<compile_context>
chip_gen: v6e
topology: v6e:2x2x1
jax: 0.10.0
libtpu: 0.0.40
codegen_flags: <defaults>
</compile_context>

<pallas_src>
import functools
import numpy as np
import jax
import jax.numpy as jnp
from jax.experimental import pallas as pl
from jax.experimental.pallas import tpu as pltpu

LN_EPS = 1e-5
_SQRT_2_OVER_PI = 0.7978845608028654


def _gelu(v):
    # tanh-approximate GELU (transcendental goes to the EUP slot on TPU)
    return 0.5 * v * (1.0 + jnp.tanh(_SQRT_2_OVER_PI * (v + 0.044715 * v * v * v)))


def _gelu_exact(v):
    # exact erf GELU (torch.nn.GELU default) — used only by the pure-JAX reference
    return 0.5 * v * (1.0 + jax.lax.erf(v * (2.0 ** -0.5)))


def _ln(v, g, b):
    mu = jnp.mean(v, axis=-1, keepdims=True)
    var = jnp.mean((v - mu) ** 2, axis=-1, keepdims=True)
    return (v - mu) * jax.lax.rsqrt(var + LN_EPS) * g + b


# ----------------------------------------------------------------------------- kernel

def _predictor_kernel(vidx, n_layers, H,
                      x_ref, vec_ref,
                      emb_w1, emb_w2, feat_w,
                      enc_wvo, enc_wf1, enc_wf2,
                      fus_w1, fus_w2,
                      out_w1, out_w2, out_w3,
                      out_ref):
    def vec(name):
        r, w = vidx[name]
        return vec_ref[r:r + 1, 0:w]          # (1, w) f32, broadcasts over batch rows

    def mm(a, wref, idx=None):
        w = wref[...] if idx is None else wref[idx]
        return jnp.dot(a.astype(jnp.bfloat16), w, preferred_element_type=jnp.float32)

    x = x_ref[...]                             # (Bblk, IN) f32

    # --- embedding: (Linear -> LayerNorm -> GELU -> Dropout) x2 ; dropout = identity ---
    # first matmul kept f32 (tiny K; robust to un-normalized raw features)
    h = jnp.dot(x, emb_w1[...], preferred_element_type=jnp.float32) + vec('emb_b1')
    h = _gelu(_ln(h, vec('emb_g1'), vec('emb_be1')))
    h = _gelu(_ln(mm(h, emb_w2) + vec('emb_b2'), vec('emb_g2'), vec('emb_be2')))
    h = h + vec('pos')                         # position embedding (seq_len == 1)

    # --- 4-branch feature extraction: ONE (H, 4H) matmul, per-branch LN/GELU on slices ---
    fm = mm(h, feat_w) + vec('feat_b')         # (Bblk, 4H)
    acc = jnp.zeros_like(h)
    for i in range(4):
        acc = acc + _gelu(_ln(fm[:, i * H:(i + 1) * H],
                              vec(f'feat_g{i}'), vec(f'feat_be{i}')))
    h = acc * 0.25

    # --- transformer encoder layers (post-norm, GELU FF). seq_len == 1 -> softmax weights
    #     are exactly 1, so self_attn(x) == x @ (Wv @ Wo) + (bv @ Wo + bo) (pre-folded). ---
    for l in range(n_layers):
        attn = mm(h, enc_wvo, l) + vec(f'enc{l}_bvo')
        h = _ln(h + attn, vec(f'enc{l}_g1'), vec(f'enc{l}_be1'))
        ff = mm(_gelu(mm(h, enc_wf1, l) + vec(f'enc{l}_bf1')), enc_wf2, l) + vec(f'enc{l}_bf2')
        h = _ln(h + ff, vec(f'enc{l}_g2'), vec(f'enc{l}_be2'))
    t = _ln(h, vec('fin_g'), vec('fin_be'))    # TransformerEncoder final norm

    # --- global-context MHA + concat folded into one K=H, N=2H fusion matmul ---
    f = _gelu(_ln(mm(t, fus_w1) + vec('fus_b1'), vec('fus_g1'), vec('fus_be1')))
    f = _gelu(_ln(mm(f, fus_w2) + vec('fus_b2'), vec('fus_g2'), vec('fus_be2')))

    # --- mean-pool over seq (length 1) is identity; output head ---
    o = _gelu(_ln(mm(f, out_w1) + vec('out_b1'), vec('out_g1'), vec('out_be1')))
    o = _gelu(_ln(mm(o, out_w2) + vec('out_b2'), vec('out_g2'), vec('out_be2')))
    logit = mm(o, out_w3) + vec('out_b3')      # (Bblk, 1)
    out_ref[...] = 1.0 / (1.0 + jnp.exp(-logit))


# ------------------------------------------------------------------- param preparation

def _pack_vectors(vec_list, width):
    rows, index = [], {}
    for name, v in vec_list:
        v = np.asarray(v, np.float32).reshape(-1)
        row = np.zeros((width,), np.float32)
        row[:v.shape[0]] = v
        index[name] = (len(rows), int(v.shape[0]))
        rows.append(row)
    return jnp.asarray(np.stack(rows, axis=0)), index


def _prepare_inputs(P, n_layers):
    H = int(P['emb_w2'].shape[0])
    Pn = {k: np.asarray(v, np.float32) for k, v in P.items()}

    # fold V-proj @ out-proj per encoder layer (exact for seq_len == 1); f32 product.
    enc_wv = Pn['enc_wqkv'][:, :, 2 * H:3 * H]                            # (L, H, H)
    enc_bv = Pn['enc_bqkv'][:, 2 * H:3 * H]                               # (L, H)
    enc_wvo = np.einsum('lij,ljk->lik', enc_wv, Pn['enc_wo'])             # (L, H, H)
    enc_bvo = np.einsum('lj,ljk->lk', enc_bv, Pn['enc_wo']) + Pn['enc_bo']

    # fold global-context MHA completely into fusion stage 1.
    gc_wvo = Pn['gc_wqkv'][:, 2 * H:3 * H] @ Pn['gc_wo']                  # (H, H)
    gc_bvo = Pn['gc_bqkv'][2 * H:3 * H] @ Pn['gc_wo'] + Pn['gc_bo']       # (H,)
    fus_w_eff = Pn['fus_w1'][:H] + gc_wvo @ Pn['fus_w1'][H:]              # (H, 2H)
    fus_b_eff = gc_bvo @ Pn['fus_w1'][H:] + Pn['fus_b1']                  # (2H,)

    # merge the 4 feature-extraction branches into one (H, 4H) matmul.
    feat_w_merged = np.concatenate([Pn['feat_w'][i] for i in range(4)], axis=1)
    feat_b_merged = np.concatenate([Pn['feat_b'][i] for i in range(4)], axis=0)

    vec_list = [('emb_b1', Pn['emb_b1']), ('emb_g1', Pn['emb_g1']), ('emb_be1', Pn['emb_be1']),
                ('emb_b2', Pn['emb_b2']), ('emb_g2', Pn['emb_g2']), ('emb_be2', Pn['emb_be2']),
                ('pos', Pn['pos']), ('feat_b', feat_b_merged)]
    for i in range(4):
        vec_list += [(f'feat_g{i}', Pn['feat_g'][i]), (f'feat_be{i}', Pn['feat_be'][i])]
    for l in range(n_layers):
        vec_list += [(f'enc{l}_bvo', enc_bvo[l]),
                     (f'enc{l}_g1', Pn['enc_g1'][l]), (f'enc{l}_be1', Pn['enc_be1'][l]),
                     (f'enc{l}_bf1', Pn['enc_bf1'][l]), (f'enc{l}_bf2', Pn['enc_bf2'][l]),
                     (f'enc{l}_g2', Pn['enc_g2'][l]), (f'enc{l}_be2', Pn['enc_be2'][l])]
    vec_list += [('fin_g', Pn['fin_g']), ('fin_be', Pn['fin_be']),
                 ('fus_b1', fus_b_eff), ('fus_g1', Pn['fus_g1']), ('fus_be1', Pn['fus_be1']),
                 ('fus_b2', Pn['fus_b2']), ('fus_g2', Pn['fus_g2']), ('fus_be2', Pn['fus_be2']),
                 ('out_b1', Pn['out_b1']), ('out_g1', Pn['out_g1']), ('out_be1', Pn['out_be1']),
                 ('out_b2', Pn['out_b2']), ('out_g2', Pn['out_g2']), ('out_be2', Pn['out_be2']),
                 ('out_b3', Pn['out_b3'])]
    vecs, vidx = _pack_vectors(vec_list, 6 * H)

    bf = lambda a: jnp.asarray(a, jnp.bfloat16)
    mats = [jnp.asarray(Pn['emb_w1'], jnp.float32),    # first matmul stays f32
            bf(Pn['emb_w2']), bf(feat_w_merged),
            bf(enc_wvo), bf(Pn['enc_wf1']), bf(Pn['enc_wf2']),
            bf(fus_w_eff), bf(Pn['fus_w2']),
            bf(Pn['out_w1']), bf(Pn['out_w2']), bf(Pn['out_w3'])]
    return vecs, vidx, mats, H


def _pick_block_b(B):
    """Batch tile that fills the MXU rows.  Whole batch if it fits a 256-row tile,
    otherwise >= 2 blocks (keeps both v7x TensorCores busy), capped at 512 rows."""
    b8 = ((B + 7) // 8) * 8
    if b8 <= 256:
        return b8
    if b8 <= 1024:
        return (((b8 + 1) // 2) + 7) // 8 * 8
    return 512


# ---------------------------------------------------------------------------- wrapper

def transformer_predictor_forward(x, P, *, n_layers, block_b=None):
    B, IN = x.shape
    vecs, vidx, mats, H = _prepare_inputs(P, n_layers)

    if block_b is None:
        block_b = _pick_block_b(B)
    block_b = max(8, ((block_b + 7) // 8) * 8)
    Bp = ((B + block_b - 1) // block_b) * block_b
    xp = jnp.pad(x, ((0, Bp - B), (0, 0))) if Bp != B else x
    n_blocks = Bp // block_b

    in_specs = [pl.BlockSpec((block_b, IN), lambda b: (b, 0)),
                pl.BlockSpec(vecs.shape, lambda b: (0, 0))]
    for m in mats:
        in_specs.append(pl.BlockSpec(m.shape, lambda b, nd=m.ndim: (0,) * nd))
    out_specs = pl.BlockSpec((block_b, 1), lambda b: (b, 0))

    # weights / vec table have constant index maps -> fetched once, not per block.
    weight_elems = sum(int(np.prod(m.shape)) for m in mats)
    weight_bytes = sum(int(m.nbytes) for m in mats)
    cost = pl.CostEstimate(
        flops=int(2 * Bp * weight_elems),
        transcendentals=int(Bp * H * (10 + 6 * n_layers)),
        bytes_accessed=int(xp.nbytes) + 4 * Bp + weight_bytes + int(vecs.nbytes))

    kernel = functools.partial(_predictor_kernel, vidx, n_layers, H)
    out = pl.pallas_call(
        kernel,
        out_shape=jax.ShapeDtypeStruct((Bp, 1), jnp.float32),
        grid_spec=pltpu.PrefetchScalarGridSpec(
            num_scalar_prefetch=0,
            grid=(n_blocks,),
            in_specs=in_specs,
            out_specs=out_specs),
        compiler_params=pltpu.CompilerParams(
            dimension_semantics=("parallel",),
            vmem_limit_bytes=48 * 1024 * 1024),
        cost_estimate=cost,
    )(xp, vecs, *mats)
    return out[:B, 0]


# ------------------------------------------------------------------------------- init

def init_params(key, input_size, hidden, n_layers):
    H = hidden
    ks = iter(jax.random.split(key, 128))
    f32 = jnp.float32

    def w(shape, fan_in):
        return jax.random.normal(next(ks), shape, f32) / np.sqrt(fan_in)

    def b(shape):
        return 0.02 * jax.random.normal(next(ks), shape, f32)

    P = {}
    P['emb_w1'], P['emb_b1'] = w((input_size, H), input_size), b((H,))
    P['emb_g1'], P['emb_be1'] = jnp.ones((H,), f32), jnp.zeros((H,), f32)
    P['emb_w2'], P['emb_b2'] = w((H, H), H), b((H,))
    P['emb_g2'], P['emb_be2'] = jnp.ones((H,), f32), jnp.zeros((H,), f32)
    P['pos'] = jax.random.normal(next(ks), (H,), f32)
    P['feat_w'], P['feat_b'] = w((4, H, H), H), b((4, H))
    P['feat_g'], P['feat_be'] = jnp.ones((4, H), f32), jnp.zeros((4, H), f32)
    P['enc_wqkv'], P['enc_bqkv'] = w((n_layers, H, 3 * H), H), b((n_layers, 3 * H))
    P['enc_wo'], P['enc_bo'] = w((n_layers, H, H), H), b((n_layers, H))
    P['enc_g1'], P['enc_be1'] = jnp.ones((n_layers, H), f32), jnp.zeros((n_layers, H), f32)
    P['enc_wf1'], P['enc_bf1'] = w((n_layers, H, 6 * H), H), b((n_layers, 6 * H))
    P['enc_wf2'], P['enc_bf2'] = w((n_layers, 6 * H, H), 6 * H), b((n_layers, H))
    P['enc_g2'], P['enc_be2'] = jnp.ones((n_layers, H), f32), jnp.zeros((n_layers, H), f32)
    P['fin_g'], P['fin_be'] = jnp.ones((H,), f32), jnp.zeros((H,), f32)
    P['gc_wqkv'], P['gc_bqkv'] = w((H, 3 * H), H), b((3 * H,))
    P['gc_wo'], P['gc_bo'] = w((H, H), H), b((H,))
    P['fus_w1'], P['fus_b1'] = w((2 * H, 2 * H), 2 * H), b((2 * H,))
    P['fus_g1'], P['fus_be1'] = jnp.ones((2 * H,), f32), jnp.zeros((2 * H,), f32)
    P['fus_w2'], P['fus_b2'] = w((2 * H, H), 2 * H), b((H,))
    P['fus_g2'], P['fus_be2'] = jnp.ones((H,), f32), jnp.zeros((H,), f32)
    P['out_w1'], P['out_b1'] = w((H, H), H), b((H,))
    P['out_g1'], P['out_be1'] = jnp.ones((H,), f32), jnp.zeros((H,), f32)
    P['out_w2'], P['out_b2'] = w((H, H // 2), H), b((H // 2,))
    P['out_g2'], P['out_be2'] = jnp.ones((H // 2,), f32), jnp.zeros((H // 2,), f32)
    P['out_w3'], P['out_b3'] = w((H // 2, 1), H // 2), b((1,))
    return P


# -------------------------------------------------------------------- pure-JAX reference

def ref_forward(x, P, *, n_head_enc, n_head_gc, n_layers):
    """Mirrors the PyTorch module in eval mode (exact erf GELU, full multi-head softmax
    attention computed explicitly; seq_len == 1 after unsqueeze(1))."""
    h = x[:, None, :]                                               # (B, 1, IN)
    h = _gelu_exact(_ln(h @ P['emb_w1'] + P['emb_b1'], P['emb_g1'], P['emb_be1']))
    h = _gelu_exact(_ln(h @ P['emb_w2'] + P['emb_b2'], P['emb_g2'], P['emb_be2']))
    h = h + P['pos'][None, None, :]
    feats = [_gelu_exact(_ln(h @ P['feat_w'][i] + P['feat_b'][i],
                             P['feat_g'][i], P['feat_be'][i])) for i in range(4)]
    h = jnp.mean(jnp.stack(feats), axis=0)

    def mha(y, wqkv, bqkv, wo, bo, nh):
        Bb, L, D = y.shape
        dh = D // nh
        qkv = y @ wqkv + bqkv
        q, k, v = jnp.split(qkv, 3, axis=-1)
        sp = lambda z: z.reshape(Bb, L, nh, dh).transpose(0, 2, 1, 3)
        q, k, v = sp(q), sp(k), sp(v)
        sc = jnp.einsum('bhld,bhmd->bhlm', q, k) / np.sqrt(dh)
        p = jax.nn.softmax(sc, axis=-1)
        o = jnp.einsum('bhlm,bhmd->bhld', p, v).transpose(0, 2, 1, 3).reshape(Bb, L, D)
        return o @ wo + bo

    for l in range(n_layers):
        attn = mha(h, P['enc_wqkv'][l], P['enc_bqkv'][l], P['enc_wo'][l], P['enc_bo'][l], n_head_enc)
        h = _ln(h + attn, P['enc_g1'][l], P['enc_be1'][l])
        ff = _gelu_exact(h @ P['enc_wf1'][l] + P['enc_bf1'][l]) @ P['enc_wf2'][l] + P['enc_bf2'][l]
        h = _ln(h + ff, P['enc_g2'][l], P['enc_be2'][l])
    t = _ln(h, P['fin_g'], P['fin_be'])
    ctx = mha(t, P['gc_wqkv'], P['gc_bqkv'], P['gc_wo'], P['gc_bo'], n_head_gc)
    comb = jnp.concatenate([t, ctx], axis=-1)
    f = _gelu_exact(_ln(comb @ P['fus_w1'] + P['fus_b1'], P['fus_g1'], P['fus_be1']))
    f = _gelu_exact(_ln(f @ P['fus_w2'] + P['fus_b2'], P['fus_g2'], P['fus_be2']))
    pooled = jnp.mean(f, axis=1)
    o = _gelu_exact(_ln(pooled @ P['out_w1'] + P['out_b1'], P['out_g1'], P['out_be1']))
    o = _gelu_exact(_ln(o @ P['out_w2'] + P['out_b2'], P['out_g2'], P['out_be2']))
    return jax.nn.sigmoid(o @ P['out_w3'] + P['out_b3'])[:, 0]


if __name__ == "__main__":
    key = jax.random.PRNGKey(0)
    B, INPUT_SIZE, HIDDEN, N_LAYERS = 64, 16, 128, 2   # small but lane-dense (H = 128)
    kx, kp = jax.random.split(key)
    x = jax.random.normal(kx, (B, INPUT_SIZE), jnp.float32)
    P = init_params(kp, INPUT_SIZE, HIDDEN, N_LAYERS)

    out = transformer_predictor_forward(x, P, n_layers=N_LAYERS)
    out = jax.block_until_ready(out)

    ref = ref_forward(x, P, n_head_enc=4, n_head_gc=8, n_layers=N_LAYERS)
    np.testing.assert_allclose(np.asarray(out), np.asarray(ref), rtol=3e-2, atol=3e-2)
    print("KERNEL_OK")
</pallas_src>

<mosaic_0001>
module attributes {stable_mosaic.version = 11 : i64} {
  func.func @_predictor_kernel(%arg0: i32, %arg1: memref<64x16xf32, #tpu.memory_space<vmem>>, %arg2: memref<45x768xf32, #tpu.memory_space<vmem>>, %arg3: memref<16x128xf32, #tpu.memory_space<vmem>>, %arg4: memref<128x128xbf16, #tpu.memory_space<vmem>>, %arg5: memref<128x512xbf16, #tpu.memory_space<vmem>>, %arg6: memref<2x128x128xbf16, #tpu.memory_space<vmem>>, %arg7: memref<2x128x768xbf16, #tpu.memory_space<vmem>>, %arg8: memref<2x768x128xbf16, #tpu.memory_space<vmem>>, %arg9: memref<128x256xbf16, #tpu.memory_space<vmem>>, %arg10: memref<256x128xbf16, #tpu.memory_space<vmem>>, %arg11: memref<128x128xbf16, #tpu.memory_space<vmem>>, %arg12: memref<128x64xbf16, #tpu.memory_space<vmem>>, %arg13: memref<64x1xbf16, #tpu.memory_space<vmem>>, %arg14: memref<64x1xf32, #tpu.memory_space<vmem>>) attributes {dimension_semantics = [#tpu.dimension_semantics<parallel>], iteration_bounds = array<i64: 1>, scalar_prefetch = 0 : i64, scratch_operands = 0 : i64, tpu.core_type = #tpu.core_type<tc>, window_params = [{transform_indices = @transform_0, window_bounds = array<i64: 64, 16>}, {pipeline_mode = #tpu.pipeline_mode<synchronous>, transform_indices = @transform_1, window_bounds = array<i64: 45, 768>}, {pipeline_mode = #tpu.pipeline_mode<synchronous>, transform_indices = @transform_2, window_bounds = array<i64: 16, 128>}, {pipeline_mode = #tpu.pipeline_mode<synchronous>, transform_indices = @transform_3, window_bounds = array<i64: 128, 128>}, {pipeline_mode = #tpu.pipeline_mode<synchronous>, transform_indices = @transform_4, window_bounds = array<i64: 128, 512>}, {pipeline_mode = #tpu.pipeline_mode<synchronous>, transform_indices = @transform_5, window_bounds = array<i64: 2, 128, 128>}, {pipeline_mode = #tpu.pipeline_mode<synchronous>, transform_indices = @transform_6, window_bounds = array<i64: 2, 128, 768>}, {pipeline_mode = #tpu.pipeline_mode<synchronous>, transform_indices = @transform_7, window_bounds = array<i64: 2, 768, 128>}, {pipeline_mode = #tpu.pipeline_mode<synchronous>, transform_indices = @transform_8, window_bounds = array<i64: 128, 256>}, {pipeline_mode = #tpu.pipeline_mode<synchronous>, transform_indices = @transform_9, window_bounds = array<i64: 256, 128>}, {pipeline_mode = #tpu.pipeline_mode<synchronous>, transform_indices = @transform_10, window_bounds = array<i64: 128, 128>}, {pipeline_mode = #tpu.pipeline_mode<synchronous>, transform_indices = @transform_11, window_bounds = array<i64: 128, 64>}, {pipeline_mode = #tpu.pipeline_mode<synchronous>, transform_indices = @transform_12, window_bounds = array<i64: 64, 1>}, {transform_indices = @transform_13, window_bounds = array<i64: 64, 1>}]} {
    %c0 = arith.constant 0 : index
    %c0_0 = arith.constant 0 : index
    %0 = vector.load %arg1[%c0, %c0_0] : memref<64x16xf32, #tpu.memory_space<vmem>>, vector<64x16xf32>
    %c0_1 = arith.constant 0 : index
    %c0_2 = arith.constant 0 : index
    %1 = vector.load %arg3[%c0_1, %c0_2] : memref<16x128xf32, #tpu.memory_space<vmem>>, vector<16x128xf32>
    %cst = arith.constant dense<0.000000e+00> : vector<64x128xf32>
    %2 = tpu.matmul %0, %1, %cst {dimension_numbers = #tpu.dot_dimension_numbers<[1], [0], [0], [1], [0, 0, 1, 1], [], []>} : vector<64x16xf32>, vector<16x128xf32>, vector<64x128xf32> -> vector<64x128xf32>
    %c0_3 = arith.constant 0 : index
    %c0_4 = arith.constant 0 : index
    %3 = vector.load %arg2[%c0_3, %c0_4] : memref<45x768xf32, #tpu.memory_space<vmem>>, vector<1x128xf32>
    %4 = vector.broadcast %3 : vector<1x128xf32> to vector<64x128xf32>
    %5 = arith.addf %2, %4 : vector<64x128xf32>
    %c1 = arith.constant 1 : index
    %c0_5 = arith.constant 0 : index
    %6 = vector.load %arg2[%c1, %c0_5] : memref<45x768xf32, #tpu.memory_space<vmem>>, vector<1x128xf32>
    %c2 = arith.constant 2 : index
    %c0_6 = arith.constant 0 : index
    %7 = vector.load %arg2[%c2, %c0_6] : memref<45x768xf32, #tpu.memory_space<vmem>>, vector<1x128xf32>
    %cst_7 = arith.constant dense<0.000000e+00> : vector<64xf32>
    %8 = vector.multi_reduction <add>, %5, %cst_7 [1] : vector<64x128xf32> to vector<64xf32>
    %9 = vector.shape_cast %8 : vector<64xf32> to vector<64x1xf32>
    %cst_8 = arith.constant 1.280000e+02 : f32
    %10 = vector.broadcast %cst_8 : f32 to vector<64x1xf32>
    %11 = arith.divf %9, %10 : vector<64x1xf32>
    %12 = vector.broadcast %11 : vector<64x1xf32> to vector<64x128xf32>
    %13 = arith.subf %5, %12 : vector<64x128xf32>
    %14 = arith.mulf %13, %13 : vector<64x128xf32>
    %cst_9 = arith.constant dense<0.000000e+00> : vector<64xf32>
    %15 = vector.multi_reduction <add>, %14, %cst_9 [1] : vector<64x128xf32> to vector<64xf32>
    %16 = vector.shape_cast %15 : vector<64xf32> to vector<64x1xf32>
    %cst_10 = arith.constant 1.280000e+02 : f32
    %17 = vector.broadcast %cst_10 : f32 to vector<64x1xf32>
    %18 = arith.divf %16, %17 : vector<64x1xf32>
    %19 = vector.broadcast %11 : vector<64x1xf32> to vector<64x128xf32>
    %20 = arith.subf %5, %19 : vector<64x128xf32>
    %cst_11 = arith.constant 9.99999974E-6 : f32
    %21 = vector.broadcast %cst_11 : f32 to vector<64x1xf32>
    %22 = arith.addf %18, %21 : vector<64x1xf32>
    %23 = math.rsqrt %22 : vector<64x1xf32>
    %24 = vector.broadcast %23 : vector<64x1xf32> to vector<64x128xf32>
    %25 = arith.mulf %20, %24 : vector<64x128xf32>
    %26 = vector.broadcast %6 : vector<1x128xf32> to vector<64x128xf32>
    %27 = arith.mulf %25, %26 : vector<64x128xf32>
    %28 = vector.broadcast %7 : vector<1x128xf32> to vector<64x128xf32>
    %29 = arith.addf %27, %28 : vector<64x128xf32>
    %cst_12 = arith.constant 5.000000e-01 : f32
    %30 = vector.broadcast %cst_12 : f32 to vector<64x128xf32>
    %31 = arith.mulf %30, %29 : vector<64x128xf32>
    %cst_13 = arith.constant 4.471500e-02 : f32
    %32 = vector.broadcast %cst_13 : f32 to vector<64x128xf32>
    %33 = arith.mulf %32, %29 : vector<64x128xf32>
    %34 = arith.mulf %33, %29 : vector<64x128xf32>
    %35 = arith.mulf %34, %29 : vector<64x128xf32>
    %36 = arith.addf %29, %35 : vector<64x128xf32>
    %cst_14 = arith.constant 0.797884583 : f32
    %37 = vector.broadcast %cst_14 : f32 to vector<64x128xf32>
    %38 = arith.mulf %37, %36 : vector<64x128xf32>
    %39 = math.tanh %38 : vector<64x128xf32>
    %cst_15 = arith.constant 1.000000e+00 : f32
    %40 = vector.broadcast %cst_15 : f32 to vector<64x128xf32>
    %41 = arith.addf %40, %39 : vector<64x128xf32>
    %42 = arith.mulf %31, %41 : vector<64x128xf32>
    %c0_16 = arith.constant 0 : index
    %c0_17 = arith.constant 0 : index
    %43 = vector.load %arg4[%c0_16, %c0_17] : memref<128x128xbf16, #tpu.memory_space<vmem>>, vector<128x128xbf16>
    %44 = arith.truncf %42 : vector<64x128xf32> to vector<64x128xbf16>
    %cst_18 = arith.constant dense<0.000000e+00> : vector<64x128xf32>
    %45 = tpu.matmul %44, %43, %cst_18 {dimension_numbers = #tpu.dot_dimension_numbers<[1], [0], [0], [1], [0, 0, 1, 1], [], []>} : vector<64x128xbf16>, vector<128x128xbf16>, vector<64x128xf32> -> vector<64x128xf32>
    %c3 = arith.constant 3 : index
    %c0_19 = arith.constant 0 : index
    %46 = vector.load %arg2[%c3, %c0_19] : memref<45x768xf32, #tpu.memory_space<vmem>>, vector<1x128xf32>
    %47 = vector.broadcast %46 : vector<1x128xf32> to vector<64x128xf32>
    %48 = arith.addf %45, %47 : vector<64x128xf32>
    %c4 = arith.constant 4 : index
    %c0_20 = arith.constant 0 : index
    %49 = vector.load %arg2[%c4, %c0_20] : memref<45x768xf32, #tpu.memory_space<vmem>>, vector<1x128xf32>
    %c5 = arith.constant 5 : index
    %c0_21 = arith.constant 0 : index
    %50 = vector.load %arg2[%c5, %c0_21] : memref<45x768xf32, #tpu.memory_space<vmem>>, vector<1x128xf32>
    %cst_22 = arith.constant dense<0.000000e+00> : vector<64xf32>
    %51 = vector.multi_reduction <add>, %48, %cst_22 [1] : vector<64x128xf32> to vector<64xf32>
    %52 = vector.shape_cast %51 : vector<64xf32> to vector<64x1xf32>
    %cst_23 = arith.constant 1.280000e+02 : f32
    %53 = vector.broadcast %cst_23 : f32 to vector<64x1xf32>
    %54 = arith.divf %52, %53 : vector<64x1xf32>
    %55 = vector.broadcast %54 : vector<64x1xf32> to vector<64x128xf32>
    %56 = arith.subf %48, %55 : vector<64x128xf32>
    %57 = arith.mulf %56, %56 : vector<64x128xf32>
    %cst_24 = arith.constant dense<0.000000e+00> : vector<64xf32>
    %58 = vector.multi_reduction <add>, %57, %cst_24 [1] : vector<64x128xf32> to vector<64xf32>
    %59 = vector.shape_cast %58 : vector<64xf32> to vector<64x1xf32>
    %cst_25 = arith.constant 1.280000e+02 : f32
    %60 = vector.broadcast %cst_25 : f32 to vector<64x1xf32>
    %61 = arith.divf %59, %60 : vector<64x1xf32>
    %62 = vector.broadcast %54 : vector<64x1xf32> to vector<64x128xf32>
    %63 = arith.subf %48, %62 : vector<64x128xf32>
    %cst_26 = arith.constant 9.99999974E-6 : f32
    %64 = vector.broadcast %cst_26 : f32 to vector<64x1xf32>
    %65 = arith.addf %61, %64 : vector<64x1xf32>
    %66 = math.rsqrt %65 : vector<64x1xf32>
    %67 = vector.broadcast %66 : vector<64x1xf32> to vector<64x128xf32>
    %68 = arith.mulf %63, %67 : vector<64x128xf32>
    %69 = vector.broadcast %49 : vector<1x128xf32> to vector<64x128xf32>
    %70 = arith.mulf %68, %69 : vector<64x128xf32>
    %71 = vector.broadcast %50 : vector<1x128xf32> to vector<64x128xf32>
    %72 = arith.addf %70, %71 : vector<64x128xf32>
    %cst_27 = arith.constant 5.000000e-01 : f32
    %73 = vector.broadcast %cst_27 : f32 to vector<64x128xf32>
    %74 = arith.mulf %73, %72 : vector<64x128xf32>
    %cst_28 = arith.constant 4.471500e-02 : f32
    %75 = vector.broadcast %cst_28 : f32 to vector<64x128xf32>
    %76 = arith.mulf %75, %72 : vector<64x128xf32>
    %77 = arith.mulf %76, %72 : vector<64x128xf32>
    %78 = arith.mulf %77, %72 : vector<64x128xf32>
    %79 = arith.addf %72, %78 : vector<64x128xf32>
    %cst_29 = arith.constant 0.797884583 : f32
    %80 = vector.broadcast %cst_29 : f32 to vector<64x128xf32>
    %81 = arith.mulf %80, %79 : vector<64x128xf32>
    %82 = math.tanh %81 : vector<64x128xf32>
    %cst_30 = arith.constant 1.000000e+00 : f32
    %83 = vector.broadcast %cst_30 : f32 to vector<64x128xf32>
    %84 = arith.addf %83, %82 : vector<64x128xf32>
    %85 = arith.mulf %74, %84 : vector<64x128xf32>
    %c6 = arith.constant 6 : index
    %c0_31 = arith.constant 0 : index
    %86 = vector.load %arg2[%c6, %c0_31] : memref<45x768xf32, #tpu.memory_space<vmem>>, vector<1x128xf32>
    %87 = vector.broadcast %86 : vector<1x128xf32> to vector<64x128xf32>
    %88 = arith.addf %85, %87 : vector<64x128xf32>
    %c0_32 = arith.constant 0 : index
    %c0_33 = arith.constant 0 : index
    %89 = vector.load %arg5[%c0_32, %c0_33] : memref<128x512xbf16, #tpu.memory_space<vmem>>, vector<128x512xbf16>
    %90 = arith.truncf %88 : vector<64x128xf32> to vector<64x128xbf16>
    %cst_34 = arith.constant dense<0.000000e+00> : vector<64x512xf32>
    %91 = tpu.matmul %90, %89, %cst_34 {dimension_numbers = #tpu.dot_dimension_numbers<[1], [0], [0], [1], [0, 0, 1, 1], [], []>} : vector<64x128xbf16>, vector<128x512xbf16>, vector<64x512xf32> -> vector<64x512xf32>
    %c7 = arith.constant 7 : index
    %c0_35 = arith.constant 0 : index
    %92 = vector.load %arg2[%c7, %c0_35] : memref<45x768xf32, #tpu.memory_space<vmem>>, vector<1x512xf32>
    %93 = vector.broadcast %92 : vector<1x512xf32> to vector<64x512xf32>
    %94 = arith.addf %91, %93 : vector<64x512xf32>
    %cst_36 = arith.constant 0.000000e+00 : f32
    %95 = vector.broadcast %cst_36 : f32 to vector<64x128xf32>
    %96 = vector.extract_strided_slice %94 {offsets = [0, 0], sizes = [64, 128], strides = [1, 1]} : vector<64x512xf32> to vector<64x128xf32>
    %c8 = arith.constant 8 : index
    %c0_37 = arith.constant 0 : index
    %97 = vector.load %arg2[%c8, %c0_37] : memref<45x768xf32, #tpu.memory_space<vmem>>, vector<1x128xf32>
    %c9 = arith.constant 9 : index
    %c0_38 = arith.constant 0 : index
    %98 = vector.load %arg2[%c9, %c0_38] : memref<45x768xf32, #tpu.memory_space<vmem>>, vector<1x128xf32>
    %cst_39 = arith.constant dense<0.000000e+00> : vector<64xf32>
    %99 = vector.multi_reduction <add>, %96, %cst_39 [1] : vector<64x128xf32> to vector<64xf32>
    %100 = vector.shape_cast %99 : vector<64xf32> to vector<64x1xf32>
    %cst_40 = arith.constant 1.280000e+02 : f32
    %101 = vector.broadcast %cst_40 : f32 to vector<64x1xf32>
    %102 = arith.divf %100, %101 : vector<64x1xf32>
    %103 = vector.broadcast %102 : vector<64x1xf32> to vector<64x128xf32>
    %104 = arith.subf %96, %103 : vector<64x128xf32>
    %105 = arith.mulf %104, %104 : vector<64x128xf32>
    %cst_41 = arith.constant dense<0.000000e+00> : vector<64xf32>
    %106 = vector.multi_reduction <add>, %105, %cst_41 [1] : vector<64x128xf32> to vector<64xf32>
    %107 = vector.shape_cast %106 : vector<64xf32> to vector<64x1xf32>
    %cst_42 = arith.constant 1.280000e+02 : f32
    %108 = vector.broadcast %cst_42 : f32 to vector<64x1xf32>
    %109 = arith.divf %107, %108 : vector<64x1xf32>
    %110 = vector.broadcast %102 : vector<64x1xf32> to vector<64x128xf32>
    %111 = arith.subf %96, %110 : vector<64x128xf32>
    %cst_43 = arith.constant 9.99999974E-6 : f32
    %112 = vector.broadcast %cst_43 : f32 to vector<64x1xf32>
    %113 = arith.addf %109, %112 : vector<64x1xf32>
    %114 = math.rsqrt %113 : vector<64x1xf32>
    %115 = vector.broadcast %114 : vector<64x1xf32> to vector<64x128xf32>
    %116 = arith.mulf %111, %115 : vector<64x128xf32>
    %117 = vector.broadcast %97 : vector<1x128xf32> to vector<64x128xf32>
    %118 = arith.mulf %116, %117 : vector<64x128xf32>
    %119 = vector.broadcast %98 : vector<1x128xf32> to vector<64x128xf32>
    %120 = arith.addf %118, %119 : vector<64x128xf32>
    %cst_44 = arith.constant 5.000000e-01 : f32
    %121 = vector.broadcast %cst_44 : f32 to vector<64x128xf32>
    %122 = arith.mulf %121, %120 : vector<64x128xf32>
    %cst_45 = arith.constant 4.471500e-02 : f32
    %123 = vector.broadcast %cst_45 : f32 to vector<64x128xf32>
    %124 = arith.mulf %123, %120 : vector<64x128xf32>
    %125 = arith.mulf %124, %120 : vector<64x128xf32>
    %126 = arith.mulf %125, %120 : vector<64x128xf32>
    %127 = arith.addf %120, %126 : vector<64x128xf32>
    %cst_46 = arith.constant 0.797884583 : f32
    %128 = vector.broadcast %cst_46 : f32 to vector<64x128xf32>
    %129 = arith.mulf %128, %127 : vector<64x128xf32>
    %130 = math.tanh %129 : vector<64x128xf32>
    %cst_47 = arith.constant 1.000000e+00 : f32
    %131 = vector.broadcast %cst_47 : f32 to vector<64x128xf32>
    %132 = arith.addf %131, %130 : vector<64x128xf32>
    %133 = arith.mulf %122, %132 : vector<64x128xf32>
    %134 = arith.addf %95, %133 : vector<64x128xf32>
    %135 = vector.extract_strided_slice %94 {offsets = [0, 128], sizes = [64, 128], strides = [1, 1]} : vector<64x512xf32> to vector<64x128xf32>
    %c10 = arith.constant 10 : index
    %c0_48 = arith.constant 0 : index
    %136 = vector.load %arg2[%c10, %c0_48] : memref<45x768xf32, #tpu.memory_space<vmem>>, vector<1x128xf32>
    %c11 = arith.constant 11 : index
    %c0_49 = arith.constant 0 : index
    %137 = vector.load %arg2[%c11, %c0_49] : memref<45x768xf32, #tpu.memory_space<vmem>>, vector<1x128xf32>
    %cst_50 = arith.constant dense<0.000000e+00> : vector<64xf32>
    %138 = vector.multi_reduction <add>, %135, %cst_50 [1] : vector<64x128xf32> to vector<64xf32>
    %139 = vector.shape_cast %138 : vector<64xf32> to vector<64x1xf32>
    %cst_51 = arith.constant 1.280000e+02 : f32
    %140 = vector.broadcast %cst_51 : f32 to vector<64x1xf32>
    %141 = arith.divf %139, %140 : vector<64x1xf32>
    %142 = vector.broadcast %141 : vector<64x1xf32> to vector<64x128xf32>
    %143 = arith.subf %135, %142 : vector<64x128xf32>
    %144 = arith.mulf %143, %143 : vector<64x128xf32>
    %cst_52 = arith.constant dense<0.000000e+00> : vector<64xf32>
    %145 = vector.multi_reduction <add>, %144, %cst_52 [1] : vector<64x128xf32> to vector<64xf32>
    %146 = vector.shape_cast %145 : vector<64xf32> to vector<64x1xf32>
    %cst_53 = arith.constant 1.280000e+02 : f32
    %147 = vector.broadcast %cst_53 : f32 to vector<64x1xf32>
    %148 = arith.divf %146, %147 : vector<64x1xf32>
    %149 = vector.broadcast %141 : vector<64x1xf32> to vector<64x128xf32>
    %150 = arith.subf %135, %149 : vector<64x128xf32>
    %cst_54 = arith.constant 9.99999974E-6 : f32
    %151 = vector.broadcast %cst_54 : f32 to vector<64x1xf32>
    %152 = arith.addf %148, %151 : vector<64x1xf32>
    %153 = math.rsqrt %152 : vector<64x1xf32>
    %154 = vector.broadcast %153 : vector<64x1xf32> to vector<64x128xf32>
    %155 = arith.mulf %150, %154 : vector<64x128xf32>
    %156 = vector.broadcast %136 : vector<1x128xf32> to vector<64x128xf32>
    %157 = arith.mulf %155, %156 : vector<64x128xf32>
    %158 = vector.broadcast %137 : vector<1x128xf32> to vector<64x128xf32>
    %159 = arith.addf %157, %158 : vector<64x128xf32>
    %cst_55 = arith.constant 5.000000e-01 : f32
    %160 = vector.broadcast %cst_55 : f32 to vector<64x128xf32>
    %161 = arith.mulf %160, %159 : vector<64x128xf32>
    %cst_56 = arith.constant 4.471500e-02 : f32
    %162 = vector.broadcast %cst_56 : f32 to vector<64x128xf32>
    %163 = arith.mulf %162, %159 : vector<64x128xf32>
    %164 = arith.mulf %163, %159 : vector<64x128xf32>
    %165 = arith.mulf %164, %159 : vector<64x128xf32>
    %166 = arith.addf %159, %165 : vector<64x128xf32>
    %cst_57 = arith.constant 0.797884583 : f32
    %167 = vector.broadcast %cst_57 : f32 to vector<64x128xf32>
    %168 = arith.mulf %167, %166 : vector<64x128xf32>
    %169 = math.tanh %168 : vector<64x128xf32>
    %cst_58 = arith.constant 1.000000e+00 : f32
    %170 = vector.broadcast %cst_58 : f32 to vector<64x128xf32>
    %171 = arith.addf %170, %169 : vector<64x128xf32>
    %172 = arith.mulf %161, %171 : vector<64x128xf32>
    %173 = arith.addf %134, %172 : vector<64x128xf32>
    %174 = vector.extract_strided_slice %94 {offsets = [0, 256], sizes = [64, 128], strides = [1, 1]} : vector<64x512xf32> to vector<64x128xf32>
    %c12 = arith.constant 12 : index
    %c0_59 = arith.constant 0 : index
    %175 = vector.load %arg2[%c12, %c0_59] : memref<45x768xf32, #tpu.memory_space<vmem>>, vector<1x128xf32>
    %c13 = arith.constant 13 : index
    %c0_60 = arith.constant 0 : index
    %176 = vector.load %arg2[%c13, %c0_60] : memref<45x768xf32, #tpu.memory_space<vmem>>, vector<1x128xf32>
    %cst_61 = arith.constant dense<0.000000e+00> : vector<64xf32>
    %177 = vector.multi_reduction <add>, %174, %cst_61 [1] : vector<64x128xf32> to vector<64xf32>
    %178 = vector.shape_cast %177 : vector<64xf32> to vector<64x1xf32>
    %cst_62 = arith.constant 1.280000e+02 : f32
    %179 = vector.broadcast %cst_62 : f32 to vector<64x1xf32>
    %180 = arith.divf %178, %179 : vector<64x1xf32>
    %181 = vector.broadcast %180 : vector<64x1xf32> to vector<64x128xf32>
    %182 = arith.subf %174, %181 : vector<64x128xf32>
    %183 = arith.mulf %182, %182 : vector<64x128xf32>
    %cst_63 = arith.constant dense<0.000000e+00> : vector<64xf32>
    %184 = vector.multi_reduction <add>, %183, %cst_63 [1] : vector<64x128xf32> to vector<64xf32>
    %185 = vector.shape_cast %184 : vector<64xf32> to vector<64x1xf32>
    %cst_64 = arith.constant 1.280000e+02 : f32
    %186 = vector.broadcast %cst_64 : f32 to vector<64x1xf32>
    %187 = arith.divf %185, %186 : vector<64x1xf32>
    %188 = vector.broadcast %180 : vector<64x1xf32> to vector<64x128xf32>
    %189 = arith.subf %174, %188 : vector<64x128xf32>
    %cst_65 = arith.constant 9.99999974E-6 : f32
    %190 = vector.broadcast %cst_65 : f32 to vector<64x1xf32>
    %191 = arith.addf %187, %190 : vector<64x1xf32>
    %192 = math.rsqrt %191 : vector<64x1xf32>
    %193 = vector.broadcast %192 : vector<64x1xf32> to vector<64x128xf32>
    %194 = arith.mulf %189, %193 : vector<64x128xf32>
    %195 = vector.broadcast %175 : vector<1x128xf32> to vector<64x128xf32>
    %196 = arith.mulf %194, %195 : vector<64x128xf32>
    %197 = vector.broadcast %176 : vector<1x128xf32> to vector<64x128xf32>
    %198 = arith.addf %196, %197 : vector<64x128xf32>
    %cst_66 = arith.constant 5.000000e-01 : f32
    %199 = vector.broadcast %cst_66 : f32 to vector<64x128xf32>
    %200 = arith.mulf %199, %198 : vector<64x128xf32>
    %cst_67 = arith.constant 4.471500e-02 : f32
    %201 = vector.broadcast %cst_67 : f32 to vector<64x128xf32>
    %202 = arith.mulf %201, %198 : vector<64x128xf32>
    %203 = arith.mulf %202, %198 : vector<64x128xf32>
    %204 = arith.mulf %203, %198 : vector<64x128xf32>
    %205 = arith.addf %198, %204 : vector<64x128xf32>
    %cst_68 = arith.constant 0.797884583 : f32
    %206 = vector.broadcast %cst_68 : f32 to vector<64x128xf32>
    %207 = arith.mulf %206, %205 : vector<64x128xf32>
    %208 = math.tanh %207 : vector<64x128xf32>
    %cst_69 = arith.constant 1.000000e+00 : f32
    %209 = vector.broadcast %cst_69 : f32 to vector<64x128xf32>
    %210 = arith.addf %209, %208 : vector<64x128xf32>
    %211 = arith.mulf %200, %210 : vector<64x128xf32>
    %212 = arith.addf %173, %211 : vector<64x128xf32>
    %213 = vector.extract_strided_slice %94 {offsets = [0, 384], sizes = [64, 128], strides = [1, 1]} : vector<64x512xf32> to vector<64x128xf32>
    %c14 = arith.constant 14 : index
    %c0_70 = arith.constant 0 : index
    %214 = vector.load %arg2[%c14, %c0_70] : memref<45x768xf32, #tpu.memory_space<vmem>>, vector<1x128xf32>
    %c15 = arith.constant 15 : index
    %c0_71 = arith.constant 0 : index
    %215 = vector.load %arg2[%c15, %c0_71] : memref<45x768xf32, #tpu.memory_space<vmem>>, vector<1x128xf32>
    %cst_72 = arith.constant dense<0.000000e+00> : vector<64xf32>
    %216 = vector.multi_reduction <add>, %213, %cst_72 [1] : vector<64x128xf32> to vector<64xf32>
    %217 = vector.shape_cast %216 : vector<64xf32> to vector<64x1xf32>
    %cst_73 = arith.constant 1.280000e+02 : f32
    %218 = vector.broadcast %cst_73 : f32 to vector<64x1xf32>
    %219 = arith.divf %217, %218 : vector<64x1xf32>
    %220 = vector.broadcast %219 : vector<64x1xf32> to vector<64x128xf32>
    %221 = arith.subf %213, %220 : vector<64x128xf32>
    %222 = arith.mulf %221, %221 : vector<64x128xf32>
    %cst_74 = arith.constant dense<0.000000e+00> : vector<64xf32>
    %223 = vector.multi_reduction <add>, %222, %cst_74 [1] : vector<64x128xf32> to vector<64xf32>
    %224 = vector.shape_cast %223 : vector<64xf32> to vector<64x1xf32>
    %cst_75 = arith.constant 1.280000e+02 : f32
    %225 = vector.broadcast %cst_75 : f32 to vector<64x1xf32>
    %226 = arith.divf %224, %225 : vector<64x1xf32>
    %227 = vector.broadcast %219 : vector<64x1xf32> to vector<64x128xf32>
    %228 = arith.subf %213, %227 : vector<64x128xf32>
    %cst_76 = arith.constant 9.99999974E-6 : f32
    %229 = vector.broadcast %cst_76 : f32 to vector<64x1xf32>
    %230 = arith.addf %226, %229 : vector<64x1xf32>
    %231 = math.rsqrt %230 : vector<64x1xf32>
    %232 = vector.broadcast %231 : vector<64x1xf32> to vector<64x128xf32>
    %233 = arith.mulf %228, %232 : vector<64x128xf32>
    %234 = vector.broadcast %214 : vector<1x128xf32> to vector<64x128xf32>
    %235 = arith.mulf %233, %234 : vector<64x128xf32>
    %236 = vector.broadcast %215 : vector<1x128xf32> to vector<64x128xf32>
    %237 = arith.addf %235, %236 : vector<64x128xf32>
    %cst_77 = arith.constant 5.000000e-01 : f32
    %238 = vector.broadcast %cst_77 : f32 to vector<64x128xf32>
    %239 = arith.mulf %238, %237 : vector<64x128xf32>
    %cst_78 = arith.constant 4.471500e-02 : f32
    %240 = vector.broadcast %cst_78 : f32 to vector<64x128xf32>
    %241 = arith.mulf %240, %237 : vector<64x128xf32>
    %242 = arith.mulf %241, %237 : vector<64x128xf32>
    %243 = arith.mulf %242, %237 : vector<64x128xf32>
    %244 = arith.addf %237, %243 : vector<64x128xf32>
    %cst_79 = arith.constant 0.797884583 : f32
    %245 = vector.broadcast %cst_79 : f32 to vector<64x128xf32>
    %246 = arith.mulf %245, %244 : vector<64x128xf32>
    %247 = math.tanh %246 : vector<64x128xf32>
    %cst_80 = arith.constant 1.000000e+00 : f32
    %248 = vector.broadcast %cst_80 : f32 to vector<64x128xf32>
    %249 = arith.addf %248, %247 : vector<64x128xf32>
    %250 = arith.mulf %239, %249 : vector<64x128xf32>
    %251 = arith.addf %212, %250 : vector<64x128xf32>
    %cst_81 = arith.constant 2.500000e-01 : f32
    %252 = vector.broadcast %cst_81 : f32 to vector<64x128xf32>
    %253 = arith.mulf %251, %252 : vector<64x128xf32>
    %c0_82 = arith.constant 0 : index
    %c0_83 = arith.constant 0 : index
    %c0_84 = arith.constant 0 : index
    %254 = vector.load %arg6[%c0_82, %c0_83, %c0_84] : memref<2x128x128xbf16, #tpu.memory_space<vmem>>, vector<1x128x128xbf16>
    %255 = vector.shape_cast %254 : vector<1x128x128xbf16> to vector<128x128xbf16>
    %256 = arith.truncf %253 : vector<64x128xf32> to vector<64x128xbf16>
    %cst_85 = arith.constant dense<0.000000e+00> : vector<64x128xf32>
    %257 = tpu.matmul %256, %255, %cst_85 {dimension_numbers = #tpu.dot_dimension_numbers<[1], [0], [0], [1], [0, 0, 1, 1], [], []>} : vector<64x128xbf16>, vector<128x128xbf16>, vector<64x128xf32> -> vector<64x128xf32>
    %c16 = arith.constant 16 : index
    %c0_86 = arith.constant 0 : index
    %258 = vector.load %arg2[%c16, %c0_86] : memref<45x768xf32, #tpu.memory_space<vmem>>, vector<1x128xf32>
    %259 = vector.broadcast %258 : vector<1x128xf32> to vector<64x128xf32>
    %260 = arith.addf %257, %259 : vector<64x128xf32>
    %261 = arith.addf %253, %260 : vector<64x128xf32>
    %c17 = arith.constant 17 : index
    %c0_87 = arith.constant 0 : index
    %262 = vector.load %arg2[%c17, %c0_87] : memref<45x768xf32, #tpu.memory_space<vmem>>, vector<1x128xf32>
    %c18 = arith.constant 18 : index
    %c0_88 = arith.constant 0 : index
    %263 = vector.load %arg2[%c18, %c0_88] : memref<45x768xf32, #tpu.memory_space<vmem>>, vector<1x128xf32>
    %cst_89 = arith.constant dense<0.000000e+00> : vector<64xf32>
    %264 = vector.multi_reduction <add>, %261, %cst_89 [1] : vector<64x128xf32> to vector<64xf32>
    %265 = vector.shape_cast %264 : vector<64xf32> to vector<64x1xf32>
    %cst_90 = arith.constant 1.280000e+02 : f32
    %266 = vector.broadcast %cst_90 : f32 to vector<64x1xf32>
    %267 = arith.divf %265, %266 : vector<64x1xf32>
    %268 = vector.broadcast %267 : vector<64x1xf32> to vector<64x128xf32>
    %269 = arith.subf %261, %268 : vector<64x128xf32>
    %270 = arith.mulf %269, %269 : vector<64x128xf32>
    %cst_91 = arith.constant dense<0.000000e+00> : vector<64xf32>
    %271 = vector.multi_reduction <add>, %270, %cst_91 [1] : vector<64x128xf32> to vector<64xf32>
    %272 = vector.shape_cast %271 : vector<64xf32> to vector<64x1xf32>
    %cst_92 = arith.constant 1.280000e+02 : f32
    %273 = vector.broadcast %cst_92 : f32 to vector<64x1xf32>
    %274 = arith.divf %272, %273 : vector<64x1xf32>
    %275 = vector.broadcast %267 : vector<64x1xf32> to vector<64x128xf32>
    %276 = arith.subf %261, %275 : vector<64x128xf32>
    %cst_93 = arith.constant 9.99999974E-6 : f32
    %277 = vector.broadcast %cst_93 : f32 to vector<64x1xf32>
    %278 = arith.addf %274, %277 : vector<64x1xf32>
    %279 = math.rsqrt %278 : vector<64x1xf32>
    %280 = vector.broadcast %279 : vector<64x1xf32> to vector<64x128xf32>
    %281 = arith.mulf %276, %280 : vector<64x128xf32>
    %282 = vector.broadcast %262 : vector<1x128xf32> to vector<64x128xf32>
    %283 = arith.mulf %281, %282 : vector<64x128xf32>
    %284 = vector.broadcast %263 : vector<1x128xf32> to vector<64x128xf32>
    %285 = arith.addf %283, %284 : vector<64x128xf32>
    %c0_94 = arith.constant 0 : index
    %c0_95 = arith.constant 0 : index
    %c0_96 = arith.constant 0 : index
    %286 = vector.load %arg7[%c0_94, %c0_95, %c0_96] : memref<2x128x768xbf16, #tpu.memory_space<vmem>>, vector<1x128x768xbf16>
    %287 = vector.shape_cast %286 : vector<1x128x768xbf16> to vector<128x768xbf16>
    %288 = arith.truncf %285 : vector<64x128xf32> to vector<64x128xbf16>
    %cst_97 = arith.constant dense<0.000000e+00> : vector<64x768xf32>
    %289 = tpu.matmul %288, %287, %cst_97 {dimension_numbers = #tpu.dot_dimension_numbers<[1], [0], [0], [1], [0, 0, 1, 1], [], []>} : vector<64x128xbf16>, vector<128x768xbf16>, vector<64x768xf32> -> vector<64x768xf32>
    %c19 = arith.constant 19 : index
    %c0_98 = arith.constant 0 : index
    %290 = vector.load %arg2[%c19, %c0_98] : memref<45x768xf32, #tpu.memory_space<vmem>>, vector<1x768xf32>
    %291 = vector.broadcast %290 : vector<1x768xf32> to vector<64x768xf32>
    %292 = arith.addf %289, %291 : vector<64x768xf32>
    %cst_99 = arith.constant 5.000000e-01 : f32
    %293 = vector.broadcast %cst_99 : f32 to vector<64x768xf32>
    %294 = arith.mulf %293, %292 : vector<64x768xf32>
    %cst_100 = arith.constant 4.471500e-02 : f32
    %295 = vector.broadcast %cst_100 : f32 to vector<64x768xf32>
    %296 = arith.mulf %295, %292 : vector<64x768xf32>
    %297 = arith.mulf %296, %292 : vector<64x768xf32>
    %298 = arith.mulf %297, %292 : vector<64x768xf32>
    %299 = arith.addf %292, %298 : vector<64x768xf32>
    %cst_101 = arith.constant 0.797884583 : f32
    %300 = vector.broadcast %cst_101 : f32 to vector<64x768xf32>
    %301 = arith.mulf %300, %299 : vector<64x768xf32>
    %302 = math.tanh %301 : vector<64x768xf32>
    %cst_102 = arith.constant 1.000000e+00 : f32
    %303 = vector.broadcast %cst_102 : f32 to vector<64x768xf32>
    %304 = arith.addf %303, %302 : vector<64x768xf32>
    %305 = arith.mulf %294, %304 : vector<64x768xf32>
    %c0_103 = arith.constant 0 : index
    %c0_104 = arith.constant 0 : index
    %c0_105 = arith.constant 0 : index
    %306 = vector.load %arg8[%c0_103, %c0_104, %c0_105] : memref<2x768x128xbf16, #tpu.memory_space<vmem>>, vector<1x768x128xbf16>
    %307 = vector.shape_cast %306 : vector<1x768x128xbf16> to vector<768x128xbf16>
    %308 = arith.truncf %305 : vector<64x768xf32> to vector<64x768xbf16>
    %cst_106 = arith.constant dense<0.000000e+00> : vector<64x128xf32>
    %309 = tpu.matmul %308, %307, %cst_106 {dimension_numbers = #tpu.dot_dimension_numbers<[1], [0], [0], [1], [0, 0, 1, 1], [], []>} : vector<64x768xbf16>, vector<768x128xbf16>, vector<64x128xf32> -> vector<64x128xf32>
    %c20 = arith.constant 20 : index
    %c0_107 = arith.constant 0 : index
    %310 = vector.load %arg2[%c20, %c0_107] : memref<45x768xf32, #tpu.memory_space<vmem>>, vector<1x128xf32>
    %311 = vector.broadcast %310 : vector<1x128xf32> to vector<64x128xf32>
    %312 = arith.addf %309, %311 : vector<64x128xf32>
    %313 = arith.addf %285, %312 : vector<64x128xf32>
    %c21 = arith.constant 21 : index
    %c0_108 = arith.constant 0 : index
    %314 = vector.load %arg2[%c21, %c0_108] : memref<45x768xf32, #tpu.memory_space<vmem>>, vector<1x128xf32>
    %c22 = arith.constant 22 : index
    %c0_109 = arith.constant 0 : index
    %315 = vector.load %arg2[%c22, %c0_109] : memref<45x768xf32, #tpu.memory_space<vmem>>, vector<1x128xf32>
    %cst_110 = arith.constant dense<0.000000e+00> : vector<64xf32>
    %316 = vector.multi_reduction <add>, %313, %cst_110 [1] : vector<64x128xf32> to vector<64xf32>
    %317 = vector.shape_cast %316 : vector<64xf32> to vector<64x1xf32>
    %cst_111 = arith.constant 1.280000e+02 : f32
    %318 = vector.broadcast %cst_111 : f32 to vector<64x1xf32>
    %319 = arith.divf %317, %318 : vector<64x1xf32>
    %320 = vector.broadcast %319 : vector<64x1xf32> to vector<64x128xf32>
    %321 = arith.subf %313, %320 : vector<64x128xf32>
    %322 = arith.mulf %321, %321 : vector<64x128xf32>
    %cst_112 = arith.constant dense<0.000000e+00> : vector<64xf32>
    %323 = vector.multi_reduction <add>, %322, %cst_112 [1] : vector<64x128xf32> to vector<64xf32>
    %324 = vector.shape_cast %323 : vector<64xf32> to vector<64x1xf32>
    %cst_113 = arith.constant 1.280000e+02 : f32
    %325 = vector.broadcast %cst_113 : f32 to vector<64x1xf32>
    %326 = arith.divf %324, %325 : vector<64x1xf32>
    %327 = vector.broadcast %319 : vector<64x1xf32> to vector<64x128xf32>
    %328 = arith.subf %313, %327 : vector<64x128xf32>
    %cst_114 = arith.constant 9.99999974E-6 : f32
    %329 = vector.broadcast %cst_114 : f32 to vector<64x1xf32>
    %330 = arith.addf %326, %329 : vector<64x1xf32>
    %331 = math.rsqrt %330 : vector<64x1xf32>
    %332 = vector.broadcast %331 : vector<64x1xf32> to vector<64x128xf32>
    %333 = arith.mulf %328, %332 : vector<64x128xf32>
    %334 = vector.broadcast %314 : vector<1x128xf32> to vector<64x128xf32>
    %335 = arith.mulf %333, %334 : vector<64x128xf32>
    %336 = vector.broadcast %315 : vector<1x128xf32> to vector<64x128xf32>
    %337 = arith.addf %335, %336 : vector<64x128xf32>
    %c1_115 = arith.constant 1 : index
    %c0_116 = arith.constant 0 : index
    %c0_117 = arith.constant 0 : index
    %338 = vector.load %arg6[%c1_115, %c0_116, %c0_117] : memref<2x128x128xbf16, #tpu.memory_space<vmem>>, vector<1x128x128xbf16>
    %339 = vector.shape_cast %338 : vector<1x128x128xbf16> to vector<128x128xbf16>
    %340 = arith.truncf %337 : vector<64x128xf32> to vector<64x128xbf16>
    %cst_118 = arith.constant dense<0.000000e+00> : vector<64x128xf32>
    %341 = tpu.matmul %340, %339, %cst_118 {dimension_numbers = #tpu.dot_dimension_numbers<[1], [0], [0], [1], [0, 0, 1, 1], [], []>} : vector<64x128xbf16>, vector<128x128xbf16>, vector<64x128xf32> -> vector<64x128xf32>
    %c23 = arith.constant 23 : index
    %c0_119 = arith.constant 0 : index
    %342 = vector.load %arg2[%c23, %c0_119] : memref<45x768xf32, #tpu.memory_space<vmem>>, vector<1x128xf32>
    %343 = vector.broadcast %342 : vector<1x128xf32> to vector<64x128xf32>
    %344 = arith.addf %341, %343 : vector<64x128xf32>
    %345 = arith.addf %337, %344 : vector<64x128xf32>
    %c24 = arith.constant 24 : index
    %c0_120 = arith.constant 0 : index
    %346 = vector.load %arg2[%c24, %c0_120] : memref<45x768xf32, #tpu.memory_space<vmem>>, vector<1x128xf32>
    %c25 = arith.constant 25 : index
    %c0_121 = arith.constant 0 : index
    %347 = vector.load %arg2[%c25, %c0_121] : memref<45x768xf32, #tpu.memory_space<vmem>>, vector<1x128xf32>
    %cst_122 = arith.constant dense<0.000000e+00> : vector<64xf32>
    %348 = vector.multi_reduction <add>, %345, %cst_122 [1] : vector<64x128xf32> to vector<64xf32>
    %349 = vector.shape_cast %348 : vector<64xf32> to vector<64x1xf32>
    %cst_123 = arith.constant 1.280000e+02 : f32
    %350 = vector.broadcast %cst_123 : f32 to vector<64x1xf32>
    %351 = arith.divf %349, %350 : vector<64x1xf32>
    %352 = vector.broadcast %351 : vector<64x1xf32> to vector<64x128xf32>
    %353 = arith.subf %345, %352 : vector<64x128xf32>
    %354 = arith.mulf %353, %353 : vector<64x128xf32>
    %cst_124 = arith.constant dense<0.000000e+00> : vector<64xf32>
    %355 = vector.multi_reduction <add>, %354, %cst_124 [1] : vector<64x128xf32> to vector<64xf32>
    %356 = vector.shape_cast %355 : vector<64xf32> to vector<64x1xf32>
    %cst_125 = arith.constant 1.280000e+02 : f32
    %357 = vector.broadcast %cst_125 : f32 to vector<64x1xf32>
    %358 = arith.divf %356, %357 : vector<64x1xf32>
    %359 = vector.broadcast %351 : vector<64x1xf32> to vector<64x128xf32>
    %360 = arith.subf %345, %359 : vector<64x128xf32>
    %cst_126 = arith.constant 9.99999974E-6 : f32
    %361 = vector.broadcast %cst_126 : f32 to vector<64x1xf32>
    %362 = arith.addf %358, %361 : vector<64x1xf32>
    %363 = math.rsqrt %362 : vector<64x1xf32>
    %364 = vector.broadcast %363 : vector<64x1xf32> to vector<64x128xf32>
    %365 = arith.mulf %360, %364 : vector<64x128xf32>
    %366 = vector.broadcast %346 : vector<1x128xf32> to vector<64x128xf32>
    %367 = arith.mulf %365, %366 : vector<64x128xf32>
    %368 = vector.broadcast %347 : vector<1x128xf32> to vector<64x128xf32>
    %369 = arith.addf %367, %368 : vector<64x128xf32>
    %c1_127 = arith.constant 1 : index
    %c0_128 = arith.constant 0 : index
    %c0_129 = arith.constant 0 : index
    %370 = vector.load %arg7[%c1_127, %c0_128, %c0_129] : memref<2x128x768xbf16, #tpu.memory_space<vmem>>, vector<1x128x768xbf16>
    %371 = vector.shape_cast %370 : vector<1x128x768xbf16> to vector<128x768xbf16>
    %372 = arith.truncf %369 : vector<64x128xf32> to vector<64x128xbf16>
    %cst_130 = arith.constant dense<0.000000e+00> : vector<64x768xf32>
    %373 = tpu.matmul %372, %371, %cst_130 {dimension_numbers = #tpu.dot_dimension_numbers<[1], [0], [0], [1], [0, 0, 1, 1], [], []>} : vector<64x128xbf16>, vector<128x768xbf16>, vector<64x768xf32> -> vector<64x768xf32>
    %c26 = arith.constant 26 : index
    %c0_131 = arith.constant 0 : index
    %374 = vector.load %arg2[%c26, %c0_131] : memref<45x768xf32, #tpu.memory_space<vmem>>, vector<1x768xf32>
    %375 = vector.broadcast %374 : vector<1x768xf32> to vector<64x768xf32>
    %376 = arith.addf %373, %375 : vector<64x768xf32>
    %cst_132 = arith.constant 5.000000e-01 : f32
    %377 = vector.broadcast %cst_132 : f32 to vector<64x768xf32>
    %378 = arith.mulf %377, %376 : vector<64x768xf32>
    %cst_133 = arith.constant 4.471500e-02 : f32
    %379 = vector.broadcast %cst_133 : f32 to vector<64x768xf32>
    %380 = arith.mulf %379, %376 : vector<64x768xf32>
    %381 = arith.mulf %380, %376 : vector<64x768xf32>
    %382 = arith.mulf %381, %376 : vector<64x768xf32>
    %383 = arith.addf %376, %382 : vector<64x768xf32>
    %cst_134 = arith.constant 0.797884583 : f32
    %384 = vector.broadcast %cst_134 : f32 to vector<64x768xf32>
    %385 = arith.mulf %384, %383 : vector<64x768xf32>
    %386 = math.tanh %385 : vector<64x768xf32>
    %cst_135 = arith.constant 1.000000e+00 : f32
    %387 = vector.broadcast %cst_135 : f32 to vector<64x768xf32>
    %388 = arith.addf %387, %386 : vector<64x768xf32>
    %389 = arith.mulf %378, %388 : vector<64x768xf32>
    %c1_136 = arith.constant 1 : index
    %c0_137 = arith.constant 0 : index
    %c0_138 = arith.constant 0 : index
    %390 = vector.load %arg8[%c1_136, %c0_137, %c0_138] : memref<2x768x128xbf16, #tpu.memory_space<vmem>>, vector<1x768x128xbf16>
    %391 = vector.shape_cast %390 : vector<1x768x128xbf16> to vector<768x128xbf16>
    %392 = arith.truncf %389 : vector<64x768xf32> to vector<64x768xbf16>
    %cst_139 = arith.constant dense<0.000000e+00> : vector<64x128xf32>
    %393 = tpu.matmul %392, %391, %cst_139 {dimension_numbers = #tpu.dot_dimension_numbers<[1], [0], [0], [1], [0, 0, 1, 1], [], []>} : vector<64x768xbf16>, vector<768x128xbf16>, vector<64x128xf32> -> vector<64x128xf32>
    %c27 = arith.constant 27 : index
    %c0_140 = arith.constant 0 : index
    %394 = vector.load %arg2[%c27, %c0_140] : memref<45x768xf32, #tpu.memory_space<vmem>>, vector<1x128xf32>
    %395 = vector.broadcast %394 : vector<1x128xf32> to vector<64x128xf32>
    %396 = arith.addf %393, %395 : vector<64x128xf32>
    %397 = arith.addf %369, %396 : vector<64x128xf32>
    %c28 = arith.constant 28 : index
    %c0_141 = arith.constant 0 : index
    %398 = vector.load %arg2[%c28, %c0_141] : memref<45x768xf32, #tpu.memory_space<vmem>>, vector<1x128xf32>
    %c29 = arith.constant 29 : index
    %c0_142 = arith.constant 0 : index
    %399 = vector.load %arg2[%c29, %c0_142] : memref<45x768xf32, #tpu.memory_space<vmem>>, vector<1x128xf32>
    %cst_143 = arith.constant dense<0.000000e+00> : vector<64xf32>
    %400 = vector.multi_reduction <add>, %397, %cst_143 [1] : vector<64x128xf32> to vector<64xf32>
    %401 = vector.shape_cast %400 : vector<64xf32> to vector<64x1xf32>
    %cst_144 = arith.constant 1.280000e+02 : f32
    %402 = vector.broadcast %cst_144 : f32 to vector<64x1xf32>
    %403 = arith.divf %401, %402 : vector<64x1xf32>
    %404 = vector.broadcast %403 : vector<64x1xf32> to vector<64x128xf32>
    %405 = arith.subf %397, %404 : vector<64x128xf32>
    %406 = arith.mulf %405, %405 : vector<64x128xf32>
    %cst_145 = arith.constant dense<0.000000e+00> : vector<64xf32>
    %407 = vector.multi_reduction <add>, %406, %cst_145 [1] : vector<64x128xf32> to vector<64xf32>
    %408 = vector.shape_cast %407 : vector<64xf32> to vector<64x1xf32>
    %cst_146 = arith.constant 1.280000e+02 : f32
    %409 = vector.broadcast %cst_146 : f32 to vector<64x1xf32>
    %410 = arith.divf %408, %409 : vector<64x1xf32>
    %411 = vector.broadcast %403 : vector<64x1xf32> to vector<64x128xf32>
    %412 = arith.subf %397, %411 : vector<64x128xf32>
    %cst_147 = arith.constant 9.99999974E-6 : f32
    %413 = vector.broadcast %cst_147 : f32 to vector<64x1xf32>
    %414 = arith.addf %410, %413 : vector<64x1xf32>
    %415 = math.rsqrt %414 : vector<64x1xf32>
    %416 = vector.broadcast %415 : vector<64x1xf32> to vector<64x128xf32>
    %417 = arith.mulf %412, %416 : vector<64x128xf32>
    %418 = vector.broadcast %398 : vector<1x128xf32> to vector<64x128xf32>
    %419 = arith.mulf %417, %418 : vector<64x128xf32>
    %420 = vector.broadcast %399 : vector<1x128xf32> to vector<64x128xf32>
    %421 = arith.addf %419, %420 : vector<64x128xf32>
    %c30 = arith.constant 30 : index
    %c0_148 = arith.constant 0 : index
    %422 = vector.load %arg2[%c30, %c0_148] : memref<45x768xf32, #tpu.memory_space<vmem>>, vector<1x128xf32>
    %c31 = arith.constant 31 : index
    %c0_149 = arith.constant 0 : index
    %423 = vector.load %arg2[%c31, %c0_149] : memref<45x768xf32, #tpu.memory_space<vmem>>, vector<1x128xf32>
    %cst_150 = arith.constant dense<0.000000e+00> : vector<64xf32>
    %424 = vector.multi_reduction <add>, %421, %cst_150 [1] : vector<64x128xf32> to vector<64xf32>
    %425 = vector.shape_cast %424 : vector<64xf32> to vector<64x1xf32>
    %cst_151 = arith.constant 1.280000e+02 : f32
    %426 = vector.broadcast %cst_151 : f32 to vector<64x1xf32>
    %427 = arith.divf %425, %426 : vector<64x1xf32>
    %428 = vector.broadcast %427 : vector<64x1xf32> to vector<64x128xf32>
    %429 = arith.subf %421, %428 : vector<64x128xf32>
    %430 = arith.mulf %429, %429 : vector<64x128xf32>
    %cst_152 = arith.constant dense<0.000000e+00> : vector<64xf32>
    %431 = vector.multi_reduction <add>, %430, %cst_152 [1] : vector<64x128xf32> to vector<64xf32>
    %432 = vector.shape_cast %431 : vector<64xf32> to vector<64x1xf32>
    %cst_153 = arith.constant 1.280000e+02 : f32
    %433 = vector.broadcast %cst_153 : f32 to vector<64x1xf32>
    %434 = arith.divf %432, %433 : vector<64x1xf32>
    %435 = vector.broadcast %427 : vector<64x1xf32> to vector<64x128xf32>
    %436 = arith.subf %421, %435 : vector<64x128xf32>
    %cst_154 = arith.constant 9.99999974E-6 : f32
    %437 = vector.broadcast %cst_154 : f32 to vector<64x1xf32>
    %438 = arith.addf %434, %437 : vector<64x1xf32>
    %439 = math.rsqrt %438 : vector<64x1xf32>
    %440 = vector.broadcast %439 : vector<64x1xf32> to vector<64x128xf32>
    %441 = arith.mulf %436, %440 : vector<64x128xf32>
    %442 = vector.broadcast %422 : vector<1x128xf32> to vector<64x128xf32>
    %443 = arith.mulf %441, %442 : vector<64x128xf32>
    %444 = vector.broadcast %423 : vector<1x128xf32> to vector<64x128xf32>
    %445 = arith.addf %443, %444 : vector<64x128xf32>
    %c0_155 = arith.constant 0 : index
    %c0_156 = arith.constant 0 : index
    %446 = vector.load %arg9[%c0_155, %c0_156] : memref<128x256xbf16, #tpu.memory_space<vmem>>, vector<128x256xbf16>
    %447 = arith.truncf %445 : vector<64x128xf32> to vector<64x128xbf16>
    %cst_157 = arith.constant dense<0.000000e+00> : vector<64x256xf32>
    %448 = tpu.matmul %447, %446, %cst_157 {dimension_numbers = #tpu.dot_dimension_numbers<[1], [0], [0], [1], [0, 0, 1, 1], [], []>} : vector<64x128xbf16>, vector<128x256xbf16>, vector<64x256xf32> -> vector<64x256xf32>
    %c32 = arith.constant 32 : index
    %c0_158 = arith.constant 0 : index
    %449 = vector.load %arg2[%c32, %c0_158] : memref<45x768xf32, #tpu.memory_space<vmem>>, vector<1x256xf32>
    %450 = vector.broadcast %449 : vector<1x256xf32> to vector<64x256xf32>
    %451 = arith.addf %448, %450 : vector<64x256xf32>
    %c33 = arith.constant 33 : index
    %c0_159 = arith.constant 0 : index
    %452 = vector.load %arg2[%c33, %c0_159] : memref<45x768xf32, #tpu.memory_space<vmem>>, vector<1x256xf32>
    %c34 = arith.constant 34 : index
    %c0_160 = arith.constant 0 : index
    %453 = vector.load %arg2[%c34, %c0_160] : memref<45x768xf32, #tpu.memory_space<vmem>>, vector<1x256xf32>
    %cst_161 = arith.constant dense<0.000000e+00> : vector<64xf32>
    %454 = vector.multi_reduction <add>, %451, %cst_161 [1] : vector<64x256xf32> to vector<64xf32>
    %455 = vector.shape_cast %454 : vector<64xf32> to vector<64x1xf32>
    %cst_162 = arith.constant 2.560000e+02 : f32
    %456 = vector.broadcast %cst_162 : f32 to vector<64x1xf32>
    %457 = arith.divf %455, %456 : vector<64x1xf32>
    %458 = vector.broadcast %457 : vector<64x1xf32> to vector<64x256xf32>
    %459 = arith.subf %451, %458 : vector<64x256xf32>
    %460 = arith.mulf %459, %459 : vector<64x256xf32>
    %cst_163 = arith.constant dense<0.000000e+00> : vector<64xf32>
    %461 = vector.multi_reduction <add>, %460, %cst_163 [1] : vector<64x256xf32> to vector<64xf32>
    %462 = vector.shape_cast %461 : vector<64xf32> to vector<64x1xf32>
    %cst_164 = arith.constant 2.560000e+02 : f32
    %463 = vector.broadcast %cst_164 : f32 to vector<64x1xf32>
    %464 = arith.divf %462, %463 : vector<64x1xf32>
    %465 = vector.broadcast %457 : vector<64x1xf32> to vector<64x256xf32>
    %466 = arith.subf %451, %465 : vector<64x256xf32>
    %cst_165 = arith.constant 9.99999974E-6 : f32
    %467 = vector.broadcast %cst_165 : f32 to vector<64x1xf32>
    %468 = arith.addf %464, %467 : vector<64x1xf32>
    %469 = math.rsqrt %468 : vector<64x1xf32>
    %470 = vector.broadcast %469 : vector<64x1xf32> to vector<64x256xf32>
    %471 = arith.mulf %466, %470 : vector<64x256xf32>
    %472 = vector.broadcast %452 : vector<1x256xf32> to vector<64x256xf32>
    %473 = arith.mulf %471, %472 : vector<64x256xf32>
    %474 = vector.broadcast %453 : vector<1x256xf32> to vector<64x256xf32>
    %475 = arith.addf %473, %474 : vector<64x256xf32>
    %cst_166 = arith.constant 5.000000e-01 : f32
    %476 = vector.broadcast %cst_166 : f32 to vector<64x256xf32>
    %477 = arith.mulf %476, %475 : vector<64x256xf32>
    %cst_167 = arith.constant 4.471500e-02 : f32
    %478 = vector.broadcast %cst_167 : f32 to vector<64x256xf32>
    %479 = arith.mulf %478, %475 : vector<64x256xf32>
    %480 = arith.mulf %479, %475 : vector<64x256xf32>
    %481 = arith.mulf %480, %475 : vector<64x256xf32>
    %482 = arith.addf %475, %481 : vector<64x256xf32>
    %cst_168 = arith.constant 0.797884583 : f32
    %483 = vector.broadcast %cst_168 : f32 to vector<64x256xf32>
    %484 = arith.mulf %483, %482 : vector<64x256xf32>
    %485 = math.tanh %484 : vector<64x256xf32>
    %cst_169 = arith.constant 1.000000e+00 : f32
    %486 = vector.broadcast %cst_169 : f32 to vector<64x256xf32>
    %487 = arith.addf %486, %485 : vector<64x256xf32>
    %488 = arith.mulf %477, %487 : vector<64x256xf32>
    %c0_170 = arith.constant 0 : index
    %c0_171 = arith.constant 0 : index
    %489 = vector.load %arg10[%c0_170, %c0_171] : memref<256x128xbf16, #tpu.memory_space<vmem>>, vector<256x128xbf16>
    %490 = arith.truncf %488 : vector<64x256xf32> to vector<64x256xbf16>
    %cst_172 = arith.constant dense<0.000000e+00> : vector<64x128xf32>
    %491 = tpu.matmul %490, %489, %cst_172 {dimension_numbers = #tpu.dot_dimension_numbers<[1], [0], [0], [1], [0, 0, 1, 1], [], []>} : vector<64x256xbf16>, vector<256x128xbf16>, vector<64x128xf32> -> vector<64x128xf32>
    %c35 = arith.constant 35 : index
    %c0_173 = arith.constant 0 : index
    %492 = vector.load %arg2[%c35, %c0_173] : memref<45x768xf32, #tpu.memory_space<vmem>>, vector<1x128xf32>
    %493 = vector.broadcast %492 : vector<1x128xf32> to vector<64x128xf32>
    %494 = arith.addf %491, %493 : vector<64x128xf32>
    %c36 = arith.constant 36 : index
    %c0_174 = arith.constant 0 : index
    %495 = vector.load %arg2[%c36, %c0_174] : memref<45x768xf32, #tpu.memory_space<vmem>>, vector<1x128xf32>
    %c37 = arith.constant 37 : index
    %c0_175 = arith.constant 0 : index
    %496 = vector.load %arg2[%c37, %c0_175] : memref<45x768xf32, #tpu.memory_space<vmem>>, vector<1x128xf32>
    %cst_176 = arith.constant dense<0.000000e+00> : vector<64xf32>
    %497 = vector.multi_reduction <add>, %494, %cst_176 [1] : vector<64x128xf32> to vector<64xf32>
    %498 = vector.shape_cast %497 : vector<64xf32> to vector<64x1xf32>
    %cst_177 = arith.constant 1.280000e+02 : f32
    %499 = vector.broadcast %cst_177 : f32 to vector<64x1xf32>
    %500 = arith.divf %498, %499 : vector<64x1xf32>
    %501 = vector.broadcast %500 : vector<64x1xf32> to vector<64x128xf32>
    %502 = arith.subf %494, %501 : vector<64x128xf32>
    %503 = arith.mulf %502, %502 : vector<64x128xf32>
    %cst_178 = arith.constant dense<0.000000e+00> : vector<64xf32>
    %504 = vector.multi_reduction <add>, %503, %cst_178 [1] : vector<64x128xf32> to vector<64xf32>
    %505 = vector.shape_cast %504 : vector<64xf32> to vector<64x1xf32>
    %cst_179 = arith.constant 1.280000e+02 : f32
    %506 = vector.broadcast %cst_179 : f32 to vector<64x1xf32>
    %507 = arith.divf %505, %506 : vector<64x1xf32>
    %508 = vector.broadcast %500 : vector<64x1xf32> to vector<64x128xf32>
    %509 = arith.subf %494, %508 : vector<64x128xf32>
    %cst_180 = arith.constant 9.99999974E-6 : f32
    %510 = vector.broadcast %cst_180 : f32 to vector<64x1xf32>
    %511 = arith.addf %507, %510 : vector<64x1xf32>
    %512 = math.rsqrt %511 : vector<64x1xf32>
    %513 = vector.broadcast %512 : vector<64x1xf32> to vector<64x128xf32>
    %514 = arith.mulf %509, %513 : vector<64x128xf32>
    %515 = vector.broadcast %495 : vector<1x128xf32> to vector<64x128xf32>
    %516 = arith.mulf %514, %515 : vector<64x128xf32>
    %517 = vector.broadcast %496 : vector<1x128xf32> to vector<64x128xf32>
    %518 = arith.addf %516, %517 : vector<64x128xf32>
    %cst_181 = arith.constant 5.000000e-01 : f32
    %519 = vector.broadcast %cst_181 : f32 to vector<64x128xf32>
    %520 = arith.mulf %519, %518 : vector<64x128xf32>
    %cst_182 = arith.constant 4.471500e-02 : f32
    %521 = vector.broadcast %cst_182 : f32 to vector<64x128xf32>
    %522 = arith.mulf %521, %518 : vector<64x128xf32>
    %523 = arith.mulf %522, %518 : vector<64x128xf32>
    %524 = arith.mulf %523, %518 : vector<64x128xf32>
    %525 = arith.addf %518, %524 : vector<64x128xf32>
    %cst_183 = arith.constant 0.797884583 : f32
    %526 = vector.broadcast %cst_183 : f32 to vector<64x128xf32>
    %527 = arith.mulf %526, %525 : vector<64x128xf32>
    %528 = math.tanh %527 : vector<64x128xf32>
    %cst_184 = arith.constant 1.000000e+00 : f32
    %529 = vector.broadcast %cst_184 : f32 to vector<64x128xf32>
    %530 = arith.addf %529, %528 : vector<64x128xf32>
    %531 = arith.mulf %520, %530 : vector<64x128xf32>
    %c0_185 = arith.constant 0 : index
    %c0_186 = arith.constant 0 : index
    %532 = vector.load %arg11[%c0_185, %c0_186] : memref<128x128xbf16, #tpu.memory_space<vmem>>, vector<128x128xbf16>
    %533 = arith.truncf %531 : vector<64x128xf32> to vector<64x128xbf16>
    %cst_187 = arith.constant dense<0.000000e+00> : vector<64x128xf32>
    %534 = tpu.matmul %533, %532, %cst_187 {dimension_numbers = #tpu.dot_dimension_numbers<[1], [0], [0], [1], [0, 0, 1, 1], [], []>} : vector<64x128xbf16>, vector<128x128xbf16>, vector<64x128xf32> -> vector<64x128xf32>
    %c38 = arith.constant 38 : index
    %c0_188 = arith.constant 0 : index
    %535 = vector.load %arg2[%c38, %c0_188] : memref<45x768xf32, #tpu.memory_space<vmem>>, vector<1x128xf32>
    %536 = vector.broadcast %535 : vector<1x128xf32> to vector<64x128xf32>
    %537 = arith.addf %534, %536 : vector<64x128xf32>
    %c39 = arith.constant 39 : index
    %c0_189 = arith.constant 0 : index
    %538 = vector.load %arg2[%c39, %c0_189] : memref<45x768xf32, #tpu.memory_space<vmem>>, vector<1x128xf32>
    %c40 = arith.constant 40 : index
    %c0_190 = arith.constant 0 : index
    %539 = vector.load %arg2[%c40, %c0_190] : memref<45x768xf32, #tpu.memory_space<vmem>>, vector<1x128xf32>
    %cst_191 = arith.constant dense<0.000000e+00> : vector<64xf32>
    %540 = vector.multi_reduction <add>, %537, %cst_191 [1] : vector<64x128xf32> to vector<64xf32>
    %541 = vector.shape_cast %540 : vector<64xf32> to vector<64x1xf32>
    %cst_192 = arith.constant 1.280000e+02 : f32
    %542 = vector.broadcast %cst_192 : f32 to vector<64x1xf32>
    %543 = arith.divf %541, %542 : vector<64x1xf32>
    %544 = vector.broadcast %543 : vector<64x1xf32> to vector<64x128xf32>
    %545 = arith.subf %537, %544 : vector<64x128xf32>
    %546 = arith.mulf %545, %545 : vector<64x128xf32>
    %cst_193 = arith.constant dense<0.000000e+00> : vector<64xf32>
    %547 = vector.multi_reduction <add>, %546, %cst_193 [1] : vector<64x128xf32> to vector<64xf32>
    %548 = vector.shape_cast %547 : vector<64xf32> to vector<64x1xf32>
    %cst_194 = arith.constant 1.280000e+02 : f32
    %549 = vector.broadcast %cst_194 : f32 to vector<64x1xf32>
    %550 = arith.divf %548, %549 : vector<64x1xf32>
    %551 = vector.broadcast %543 : vector<64x1xf32> to vector<64x128xf32>
    %552 = arith.subf %537, %551 : vector<64x128xf32>
    %cst_195 = arith.constant 9.99999974E-6 : f32
    %553 = vector.broadcast %cst_195 : f32 to vector<64x1xf32>
    %554 = arith.addf %550, %553 : vector<64x1xf32>
    %555 = math.rsqrt %554 : vector<64x1xf32>
    %556 = vector.broadcast %555 : vector<64x1xf32> to vector<64x128xf32>
    %557 = arith.mulf %552, %556 : vector<64x128xf32>
    %558 = vector.broadcast %538 : vector<1x128xf32> to vector<64x128xf32>
    %559 = arith.mulf %557, %558 : vector<64x128xf32>
    %560 = vector.broadcast %539 : vector<1x128xf32> to vector<64x128xf32>
    %561 = arith.addf %559, %560 : vector<64x128xf32>
    %cst_196 = arith.constant 5.000000e-01 : f32
    %562 = vector.broadcast %cst_196 : f32 to vector<64x128xf32>
    %563 = arith.mulf %562, %561 : vector<64x128xf32>
    %cst_197 = arith.constant 4.471500e-02 : f32
    %564 = vector.broadcast %cst_197 : f32 to vector<64x128xf32>
    %565 = arith.mulf %564, %561 : vector<64x128xf32>
    %566 = arith.mulf %565, %561 : vector<64x128xf32>
    %567 = arith.mulf %566, %561 : vector<64x128xf32>
    %568 = arith.addf %561, %567 : vector<64x128xf32>
    %cst_198 = arith.constant 0.797884583 : f32
    %569 = vector.broadcast %cst_198 : f32 to vector<64x128xf32>
    %570 = arith.mulf %569, %568 : vector<64x128xf32>
    %571 = math.tanh %570 : vector<64x128xf32>
    %cst_199 = arith.constant 1.000000e+00 : f32
    %572 = vector.broadcast %cst_199 : f32 to vector<64x128xf32>
    %573 = arith.addf %572, %571 : vector<64x128xf32>
    %574 = arith.mulf %563, %573 : vector<64x128xf32>
    %c0_200 = arith.constant 0 : index
    %c0_201 = arith.constant 0 : index
    %575 = vector.load %arg12[%c0_200, %c0_201] : memref<128x64xbf16, #tpu.memory_space<vmem>>, vector<128x64xbf16>
    %576 = arith.truncf %574 : vector<64x128xf32> to vector<64x128xbf16>
    %cst_202 = arith.constant dense<0.000000e+00> : vector<64x64xf32>
    %577 = tpu.matmul %576, %575, %cst_202 {dimension_numbers = #tpu.dot_dimension_numbers<[1], [0], [0], [1], [0, 0, 1, 1], [], []>} : vector<64x128xbf16>, vector<128x64xbf16>, vector<64x64xf32> -> vector<64x64xf32>
    %c41 = arith.constant 41 : index
    %c0_203 = arith.constant 0 : index
    %578 = vector.load %arg2[%c41, %c0_203] : memref<45x768xf32, #tpu.memory_space<vmem>>, vector<1x64xf32>
    %579 = vector.broadcast %578 : vector<1x64xf32> to vector<64x64xf32>
    %580 = arith.addf %577, %579 : vector<64x64xf32>
    %c42 = arith.constant 42 : index
    %c0_204 = arith.constant 0 : index
    %581 = vector.load %arg2[%c42, %c0_204] : memref<45x768xf32, #tpu.memory_space<vmem>>, vector<1x64xf32>
    %c43 = arith.constant 43 : index
    %c0_205 = arith.constant 0 : index
    %582 = vector.load %arg2[%c43, %c0_205] : memref<45x768xf32, #tpu.memory_space<vmem>>, vector<1x64xf32>
    %cst_206 = arith.constant dense<0.000000e+00> : vector<64xf32>
    %583 = vector.multi_reduction <add>, %580, %cst_206 [1] : vector<64x64xf32> to vector<64xf32>
    %584 = vector.shape_cast %583 : vector<64xf32> to vector<64x1xf32>
    %cst_207 = arith.constant 6.400000e+01 : f32
    %585 = vector.broadcast %cst_207 : f32 to vector<64x1xf32>
    %586 = arith.divf %584, %585 : vector<64x1xf32>
    %587 = vector.broadcast %586 : vector<64x1xf32> to vector<64x64xf32>
    %588 = arith.subf %580, %587 : vector<64x64xf32>
    %589 = arith.mulf %588, %588 : vector<64x64xf32>
    %cst_208 = arith.constant dense<0.000000e+00> : vector<64xf32>
    %590 = vector.multi_reduction <add>, %589, %cst_208 [1] : vector<64x64xf32> to vector<64xf32>
    %591 = vector.shape_cast %590 : vector<64xf32> to vector<64x1xf32>
    %cst_209 = arith.constant 6.400000e+01 : f32
    %592 = vector.broadcast %cst_209 : f32 to vector<64x1xf32>
    %593 = arith.divf %591, %592 : vector<64x1xf32>
    %594 = vector.broadcast %586 : vector<64x1xf32> to vector<64x64xf32>
    %595 = arith.subf %580, %594 : vector<64x64xf32>
    %cst_210 = arith.constant 9.99999974E-6 : f32
    %596 = vector.broadcast %cst_210 : f32 to vector<64x1xf32>
    %597 = arith.addf %593, %596 : vector<64x1xf32>
    %598 = math.rsqrt %597 : vector<64x1xf32>
    %599 = vector.broadcast %598 : vector<64x1xf32> to vector<64x64xf32>
    %600 = arith.mulf %595, %599 : vector<64x64xf32>
    %601 = vector.broadcast %581 : vector<1x64xf32> to vector<64x64xf32>
    %602 = arith.mulf %600, %601 : vector<64x64xf32>
    %603 = vector.broadcast %582 : vector<1x64xf32> to vector<64x64xf32>
    %604 = arith.addf %602, %603 : vector<64x64xf32>
    %cst_211 = arith.constant 5.000000e-01 : f32
    %605 = vector.broadcast %cst_211 : f32 to vector<64x64xf32>
    %606 = arith.mulf %605, %604 : vector<64x64xf32>
    %cst_212 = arith.constant 4.471500e-02 : f32
    %607 = vector.broadcast %cst_212 : f32 to vector<64x64xf32>
    %608 = arith.mulf %607, %604 : vector<64x64xf32>
    %609 = arith.mulf %608, %604 : vector<64x64xf32>
    %610 = arith.mulf %609, %604 : vector<64x64xf32>
    %611 = arith.addf %604, %610 : vector<64x64xf32>
    %cst_213 = arith.constant 0.797884583 : f32
    %612 = vector.broadcast %cst_213 : f32 to vector<64x64xf32>
    %613 = arith.mulf %612, %611 : vector<64x64xf32>
    %614 = math.tanh %613 : vector<64x64xf32>
    %cst_214 = arith.constant 1.000000e+00 : f32
    %615 = vector.broadcast %cst_214 : f32 to vector<64x64xf32>
    %616 = arith.addf %615, %614 : vector<64x64xf32>
    %617 = arith.mulf %606, %616 : vector<64x64xf32>
    %c0_215 = arith.constant 0 : index
    %c0_216 = arith.constant 0 : index
    %618 = vector.load %arg13[%c0_215, %c0_216] : memref<64x1xbf16, #tpu.memory_space<vmem>>, vector<64x1xbf16>
    %619 = arith.truncf %617 : vector<64x64xf32> to vector<64x64xbf16>
    %cst_217 = arith.constant dense<0.000000e+00> : vector<64x1xf32>
    %620 = tpu.matmul %619, %618, %cst_217 {dimension_numbers = #tpu.dot_dimension_numbers<[1], [0], [0], [1], [0, 0, 1, 1], [], []>} : vector<64x64xbf16>, vector<64x1xbf16>, vector<64x1xf32> -> vector<64x1xf32>
    %c44 = arith.constant 44 : index
    %c0_218 = arith.constant 0 : index
    %621 = vector.load %arg2[%c44, %c0_218] : memref<45x768xf32, #tpu.memory_space<vmem>>, vector<1x1xf32>
    %622 = vector.broadcast %621 : vector<1x1xf32> to vector<64x1xf32>
    %623 = arith.addf %620, %622 : vector<64x1xf32>
    %cst_219 = arith.constant 0.000000e+00 : f32
    %624 = vector.broadcast %cst_219 : f32 to vector<64x1xf32>
    %625 = arith.subf %624, %623 : vector<64x1xf32>
    %626 = math.exp %625 : vector<64x1xf32>
    %cst_220 = arith.constant 1.000000e+00 : f32
    %627 = vector.broadcast %cst_220 : f32 to vector<64x1xf32>
    %628 = arith.addf %627, %626 : vector<64x1xf32>
    %cst_221 = arith.constant 1.000000e+00 : f32
    %629 = vector.broadcast %cst_221 : f32 to vector<64x1xf32>
    %630 = arith.divf %629, %628 : vector<64x1xf32>
    %c0_222 = arith.constant 0 : index
    %c0_223 = arith.constant 0 : index
    %631 = vector.load %arg14[%c0_222, %c0_223] : memref<64x1xf32, #tpu.memory_space<vmem>>, vector<64x1xf32>
    tpu.vector_store %arg14[%c0_222, %c0_223], %630 {strides = array<i32>} : memref<64x1xf32, #tpu.memory_space<vmem>>, vector<64x1xf32>,
    return
  }
  func.func @transform_0(%arg0: i32) -> (i32, i32) {
    %c0_i32 = arith.constant 0 : i32
    %c0_i32_0 = arith.constant 0 : i32
    return %arg0, %c0_i32 : i32, i32
  }
  func.func @transform_1(%arg0: i32) -> (i32, i32) {
    %c0_i32 = arith.constant 0 : i32
    %c0_i32_0 = arith.constant 0 : i32
    %c0_i32_1 = arith.constant 0 : i32
    return %c0_i32, %c0_i32_0 : i32, i32
  }
  func.func @transform_2(%arg0: i32) -> (i32, i32) {
    %c0_i32 = arith.constant 0 : i32
    %c0_i32_0 = arith.constant 0 : i32
    %c0_i32_1 = arith.constant 0 : i32
    return %c0_i32, %c0_i32_0 : i32, i32
  }
  func.func @transform_3(%arg0: i32) -> (i32, i32) {
    %c0_i32 = arith.constant 0 : i32
    %c0_i32_0 = arith.constant 0 : i32
    %c0_i32_1 = arith.constant 0 : i32
    return %c0_i32, %c0_i32_0 : i32, i32
  }
  func.func @transform_4(%arg0: i32) -> (i32, i32) {
    %c0_i32 = arith.constant 0 : i32
    %c0_i32_0 = arith.constant 0 : i32
    %c0_i32_1 = arith.constant 0 : i32
    return %c0_i32, %c0_i32_0 : i32, i32
  }
  func.func @transform_5(%arg0: i32) -> (i32, i32, i32) {
    %c0_i32 = arith.constant 0 : i32
    %c0_i32_0 = arith.constant 0 : i32
    %c0_i32_1 = arith.constant 0 : i32
    %c0_i32_2 = arith.constant 0 : i32
    return %c0_i32, %c0_i32_0, %c0_i32_1 : i32, i32, i32
  }
  func.func @transform_6(%arg0: i32) -> (i32, i32, i32) {
    %c0_i32 = arith.constant 0 : i32
    %c0_i32_0 = arith.constant 0 : i32
    %c0_i32_1 = arith.constant 0 : i32
    %c0_i32_2 = arith.constant 0 : i32
    return %c0_i32, %c0_i32_0, %c0_i32_1 : i32, i32, i32
  }
  func.func @transform_7(%arg0: i32) -> (i32, i32, i32) {
    %c0_i32 = arith.constant 0 : i32
    %c0_i32_0 = arith.constant 0 : i32
    %c0_i32_1 = arith.constant 0 : i32
    %c0_i32_2 = arith.constant 0 : i32
    return %c0_i32, %c0_i32_0, %c0_i32_1 : i32, i32, i32
  }
  func.func @transform_8(%arg0: i32) -> (i32, i32) {
    %c0_i32 = arith.constant 0 : i32
    %c0_i32_0 = arith.constant 0 : i32
    %c0_i32_1 = arith.constant 0 : i32
    return %c0_i32, %c0_i32_0 : i32, i32
  }
  func.func @transform_9(%arg0: i32) -> (i32, i32) {
    %c0_i32 = arith.constant 0 : i32
    %c0_i32_0 = arith.constant 0 : i32
    %c0_i32_1 = arith.constant 0 : i32
    return %c0_i32, %c0_i32_0 : i32, i32
  }
  func.func @transform_10(%arg0: i32) -> (i32, i32) {
    %c0_i32 = arith.constant 0 : i32
    %c0_i32_0 = arith.constant 0 : i32
    %c0_i32_1 = arith.constant 0 : i32
    return %c0_i32, %c0_i32_0 : i32, i32
  }
  func.func @transform_11(%arg0: i32) -> (i32, i32) {
    %c0_i32 = arith.constant 0 : i32
    %c0_i32_0 = arith.constant 0 : i32
    %c0_i32_1 = arith.constant 0 : i32
    return %c0_i32, %c0_i32_0 : i32, i32
  }
  func.func @transform_12(%arg0: i32) -> (i32, i32) {
    %c0_i32 = arith.constant 0 : i32
    %c0_i32_0 = arith.constant 0 : i32
    %c0_i32_1 = arith.constant 0 : i32
    return %c0_i32, %c0_i32_0 : i32, i32
  }
  func.func @transform_13(%arg0: i32) -> (i32, i32) {
    %c0_i32 = arith.constant 0 : i32
    %c0_i32_0 = arith.constant 0 : i32
    return %arg0, %c0_i32 : i32, i32
  }
}

</mosaic_0001>

<llo_original>
// kernel: tpu_custom_call.1
$region0: #{tpu_custom_call.1}
  #allocation0 [shape = 'u32[]', space=smem, size = 0x4, offset = 0x4, fixed_abs, tag = 'smem constant byte address 0x4 - core index']
  #allocation1 [shape = 'u32[144,128]{1,0:T(1,128)}', space=vmem, size = 0x12000, scoped, tag = 'internal scratch']
  %s0 = inlined_call_operand.vmem [shape: f32[64,16], index: 0, kind: input, shape index: {}]
  %s1 = inlined_call_operand.hbm [shape: f32[45,768], index: 1, kind: input, shape index: {}]
  %s2 = inlined_call_operand.hbm [shape: f32[16,128], index: 2, kind: input, shape index: {}]
  %s3 = inlined_call_operand.vmem [shape: bf16[128,128], index: 3, kind: input, shape index: {}]
  %s4 = inlined_call_operand.hbm [shape: bf16[128,512], index: 4, kind: input, shape index: {}]
  %s5 = inlined_call_operand.vmem [shape: bf16[2,128,128], index: 5, kind: input, shape index: {}]
  %s6 = inlined_call_operand.hbm [shape: bf16[2,128,768], index: 6, kind: input, shape index: {}]
  %s7 = inlined_call_operand.hbm [shape: bf16[2,768,128], index: 7, kind: input, shape index: {}]
  %s8 = inlined_call_operand.hbm [shape: bf16[128,256], index: 8, kind: input, shape index: {}]
  %s9 = inlined_call_operand.hbm [shape: bf16[256,128], index: 9, kind: input, shape index: {}]
  %s10 = inlined_call_operand.hbm [shape: bf16[128,128], index: 10, kind: input, shape index: {}]
  %s11 = inlined_call_operand.vmem [shape: bf16[128,64], index: 11, kind: input, shape index: {}]
  %s12 = inlined_call_operand.vmem [shape: bf16[64,1], index: 12, kind: input, shape index: {}]
  %s13 = inlined_call_operand.vmem [shape: f32[64,1], index: 13, kind: output, shape index: {}]
  %s14 = sld [smem:[#allocation0]]
  $region94: #{tpu_custom_call.1} parent=0
    _
  %s16 = ssub.s32 1, %s14
  %s17 = scalar_select 0, %s16, %s14
  $region1: #{tpu_custom_call.1} parent=0
    #allocation2 [shape = 'u8[147456]{0}', space=vmem, size = 0x24000, scoped, tag = 'input window, operand 1, single buffered']
    #allocation3 [shape = 's32[1]{0}', space=sflag, size = 0x4, scoped, tag = 'scoped memory for tpu_custom_call.1']
    #allocation4 [shape = 'u8[8192]{0}', space=vmem, size = 0x2000, scoped, tag = 'input window, operand 2, single buffered']
    #allocation5 [shape = 's32[1]{0}', space=sflag, size = 0x4, scoped, tag = 'scoped memory for tpu_custom_call.1']
    #allocation6 [shape = 'u8[131072]{0}', space=vmem, size = 0x20000, scoped, tag = 'input window, operand 4, single buffered']
    #allocation7 [shape = 'u8[393216]{0}', space=vmem, size = 0x60000, scoped, tag = 'input window, operand 6, single buffered']
    #allocation8 [shape = 's32[1]{0}', space=sflag, size = 0x4, scoped, tag = 'scoped memory for tpu_custom_call.1']
    #allocation9 [shape = 'u8[393216]{0}', space=vmem, size = 0x60000, scoped, tag = 'input window, operand 7, single buffered']
    #allocation10 [shape = 'u8[65536]{0}', space=vmem, size = 0x10000, scoped, tag = 'input window, operand 8, single buffered']
    #allocation11 [shape = 's32[1]{0}', space=sflag, size = 0x4, scoped, tag = 'scoped memory for tpu_custom_call.1']
    #allocation12 [shape = 'u8[65536]{0}', space=vmem, size = 0x10000, scoped, tag = 'input window, operand 9, single buffered']
    #allocation13 [shape = 'u8[32768]{0}', space=vmem, size = 0x8000, scoped, tag = 'input window, operand 10, single buffered']
    #allocation14 [shape = 's32[1]{0}', space=sflag, size = 0x4, scoped, tag = 'scoped memory for tpu_custom_call.1']
    %18 = vsyncpa [#allocation3], 0
    %19 = vsyncpa [#allocation5], 0
    %20 = vsyncpa [#allocation8], 0
    %21 = vsyncpa [#allocation11], 0
    %22 = vsyncpa [#allocation14], 0
    // Predicated region
    $region2: #{tpu_custom_call.1} parent=1 // pred_check
      _
    $region3: #{tpu_custom_call.1} parent=1 // pred_check_branch
      %24 = sbr.rel (0) target = $region5
    $region4: #{tpu_custom_call.1} parent=1 // pred_region
      _
    $region5: #{tpu_custom_call.1} parent=1 // pred_fallthru
      _
    // Predicated region
    $region6: #{tpu_custom_call.1} parent=1 // pred_check
      _
    $region7: #{tpu_custom_call.1} parent=1 // pred_check_branch
      %26 = sbr.rel (0) target = $region9
    $region8: #{tpu_custom_call.1} parent=1 // pred_region
      %s28 = ssub.s32 4608, 4608
      %29 = vsyncadd [#allocation3], %s28
      %s30 = sshll.u32 [#allocation2], 4
      %s31 = int_to_ptr.vmem [resolvable:$true] %s30
      %36 = dma.hbm_to_vmem [thread:$0]  %s1, 4608, %s31, [#allocation3], 768, 768, 48
    $region9: #{tpu_custom_call.1} parent=1 // pred_fallthru
      _
    // Predicated region
    $region10: #{tpu_custom_call.1} parent=1 // pred_check
      _
    $region11: #{tpu_custom_call.1} parent=1 // pred_check_branch
      %38 = sbr.rel (0) target = $region13
    $region12: #{tpu_custom_call.1} parent=1 // pred_region
      %s40 = ssub.s32 256, 256
      %41 = vsyncadd [#allocation5], %s40
      %s42 = sshll.u32 [#allocation4], 4
      %s43 = int_to_ptr.vmem [resolvable:$true] %s42
      %48 = dma.hbm_to_vmem [thread:$0]  %s2, 256, %s43, [#allocation5], 128, 128, 8
    $region13: #{tpu_custom_call.1} parent=1 // pred_fallthru
      _
    // Predicated region
    $region14: #{tpu_custom_call.1} parent=1 // pred_check
      _
    $region15: #{tpu_custom_call.1} parent=1 // pred_check_branch
      %50 = sbr.rel (0) target = $region17
    $region16: #{tpu_custom_call.1} parent=1 // pred_region
      _
    $region17: #{tpu_custom_call.1} parent=1 // pred_fallthru
      _
    // Predicated region
    $region18: #{tpu_custom_call.1} parent=1 // pred_check
      _
    $region19: #{tpu_custom_call.1} parent=1 // pred_check_branch
      %52 = sbr.rel (0) target = $region21
    $region20: #{tpu_custom_call.1} parent=1 // pred_region
      %s54 = ssub.s32 4096, 4096
      %55 = vsyncadd [#allocation5], %s54
      %s56 = sshll.u32 [#allocation6], 4
      %s57 = int_to_ptr.vmem [resolvable:$true] %s56
      %62 = dma.hbm_to_vmem [thread:$0]  %s4, 4096, %s57, [#allocation5], 256, 256, 16
    $region21: #{tpu_custom_call.1} parent=1 // pred_fallthru
      _
    // Predicated region
    $region22: #{tpu_custom_call.1} parent=1 // pred_check
      _
    $region23: #{tpu_custom_call.1} parent=1 // pred_check_branch
      %64 = sbr.rel (0) target = $region25
    $region24: #{tpu_custom_call.1} parent=1 // pred_region
      _
    $region25: #{tpu_custom_call.1} parent=1 // pred_fallthru
      _
    // Predicated region
    $region26: #{tpu_custom_call.1} parent=1 // pred_check
      _
    $region27: #{tpu_custom_call.1} parent=1 // pred_check_branch
      %66 = sbr.rel (0) target = $region29
    $region28: #{tpu_custom_call.1} parent=1 // pred_region
      %s68 = ssub.s32 12288, 12288
      %69 = vsyncadd [#allocation8], %s68
      %s70 = sshll.u32 [#allocation7], 4
      %s71 = int_to_ptr.vmem [resolvable:$true] %s70
      %76 = dma.hbm_to_vmem [thread:$0]  %s6, 12288, %s71, [#allocation8], 384, 384, 24
    $region29: #{tpu_custom_call.1} parent=1 // pred_fallthru
      _
    // Predicated region
    $region30: #{tpu_custom_call.1} parent=1 // pred_check
      _
    $region31: #{tpu_custom_call.1} parent=1 // pred_check_branch
      %78 = sbr.rel (0) target = $region33
    $region32: #{tpu_custom_call.1} parent=1 // pred_region
      %s80 = ssub.s32 12288, 12288
      %81 = vsyncadd [#allocation8], %s80
      %s82 = sshll.u32 [#allocation9], 4
      %s83 = int_to_ptr.vmem [resolvable:$true] %s82
      %88 = dma.hbm_to_vmem [thread:$0]  %s7, 12288, %s83, [#allocation8], 64, 64, 4
    $region33: #{tpu_custom_call.1} parent=1 // pred_fallthru
      _
    // Predicated region
    $region34: #{tpu_custom_call.1} parent=1 // pred_check
      _
    $region35: #{tpu_custom_call.1} parent=1 // pred_check_branch
      %90 = sbr.rel (0) target = $region37
    $region36: #{tpu_custom_call.1} parent=1 // pred_region
      %s92 = ssub.s32 2048, 2048
      %93 = vsyncadd [#allocation11], %s92
      %s94 = sshll.u32 [#allocation10], 4
      %s95 = int_to_ptr.vmem [resolvable:$true] %s94
      %100 = dma.hbm_to_vmem [thread:$0]  %s8, 2048, %s95, [#allocation11], 128, 128, 8
    $region37: #{tpu_custom_call.1} parent=1 // pred_fallthru
      _
    // Predicated region
    $region38: #{tpu_custom_call.1} parent=1 // pred_check
      _
    $region39: #{tpu_custom_call.1} parent=1 // pred_check_branch
      %102 = sbr.rel (0) target = $region41
    $region40: #{tpu_custom_call.1} parent=1 // pred_region
      %s104 = ssub.s32 2048, 2048
      %105 = vsyncadd [#allocation11], %s104
      %s106 = sshll.u32 [#allocation12], 4
      %s107 = int_to_ptr.vmem [resolvable:$true] %s106
      %112 = dma.hbm_to_vmem [thread:$0]  %s9, 2048, %s107, [#allocation11], 64, 64, 4
    $region41: #{tpu_custom_call.1} parent=1 // pred_fallthru
      _
    // Predicated region
    $region42: #{tpu_custom_call.1} parent=1 // pred_check
      _
    $region43: #{tpu_custom_call.1} parent=1 // pred_check_branch
      %114 = sbr.rel (0) target = $region45
    $region44: #{tpu_custom_call.1} parent=1 // pred_region
      %s116 = ssub.s32 1024, 1024
      %117 = vsyncadd [#allocation14], %s116
      %s118 = sshll.u32 [#allocation13], 4
      %s119 = int_to_ptr.vmem [resolvable:$true] %s118
      %124 = dma.hbm_to_vmem [thread:$0]  %s10, 1024, %s119, [#allocation14], 64, 64, 4
    $region45: #{tpu_custom_call.1} parent=1 // pred_fallthru
      _
    // Predicated region
    $region46: #{tpu_custom_call.1} parent=1 // pred_check
      _
    $region47: #{tpu_custom_call.1} parent=1 // pred_check_branch
      %126 = sbr.rel (0) target = $region49
    $region48: #{tpu_custom_call.1} parent=1 // pred_region
      _
    $region49: #{tpu_custom_call.1} parent=1 // pred_fallthru
      _
    // Predicated region
    $region50: #{tpu_custom_call.1} parent=1 // pred_check
      _
    $region51: #{tpu_custom_call.1} parent=1 // pred_check_branch
      %128 = sbr.rel (0) target = $region53
    $region52: #{tpu_custom_call.1} parent=1 // pred_region
      _
    $region53: #{tpu_custom_call.1} parent=1 // pred_fallthru
      _
    // Predicated region
    $region54: #{tpu_custom_call.1} parent=1 // pred_check
      _
    $region55: #{tpu_custom_call.1} parent=1 // pred_check_branch
      %130 = sbr.rel (0) target = $region57
    $region56: #{tpu_custom_call.1} parent=1 // pred_region
      %131 = dma.done [#allocation3], 4608
    $region57: #{tpu_custom_call.1} parent=1 // pred_fallthru
      _
    // Predicated region
    $region58: #{tpu_custom_call.1} parent=1 // pred_check
      _
    $region59: #{tpu_custom_call.1} parent=1 // pred_check_branch
      %133 = sbr.rel (0) target = $region61
    $region60: #{tpu_custom_call.1} parent=1 // pred_region
      %134 = dma.done [#allocation5], 256
    $region61: #{tpu_custom_call.1} parent=1 // pred_fallthru
      _
    // Predicated region
    $region62: #{tpu_custom_call.1} parent=1 // pred_check
      _
    $region63: #{tpu_custom_call.1} parent=1 // pred_check_branch
      %136 = sbr.rel (0) target = $region65
    $region64: #{tpu_custom_call.1} parent=1 // pred_region
      %137 = dma.done [#allocation5], 4096
    $region65: #{tpu_custom_call.1} parent=1 // pred_fallthru
      _
    // Predicated region
    $region66: #{tpu_custom_call.1} parent=1 // pred_check
      _
    $region67: #{tpu_custom_call.1} parent=1 // pred_check_branch
      %139 = sbr.rel (0) target = $region69
    $region68: #{tpu_custom_call.1} parent=1 // pred_region
      %140 = dma.done [#allocation8], 12288
    $region69: #{tpu_custom_call.1} parent=1 // pred_fallthru
      _
    // Predicated region
    $region70: #{tpu_custom_call.1} parent=1 // pred_check
      _
    $region71: #{tpu_custom_call.1} parent=1 // pred_check_branch
      %142 = sbr.rel (0) target = $region73
    $region72: #{tpu_custom_call.1} parent=1 // pred_region
      %143 = dma.done [#allocation8], 12288
    $region73: #{tpu_custom_call.1} parent=1 // pred_fallthru
      _
    // Predicated region
    $region74: #{tpu_custom_call.1} parent=1 // pred_check
      _
    $region75: #{tpu_custom_call.1} parent=1 // pred_check_branch
      %145 = sbr.rel (0) target = $region77
    $region76: #{tpu_custom_call.1} parent=1 // pred_region
      %146 = dma.done [#allocation11], 2048
    $region77: #{tpu_custom_call.1} parent=1 // pred_fallthru
      _
    // Predicated region
    $region78: #{tpu_custom_call.1} parent=1 // pred_check
      _
    $region79: #{tpu_custom_call.1} parent=1 // pred_check_branch
      %148 = sbr.rel (0) target = $region81
    $region80: #{tpu_custom_call.1} parent=1 // pred_region
      %149 = dma.done [#allocation11], 2048
    $region81: #{tpu_custom_call.1} parent=1 // pred_fallthru
      _
    // Predicated region
    $region82: #{tpu_custom_call.1} parent=1 // pred_check
      _
    $region83: #{tpu_custom_call.1} parent=1 // pred_check_branch
      %151 = sbr.rel (0) target = $region85
    $region84: #{tpu_custom_call.1} parent=1 // pred_region
      %152 = dma.done [#allocation14], 1024
    $region85: #{tpu_custom_call.1} parent=1 // pred_fallthru
      _
    %v154 = vld [vmem:[%s0] sm:$0xff]
    %v155 = vld [vmem:[%s0 + $0x8] sm:$0xff]
    %v156 = vld [vmem:[%s0 + $0x10] sm:$0xff]
    %v157 = vld [vmem:[%s0 + $0x18] sm:$0xff]
    %v158 = vld [vmem:[%s0 + $0x20] sm:$0xff]
    %v159 = vld [vmem:[%s0 + $0x28] sm:$0xff]
    %v160 = vld [vmem:[%s0 + $0x30] sm:$0xff]
    %v161 = vld [vmem:[%s0 + $0x38] sm:$0xff]
    %v162 = vld [vmem:[#allocation4] sm:$0xff]
    %v163 = vld [vmem:[#allocation4 + $0x8] sm:$0xff]
    %v164 = vld [vmem:[#allocation2] ss:$0 sm:$0xff]
    %vm165 = vcmask 130048
    %v167 = vsel %vm165, %v154, 0
    %v170 = vsel %vm165, %v155, 0
    %v173 = vsel %vm165, %v156, 0
    %v176 = vsel %vm165, %v157, 0
    %v179 = vsel %vm165, %v158, 0
    %v182 = vsel %vm165, %v159, 0
    %v185 = vsel %vm165, %v160, 0
    %v188 = vsel %vm165, %v161, 0
    %190 = vmatprep.subr.mxu0 0.0
    %191 = vmatpush1.msra.mxu0 0.0
    %192 = vmatprep.subr.mxu0 0.0
    %193 = vmatpush1.msra.mxu0 0.0
    %194 = vmatprep.subr.mxu0 0.0
    %195 = vmatpush1.msra.mxu0 0.0
    %196 = vmatprep.subr.mxu0 0.0
    %197 = vmatpush1.msra.mxu0 0.0
    %198 = vmatprep.subr.mxu0 0.0
    %199 = vmatpush1.msra.mxu0 0.0
    %200 = vmatprep.subr.mxu0 0.0
    %201 = vmatpush1.msra.mxu0 0.0
    %202 = vmatprep.subr.mxu0 0.0
    %203 = vmatpush1.msra.mxu0 0.0
    %204 = vmatprep.subr.mxu0 0.0
    %205 = vmatpush1.msra.mxu0 0.0
    %206 = vmatprep.subr.mxu0 0.0
    %207 = vmatpush1.msra.mxu0 0.0
    %208 = vmatprep.subr.mxu0 0.0
    %209 = vmatpush1.msra.mxu0 0.0
    %210 = vmatprep.subr.mxu0 0.0
    %211 = vmatpush1.msra.mxu0 0.0
    %212 = vmatprep.subr.mxu0 0.0
    %213 = vmatpush1.msra.mxu0 0.0
    %214 = vmatprep.subr.mxu0 0.0
    %215 = vmatpush1.msra.mxu0 0.0
    %216 = vmatprep.subr.mxu0 0.0
    %217 = vmatpush1.msra.mxu0 0.0
    %218 = vmatprep.subr.mxu0 0.0
    %219 = vmatpush1.msra.mxu0 %v163
    %220 = vmatprep.subr.mxu0 0.0
    %221 = vmatpush1.msra.mxu0 %v162
    %222 = vmatprep.subr.mxu0 0.0
    %223 = vmatpush2.msra.mxu0 0.0
    %224 = vmatprep.subr.mxu0 0.0
    %225 = vmatpush2.msra.mxu0 0.0
    %226 = vmatprep.subr.mxu0 0.0
    %227 = vmatpush2.msra.mxu0 0.0
    %228 = vmatprep.subr.mxu0 0.0
    %229 = vmatpush2.msra.mxu0 0.0
    %230 = vmatprep.subr.mxu0 0.0
    %231 = vmatpush2.msra.mxu0 0.0
    %232 = vmatprep.subr.mxu0 0.0
    %233 = vmatpush2.msra.mxu0 0.0
    %234 = vmatprep.subr.mxu0 0.0
    %235 = vmatpush2.msra.mxu0 0.0
    %236 = vmatprep.subr.mxu0 0.0
    %237 = vmatpush2.msra.mxu0 0.0
    %238 = vmatprep.subr.mxu0 0.0
    %239 = vmatpush2.msra.mxu0 0.0
    %240 = vmatprep.subr.mxu0 0.0
    %241 = vmatpush2.msra.mxu0 0.0
    %242 = vmatprep.subr.mxu0 0.0
    %243 = vmatpush2.msra.mxu0 0.0
    %244 = vmatprep.subr.mxu0 0.0
    %245 = vmatpush2.msra.mxu0 0.0
    %246 = vmatprep.subr.mxu0 0.0
    %247 = vmatpush2.msra.mxu0 0.0
    %248 = vmatprep.subr.mxu0 0.0
    %249 = vmatpush2.msra.mxu0 0.0
    %250 = vmatprep.subr.mxu0 0.0
    %251 = vmatpush2.msra.mxu0 0.0
    %252 = vmatprep.subr.mxu0 0.0
    %253 = vmatpush2.msra.mxu0 0.0
    %254 = vmatprep.mubr.f32.mxu0 0.0
    %255 = vmatmul.mubr.f32.gmra.mxu0 %v167
    %v256 = vpop.f32.mrf.mxu0
    %v257 = vadd.f32 %v164, %v256
    %v258 = vpop.f32.mrf.mxu0
    %259 = vmatprep.mubr.f32.mxu0 0.0
    %260 = vmatmul.mubr.f32.gmra.mxu0 %v170
    %v261 = vpop.f32.mrf.mxu0
    %v262 = vadd.f32 %v164, %v261
    %v263 = vpop.f32.mrf.mxu0
    %264 = vmatprep.mubr.f32.mxu0 0.0
    %265 = vmatmul.mubr.f32.gmra.mxu0 %v173
    %v266 = vpop.f32.mrf.mxu0
    %v267 = vadd.f32 %v164, %v266
    %v268 = vpop.f32.mrf.mxu0
    %269 = vmatprep.mubr.f32.mxu0 0.0
    %270 = vmatmul.mubr.f32.gmra.mxu0 %v176
    %v271 = vpop.f32.mrf.mxu0
    %v272 = vadd.f32 %v164, %v271
    %v273 = vpop.f32.mrf.mxu0
    %274 = vmatprep.mubr.f32.mxu0 0.0
    %275 = vmatmul.mubr.f32.gmra.mxu0 %v179
    %v276 = vpop.f32.mrf.mxu0
    %v277 = vadd.f32 %v164, %v276
    %v278 = vpop.f32.mrf.mxu0
    %279 = vmatprep.mubr.f32.mxu0 0.0
    %280 = vmatmul.mubr.f32.gmra.mxu0 %v182
    %v281 = vpop.f32.mrf.mxu0
    %v282 = vadd.f32 %v164, %v281
    %v283 = vpop.f32.mrf.mxu0
    %284 = vmatprep.mubr.f32.mxu0 0.0
    %285 = vmatmul.mubr.f32.gmra.mxu0 %v185
    %v286 = vpop.f32.mrf.mxu0
    %v287 = vadd.f32 %v164, %v286
    %v288 = vpop.f32.mrf.mxu0
    %289 = vmatprep.mubr.f32.mxu0 0.0
    %290 = vmatmul.mubr.f32.gmra.mxu0 %v188
    %v291 = vpop.f32.mrf.mxu0
    %v292 = vadd.f32 %v164, %v291
    %v293 = vpop.f32.mrf.mxu0
    %294 = vdwg.mxu0
    %v295 = vld [vmem:[#allocation2 + $0x1] ss:$0 sm:$0xff]
    %v296 = vld [vmem:[#allocation2 + $0x2] ss:$0 sm:$0xff]
    %297 = vadd.xlane.f32.xlu0 %v257
    %v298 = vpop.xlane.xlu0 %297
    %299 = vadd.xlane.f32.xlu0 %v262
    %v300 = vpop.xlane.xlu0 %299
    %301 = vadd.xlane.f32.xlu0 %v267
    %v302 = vpop.xlane.xlu0 %301
    %303 = vadd.xlane.f32.xlu0 %v272
    %v304 = vpop.xlane.xlu0 %303
    %305 = vadd.xlane.f32.xlu0 %v277
    %v306 = vpop.xlane.xlu0 %305
    %307 = vadd.xlane.f32.xlu0 %v282
    %v308 = vpop.xlane.xlu0 %307
    %309 = vadd.xlane.f32.xlu0 %v287
    %v310 = vpop.xlane.xlu0 %309
    %311 = vadd.xlane.f32.xlu0 %v292
    %v312 = vpop.xlane.xlu0 %311
    %v313 = vrcp.pop 128.0
    %v314 = vmul.f32 %v298, %v313
    %v315 = vmul.f32 %v300, %v313
    %v316 = vmul.f32 %v302, %v313
    %v317 = vmul.f32 %v304, %v313
    %v318 = vmul.f32 %v306, %v313
    %v319 = vmul.f32 %v308, %v313
    %v320 = vmul.f32 %v310, %v313
    %v321 = vmul.f32 %v312, %v313
    %v322 = vsub.f32 %v257, %v314
    %v323 = vsub.f32 %v262, %v315
    %v324 = vsub.f32 %v267, %v316
    %v325 = vsub.f32 %v272, %v317
    %v326 = vsub.f32 %v277, %v318
    %v327 = vsub.f32 %v282, %v319
    %v328 = vsub.f32 %v287, %v320
    %v329 = vsub.f32 %v292, %v321
    %v330 = vmul.f32 %v322, %v322
    %v331 = vmul.f32 %v323, %v323
    %v332 = vmul.f32 %v324, %v324
    %v333 = vmul.f32 %v325, %v325
    %v334 = vmul.f32 %v326, %v326
    %v335 = vmul.f32 %v327, %v327
    %v336 = vmul.f32 %v328, %v328
    %v337 = vmul.f32 %v329, %v329
    %338 = vadd.xlane.f32.xlu0 %v330
    %v339 = vpop.xlane.xlu0 %338
    %340 = vadd.xlane.f32.xlu0 %v331
    %v341 = vpop.xlane.xlu0 %340
    %342 = vadd.xlane.f32.xlu0 %v332
    %v343 = vpop.xlane.xlu0 %342
    %344 = vadd.xlane.f32.xlu0 %v333
    %v345 = vpop.xlane.xlu0 %344
    %346 = vadd.xlane.f32.xlu0 %v334
    %v347 = vpop.xlane.xlu0 %346
    %348 = vadd.xlane.f32.xlu0 %v335
    %v349 = vpop.xlane.xlu0 %348
    %350 = vadd.xlane.f32.xlu0 %v336
    %v351 = vpop.xlane.xlu0 %350
    %352 = vadd.xlane.f32.xlu0 %v337
    %v353 = vpop.xlane.xlu0 %352
    %v354 = vmul.f32 %v339, %v313
    %v355 = vmul.f32 %v341, %v313
    %v356 = vmul.f32 %v343, %v313
    %v357 = vmul.f32 %v345, %v313
    %v358 = vmul.f32 %v347, %v313
    %v359 = vmul.f32 %v349, %v313
    %v360 = vmul.f32 %v351, %v313
    %v361 = vmul.f32 %v353, %v313
    %v362 = vadd.f32 %v354, 1e-05
    %v363 = vadd.f32 %v355, 1e-05
    %v364 = vadd.f32 %v356, 1e-05
    %v365 = vadd.f32 %v357, 1e-05
    %v366 = vadd.f32 %v358, 1e-05
    %v367 = vadd.f32 %v359, 1e-05
    %v368 = vadd.f32 %v360, 1e-05
    %v369 = vadd.f32 %v361, 1e-05
    %v370 = vrsqrt.pop %v362
    %v371 = vrsqrt.pop %v363
    %v372 = vrsqrt.pop %v364
    %v373 = vrsqrt.pop %v365
    %v374 = vrsqrt.pop %v366
    %v375 = vrsqrt.pop %v367
    %v376 = vrsqrt.pop %v368
    %v377 = vrsqrt.pop %v369
    %v378 = vmul.f32 %v322, %v370
    %v379 = vmul.f32 %v323, %v371
    %v380 = vmul.f32 %v324, %v372
    %v381 = vmul.f32 %v325, %v373
    %v382 = vmul.f32 %v326, %v374
    %v383 = vmul.f32 %v327, %v375
    %v384 = vmul.f32 %v328, %v376
    %v385 = vmul.f32 %v329, %v377
    %v386 = vmul.f32 %v378, %v295
    %v387 = vmul.f32 %v379, %v295
    %v388 = vmul.f32 %v380, %v295
    %v389 = vmul.f32 %v381, %v295
    %v390 = vmul.f32 %v382, %v295
    %v391 = vmul.f32 %v383, %v295
    %v392 = vmul.f32 %v384, %v295
    %v393 = vmul.f32 %v385, %v295
    %v394 = vadd.f32 %v386, %v296
    %v395 = vadd.f32 %v387, %v296
    %v396 = vadd.f32 %v388, %v296
    %v397 = vadd.f32 %v389, %v296
    %v398 = vadd.f32 %v390, %v296
    %v399 = vadd.f32 %v391, %v296
    %v400 = vadd.f32 %v392, %v296
    %v401 = vadd.f32 %v393, %v296
    %v402 = vmul.f32 %v394, 0.5
    %v403 = vmul.f32 %v395, 0.5
    %v404 = vmul.f32 %v396, 0.5
    %v405 = vmul.f32 %v397, 0.5
    %v406 = vmul.f32 %v398, 0.5
    %v407 = vmul.f32 %v399, 0.5
    %v408 = vmul.f32 %v400, 0.5
    %v409 = vmul.f32 %v401, 0.5
    %v410 = vmul.f32 %v394, 0.044715
    %v411 = vmul.f32 %v395, 0.044715
    %v412 = vmul.f32 %v396, 0.044715
    %v413 = vmul.f32 %v397, 0.044715
    %v414 = vmul.f32 %v398, 0.044715
    %v415 = vmul.f32 %v399, 0.044715
    %v416 = vmul.f32 %v400, 0.044715
    %v417 = vmul.f32 %v401, 0.044715
    %v418 = vmul.f32 %v410, %v394
    %v419 = vmul.f32 %v411, %v395
    %v420 = vmul.f32 %v412, %v396
    %v421 = vmul.f32 %v413, %v397
    %v422 = vmul.f32 %v414, %v398
    %v423 = vmul.f32 %v415, %v399
    %v424 = vmul.f32 %v416, %v400
    %v425 = vmul.f32 %v417, %v401
    %v426 = vmul.f32 %v418, %v394
    %v427 = vmul.f32 %v419, %v395
    %v428 = vmul.f32 %v420, %v396
    %v429 = vmul.f32 %v421, %v397
    %v430 = vmul.f32 %v422, %v398
    %v431 = vmul.f32 %v423, %v399
    %v432 = vmul.f32 %v424, %v400
    %v433 = vmul.f32 %v425, %v401
    %v434 = vadd.f32 %v394, %v426
    %v435 = vadd.f32 %v395, %v427
    %v436 = vadd.f32 %v396, %v428
    %v437 = vadd.f32 %v397, %v429
    %v438 = vadd.f32 %v398, %v430
    %v439 = vadd.f32 %v399, %v431
    %v440 = vadd.f32 %v400, %v432
    %v441 = vadd.f32 %v401, %v433
    %v442 = vmul.f32 %v434, 0.7978846
    %v443 = vmul.f32 %v435, 0.7978846
    %v444 = vmul.f32 %v436, 0.7978846
    %v445 = vmul.f32 %v437, 0.7978846
    %v446 = vmul.f32 %v438, 0.7978846
    %v447 = vmul.f32 %v439, 0.7978846
    %v448 = vmul.f32 %v440, 0.7978846
    %v449 = vmul.f32 %v441, 0.7978846
    %v450 = vtanh.pop %v442
    %v451 = vtanh.pop %v443
    %v452 = vtanh.pop %v444
    %v453 = vtanh.pop %v445
    %v454 = vtanh.pop %v446
    %v455 = vtanh.pop %v447
    %v456 = vtanh.pop %v448
    %v457 = vtanh.pop %v449
    %v458 = vadd.f32 %v450, 1.0
    %v459 = vadd.f32 %v451, 1.0
    %v460 = vadd.f32 %v452, 1.0
    %v461 = vadd.f32 %v453, 1.0
    %v462 = vadd.f32 %v454, 1.0
    %v463 = vadd.f32 %v455, 1.0
    %v464 = vadd.f32 %v456, 1.0
    %v465 = vadd.f32 %v457, 1.0
    %v466 = vmul.f32 %v402, %v458
    %v467 = vmul.f32 %v403, %v459
    %v468 = vmul.f32 %v404, %v460
    %v469 = vmul.f32 %v405, %v461
    %v470 = vmul.f32 %v406, %v462
    %v471 = vmul.f32 %v407, %v463
    %v472 = vmul.f32 %v408, %v464
    %v473 = vmul.f32 %v409, %v465
    %v474 = vld [vmem:[%s3] sm:$0xf]
    %v475 = vld [vmem:[%s3 + $0x4] sm:$0xf]
    %v476 = vld [vmem:[%s3 + $0x8] sm:$0xf]
    %v477 = vld [vmem:[%s3 + $0xc] sm:$0xf]
    %v478 = vld [vmem:[%s3 + $0x10] sm:$0xf]
    %v479 = vld [vmem:[%s3 + $0x14] sm:$0xf]
    %v480 = vld [vmem:[%s3 + $0x18] sm:$0xf]
    %v481 = vld [vmem:[%s3 + $0x1c] sm:$0xf]
    %v482 = vld [vmem:[%s3 + $0x20] sm:$0xf]
    %v483 = vld [vmem:[%s3 + $0x24] sm:$0xf]
    %v484 = vld [vmem:[%s3 + $0x28] sm:$0xf]
    %v485 = vld [vmem:[%s3 + $0x2c] sm:$0xf]
    %v486 = vld [vmem:[%s3 + $0x30] sm:$0xf]
    %v487 = vld [vmem:[%s3 + $0x34] sm:$0xf]
    %v488 = vld [vmem:[%s3 + $0x38] sm:$0xf]
    %v489 = vld [vmem:[%s3 + $0x3c] sm:$0xf]
    %v490 = vpack.c.bf16 %v467, %v466
    %v491 = vpack.c.bf16 %v469, %v468
    %v492 = vpack.c.bf16 %v471, %v470
    %v493 = vpack.c.bf16 %v473, %v472
    %v494 = vld [vmem:[#allocation2 + $0x3] ss:$0 sm:$0xff]
    %v511 = vunpack.c.l.b16 %v474
    %v512 = vunpack.c.l.b16 %v475
    %v513 = vunpack.c.l.b16 %v476
    %v514 = vunpack.c.l.b16 %v477
    %v515 = vunpack.c.l.b16 %v478
    %v516 = vunpack.c.l.b16 %v479
    %v517 = vunpack.c.l.b16 %v480
    %v518 = vunpack.c.l.b16 %v481
    %v519 = vunpack.c.l.b16 %v482
    %v520 = vunpack.c.l.b16 %v483
    %v521 = vunpack.c.l.b16 %v484
    %v522 = vunpack.c.l.b16 %v485
    %v523 = vunpack.c.l.b16 %v486
    %v524 = vunpack.c.l.b16 %v487
    %v525 = vunpack.c.l.b16 %v488
    %v526 = vunpack.c.l.b16 %v489
    %v527 = vpack.c.b16 %v512, %v511
    %v528 = vpack.c.b16 %v514, %v513
    %v529 = vpack.c.b16 %v516, %v515
    %v530 = vpack.c.b16 %v518, %v517
    %v531 = vpack.c.b16 %v520, %v519
    %v532 = vpack.c.b16 %v522, %v521
    %v533 = vpack.c.b16 %v524, %v523
    %v534 = vpack.c.b16 %v526, %v525
    %543 = vmatprep.subr.bf16.mxu0 0
    %544 = vmatpush1.bf16.msra.mxu0 %v534
    %545 = vmatprep.subr.bf16.mxu0 0
    %546 = vmatpush1.bf16.msra.mxu0 %v533
    %547 = vmatprep.subr.bf16.mxu0 0
    %548 = vmatpush1.bf16.msra.mxu0 %v532
    %549 = vmatprep.subr.bf16.mxu0 0
    %550 = vmatpush1.bf16.msra.mxu0 %v531
    %551 = vmatprep.subr.bf16.mxu0 0
    %552 = vmatpush1.bf16.msra.mxu0 %v530
    %553 = vmatprep.subr.bf16.mxu0 0
    %554 = vmatpush1.bf16.msra.mxu0 %v529
    %555 = vmatprep.subr.bf16.mxu0 0
    %556 = vmatpush1.bf16.msra.mxu0 %v528
    %557 = vmatprep.subr.bf16.mxu0 0
    %558 = vmatpush1.bf16.msra.mxu0 %v527
    %559 = vmatprep.subr.bf16.mxu0 0
    %560 = vmatpush2.bf16.msra.mxu0 0
    %561 = vmatprep.subr.bf16.mxu0 0
    %562 = vmatpush2.bf16.msra.mxu0 0
    %563 = vmatprep.subr.bf16.mxu0 0
    %564 = vmatpush2.bf16.msra.mxu0 0
    %565 = vmatprep.subr.bf16.mxu0 0
    %566 = vmatpush2.bf16.msra.mxu0 0
    %567 = vmatprep.subr.bf16.mxu0 0
    %568 = vmatpush2.bf16.msra.mxu0 0
    %569 = vmatprep.subr.bf16.mxu0 0
    %570 = vmatpush2.bf16.msra.mxu0 0
    %571 = vmatprep.subr.bf16.mxu0 0
    %572 = vmatpush2.bf16.msra.mxu0 0
    %573 = vmatprep.subr.bf16.mxu0 0
    %574 = vmatpush2.bf16.msra.mxu0 0
    %575 = vmatprep.mubr.bf16.mxu0 0
    %576 = vmatmul.mubr.bf16.gmra.mxu0 %v490
    %v577 = vpop.f32.mrf.mxu0
    %v578 = vadd.f32 %v494, %v577
    %v579 = vpop.f32.mrf.mxu0
    %v580 = vpop.f32.mrf.mxu0
    %v581 = vadd.f32 %v494, %v580
    %v582 = vpop.f32.mrf.mxu0
    %583 = vmatprep.mubr.bf16.mxu0 0
    %584 = vmatmul.mubr.bf16.gmra.mxu0 %v491
    %v585 = vpop.f32.mrf.mxu0
    %v586 = vadd.f32 %v494, %v585
    %v587 = vpop.f32.mrf.mxu0
    %v588 = vpop.f32.mrf.mxu0
    %v589 = vadd.f32 %v494, %v588
    %v590 = vpop.f32.mrf.mxu0
    %591 = vmatprep.mubr.bf16.mxu0 0
    %592 = vmatmul.mubr.bf16.gmra.mxu0 %v492
    %v593 = vpop.f32.mrf.mxu0
    %v594 = vadd.f32 %v494, %v593
    %v595 = vpop.f32.mrf.mxu0
    %v596 = vpop.f32.mrf.mxu0
    %v597 = vadd.f32 %v494, %v596
    %v598 = vpop.f32.mrf.mxu0
    %599 = vmatprep.mubr.bf16.mxu0 0
    %600 = vmatmul.mubr.bf16.gmra.mxu0 %v493
    %v601 = vpop.f32.mrf.mxu0
    %v602 = vadd.f32 %v494, %v601
    %v603 = vpop.f32.mrf.mxu0
    %v604 = vpop.f32.mrf.mxu0
    %v605 = vadd.f32 %v494, %v604
    %v606 = vpop.f32.mrf.mxu0
    %607 = vdwg.mxu0
    %v608 = vld [vmem:[#allocation2 + $0x4] ss:$0 sm:$0xff]
    %v609 = vld [vmem:[#allocation2 + $0x5] ss:$0 sm:$0xff]
    %610 = vadd.xlane.f32.xlu0 %v578
    %v611 = vpop.xlane.xlu0 %610
    %612 = vadd.xlane.f32.xlu0 %v581
    %v613 = vpop.xlane.xlu0 %612
    %614 = vadd.xlane.f32.xlu0 %v586
    %v615 = vpop.xlane.xlu0 %614
    %616 = vadd.xlane.f32.xlu0 %v589
    %v617 = vpop.xlane.xlu0 %616
    %618 = vadd.xlane.f32.xlu0 %v594
    %v619 = vpop.xlane.xlu0 %618
    %620 = vadd.xlane.f32.xlu0 %v597
    %v621 = vpop.xlane.xlu0 %620
    %622 = vadd.xlane.f32.xlu0 %v602
    %v623 = vpop.xlane.xlu0 %622
    %624 = vadd.xlane.f32.xlu0 %v605
    %v625 = vpop.xlane.xlu0 %624
    %v626 = vmul.f32 %v611, %v313
    %v627 = vmul.f32 %v613, %v313
    %v628 = vmul.f32 %v615, %v313
    %v629 = vmul.f32 %v617, %v313
    %v630 = vmul.f32 %v619, %v313
    %v631 = vmul.f32 %v621, %v313
    %v632 = vmul.f32 %v623, %v313
    %v633 = vmul.f32 %v625, %v313
    %v634 = vsub.f32 %v578, %v626
    %v635 = vsub.f32 %v581, %v627
    %v636 = vsub.f32 %v586, %v628
    %v637 = vsub.f32 %v589, %v629
    %v638 = vsub.f32 %v594, %v630
    %v639 = vsub.f32 %v597, %v631
    %v640 = vsub.f32 %v602, %v632
    %v641 = vsub.f32 %v605, %v633
    %v642 = vmul.f32 %v634, %v634
    %v643 = vmul.f32 %v635, %v635
    %v644 = vmul.f32 %v636, %v636
    %v645 = vmul.f32 %v637, %v637
    %v646 = vmul.f32 %v638, %v638
    %v647 = vmul.f32 %v639, %v639
    %v648 = vmul.f32 %v640, %v640
    %v649 = vmul.f32 %v641, %v641
    %650 = vadd.xlane.f32.xlu0 %v642
    %v651 = vpop.xlane.xlu0 %650
    %652 = vadd.xlane.f32.xlu0 %v643
    %v653 = vpop.xlane.xlu0 %652
    %654 = vadd.xlane.f32.xlu0 %v644
    %v655 = vpop.xlane.xlu0 %654
    %656 = vadd.xlane.f32.xlu0 %v645
    %v657 = vpop.xlane.xlu0 %656
    %658 = vadd.xlane.f32.xlu0 %v646
    %v659 = vpop.xlane.xlu0 %658
    %660 = vadd.xlane.f32.xlu0 %v647
    %v661 = vpop.xlane.xlu0 %660
    %662 = vadd.xlane.f32.xlu0 %v648
    %v663 = vpop.xlane.xlu0 %662
    %664 = vadd.xlane.f32.xlu0 %v649
    %v665 = vpop.xlane.xlu0 %664
    %v666 = vmul.f32 %v651, %v313
    %v667 = vmul.f32 %v653, %v313
    %v668 = vmul.f32 %v655, %v313
    %v669 = vmul.f32 %v657, %v313
    %v670 = vmul.f32 %v659, %v313
    %v671 = vmul.f32 %v661, %v313
    %v672 = vmul.f32 %v663, %v313
    %v673 = vmul.f32 %v665, %v313
    %v674 = vadd.f32 %v666, 1e-05
    %v675 = vadd.f32 %v667, 1e-05
    %v676 = vadd.f32 %v668, 1e-05
    %v677 = vadd.f32 %v669, 1e-05
    %v678 = vadd.f32 %v670, 1e-05
    %v679 = vadd.f32 %v671, 1e-05
    %v680 = vadd.f32 %v672, 1e-05
    %v681 = vadd.f32 %v673, 1e-05
    %v682 = vrsqrt.pop %v674
    %v683 = vrsqrt.pop %v675
    %v684 = vrsqrt.pop %v676
    %v685 = vrsqrt.pop %v677
    %v686 = vrsqrt.pop %v678
    %v687 = vrsqrt.pop %v679
    %v688 = vrsqrt.pop %v680
    %v689 = vrsqrt.pop %v681
    %v690 = vmul.f32 %v634, %v682
    %v691 = vmul.f32 %v635, %v683
    %v692 = vmul.f32 %v636, %v684
    %v693 = vmul.f32 %v637, %v685
    %v694 = vmul.f32 %v638, %v686
    %v695 = vmul.f32 %v639, %v687
    %v696 = vmul.f32 %v640, %v688
    %v697 = vmul.f32 %v641, %v689
    %v698 = vmul.f32 %v690, %v608
    %v699 = vmul.f32 %v691, %v608
    %v700 = vmul.f32 %v692, %v608
    %v701 = vmul.f32 %v693, %v608
    %v702 = vmul.f32 %v694, %v608
    %v703 = vmul.f32 %v695, %v608
    %v704 = vmul.f32 %v696, %v608
    %v705 = vmul.f32 %v697, %v608
    %v706 = vadd.f32 %v698, %v609
    %v707 = vadd.f32 %v699, %v609
    %v708 = vadd.f32 %v700, %v609
    %v709 = vadd.f32 %v701, %v609
    %v710 = vadd.f32 %v702, %v609
    %v711 = vadd.f32 %v703, %v609
    %v712 = vadd.f32 %v704, %v609
    %v713 = vadd.f32 %v705, %v609
    %v714 = vmul.f32 %v706, 0.5
    %v715 = vmul.f32 %v707, 0.5
    %v716 = vmul.f32 %v708, 0.5
    %v717 = vmul.f32 %v709, 0.5
    %v718 = vmul.f32 %v710, 0.5
    %v719 = vmul.f32 %v711, 0.5
    %v720 = vmul.f32 %v712, 0.5
    %v721 = vmul.f32 %v713, 0.5
    %v722 = vmul.f32 %v706, 0.044715
    %v723 = vmul.f32 %v707, 0.044715
    %v724 = vmul.f32 %v708, 0.044715
    %v725 = vmul.f32 %v709, 0.044715
    %v726 = vmul.f32 %v710, 0.044715
    %v727 = vmul.f32 %v711, 0.044715
    %v728 = vmul.f32 %v712, 0.044715
    %v729 = vmul.f32 %v713, 0.044715
    %v730 = vmul.f32 %v722, %v706
    %v731 = vmul.f32 %v723, %v707
    %v732 = vmul.f32 %v724, %v708
    %v733 = vmul.f32 %v725, %v709
    %v734 = vmul.f32 %v726, %v710
    %v735 = vmul.f32 %v727, %v711
    %v736 = vmul.f32 %v728, %v712
    %v737 = vmul.f32 %v729, %v713
    %v738 = vmul.f32 %v730, %v706
    %v739 = vmul.f32 %v731, %v707
    %v740 = vmul.f32 %v732, %v708
    %v741 = vmul.f32 %v733, %v709
    %v742 = vmul.f32 %v734, %v710
    %v743 = vmul.f32 %v735, %v711
    %v744 = vmul.f32 %v736, %v712
    %v745 = vmul.f32 %v737, %v713
    %v746 = vadd.f32 %v706, %v738
    %v747 = vadd.f32 %v707, %v739
    %v748 = vadd.f32 %v708, %v740
    %v749 = vadd.f32 %v709, %v741
    %v750 = vadd.f32 %v710, %v742
    %v751 = vadd.f32 %v711, %v743
    %v752 = vadd.f32 %v712, %v744
    %v753 = vadd.f32 %v713, %v745
    %v754 = vmul.f32 %v746, 0.7978846
    %v755 = vmul.f32 %v747, 0.7978846
    %v756 = vmul.f32 %v748, 0.7978846
    %v757 = vmul.f32 %v749, 0.7978846
    %v758 = vmul.f32 %v750, 0.7978846
    %v759 = vmul.f32 %v751, 0.7978846
    %v760 = vmul.f32 %v752, 0.7978846
    %v761 = vmul.f32 %v753, 0.7978846
    %v762 = vtanh.pop %v754
    %v763 = vtanh.pop %v755
    %v764 = vtanh.pop %v756
    %v765 = vtanh.pop %v757
    %v766 = vtanh.pop %v758
    %v767 = vtanh.pop %v759
    %v768 = vtanh.pop %v760
    %v769 = vtanh.pop %v761
    %v770 = vadd.f32 %v762, 1.0
    %v771 = vadd.f32 %v763, 1.0
    %v772 = vadd.f32 %v764, 1.0
    %v773 = vadd.f32 %v765, 1.0
    %v774 = vadd.f32 %v766, 1.0
    %v775 = vadd.f32 %v767, 1.0
    %v776 = vadd.f32 %v768, 1.0
    %v777 = vadd.f32 %v769, 1.0
    %v778 = vmul.f32 %v714, %v770
    %v779 = vmul.f32 %v715, %v771
    %v780 = vmul.f32 %v716, %v772
    %v781 = vmul.f32 %v717, %v773
    %v782 = vmul.f32 %v718, %v774
    %v783 = vmul.f32 %v719, %v775
    %v784 = vmul.f32 %v720, %v776
    %v785 = vmul.f32 %v721, %v777
    %v786 = vld [vmem:[#allocation2 + $0x6] ss:$0 sm:$0xff]
    %v787 = vadd.f32 %v778, %v786
    %v788 = vadd.f32 %v779, %v786
    %v789 = vadd.f32 %v780, %v786
    %v790 = vadd.f32 %v781, %v786
    %v791 = vadd.f32 %v782, %v786
    %v792 = vadd.f32 %v783, %v786
    %v793 = vadd.f32 %v784, %v786
    %v794 = vadd.f32 %v785, %v786
    %v795 = vld [vmem:[#allocation6] sm:$0xff]
    %v796 = vld [vmem:[#allocation6 + $0x8] sm:$0xff]
    %v797 = vld [vmem:[#allocation6 + $0x10] sm:$0xff]
    %v798 = vld [vmem:[#allocation6 + $0x18] sm:$0xff]
    %v799 = vld [vmem:[#allocation6 + $0x20] sm:$0xff]
    %v800 = vld [vmem:[#allocation6 + $0x28] sm:$0xff]
    %v801 = vld [vmem:[#allocation6 + $0x30] sm:$0xff]
    %v802 = vld [vmem:[#allocation6 + $0x38] sm:$0xff]
    %v803 = vld [vmem:[#allocation6 + $0x40] sm:$0xff]
    %v804 = vld [vmem:[#allocation6 + $0x48] sm:$0xff]
    %v805 = vld [vmem:[#allocation6 + $0x50] sm:$0xff]
    %v806 = vld [vmem:[#allocation6 + $0x58] sm:$0xff]
    %v807 = vld [vmem:[#allocation6 + $0x60] sm:$0xff]
    %v808 = vld [vmem:[#allocation6 + $0x68] sm:$0xff]
    %v809 = vld [vmem:[#allocation6 + $0x70] sm:$0xff]
    %v810 = vld [vmem:[#allocation6 + $0x78] sm:$0xff]
    %v811 = vld [vmem:[#allocation6 + $0x80] sm:$0xff]
    %v812 = vld [vmem:[#allocation6 + $0x88] sm:$0xff]
    %v813 = vld [vmem:[#allocation6 + $0x90] sm:$0xff]
    %v814 = vld [vmem:[#allocation6 + $0x98] sm:$0xff]
    %v815 = vld [vmem:[#allocation6 + $0xa0] sm:$0xff]
    %v816 = vld [vmem:[#allocation6 + $0xa8] sm:$0xff]
    %v817 = vld [vmem:[#allocation6 + $0xb0] sm:$0xff]
    %v818 = vld [vmem:[#allocation6 + $0xb8] sm:$0xff]
    %v819 = vld [vmem:[#allocation6 + $0xc0] sm:$0xff]
    %v820 = vld [vmem:[#allocation6 + $0xc8] sm:$0xff]
    %v821 = vld [vmem:[#allocation6 + $0xd0] sm:$0xff]
    %v822 = vld [vmem:[#allocation6 + $0xd8] sm:$0xff]
    %v823 = vld [vmem:[#allocation6 + $0xe0] sm:$0xff]
    %v824 = vld [vmem:[#allocation6 + $0xe8] sm:$0xff]
    %v825 = vld [vmem:[#allocation6 + $0xf0] sm:$0xff]
    %v826 = vld [vmem:[#allocation6 + $0xf8] sm:$0xff]
    %v827 = vpack.c.bf16 %v788, %v787
    %v828 = vpack.c.bf16 %v790, %v789
    %v829 = vpack.c.bf16 %v792, %v791
    %v830 = vpack.c.bf16 %v794, %v793
    %s831 = scalar_lea.vmem [#allocation2], 7
    %v832 = vld [vmem:[%s831] ss:$8 sm:$0xf]
    %v834 = vlaneseq
    %v835 = vshrl.u32 %v834, 7
    %v836 = vsub.s32 0, %v835
    %v837 = vrot.slane %v832, %v836
    %v838 = vlaneseq
    %v839 = vshrl.u32 %v838, 7
    %v840 = vsub.s32 1, %v839
    %v841 = vrot.slane %v832, %v840
    %v842 = vlaneseq
    %v843 = vshrl.u32 %v842, 7
    %v844 = vsub.s32 2, %v843
    %v845 = vrot.slane %v832, %v844
    %v846 = vlaneseq
    %v847 = vshrl.u32 %v846, 7
    %v848 = vsub.s32 3, %v847
    %v849 = vrot.slane %v832, %v848
    %v886 = vunpack.c.l.b16 %v795
    %v887 = vunpack.c.h.b16 %v795
    %v888 = vunpack.c.l.b16 %v796
    %v889 = vunpack.c.h.b16 %v796
    %v890 = vunpack.c.l.b16 %v797
    %v891 = vunpack.c.h.b16 %v797
    %v892 = vunpack.c.l.b16 %v798
    %v893 = vunpack.c.h.b16 %v798
    %v894 = vunpack.c.l.b16 %v799
    %v895 = vunpack.c.h.b16 %v799
    %v896 = vunpack.c.l.b16 %v800
    %v897 = vunpack.c.h.b16 %v800
    %v898 = vunpack.c.l.b16 %v801
    %v899 = vunpack.c.h.b16 %v801
    %v900 = vunpack.c.l.b16 %v802
    %v901 = vunpack.c.h.b16 %v802
    %v902 = vunpack.c.l.b16 %v803
    %v903 = vunpack.c.h.b16 %v803
    %v904 = vunpack.c.l.b16 %v804
    %v905 = vunpack.c.h.b16 %v804
    %v906 = vunpack.c.l.b16 %v805
    %v907 = vunpack.c.h.b16 %v805
    %v908 = vunpack.c.l.b16 %v806
    %v909 = vunpack.c.h.b16 %v806
    %v910 = vunpack.c.l.b16 %v807
    %v911 = vunpack.c.h.b16 %v807
    %v912 = vunpack.c.l.b16 %v808
    %v913 = vunpack.c.h.b16 %v808
    %v914 = vunpack.c.l.b16 %v809
    %v915 = vunpack.c.h.b16 %v809
    %v916 = vunpack.c.l.b16 %v810
    %v917 = vunpack.c.h.b16 %v810
    %v918 = vunpack.c.l.b16 %v811
    %v919 = vunpack.c.h.b16 %v811
    %v920 = vunpack.c.l.b16 %v812
    %v921 = vunpack.c.h.b16 %v812
    %v922 = vunpack.c.l.b16 %v813
    %v923 = vunpack.c.h.b16 %v813
    %v924 = vunpack.c.l.b16 %v814
    %v925 = vunpack.c.h.b16 %v814
    %v926 = vunpack.c.l.b16 %v815
    %v927 = vunpack.c.h.b16 %v815
    %v928 = vunpack.c.l.b16 %v816
    %v929 = vunpack.c.h.b16 %v816
    %v930 = vunpack.c.l.b16 %v817
    %v931 = vunpack.c.h.b16 %v817
    %v932 = vunpack.c.l.b16 %v818
    %v933 = vunpack.c.h.b16 %v818
    %v934 = vunpack.c.l.b16 %v819
    %v935 = vunpack.c.h.b16 %v819
    %v936 = vunpack.c.l.b16 %v820
    %v937 = vunpack.c.h.b16 %v820
    %v938 = vunpack.c.l.b16 %v821
    %v939 = vunpack.c.h.b16 %v821
    %v940 = vunpack.c.l.b16 %v822
    %v941 = vunpack.c.h.b16 %v822
    %v942 = vunpack.c.l.b16 %v823
    %v943 = vunpack.c.h.b16 %v823
    %v944 = vunpack.c.l.b16 %v824
    %v945 = vunpack.c.h.b16 %v824
    %v946 = vunpack.c.l.b16 %v825
    %v947 = vunpack.c.h.b16 %v825
    %v948 = vunpack.c.l.b16 %v826
    %v949 = vunpack.c.h.b16 %v826
    %v950 = vpack.c.b16 %v890, %v886
    %v951 = vpack.c.b16 %v891, %v887
    %v952 = vpack.c.b16 %v892, %v888
    %v953 = vpack.c.b16 %v893, %v889
    %v954 = vpack.c.b16 %v898, %v894
    %v955 = vpack.c.b16 %v899, %v895
    %v956 = vpack.c.b16 %v900, %v896
    %v957 = vpack.c.b16 %v901, %v897
    %v958 = vpack.c.b16 %v906, %v902
    %v959 = vpack.c.b16 %v907, %v903
    %v960 = vpack.c.b16 %v908, %v904
    %v961 = vpack.c.b16 %v909, %v905
    %v962 = vpack.c.b16 %v914, %v910
    %v963 = vpack.c.b16 %v915, %v911
    %v964 = vpack.c.b16 %v916, %v912
    %v965 = vpack.c.b16 %v917, %v913
    %v966 = vpack.c.b16 %v922, %v918
    %v967 = vpack.c.b16 %v923, %v919
    %v968 = vpack.c.b16 %v924, %v920
    %v969 = vpack.c.b16 %v925, %v921
    %v970 = vpack.c.b16 %v930, %v926
    %v971 = vpack.c.b16 %v931, %v927
    %v972 = vpack.c.b16 %v932, %v928
    %v973 = vpack.c.b16 %v933, %v929
    %v974 = vpack.c.b16 %v938, %v934
    %v975 = vpack.c.b16 %v939, %v935
    %v976 = vpack.c.b16 %v940, %v936
    %v977 = vpack.c.b16 %v941, %v937
    %v978 = vpack.c.b16 %v946, %v942
    %v979 = vpack.c.b16 %v947, %v943
    %v980 = vpack.c.b16 %v948, %v944
    %v981 = vpack.c.b16 %v949, %v945
    %1014 = vmatprep.subr.bf16.mxu0 %v979
    %1015 = vmatpush1.bf16.msra.mxu0 %v978
    %1016 = vmatprep.subr.bf16.mxu0 %v975
    %1017 = vmatpush1.bf16.msra.mxu0 %v974
    %1018 = vmatprep.subr.bf16.mxu0 %v971
    %1019 = vmatpush1.bf16.msra.mxu0 %v970
    %1020 = vmatprep.subr.bf16.mxu0 %v967
    %1021 = vmatpush1.bf16.msra.mxu0 %v966
    %1022 = vmatprep.subr.bf16.mxu0 %v963
    %1023 = vmatpush1.bf16.msra.mxu0 %v962
    %1024 = vmatprep.subr.bf16.mxu0 %v959
    %1025 = vmatpush1.bf16.msra.mxu0 %v958
    %1026 = vmatprep.subr.bf16.mxu0 %v955
    %1027 = vmatpush1.bf16.msra.mxu0 %v954
    %1028 = vmatprep.subr.bf16.mxu0 %v951
    %1029 = vmatpush1.bf16.msra.mxu0 %v950
    %1030 = vmatprep.subr.bf16.mxu0 0
    %1031 = vmatpush2.bf16.msra.mxu0 0
    %1032 = vmatprep.subr.bf16.mxu0 0
    %1033 = vmatpush2.bf16.msra.mxu0 0
    %1034 = vmatprep.subr.bf16.mxu0 0
    %1035 = vmatpush2.bf16.msra.mxu0 0
    %1036 = vmatprep.subr.bf16.mxu0 0
    %1037 = vmatpush2.bf16.msra.mxu0 0
    %1038 = vmatprep.subr.bf16.mxu0 0
    %1039 = vmatpush2.bf16.msra.mxu0 0
    %1040 = vmatprep.subr.bf16.mxu0 0
    %1041 = vmatpush2.bf16.msra.mxu0 0
    %1042 = vmatprep.subr.bf16.mxu0 0
    %1043 = vmatpush2.bf16.msra.mxu0 0
    %1044 = vmatprep.subr.bf16.mxu0 0
    %1045 = vmatpush2.bf16.msra.mxu0 0
    %1046 = vmatprep.mubr.bf16.mxu0 0
    %1047 = vmatmul.mubr.bf16.gmra.mxu0 %v827
    %v1048 = vpop.f32.mrf.mxu0
    %v1049 = vadd.f32 %v837, %v1048
    %v1050 = vpop.f32.mrf.mxu0
    %v1051 = vadd.f32 %v841, %v1050
    %v1052 = vpop.f32.mrf.mxu0
    %v1053 = vadd.f32 %v837, %v1052
    %v1054 = vpop.f32.mrf.mxu0
    %v1055 = vadd.f32 %v841, %v1054
    %1056 = vmatprep.mubr.bf16.mxu0 0
    %1057 = vmatmul.mubr.bf16.gmra.mxu0 %v828
    %v1058 = vpop.f32.mrf.mxu0
    %v1059 = vadd.f32 %v837, %v1058
    %v1060 = vpop.f32.mrf.mxu0
    %v1061 = vadd.f32 %v841, %v1060
    %v1062 = vpop.f32.mrf.mxu0
    %v1063 = vadd.f32 %v837, %v1062
    %v1064 = vpop.f32.mrf.mxu0
    %v1065 = vadd.f32 %v841, %v1064
    %1066 = vmatprep.mubr.bf16.mxu0 0
    %1067 = vmatmul.mubr.bf16.gmra.mxu0 %v829
    %v1068 = vpop.f32.mrf.mxu0
    %v1069 = vadd.f32 %v837, %v1068
    %v1070 = vpop.f32.mrf.mxu0
    %v1071 = vadd.f32 %v841, %v1070
    %v1072 = vpop.f32.mrf.mxu0
    %v1073 = vadd.f32 %v837, %v1072
    %v1074 = vpop.f32.mrf.mxu0
    %v1075 = vadd.f32 %v841, %v1074
    %1076 = vmatprep.mubr.bf16.mxu0 0
    %1077 = vmatmul.mubr.bf16.gmra.mxu0 %v830
    %v1078 = vpop.f32.mrf.mxu0
    %v1079 = vadd.f32 %v837, %v1078
    %v1080 = vpop.f32.mrf.mxu0
    %v1081 = vadd.f32 %v841, %v1080
    %v1082 = vpop.f32.mrf.mxu0
    %v1083 = vadd.f32 %v837, %v1082
    %v1084 = vpop.f32.mrf.mxu0
    %v1085 = vadd.f32 %v841, %v1084
    %1086 = vdwg.mxu0
    %1087 = vmatprep.subr.bf16.mxu0 %v981
    %1088 = vmatpush1.bf16.msra.mxu0 %v980
    %1089 = vmatprep.subr.bf16.mxu0 %v977
    %1090 = vmatpush1.bf16.msra.mxu0 %v976
    %1091 = vmatprep.subr.bf16.mxu0 %v973
    %1092 = vmatpush1.bf16.msra.mxu0 %v972
    %1093 = vmatprep.subr.bf16.mxu0 %v969
    %1094 = vmatpush1.bf16.msra.mxu0 %v968
    %1095 = vmatprep.subr.bf16.mxu0 %v965
    %1096 = vmatpush1.bf16.msra.mxu0 %v964
    %1097 = vmatprep.subr.bf16.mxu0 %v961
    %1098 = vmatpush1.bf16.msra.mxu0 %v960
    %1099 = vmatprep.subr.bf16.mxu0 %v957
    %1100 = vmatpush1.bf16.msra.mxu0 %v956
    %1101 = vmatprep.subr.bf16.mxu0 %v953
    %1102 = vmatpush1.bf16.msra.mxu0 %v952
    %1103 = vmatprep.subr.bf16.mxu0 0
    %1104 = vmatpush2.bf16.msra.mxu0 0
    %1105 = vmatprep.subr.bf16.mxu0 0
    %1106 = vmatpush2.bf16.msra.mxu0 0
    %1107 = vmatprep.subr.bf16.mxu0 0
    %1108 = vmatpush2.bf16.msra.mxu0 0
    %1109 = vmatprep.subr.bf16.mxu0 0
    %1110 = vmatpush2.bf16.msra.mxu0 0
    %1111 = vmatprep.subr.bf16.mxu0 0
    %1112 = vmatpush2.bf16.msra.mxu0 0
    %1113 = vmatprep.subr.bf16.mxu0 0
    %1114 = vmatpush2.bf16.msra.mxu0 0
    %1115 = vmatprep.subr.bf16.mxu0 0
    %1116 = vmatpush2.bf16.msra.mxu0 0
    %1117 = vmatprep.subr.bf16.mxu0 0
    %1118 = vmatpush2.bf16.msra.mxu0 0
    %1119 = vmatprep.mubr.bf16.mxu0 0
    %1120 = vmatmul.mubr.bf16.gmra.mxu0 %v827
    %v1121 = vpop.f32.mrf.mxu0
    %v1122 = vadd.f32 %v845, %v1121
    %v1123 = vpop.f32.mrf.mxu0
    %v1124 = vadd.f32 %v849, %v1123
    %v1125 = vpop.f32.mrf.mxu0
    %v1126 = vadd.f32 %v845, %v1125
    %v1127 = vpop.f32.mrf.mxu0
    %v1128 = vadd.f32 %v849, %v1127
    %1129 = vmatprep.mubr.bf16.mxu0 0
    %1130 = vmatmul.mubr.bf16.gmra.mxu0 %v828
    %v1131 = vpop.f32.mrf.mxu0
    %v1132 = vadd.f32 %v845, %v1131
    %v1133 = vpop.f32.mrf.mxu0
    %v1134 = vadd.f32 %v849, %v1133
    %v1135 = vpop.f32.mrf.mxu0
    %v1136 = vadd.f32 %v845, %v1135
    %v1137 = vpop.f32.mrf.mxu0
    %v1138 = vadd.f32 %v849, %v1137
    %1139 = vmatprep.mubr.bf16.mxu0 0
    %1140 = vmatmul.mubr.bf16.gmra.mxu0 %v829
    %v1141 = vpop.f32.mrf.mxu0
    %v1142 = vadd.f32 %v845, %v1141
    %v1143 = vpop.f32.mrf.mxu0
    %v1144 = vadd.f32 %v849, %v1143
    %v1145 = vpop.f32.mrf.mxu0
    %v1146 = vadd.f32 %v845, %v1145
    %v1147 = vpop.f32.mrf.mxu0
    %v1148 = vadd.f32 %v849, %v1147
    %1149 = vmatprep.mubr.bf16.mxu0 0
    %1150 = vmatmul.mubr.bf16.gmra.mxu0 %v830
    %v1151 = vpop.f32.mrf.mxu0
    %v1152 = vadd.f32 %v845, %v1151
    %v1153 = vpop.f32.mrf.mxu0
    %v1154 = vadd.f32 %v849, %v1153
    %v1155 = vpop.f32.mrf.mxu0
    %v1156 = vadd.f32 %v845, %v1155
    %v1157 = vpop.f32.mrf.mxu0
    %v1158 = vadd.f32 %v849, %v1157
    %1159 = vdwg.mxu0
    %v1160 = vld [vmem:[#allocation2 + $0x30] ss:$0 sm:$0xff]
    %v1161 = vld [vmem:[#allocation2 + $0x31] ss:$0 sm:$0xff]
    %1162 = vadd.xlane.f32.xlu0 %v1049
    %v1163 = vpop.xlane.xlu0 %1162
    %1164 = vadd.xlane.f32.xlu0 %v1053
    %v1165 = vpop.xlane.xlu0 %1164
    %1166 = vadd.xlane.f32.xlu0 %v1059
    %v1167 = vpop.xlane.xlu0 %1166
    %1168 = vadd.xlane.f32.xlu0 %v1063
    %v1169 = vpop.xlane.xlu0 %1168
    %1170 = vadd.xlane.f32.xlu0 %v1069
    %v1171 = vpop.xlane.xlu0 %1170
    %1172 = vadd.xlane.f32.xlu0 %v1073
    %v1173 = vpop.xlane.xlu0 %1172
    %1174 = vadd.xlane.f32.xlu0 %v1079
    %v1175 = vpop.xlane.xlu0 %1174
    %1176 = vadd.xlane.f32.xlu0 %v1083
    %v1177 = vpop.xlane.xlu0 %1176
    %v1178 = vmul.f32 %v1163, %v313
    %v1179 = vmul.f32 %v1165, %v313
    %v1180 = vmul.f32 %v1167, %v313
    %v1181 = vmul.f32 %v1169, %v313
    %v1182 = vmul.f32 %v1171, %v313
    %v1183 = vmul.f32 %v1173, %v313
    %v1184 = vmul.f32 %v1175, %v313
    %v1185 = vmul.f32 %v1177, %v313
    %v1186 = vsub.f32 %v1049, %v1178
    %v1187 = vsub.f32 %v1053, %v1179
    %v1188 = vsub.f32 %v1059, %v1180
    %v1189 = vsub.f32 %v1063, %v1181
    %v1190 = vsub.f32 %v1069, %v1182
    %v1191 = vsub.f32 %v1073, %v1183
    %v1192 = vsub.f32 %v1079, %v1184
    %v1193 = vsub.f32 %v1083, %v1185
    %v1194 = vmul.f32 %v1186, %v1186
    %v1195 = vmul.f32 %v1187, %v1187
    %v1196 = vmul.f32 %v1188, %v1188
    %v1197 = vmul.f32 %v1189, %v1189
    %v1198 = vmul.f32 %v1190, %v1190
    %v1199 = vmul.f32 %v1191, %v1191
    %v1200 = vmul.f32 %v1192, %v1192
    %v1201 = vmul.f32 %v1193, %v1193
    %1202 = vadd.xlane.f32.xlu0 %v1194
    %v1203 = vpop.xlane.xlu0 %1202
    %1204 = vadd.xlane.f32.xlu0 %v1195
    %v1205 = vpop.xlane.xlu0 %1204
    %1206 = vadd.xlane.f32.xlu0 %v1196
    %v1207 = vpop.xlane.xlu0 %1206
    %1208 = vadd.xlane.f32.xlu0 %v1197
    %v1209 = vpop.xlane.xlu0 %1208
    %1210 = vadd.xlane.f32.xlu0 %v1198
    %v1211 = vpop.xlane.xlu0 %1210
    %1212 = vadd.xlane.f32.xlu0 %v1199
    %v1213 = vpop.xlane.xlu0 %1212
    %1214 = vadd.xlane.f32.xlu0 %v1200
    %v1215 = vpop.xlane.xlu0 %1214
    %1216 = vadd.xlane.f32.xlu0 %v1201
    %v1217 = vpop.xlane.xlu0 %1216
    %v1218 = vmul.f32 %v1203, %v313
    %v1219 = vmul.f32 %v1205, %v313
    %v1220 = vmul.f32 %v1207, %v313
    %v1221 = vmul.f32 %v1209, %v313
    %v1222 = vmul.f32 %v1211, %v313
    %v1223 = vmul.f32 %v1213, %v313
    %v1224 = vmul.f32 %v1215, %v313
    %v1225 = vmul.f32 %v1217, %v313
    %v1226 = vadd.f32 %v1218, 1e-05
    %v1227 = vadd.f32 %v1219, 1e-05
    %v1228 = vadd.f32 %v1220, 1e-05
    %v1229 = vadd.f32 %v1221, 1e-05
    %v1230 = vadd.f32 %v1222, 1e-05
    %v1231 = vadd.f32 %v1223, 1e-05
    %v1232 = vadd.f32 %v1224, 1e-05
    %v1233 = vadd.f32 %v1225, 1e-05
    %v1234 = vrsqrt.pop %v1226
    %v1235 = vrsqrt.pop %v1227
    %v1236 = vrsqrt.pop %v1228
    %v1237 = vrsqrt.pop %v1229
    %v1238 = vrsqrt.pop %v1230
    %v1239 = vrsqrt.pop %v1231
    %v1240 = vrsqrt.pop %v1232
    %v1241 = vrsqrt.pop %v1233
    %v1242 = vmul.f32 %v1186, %v1234
    %v1243 = vmul.f32 %v1187, %v1235
    %v1244 = vmul.f32 %v1188, %v1236
    %v1245 = vmul.f32 %v1189, %v1237
    %v1246 = vmul.f32 %v1190, %v1238
    %v1247 = vmul.f32 %v1191, %v1239
    %v1248 = vmul.f32 %v1192, %v1240
    %v1249 = vmul.f32 %v1193, %v1241
    %v1250 = vmul.f32 %v1242, %v1160
    %v1251 = vmul.f32 %v1243, %v1160
    %v1252 = vmul.f32 %v1244, %v1160
    %v1253 = vmul.f32 %v1245, %v1160
    %v1254 = vmul.f32 %v1246, %v1160
    %v1255 = vmul.f32 %v1247, %v1160
    %v1256 = vmul.f32 %v1248, %v1160
    %v1257 = vmul.f32 %v1249, %v1160
    %v1258 = vadd.f32 %v1250, %v1161
    %v1259 = vadd.f32 %v1251, %v1161
    %v1260 = vadd.f32 %v1252, %v1161
    %v1261 = vadd.f32 %v1253, %v1161
    %v1262 = vadd.f32 %v1254, %v1161
    %v1263 = vadd.f32 %v1255, %v1161
    %v1264 = vadd.f32 %v1256, %v1161
    %v1265 = vadd.f32 %v1257, %v1161
    %v1266 = vmul.f32 %v1258, 0.5
    %v1267 = vmul.f32 %v1259, 0.5
    %v1268 = vmul.f32 %v1260, 0.5
    %v1269 = vmul.f32 %v1261, 0.5
    %v1270 = vmul.f32 %v1262, 0.5
    %v1271 = vmul.f32 %v1263, 0.5
    %v1272 = vmul.f32 %v1264, 0.5
    %v1273 = vmul.f32 %v1265, 0.5
    %v1274 = vmul.f32 %v1258, 0.044715
    %v1275 = vmul.f32 %v1259, 0.044715
    %v1276 = vmul.f32 %v1260, 0.044715
    %v1277 = vmul.f32 %v1261, 0.044715
    %v1278 = vmul.f32 %v1262, 0.044715
    %v1279 = vmul.f32 %v1263, 0.044715
    %v1280 = vmul.f32 %v1264, 0.044715
    %v1281 = vmul.f32 %v1265, 0.044715
    %v1282 = vmul.f32 %v1274, %v1258
    %v1283 = vmul.f32 %v1275, %v1259
    %v1284 = vmul.f32 %v1276, %v1260
    %v1285 = vmul.f32 %v1277, %v1261
    %v1286 = vmul.f32 %v1278, %v1262
    %v1287 = vmul.f32 %v1279, %v1263
    %v1288 = vmul.f32 %v1280, %v1264
    %v1289 = vmul.f32 %v1281, %v1265
    %v1290 = vmul.f32 %v1282, %v1258
    %v1291 = vmul.f32 %v1283, %v1259
    %v1292 = vmul.f32 %v1284, %v1260
    %v1293 = vmul.f32 %v1285, %v1261
    %v1294 = vmul.f32 %v1286, %v1262
    %v1295 = vmul.f32 %v1287, %v1263
    %v1296 = vmul.f32 %v1288, %v1264
    %v1297 = vmul.f32 %v1289, %v1265
    %v1298 = vadd.f32 %v1258, %v1290
    %v1299 = vadd.f32 %v1259, %v1291
    %v1300 = vadd.f32 %v1260, %v1292
    %v1301 = vadd.f32 %v1261, %v1293
    %v1302 = vadd.f32 %v1262, %v1294
    %v1303 = vadd.f32 %v1263, %v1295
    %v1304 = vadd.f32 %v1264, %v1296
    %v1305 = vadd.f32 %v1265, %v1297
    %v1306 = vmul.f32 %v1298, 0.7978846
    %v1307 = vmul.f32 %v1299, 0.7978846
    %v1308 = vmul.f32 %v1300, 0.7978846
    %v1309 = vmul.f32 %v1301, 0.7978846
    %v1310 = vmul.f32 %v1302, 0.7978846
    %v1311 = vmul.f32 %v1303, 0.7978846
    %v1312 = vmul.f32 %v1304, 0.7978846
    %v1313 = vmul.f32 %v1305, 0.7978846
    %v1314 = vtanh.pop %v1306
    %v1315 = vtanh.pop %v1307
    %v1316 = vtanh.pop %v1308
    %v1317 = vtanh.pop %v1309
    %v1318 = vtanh.pop %v1310
    %v1319 = vtanh.pop %v1311
    %v1320 = vtanh.pop %v1312
    %v1321 = vtanh.pop %v1313
    %v1322 = vadd.f32 %v1314, 1.0
    %v1323 = vadd.f32 %v1315, 1.0
    %v1324 = vadd.f32 %v1316, 1.0
    %v1325 = vadd.f32 %v1317, 1.0
    %v1326 = vadd.f32 %v1318, 1.0
    %v1327 = vadd.f32 %v1319, 1.0
    %v1328 = vadd.f32 %v1320, 1.0
    %v1329 = vadd.f32 %v1321, 1.0
    %v1330 = vmul.f32 %v1266, %v1322
    %v1331 = vmul.f32 %v1267, %v1323
    %v1332 = vmul.f32 %v1268, %v1324
    %v1333 = vmul.f32 %v1269, %v1325
    %v1334 = vmul.f32 %v1270, %v1326
    %v1335 = vmul.f32 %v1271, %v1327
    %v1336 = vmul.f32 %v1272, %v1328
    %v1337 = vmul.f32 %v1273, %v1329
    %v1338 = vadd.f32 %v1330, 0.0
    %v1339 = vadd.f32 %v1331, 0.0
    %v1340 = vadd.f32 %v1332, 0.0
    %v1341 = vadd.f32 %v1333, 0.0
    %v1342 = vadd.f32 %v1334, 0.0
    %v1343 = vadd.f32 %v1335, 0.0
    %v1344 = vadd.f32 %v1336, 0.0
    %v1345 = vadd.f32 %v1337, 0.0
    %v1346 = vld [vmem:[#allocation2 + $0x32] ss:$0 sm:$0xff]
    %v1347 = vld [vmem:[#allocation2 + $0x33] ss:$0 sm:$0xff]
    %1348 = vadd.xlane.f32.xlu0 %v1051
    %v1349 = vpop.xlane.xlu0 %1348
    %1350 = vadd.xlane.f32.xlu0 %v1055
    %v1351 = vpop.xlane.xlu0 %1350
    %1352 = vadd.xlane.f32.xlu0 %v1061
    %v1353 = vpop.xlane.xlu0 %1352
    %1354 = vadd.xlane.f32.xlu0 %v1065
    %v1355 = vpop.xlane.xlu0 %1354
    %1356 = vadd.xlane.f32.xlu0 %v1071
    %v1357 = vpop.xlane.xlu0 %1356
    %1358 = vadd.xlane.f32.xlu0 %v1075
    %v1359 = vpop.xlane.xlu0 %1358
    %1360 = vadd.xlane.f32.xlu0 %v1081
    %v1361 = vpop.xlane.xlu0 %1360
    %1362 = vadd.xlane.f32.xlu0 %v1085
    %v1363 = vpop.xlane.xlu0 %1362
    %v1364 = vmul.f32 %v1349, %v313
    %v1365 = vmul.f32 %v1351, %v313
    %v1366 = vmul.f32 %v1353, %v313
    %v1367 = vmul.f32 %v1355, %v313
    %v1368 = vmul.f32 %v1357, %v313
    %v1369 = vmul.f32 %v1359, %v313
    %v1370 = vmul.f32 %v1361, %v313
    %v1371 = vmul.f32 %v1363, %v313
    %v1372 = vsub.f32 %v1051, %v1364
    %v1373 = vsub.f32 %v1055, %v1365
    %v1374 = vsub.f32 %v1061, %v1366
    %v1375 = vsub.f32 %v1065, %v1367
    %v1376 = vsub.f32 %v1071, %v1368
    %v1377 = vsub.f32 %v1075, %v1369
    %v1378 = vsub.f32 %v1081, %v1370
    %v1379 = vsub.f32 %v1085, %v1371
    %v1380 = vmul.f32 %v1372, %v1372
    %v1381 = vmul.f32 %v1373, %v1373
    %v1382 = vmul.f32 %v1374, %v1374
    %v1383 = vmul.f32 %v1375, %v1375
    %v1384 = vmul.f32 %v1376, %v1376
    %v1385 = vmul.f32 %v1377, %v1377
    %v1386 = vmul.f32 %v1378, %v1378
    %v1387 = vmul.f32 %v1379, %v1379
    %1388 = vadd.xlane.f32.xlu0 %v1380
    %v1389 = vpop.xlane.xlu0 %1388
    %1390 = vadd.xlane.f32.xlu0 %v1381
    %v1391 = vpop.xlane.xlu0 %1390
    %1392 = vadd.xlane.f32.xlu0 %v1382
    %v1393 = vpop.xlane.xlu0 %1392
    %1394 = vadd.xlane.f32.xlu0 %v1383
    %v1395 = vpop.xlane.xlu0 %1394
    %1396 = vadd.xlane.f32.xlu0 %v1384
    %v1397 = vpop.xlane.xlu0 %1396
    %1398 = vadd.xlane.f32.xlu0 %v1385
    %v1399 = vpop.xlane.xlu0 %1398
    %1400 = vadd.xlane.f32.xlu0 %v1386
    %v1401 = vpop.xlane.xlu0 %1400
    %1402 = vadd.xlane.f32.xlu0 %v1387
    %v1403 = vpop.xlane.xlu0 %1402
    %v1404 = vmul.f32 %v1389, %v313
    %v1405 = vmul.f32 %v1391, %v313
    %v1406 = vmul.f32 %v1393, %v313
    %v1407 = vmul.f32 %v1395, %v313
    %v1408 = vmul.f32 %v1397, %v313
    %v1409 = vmul.f32 %v1399, %v313
    %v1410 = vmul.f32 %v1401, %v313
    %v1411 = vmul.f32 %v1403, %v313
    %v1412 = vadd.f32 %v1404, 1e-05
    %v1413 = vadd.f32 %v1405, 1e-05
    %v1414 = vadd.f32 %v1406, 1e-05
    %v1415 = vadd.f32 %v1407, 1e-05
    %v1416 = vadd.f32 %v1408, 1e-05
    %v1417 = vadd.f32 %v1409, 1e-05
    %v1418 = vadd.f32 %v1410, 1e-05
    %v1419 = vadd.f32 %v1411, 1e-05
    %v1420 = vrsqrt.pop %v1412
    %v1421 = vrsqrt.pop %v1413
    %v1422 = vrsqrt.pop %v1414
    %v1423 = vrsqrt.pop %v1415
    %v1424 = vrsqrt.pop %v1416
    %v1425 = vrsqrt.pop %v1417
    %v1426 = vrsqrt.pop %v1418
    %v1427 = vrsqrt.pop %v1419
    %v1428 = vmul.f32 %v1372, %v1420
    %v1429 = vmul.f32 %v1373, %v1421
    %v1430 = vmul.f32 %v1374, %v1422
    %v1431 = vmul.f32 %v1375, %v1423
    %v1432 = vmul.f32 %v1376, %v1424
    %v1433 = vmul.f32 %v1377, %v1425
    %v1434 = vmul.f32 %v1378, %v1426
    %v1435 = vmul.f32 %v1379, %v1427
    %v1436 = vmul.f32 %v1428, %v1346
    %v1437 = vmul.f32 %v1429, %v1346
    %v1438 = vmul.f32 %v1430, %v1346
    %v1439 = vmul.f32 %v1431, %v1346
    %v1440 = vmul.f32 %v1432, %v1346
    %v1441 = vmul.f32 %v1433, %v1346
    %v1442 = vmul.f32 %v1434, %v1346
    %v1443 = vmul.f32 %v1435, %v1346
    %v1444 = vadd.f32 %v1436, %v1347
    %v1445 = vadd.f32 %v1437, %v1347
    %v1446 = vadd.f32 %v1438, %v1347
    %v1447 = vadd.f32 %v1439, %v1347
    %v1448 = vadd.f32 %v1440, %v1347
    %v1449 = vadd.f32 %v1441, %v1347
    %v1450 = vadd.f32 %v1442, %v1347
    %v1451 = vadd.f32 %v1443, %v1347
    %v1452 = vmul.f32 %v1444, 0.5
    %v1453 = vmul.f32 %v1445, 0.5
    %v1454 = vmul.f32 %v1446, 0.5
    %v1455 = vmul.f32 %v1447, 0.5
    %v1456 = vmul.f32 %v1448, 0.5
    %v1457 = vmul.f32 %v1449, 0.5
    %v1458 = vmul.f32 %v1450, 0.5
    %v1459 = vmul.f32 %v1451, 0.5
    %v1460 = vmul.f32 %v1444, 0.044715
    %v1461 = vmul.f32 %v1445, 0.044715
    %v1462 = vmul.f32 %v1446, 0.044715
    %v1463 = vmul.f32 %v1447, 0.044715
    %v1464 = vmul.f32 %v1448, 0.044715
    %v1465 = vmul.f32 %v1449, 0.044715
    %v1466 = vmul.f32 %v1450, 0.044715
    %v1467 = vmul.f32 %v1451, 0.044715
    %v1468 = vmul.f32 %v1460, %v1444
    %v1469 = vmul.f32 %v1461, %v1445
    %v1470 = vmul.f32 %v1462, %v1446
    %v1471 = vmul.f32 %v1463, %v1447
    %v1472 = vmul.f32 %v1464, %v1448
    %v1473 = vmul.f32 %v1465, %v1449
    %v1474 = vmul.f32 %v1466, %v1450
    %v1475 = vmul.f32 %v1467, %v1451
    %v1476 = vmul.f32 %v1468, %v1444
    %v1477 = vmul.f32 %v1469, %v1445
    %v1478 = vmul.f32 %v1470, %v1446
    %v1479 = vmul.f32 %v1471, %v1447
    %v1480 = vmul.f32 %v1472, %v1448
    %v1481 = vmul.f32 %v1473, %v1449
    %v1482 = vmul.f32 %v1474, %v1450
    %v1483 = vmul.f32 %v1475, %v1451
    %v1484 = vadd.f32 %v1444, %v1476
    %v1485 = vadd.f32 %v1445, %v1477
    %v1486 = vadd.f32 %v1446, %v1478
    %v1487 = vadd.f32 %v1447, %v1479
    %v1488 = vadd.f32 %v1448, %v1480
    %v1489 = vadd.f32 %v1449, %v1481
    %v1490 = vadd.f32 %v1450, %v1482
    %v1491 = vadd.f32 %v1451, %v1483
    %v1492 = vmul.f32 %v1484, 0.7978846
    %v1493 = vmul.f32 %v1485, 0.7978846
    %v1494 = vmul.f32 %v1486, 0.7978846
    %v1495 = vmul.f32 %v1487, 0.7978846
    %v1496 = vmul.f32 %v1488, 0.7978846
    %v1497 = vmul.f32 %v1489, 0.7978846
    %v1498 = vmul.f32 %v1490, 0.7978846
    %v1499 = vmul.f32 %v1491, 0.7978846
    %v1500 = vtanh.pop %v1492
    %v1501 = vtanh.pop %v1493
    %v1502 = vtanh.pop %v1494
    %v1503 = vtanh.pop %v1495
    %v1504 = vtanh.pop %v1496
    %v1505 = vtanh.pop %v1497
    %v1506 = vtanh.pop %v1498
    %v1507 = vtanh.pop %v1499
    %v1508 = vadd.f32 %v1500, 1.0
    %v1509 = vadd.f32 %v1501, 1.0
    %v1510 = vadd.f32 %v1502, 1.0
    %v1511 = vadd.f32 %v1503, 1.0
    %v1512 = vadd.f32 %v1504, 1.0
    %v1513 = vadd.f32 %v1505, 1.0
    %v1514 = vadd.f32 %v1506, 1.0
    %v1515 = vadd.f32 %v1507, 1.0
    %v1516 = vmul.f32 %v1452, %v1508
    %v1517 = vmul.f32 %v1453, %v1509
    %v1518 = vmul.f32 %v1454, %v1510
    %v1519 = vmul.f32 %v1455, %v1511
    %v1520 = vmul.f32 %v1456, %v1512
    %v1521 = vmul.f32 %v1457, %v1513
    %v1522 = vmul.f32 %v1458, %v1514
    %v1523 = vmul.f32 %v1459, %v1515
    %v1524 = vadd.f32 %v1338, %v1516
    %v1525 = vadd.f32 %v1339, %v1517
    %v1526 = vadd.f32 %v1340, %v1518
    %v1527 = vadd.f32 %v1341, %v1519
    %v1528 = vadd.f32 %v1342, %v1520
    %v1529 = vadd.f32 %v1343, %v1521
    %v1530 = vadd.f32 %v1344, %v1522
    %v1531 = vadd.f32 %v1345, %v1523
    %v1532 = vld [vmem:[#allocation2 + $0x34] ss:$0 sm:$0xff]
    %v1533 = vld [vmem:[#allocation2 + $0x35] ss:$0 sm:$0xff]
    %1534 = vadd.xlane.f32.xlu0 %v1122
    %v1535 = vpop.xlane.xlu0 %1534
    %1536 = vadd.xlane.f32.xlu0 %v1126
    %v1537 = vpop.xlane.xlu0 %1536
    %1538 = vadd.xlane.f32.xlu0 %v1132
    %v1539 = vpop.xlane.xlu0 %1538
    %1540 = vadd.xlane.f32.xlu0 %v1136
    %v1541 = vpop.xlane.xlu0 %1540
    %1542 = vadd.xlane.f32.xlu0 %v1142
    %v1543 = vpop.xlane.xlu0 %1542
    %1544 = vadd.xlane.f32.xlu0 %v1146
    %v1545 = vpop.xlane.xlu0 %1544
    %1546 = vadd.xlane.f32.xlu0 %v1152
    %v1547 = vpop.xlane.xlu0 %1546
    %1548 = vadd.xlane.f32.xlu0 %v1156
    %v1549 = vpop.xlane.xlu0 %1548
    %v1550 = vmul.f32 %v1535, %v313
    %v1551 = vmul.f32 %v1537, %v313
    %v1552 = vmul.f32 %v1539, %v313
    %v1553 = vmul.f32 %v1541, %v313
    %v1554 = vmul.f32 %v1543, %v313
    %v1555 = vmul.f32 %v1545, %v313
    %v1556 = vmul.f32 %v1547, %v313
    %v1557 = vmul.f32 %v1549, %v313
    %v1558 = vsub.f32 %v1122, %v1550
    %v1559 = vsub.f32 %v1126, %v1551
    %v1560 = vsub.f32 %v1132, %v1552
    %v1561 = vsub.f32 %v1136, %v1553
    %v1562 = vsub.f32 %v1142, %v1554
    %v1563 = vsub.f32 %v1146, %v1555
    %v1564 = vsub.f32 %v1152, %v1556
    %v1565 = vsub.f32 %v1156, %v1557
    %v1566 = vmul.f32 %v1558, %v1558
    %v1567 = vmul.f32 %v1559, %v1559
    %v1568 = vmul.f32 %v1560, %v1560
    %v1569 = vmul.f32 %v1561, %v1561
    %v1570 = vmul.f32 %v1562, %v1562
    %v1571 = vmul.f32 %v1563, %v1563
    %v1572 = vmul.f32 %v1564, %v1564
    %v1573 = vmul.f32 %v1565, %v1565
    %1574 = vadd.xlane.f32.xlu0 %v1566
    %v1575 = vpop.xlane.xlu0 %1574
    %1576 = vadd.xlane.f32.xlu0 %v1567
    %v1577 = vpop.xlane.xlu0 %1576
    %1578 = vadd.xlane.f32.xlu0 %v1568
    %v1579 = vpop.xlane.xlu0 %1578
    %1580 = vadd.xlane.f32.xlu0 %v1569
    %v1581 = vpop.xlane.xlu0 %1580
    %1582 = vadd.xlane.f32.xlu0 %v1570
    %v1583 = vpop.xlane.xlu0 %1582
    %1584 = vadd.xlane.f32.xlu0 %v1571
    %v1585 = vpop.xlane.xlu0 %1584
    %1586 = vadd.xlane.f32.xlu0 %v1572
    %v1587 = vpop.xlane.xlu0 %1586
    %1588 = vadd.xlane.f32.xlu0 %v1573
    %v1589 = vpop.xlane.xlu0 %1588
    %v1590 = vmul.f32 %v1575, %v313
    %v1591 = vmul.f32 %v1577, %v313
    %v1592 = vmul.f32 %v1579, %v313
    %v1593 = vmul.f32 %v1581, %v313
    %v1594 = vmul.f32 %v1583, %v313
    %v1595 = vmul.f32 %v1585, %v313
    %v1596 = vmul.f32 %v1587, %v313
    %v1597 = vmul.f32 %v1589, %v313
    %v1598 = vadd.f32 %v1590, 1e-05
    %v1599 = vadd.f32 %v1591, 1e-05
    %v1600 = vadd.f32 %v1592, 1e-05
    %v1601 = vadd.f32 %v1593, 1e-05
    %v1602 = vadd.f32 %v1594, 1e-05
    %v1603 = vadd.f32 %v1595, 1e-05
    %v1604 = vadd.f32 %v1596, 1e-05
    %v1605 = vadd.f32 %v1597, 1e-05
    %v1606 = vrsqrt.pop %v1598
    %v1607 = vrsqrt.pop %v1599
    %v1608 = vrsqrt.pop %v1600
    %v1609 = vrsqrt.pop %v1601
    %v1610 = vrsqrt.pop %v1602
    %v1611 = vrsqrt.pop %v1603
    %v1612 = vrsqrt.pop %v1604
    %v1613 = vrsqrt.pop %v1605
    %v1614 = vmul.f32 %v1558, %v1606
    %v1615 = vmul.f32 %v1559, %v1607
    %v1616 = vmul.f32 %v1560, %v1608
    %v1617 = vmul.f32 %v1561, %v1609
    %v1618 = vmul.f32 %v1562, %v1610
    %v1619 = vmul.f32 %v1563, %v1611
    %v1620 = vmul.f32 %v1564, %v1612
    %v1621 = vmul.f32 %v1565, %v1613
    %v1622 = vmul.f32 %v1614, %v1532
    %v1623 = vmul.f32 %v1615, %v1532
    %v1624 = vmul.f32 %v1616, %v1532
    %v1625 = vmul.f32 %v1617, %v1532
    %v1626 = vmul.f32 %v1618, %v1532
    %v1627 = vmul.f32 %v1619, %v1532
    %v1628 = vmul.f32 %v1620, %v1532
    %v1629 = vmul.f32 %v1621, %v1532
    %v1630 = vadd.f32 %v1622, %v1533
    %v1631 = vadd.f32 %v1623, %v1533
    %v1632 = vadd.f32 %v1624, %v1533
    %v1633 = vadd.f32 %v1625, %v1533
    %v1634 = vadd.f32 %v1626, %v1533
    %v1635 = vadd.f32 %v1627, %v1533
    %v1636 = vadd.f32 %v1628, %v1533
    %v1637 = vadd.f32 %v1629, %v1533
    %v1638 = vmul.f32 %v1630, 0.5
    %v1639 = vmul.f32 %v1631, 0.5
    %v1640 = vmul.f32 %v1632, 0.5
    %v1641 = vmul.f32 %v1633, 0.5
    %v1642 = vmul.f32 %v1634, 0.5
    %v1643 = vmul.f32 %v1635, 0.5
    %v1644 = vmul.f32 %v1636, 0.5
    %v1645 = vmul.f32 %v1637, 0.5
    %v1646 = vmul.f32 %v1630, 0.044715
    %v1647 = vmul.f32 %v1631, 0.044715
    %v1648 = vmul.f32 %v1632, 0.044715
    %v1649 = vmul.f32 %v1633, 0.044715
    %v1650 = vmul.f32 %v1634, 0.044715
    %v1651 = vmul.f32 %v1635, 0.044715
    %v1652 = vmul.f32 %v1636, 0.044715
    %v1653 = vmul.f32 %v1637, 0.044715
    %v1654 = vmul.f32 %v1646, %v1630
    %v1655 = vmul.f32 %v1647, %v1631
    %v1656 = vmul.f32 %v1648, %v1632
    %v1657 = vmul.f32 %v1649, %v1633
    %v1658 = vmul.f32 %v1650, %v1634
    %v1659 = vmul.f32 %v1651, %v1635
    %v1660 = vmul.f32 %v1652, %v1636
    %v1661 = vmul.f32 %v1653, %v1637
    %v1662 = vmul.f32 %v1654, %v1630
    %v1663 = vmul.f32 %v1655, %v1631
    %v1664 = vmul.f32 %v1656, %v1632
    %v1665 = vmul.f32 %v1657, %v1633
    %v1666 = vmul.f32 %v1658, %v1634
    %v1667 = vmul.f32 %v1659, %v1635
    %v1668 = vmul.f32 %v1660, %v1636
    %v1669 = vmul.f32 %v1661, %v1637
    %v1670 = vadd.f32 %v1630, %v1662
    %v1671 = vadd.f32 %v1631, %v1663
    %v1672 = vadd.f32 %v1632, %v1664
    %v1673 = vadd.f32 %v1633, %v1665
    %v1674 = vadd.f32 %v1634, %v1666
    %v1675 = vadd.f32 %v1635, %v1667
    %v1676 = vadd.f32 %v1636, %v1668
    %v1677 = vadd.f32 %v1637, %v1669
    %v1678 = vmul.f32 %v1670, 0.7978846
    %v1679 = vmul.f32 %v1671, 0.7978846
    %v1680 = vmul.f32 %v1672, 0.7978846
    %v1681 = vmul.f32 %v1673, 0.7978846
    %v1682 = vmul.f32 %v1674, 0.7978846
    %v1683 = vmul.f32 %v1675, 0.7978846
    %v1684 = vmul.f32 %v1676, 0.7978846
    %v1685 = vmul.f32 %v1677, 0.7978846
    %v1686 = vtanh.pop %v1678
    %v1687 = vtanh.pop %v1679
    %v1688 = vtanh.pop %v1680
    %v1689 = vtanh.pop %v1681
    %v1690 = vtanh.pop %v1682
    %v1691 = vtanh.pop %v1683
    %v1692 = vtanh.pop %v1684
    %v1693 = vtanh.pop %v1685
    %v1694 = vadd.f32 %v1686, 1.0
    %v1695 = vadd.f32 %v1687, 1.0
    %v1696 = vadd.f32 %v1688, 1.0
    %v1697 = vadd.f32 %v1689, 1.0
    %v1698 = vadd.f32 %v1690, 1.0
    %v1699 = vadd.f32 %v1691, 1.0
    %v1700 = vadd.f32 %v1692, 1.0
    %v1701 = vadd.f32 %v1693, 1.0
    %v1702 = vmul.f32 %v1638, %v1694
    %v1703 = vmul.f32 %v1639, %v1695
    %v1704 = vmul.f32 %v1640, %v1696
    %v1705 = vmul.f32 %v1641, %v1697
    %v1706 = vmul.f32 %v1642, %v1698
    %v1707 = vmul.f32 %v1643, %v1699
    %v1708 = vmul.f32 %v1644, %v1700
    %v1709 = vmul.f32 %v1645, %v1701
    %v1710 = vadd.f32 %v1524, %v1702
    %v1711 = vadd.f32 %v1525, %v1703
    %v1712 = vadd.f32 %v1526, %v1704
    %v1713 = vadd.f32 %v1527, %v1705
    %v1714 = vadd.f32 %v1528, %v1706
    %v1715 = vadd.f32 %v1529, %v1707
    %v1716 = vadd.f32 %v1530, %v1708
    %v1717 = vadd.f32 %v1531, %v1709
    %v1718 = vld [vmem:[#allocation2 + $0x36] ss:$0 sm:$0xff]
    %v1719 = vld [vmem:[#allocation2 + $0x37] ss:$0 sm:$0xff]
    %1720 = vadd.xlane.f32.xlu0 %v1124
    %v1721 = vpop.xlane.xlu0 %1720
    %1722 = vadd.xlane.f32.xlu0 %v1128
    %v1723 = vpop.xlane.xlu0 %1722
    %1724 = vadd.xlane.f32.xlu0 %v1134
    %v1725 = vpop.xlane.xlu0 %1724
    %1726 = vadd.xlane.f32.xlu0 %v1138
    %v1727 = vpop.xlane.xlu0 %1726
    %1728 = vadd.xlane.f32.xlu0 %v1144
    %v1729 = vpop.xlane.xlu0 %1728
    %1730 = vadd.xlane.f32.xlu0 %v1148
    %v1731 = vpop.xlane.xlu0 %1730
    %1732 = vadd.xlane.f32.xlu0 %v1154
    %v1733 = vpop.xlane.xlu0 %1732
    %1734 = vadd.xlane.f32.xlu0 %v1158
    %v1735 = vpop.xlane.xlu0 %1734
    %v1736 = vmul.f32 %v1721, %v313
    %v1737 = vmul.f32 %v1723, %v313
    %v1738 = vmul.f32 %v1725, %v313
    %v1739 = vmul.f32 %v1727, %v313
    %v1740 = vmul.f32 %v1729, %v313
    %v1741 = vmul.f32 %v1731, %v313
    %v1742 = vmul.f32 %v1733, %v313
    %v1743 = vmul.f32 %v1735, %v313
    %v1744 = vsub.f32 %v1124, %v1736
    %v1745 = vsub.f32 %v1128, %v1737
    %v1746 = vsub.f32 %v1134, %v1738
    %v1747 = vsub.f32 %v1138, %v1739
    %v1748 = vsub.f32 %v1144, %v1740
    %v1749 = vsub.f32 %v1148, %v1741
    %v1750 = vsub.f32 %v1154, %v1742
    %v1751 = vsub.f32 %v1158, %v1743
    %v1752 = vmul.f32 %v1744, %v1744
    %v1753 = vmul.f32 %v1745, %v1745
    %v1754 = vmul.f32 %v1746, %v1746
    %v1755 = vmul.f32 %v1747, %v1747
    %v1756 = vmul.f32 %v1748, %v1748
    %v1757 = vmul.f32 %v1749, %v1749
    %v1758 = vmul.f32 %v1750, %v1750
    %v1759 = vmul.f32 %v1751, %v1751
    %1760 = vadd.xlane.f32.xlu0 %v1752
    %v1761 = vpop.xlane.xlu0 %1760
    %1762 = vadd.xlane.f32.xlu0 %v1753
    %v1763 = vpop.xlane.xlu0 %1762
    %1764 = vadd.xlane.f32.xlu0 %v1754
    %v1765 = vpop.xlane.xlu0 %1764
    %1766 = vadd.xlane.f32.xlu0 %v1755
    %v1767 = vpop.xlane.xlu0 %1766
    %1768 = vadd.xlane.f32.xlu0 %v1756
    %v1769 = vpop.xlane.xlu0 %1768
    %1770 = vadd.xlane.f32.xlu0 %v1757
    %v1771 = vpop.xlane.xlu0 %1770
    %1772 = vadd.xlane.f32.xlu0 %v1758
    %v1773 = vpop.xlane.xlu0 %1772
    %1774 = vadd.xlane.f32.xlu0 %v1759
    %v1775 = vpop.xlane.xlu0 %1774
    %v1776 = vmul.f32 %v1761, %v313
    %v1777 = vmul.f32 %v1763, %v313
    %v1778 = vmul.f32 %v1765, %v313
    %v1779 = vmul.f32 %v1767, %v313
    %v1780 = vmul.f32 %v1769, %v313
    %v1781 = vmul.f32 %v1771, %v313
    %v1782 = vmul.f32 %v1773, %v313
    %v1783 = vmul.f32 %v1775, %v313
    %v1784 = vadd.f32 %v1776, 1e-05
    %v1785 = vadd.f32 %v1777, 1e-05
    %v1786 = vadd.f32 %v1778, 1e-05
    %v1787 = vadd.f32 %v1779, 1e-05
    %v1788 = vadd.f32 %v1780, 1e-05
    %v1789 = vadd.f32 %v1781, 1e-05
    %v1790 = vadd.f32 %v1782, 1e-05
    %v1791 = vadd.f32 %v1783, 1e-05
    %v1792 = vrsqrt.pop %v1784
    %v1793 = vrsqrt.pop %v1785
    %v1794 = vrsqrt.pop %v1786
    %v1795 = vrsqrt.pop %v1787
    %v1796 = vrsqrt.pop %v1788
    %v1797 = vrsqrt.pop %v1789
    %v1798 = vrsqrt.pop %v1790
    %v1799 = vrsqrt.pop %v1791
    %v1800 = vmul.f32 %v1744, %v1792
    %v1801 = vmul.f32 %v1745, %v1793
    %v1802 = vmul.f32 %v1746, %v1794
    %v1803 = vmul.f32 %v1747, %v1795
    %v1804 = vmul.f32 %v1748, %v1796
    %v1805 = vmul.f32 %v1749, %v1797
    %v1806 = vmul.f32 %v1750, %v1798
    %v1807 = vmul.f32 %v1751, %v1799
    %v1808 = vmul.f32 %v1800, %v1718
    %v1809 = vmul.f32 %v1801, %v1718
    %v1810 = vmul.f32 %v1802, %v1718
    %v1811 = vmul.f32 %v1803, %v1718
    %v1812 = vmul.f32 %v1804, %v1718
    %v1813 = vmul.f32 %v1805, %v1718
    %v1814 = vmul.f32 %v1806, %v1718
    %v1815 = vmul.f32 %v1807, %v1718
    %v1816 = vadd.f32 %v1808, %v1719
    %v1817 = vadd.f32 %v1809, %v1719
    %v1818 = vadd.f32 %v1810, %v1719
    %v1819 = vadd.f32 %v1811, %v1719
    %v1820 = vadd.f32 %v1812, %v1719
    %v1821 = vadd.f32 %v1813, %v1719
    %v1822 = vadd.f32 %v1814, %v1719
    %v1823 = vadd.f32 %v1815, %v1719
    %v1824 = vmul.f32 %v1816, 0.5
    %v1825 = vmul.f32 %v1817, 0.5
    %v1826 = vmul.f32 %v1818, 0.5
    %v1827 = vmul.f32 %v1819, 0.5
    %v1828 = vmul.f32 %v1820, 0.5
    %v1829 = vmul.f32 %v1821, 0.5
    %v1830 = vmul.f32 %v1822, 0.5
    %v1831 = vmul.f32 %v1823, 0.5
    %v1832 = vmul.f32 %v1816, 0.044715
    %v1833 = vmul.f32 %v1817, 0.044715
    %v1834 = vmul.f32 %v1818, 0.044715
    %v1835 = vmul.f32 %v1819, 0.044715
    %v1836 = vmul.f32 %v1820, 0.044715
    %v1837 = vmul.f32 %v1821, 0.044715
    %v1838 = vmul.f32 %v1822, 0.044715
    %v1839 = vmul.f32 %v1823, 0.044715
    %v1840 = vmul.f32 %v1832, %v1816
    %v1841 = vmul.f32 %v1833, %v1817
    %v1842 = vmul.f32 %v1834, %v1818
    %v1843 = vmul.f32 %v1835, %v1819
    %v1844 = vmul.f32 %v1836, %v1820
    %v1845 = vmul.f32 %v1837, %v1821
    %v1846 = vmul.f32 %v1838, %v1822
    %v1847 = vmul.f32 %v1839, %v1823
    %v1848 = vmul.f32 %v1840, %v1816
    %v1849 = vmul.f32 %v1841, %v1817
    %v1850 = vmul.f32 %v1842, %v1818
    %v1851 = vmul.f32 %v1843, %v1819
    %v1852 = vmul.f32 %v1844, %v1820
    %v1853 = vmul.f32 %v1845, %v1821
    %v1854 = vmul.f32 %v1846, %v1822
    %v1855 = vmul.f32 %v1847, %v1823
    %v1856 = vadd.f32 %v1816, %v1848
    %v1857 = vadd.f32 %v1817, %v1849
    %v1858 = vadd.f32 %v1818, %v1850
    %v1859 = vadd.f32 %v1819, %v1851
    %v1860 = vadd.f32 %v1820, %v1852
    %v1861 = vadd.f32 %v1821, %v1853
    %v1862 = vadd.f32 %v1822, %v1854
    %v1863 = vadd.f32 %v1823, %v1855
    %v1864 = vmul.f32 %v1856, 0.7978846
    %v1865 = vmul.f32 %v1857, 0.7978846
    %v1866 = vmul.f32 %v1858, 0.7978846
    %v1867 = vmul.f32 %v1859, 0.7978846
    %v1868 = vmul.f32 %v1860, 0.7978846
    %v1869 = vmul.f32 %v1861, 0.7978846
    %v1870 = vmul.f32 %v1862, 0.7978846
    %v1871 = vmul.f32 %v1863, 0.7978846
    %v1872 = vtanh.pop %v1864
    %v1873 = vtanh.pop %v1865
    %v1874 = vtanh.pop %v1866
    %v1875 = vtanh.pop %v1867
    %v1876 = vtanh.pop %v1868
    %v1877 = vtanh.pop %v1869
    %v1878 = vtanh.pop %v1870
    %v1879 = vtanh.pop %v1871
    %v1880 = vadd.f32 %v1872, 1.0
    %v1881 = vadd.f32 %v1873, 1.0
    %v1882 = vadd.f32 %v1874, 1.0
    %v1883 = vadd.f32 %v1875, 1.0
    %v1884 = vadd.f32 %v1876, 1.0
    %v1885 = vadd.f32 %v1877, 1.0
    %v1886 = vadd.f32 %v1878, 1.0
    %v1887 = vadd.f32 %v1879, 1.0
    %v1888 = vmul.f32 %v1824, %v1880
    %v1889 = vmul.f32 %v1825, %v1881
    %v1890 = vmul.f32 %v1826, %v1882
    %v1891 = vmul.f32 %v1827, %v1883
    %v1892 = vmul.f32 %v1828, %v1884
    %v1893 = vmul.f32 %v1829, %v1885
    %v1894 = vmul.f32 %v1830, %v1886
    %v1895 = vmul.f32 %v1831, %v1887
    %v1896 = vadd.f32 %v1710, %v1888
    %v1897 = vadd.f32 %v1711, %v1889
    %v1898 = vadd.f32 %v1712, %v1890
    %v1899 = vadd.f32 %v1713, %v1891
    %v1900 = vadd.f32 %v1714, %v1892
    %v1901 = vadd.f32 %v1715, %v1893
    %v1902 = vadd.f32 %v1716, %v1894
    %v1903 = vadd.f32 %v1717, %v1895
    %v1904 = vmul.f32 %v1896, 0.25
    %v1905 = vmul.f32 %v1897, 0.25
    %v1906 = vmul.f32 %v1898, 0.25
    %v1907 = vmul.f32 %v1899, 0.25
    %v1908 = vmul.f32 %v1900, 0.25
    %v1909 = vmul.f32 %v1901, 0.25
    %v1910 = vmul.f32 %v1902, 0.25
    %v1911 = vmul.f32 %v1903, 0.25
    %v1912 = vld [vmem:[%s5] sm:$0xf]
    %v1913 = vld [vmem:[%s5 + $0x4] sm:$0xf]
    %v1914 = vld [vmem:[%s5 + $0x8] sm:$0xf]
    %v1915 = vld [vmem:[%s5 + $0xc] sm:$0xf]
    %v1916 = vld [vmem:[%s5 + $0x10] sm:$0xf]
    %v1917 = vld [vmem:[%s5 + $0x14] sm:$0xf]
    %v1918 = vld [vmem:[%s5 + $0x18] sm:$0xf]
    %v1919 = vld [vmem:[%s5 + $0x1c] sm:$0xf]
    %v1920 = vld [vmem:[%s5 + $0x20] sm:$0xf]
    %v1921 = vld [vmem:[%s5 + $0x24] sm:$0xf]
    %v1922 = vld [vmem:[%s5 + $0x28] sm:$0xf]
    %v1923 = vld [vmem:[%s5 + $0x2c] sm:$0xf]
    %v1924 = vld [vmem:[%s5 + $0x30] sm:$0xf]
    %v1925 = vld [vmem:[%s5 + $0x34] sm:$0xf]
    %v1926 = vld [vmem:[%s5 + $0x38] sm:$0xf]
    %v1927 = vld [vmem:[%s5 + $0x3c] sm:$0xf]
    %v1928 = vpack.c.bf16 %v1905, %v1904
    %v1929 = vpack.c.bf16 %v1907, %v1906
    %v1930 = vpack.c.bf16 %v1909, %v1908
    %v1931 = vpack.c.bf16 %v1911, %v1910
    %v1932 = vld [vmem:[#allocation2 + $0x60] ss:$0 sm:$0xff]
    %v1949 = vunpack.c.l.b16 %v1912
    %v1950 = vunpack.c.l.b16 %v1913
    %v1951 = vunpack.c.l.b16 %v1914
    %v1952 = vunpack.c.l.b16 %v1915
    %v1953 = vunpack.c.l.b16 %v1916
    %v1954 = vunpack.c.l.b16 %v1917
    %v1955 = vunpack.c.l.b16 %v1918
    %v1956 = vunpack.c.l.b16 %v1919
    %v1957 = vunpack.c.l.b16 %v1920
    %v1958 = vunpack.c.l.b16 %v1921
    %v1959 = vunpack.c.l.b16 %v1922
    %v1960 = vunpack.c.l.b16 %v1923
    %v1961 = vunpack.c.l.b16 %v1924
    %v1962 = vunpack.c.l.b16 %v1925
    %v1963 = vunpack.c.l.b16 %v1926
    %v1964 = vunpack.c.l.b16 %v1927
    %v1965 = vpack.c.b16 %v1950, %v1949
    %v1966 = vpack.c.b16 %v1952, %v1951
    %v1967 = vpack.c.b16 %v1954, %v1953
    %v1968 = vpack.c.b16 %v1956, %v1955
    %v1969 = vpack.c.b16 %v1958, %v1957
    %v1970 = vpack.c.b16 %v1960, %v1959
    %v1971 = vpack.c.b16 %v1962, %v1961
    %v1972 = vpack.c.b16 %v1964, %v1963
    %1981 = vmatprep.subr.bf16.mxu0 0
    %1982 = vmatpush1.bf16.msra.mxu0 %v1972
    %1983 = vmatprep.subr.bf16.mxu0 0
    %1984 = vmatpush1.bf16.msra.mxu0 %v1971
    %1985 = vmatprep.subr.bf16.mxu0 0
    %1986 = vmatpush1.bf16.msra.mxu0 %v1970
    %1987 = vmatprep.subr.bf16.mxu0 0
    %1988 = vmatpush1.bf16.msra.mxu0 %v1969
    %1989 = vmatprep.subr.bf16.mxu0 0
    %1990 = vmatpush1.bf16.msra.mxu0 %v1968
    %1991 = vmatprep.subr.bf16.mxu0 0
    %1992 = vmatpush1.bf16.msra.mxu0 %v1967
    %1993 = vmatprep.subr.bf16.mxu0 0
    %1994 = vmatpush1.bf16.msra.mxu0 %v1966
    %1995 = vmatprep.subr.bf16.mxu0 0
    %1996 = vmatpush1.bf16.msra.mxu0 %v1965
    %1997 = vmatprep.subr.bf16.mxu0 0
    %1998 = vmatpush2.bf16.msra.mxu0 0
    %1999 = vmatprep.subr.bf16.mxu0 0
    %2000 = vmatpush2.bf16.msra.mxu0 0
    %2001 = vmatprep.subr.bf16.mxu0 0
    %2002 = vmatpush2.bf16.msra.mxu0 0
    %2003 = vmatprep.subr.bf16.mxu0 0
    %2004 = vmatpush2.bf16.msra.mxu0 0
    %2005 = vmatprep.subr.bf16.mxu0 0
    %2006 = vmatpush2.bf16.msra.mxu0 0
    %2007 = vmatprep.subr.bf16.mxu0 0
    %2008 = vmatpush2.bf16.msra.mxu0 0
    %2009 = vmatprep.subr.bf16.mxu0 0
    %2010 = vmatpush2.bf16.msra.mxu0 0
    %2011 = vmatprep.subr.bf16.mxu0 0
    %2012 = vmatpush2.bf16.msra.mxu0 0
    %2013 = vmatprep.mubr.bf16.mxu0 0
    %2014 = vmatmul.mubr.bf16.gmra.mxu0 %v1928
    %v2015 = vpop.f32.mrf.mxu0
    %v2016 = vadd.f32 %v1932, %v2015
    %v2017 = vpop.f32.mrf.mxu0
    %v2018 = vpop.f32.mrf.mxu0
    %v2019 = vadd.f32 %v1932, %v2018
    %v2020 = vpop.f32.mrf.mxu0
    %2021 = vmatprep.mubr.bf16.mxu0 0
    %2022 = vmatmul.mubr.bf16.gmra.mxu0 %v1929
    %v2023 = vpop.f32.mrf.mxu0
    %v2024 = vadd.f32 %v1932, %v2023
    %v2025 = vpop.f32.mrf.mxu0
    %v2026 = vpop.f32.mrf.mxu0
    %v2027 = vadd.f32 %v1932, %v2026
    %v2028 = vpop.f32.mrf.mxu0
    %2029 = vmatprep.mubr.bf16.mxu0 0
    %2030 = vmatmul.mubr.bf16.gmra.mxu0 %v1930
    %v2031 = vpop.f32.mrf.mxu0
    %v2032 = vadd.f32 %v1932, %v2031
    %v2033 = vpop.f32.mrf.mxu0
    %v2034 = vpop.f32.mrf.mxu0
    %v2035 = vadd.f32 %v1932, %v2034
    %v2036 = vpop.f32.mrf.mxu0
    %2037 = vmatprep.mubr.bf16.mxu0 0
    %2038 = vmatmul.mubr.bf16.gmra.mxu0 %v1931
    %v2039 = vpop.f32.mrf.mxu0
    %v2040 = vadd.f32 %v1932, %v2039
    %v2041 = vpop.f32.mrf.mxu0
    %v2042 = vpop.f32.mrf.mxu0
    %v2043 = vadd.f32 %v1932, %v2042
    %v2044 = vpop.f32.mrf.mxu0
    %2045 = vdwg.mxu0
    %v2046 = vadd.f32 %v1904, %v2016
    %v2047 = vadd.f32 %v1905, %v2019
    %v2048 = vadd.f32 %v1906, %v2024
    %v2049 = vadd.f32 %v1907, %v2027
    %v2050 = vadd.f32 %v1908, %v2032
    %v2051 = vadd.f32 %v1909, %v2035
    %v2052 = vadd.f32 %v1910, %v2040
    %v2053 = vadd.f32 %v1911, %v2043
    %v2054 = vld [vmem:[#allocation2 + $0x61] ss:$0 sm:$0xff]
    %v2055 = vld [vmem:[#allocation2 + $0x62] ss:$0 sm:$0xff]
    %2056 = vadd.xlane.f32.xlu0 %v2046
    %v2057 = vpop.xlane.xlu0 %2056
    %2058 = vadd.xlane.f32.xlu0 %v2047
    %v2059 = vpop.xlane.xlu0 %2058
    %2060 = vadd.xlane.f32.xlu0 %v2048
    %v2061 = vpop.xlane.xlu0 %2060
    %2062 = vadd.xlane.f32.xlu0 %v2049
    %v2063 = vpop.xlane.xlu0 %2062
    %2064 = vadd.xlane.f32.xlu0 %v2050
    %v2065 = vpop.xlane.xlu0 %2064
    %2066 = vadd.xlane.f32.xlu0 %v2051
    %v2067 = vpop.xlane.xlu0 %2066
    %2068 = vadd.xlane.f32.xlu0 %v2052
    %v2069 = vpop.xlane.xlu0 %2068
    %2070 = vadd.xlane.f32.xlu0 %v2053
    %v2071 = vpop.xlane.xlu0 %2070
    %v2072 = vmul.f32 %v2057, %v313
    %v2073 = vmul.f32 %v2059, %v313
    %v2074 = vmul.f32 %v2061, %v313
    %v2075 = vmul.f32 %v2063, %v313
    %v2076 = vmul.f32 %v2065, %v313
    %v2077 = vmul.f32 %v2067, %v313
    %v2078 = vmul.f32 %v2069, %v313
    %v2079 = vmul.f32 %v2071, %v313
    %v2080 = vsub.f32 %v2046, %v2072
    %v2081 = vsub.f32 %v2047, %v2073
    %v2082 = vsub.f32 %v2048, %v2074
    %v2083 = vsub.f32 %v2049, %v2075
    %v2084 = vsub.f32 %v2050, %v2076
    %v2085 = vsub.f32 %v2051, %v2077
    %v2086 = vsub.f32 %v2052, %v2078
    %v2087 = vsub.f32 %v2053, %v2079
    %v2088 = vmul.f32 %v2080, %v2080
    %v2089 = vmul.f32 %v2081, %v2081
    %v2090 = vmul.f32 %v2082, %v2082
    %v2091 = vmul.f32 %v2083, %v2083
    %v2092 = vmul.f32 %v2084, %v2084
    %v2093 = vmul.f32 %v2085, %v2085
    %v2094 = vmul.f32 %v2086, %v2086
    %v2095 = vmul.f32 %v2087, %v2087
    %2096 = vadd.xlane.f32.xlu0 %v2088
    %v2097 = vpop.xlane.xlu0 %2096
    %2098 = vadd.xlane.f32.xlu0 %v2089
    %v2099 = vpop.xlane.xlu0 %2098
    %2100 = vadd.xlane.f32.xlu0 %v2090
    %v2101 = vpop.xlane.xlu0 %2100
    %2102 = vadd.xlane.f32.xlu0 %v2091
    %v2103 = vpop.xlane.xlu0 %2102
    %2104 = vadd.xlane.f32.xlu0 %v2092
    %v2105 = vpop.xlane.xlu0 %2104
    %2106 = vadd.xlane.f32.xlu0 %v2093
    %v2107 = vpop.xlane.xlu0 %2106
    %2108 = vadd.xlane.f32.xlu0 %v2094
    %v2109 = vpop.xlane.xlu0 %2108
    %2110 = vadd.xlane.f32.xlu0 %v2095
    %v2111 = vpop.xlane.xlu0 %2110
    %v2112 = vmul.f32 %v2097, %v313
    %v2113 = vmul.f32 %v2099, %v313
    %v2114 = vmul.f32 %v2101, %v313
    %v2115 = vmul.f32 %v2103, %v313
    %v2116 = vmul.f32 %v2105, %v313
    %v2117 = vmul.f32 %v2107, %v313
    %v2118 = vmul.f32 %v2109, %v313
    %v2119 = vmul.f32 %v2111, %v313
    %v2120 = vadd.f32 %v2112, 1e-05
    %v2121 = vadd.f32 %v2113, 1e-05
    %v2122 = vadd.f32 %v2114, 1e-05
    %v2123 = vadd.f32 %v2115, 1e-05
    %v2124 = vadd.f32 %v2116, 1e-05
    %v2125 = vadd.f32 %v2117, 1e-05
    %v2126 = vadd.f32 %v2118, 1e-05
    %v2127 = vadd.f32 %v2119, 1e-05
    %v2128 = vrsqrt.pop %v2120
    %v2129 = vrsqrt.pop %v2121
    %v2130 = vrsqrt.pop %v2122
    %v2131 = vrsqrt.pop %v2123
    %v2132 = vrsqrt.pop %v2124
    %v2133 = vrsqrt.pop %v2125
    %v2134 = vrsqrt.pop %v2126
    %v2135 = vrsqrt.pop %v2127
    %v2136 = vmul.f32 %v2080, %v2128
    %v2137 = vmul.f32 %v2081, %v2129
    %v2138 = vmul.f32 %v2082, %v2130
    %v2139 = vmul.f32 %v2083, %v2131
    %v2140 = vmul.f32 %v2084, %v2132
    %v2141 = vmul.f32 %v2085, %v2133
    %v2142 = vmul.f32 %v2086, %v2134
    %v2143 = vmul.f32 %v2087, %v2135
    %v2144 = vmul.f32 %v2136, %v2054
    %v2145 = vmul.f32 %v2137, %v2054
    %v2146 = vmul.f32 %v2138, %v2054
    %v2147 = vmul.f32 %v2139, %v2054
    %v2148 = vmul.f32 %v2140, %v2054
    %v2149 = vmul.f32 %v2141, %v2054
    %v2150 = vmul.f32 %v2142, %v2054
    %v2151 = vmul.f32 %v2143, %v2054
    %v2152 = vadd.f32 %v2144, %v2055
    %v2153 = vadd.f32 %v2145, %v2055
    %v2154 = vadd.f32 %v2146, %v2055
    %v2155 = vadd.f32 %v2147, %v2055
    %v2156 = vadd.f32 %v2148, %v2055
    %v2157 = vadd.f32 %v2149, %v2055
    %v2158 = vadd.f32 %v2150, %v2055
    %v2159 = vadd.f32 %v2151, %v2055
    %v2160 = vld [vmem:[#allocation7] sm:$0xff]
    %v2161 = vld [vmem:[#allocation7 + $0x8] sm:$0xff]
    %v2162 = vld [vmem:[#allocation7 + $0x10] sm:$0xff]
    %v2163 = vld [vmem:[#allocation7 + $0x18] sm:$0xff]
    %v2164 = vld [vmem:[#allocation7 + $0x20] sm:$0xff]
    %v2165 = vld [vmem:[#allocation7 + $0x28] sm:$0xff]
    %v2166 = vld [vmem:[#allocation7 + $0x30] sm:$0xff]
    %v2167 = vld [vmem:[#allocation7 + $0x38] sm:$0xff]
    %v2168 = vld [vmem:[#allocation7 + $0x40] sm:$0xff]
    %v2169 = vld [vmem:[#allocation7 + $0x48] sm:$0xff]
    %v2170 = vld [vmem:[#allocation7 + $0x50] sm:$0xff]
    %v2171 = vld [vmem:[#allocation7 + $0x58] sm:$0xff]
    %v2172 = vld [vmem:[#allocation7 + $0x60] sm:$0xff]
    %v2173 = vld [vmem:[#allocation7 + $0x68] sm:$0xff]
    %v2174 = vld [vmem:[#allocation7 + $0x70] sm:$0xff]
    %v2175 = vld [vmem:[#allocation7 + $0x78] sm:$0xff]
    %v2176 = vld [vmem:[#allocation7 + $0x80] sm:$0xff]
    %v2177 = vld [vmem:[#allocation7 + $0x88] sm:$0xff]
    %v2178 = vld [vmem:[#allocation7 + $0x90] sm:$0xff]
    %v2179 = vld [vmem:[#allocation7 + $0x98] sm:$0xff]
    %v2180 = vld [vmem:[#allocation7 + $0xa0] sm:$0xff]
    %v2181 = vld [vmem:[#allocation7 + $0xa8] sm:$0xff]
    %v2182 = vld [vmem:[#allocation7 + $0xb0] sm:$0xff]
    %v2183 = vld [vmem:[#allocation7 + $0xb8] sm:$0xff]
    %v2184 = vld [vmem:[#allocation7 + $0xc0] sm:$0xff]
    %v2185 = vld [vmem:[#allocation7 + $0xc8] sm:$0xff]
    %v2186 = vld [vmem:[#allocation7 + $0xd0] sm:$0xff]
    %v2187 = vld [vmem:[#allocation7 + $0xd8] sm:$0xff]
    %v2188 = vld [vmem:[#allocation7 + $0xe0] sm:$0xff]
    %v2189 = vld [vmem:[#allocation7 + $0xe8] sm:$0xff]
    %v2190 = vld [vmem:[#allocation7 + $0xf0] sm:$0xff]
    %v2191 = vld [vmem:[#allocation7 + $0xf8] sm:$0xff]
    %v2192 = vld [vmem:[#allocation7 + $0x100] sm:$0xff]
    %v2193 = vld [vmem:[#allocation7 + $0x108] sm:$0xff]
    %v2194 = vld [vmem:[#allocation7 + $0x110] sm:$0xff]
    %v2195 = vld [vmem:[#allocation7 + $0x118] sm:$0xff]
    %v2196 = vld [vmem:[#allocation7 + $0x120] sm:$0xff]
    %v2197 = vld [vmem:[#allocation7 + $0x128] sm:$0xff]
    %v2198 = vld [vmem:[#allocation7 + $0x130] sm:$0xff]
    %v2199 = vld [vmem:[#allocation7 + $0x138] sm:$0xff]
    %v2200 = vld [vmem:[#allocation7 + $0x140] sm:$0xff]
    %v2201 = vld [vmem:[#allocation7 + $0x148] sm:$0xff]
    %v2202 = vld [vmem:[#allocation7 + $0x150] sm:$0xff]
    %v2203 = vld [vmem:[#allocation7 + $0x158] sm:$0xff]
    %v2204 = vld [vmem:[#allocation7 + $0x160] sm:$0xff]
    %v2205 = vld [vmem:[#allocation7 + $0x168] sm:$0xff]
    %v2206 = vld [vmem:[#allocation7 + $0x170] sm:$0xff]
    %v2207 = vld [vmem:[#allocation7 + $0x178] sm:$0xff]
    %v2208 = vpack.c.bf16 %v2153, %v2152
    %v2209 = vpack.c.bf16 %v2155, %v2154
    %v2210 = vpack.c.bf16 %v2157, %v2156
    %v2211 = vpack.c.bf16 %v2159, %v2158
    %s2212 = scalar_lea.vmem [#allocation2], 99
    %v2213 = vld [vmem:[%s2212] ss:$8 sm:$0xf]
    %v2214 = vld [vmem:[%s2212] ss:$8 sm:$0x30]
    %v2215 = vor.u32 %v2213, %v2214
    %v2217 = vlaneseq
    %v2218 = vshrl.u32 %v2217, 7
    %v2219 = vsub.s32 0, %v2218
    %v2220 = vrot.slane %v2215, %v2219
    %v2221 = vlaneseq
    %v2222 = vshrl.u32 %v2221, 7
    %v2223 = vsub.s32 1, %v2222
    %v2224 = vrot.slane %v2215, %v2223
    %v2225 = vlaneseq
    %v2226 = vshrl.u32 %v2225, 7
    %v2227 = vsub.s32 2, %v2226
    %v2228 = vrot.slane %v2215, %v2227
    %v2229 = vlaneseq
    %v2230 = vshrl.u32 %v2229, 7
    %v2231 = vsub.s32 3, %v2230
    %v2232 = vrot.slane %v2215, %v2231
    %v2233 = vlaneseq
    %v2234 = vshrl.u32 %v2233, 7
    %v2235 = vsub.s32 4, %v2234
    %v2236 = vrot.slane %v2215, %v2235
    %v2237 = vlaneseq
    %v2238 = vshrl.u32 %v2237, 7
    %v2239 = vsub.s32 5, %v2238
    %v2240 = vrot.slane %v2215, %v2239
    %v2295 = vunpack.c.l.b16 %v2160
    %v2296 = vunpack.c.h.b16 %v2160
    %v2297 = vunpack.c.l.b16 %v2161
    %v2298 = vunpack.c.h.b16 %v2161
    %v2299 = vunpack.c.l.b16 %v2162
    %v2300 = vunpack.c.h.b16 %v2162
    %v2301 = vunpack.c.l.b16 %v2163
    %v2302 = vunpack.c.h.b16 %v2163
    %v2303 = vunpack.c.l.b16 %v2164
    %v2304 = vunpack.c.h.b16 %v2164
    %v2305 = vunpack.c.l.b16 %v2165
    %v2306 = vunpack.c.h.b16 %v2165
    %v2307 = vunpack.c.l.b16 %v2166
    %v2308 = vunpack.c.h.b16 %v2166
    %v2309 = vunpack.c.l.b16 %v2167
    %v2310 = vunpack.c.h.b16 %v2167
    %v2311 = vunpack.c.l.b16 %v2168
    %v2312 = vunpack.c.h.b16 %v2168
    %v2313 = vunpack.c.l.b16 %v2169
    %v2314 = vunpack.c.h.b16 %v2169
    %v2315 = vunpack.c.l.b16 %v2170
    %v2316 = vunpack.c.h.b16 %v2170
    %v2317 = vunpack.c.l.b16 %v2171
    %v2318 = vunpack.c.h.b16 %v2171
    %v2319 = vunpack.c.l.b16 %v2172
    %v2320 = vunpack.c.h.b16 %v2172
    %v2321 = vunpack.c.l.b16 %v2173
    %v2322 = vunpack.c.h.b16 %v2173
    %v2323 = vunpack.c.l.b16 %v2174
    %v2324 = vunpack.c.h.b16 %v2174
    %v2325 = vunpack.c.l.b16 %v2175
    %v2326 = vunpack.c.h.b16 %v2175
    %v2327 = vunpack.c.l.b16 %v2176
    %v2328 = vunpack.c.h.b16 %v2176
    %v2329 = vunpack.c.l.b16 %v2177
    %v2330 = vunpack.c.h.b16 %v2177
    %v2331 = vunpack.c.l.b16 %v2178
    %v2332 = vunpack.c.h.b16 %v2178
    %v2333 = vunpack.c.l.b16 %v2179
    %v2334 = vunpack.c.h.b16 %v2179
    %v2335 = vunpack.c.l.b16 %v2180
    %v2336 = vunpack.c.h.b16 %v2180
    %v2337 = vunpack.c.l.b16 %v2181
    %v2338 = vunpack.c.h.b16 %v2181
    %v2339 = vunpack.c.l.b16 %v2182
    %v2340 = vunpack.c.h.b16 %v2182
    %v2341 = vunpack.c.l.b16 %v2183
    %v2342 = vunpack.c.h.b16 %v2183
    %v2343 = vunpack.c.l.b16 %v2184
    %v2344 = vunpack.c.h.b16 %v2184
    %v2345 = vunpack.c.l.b16 %v2185
    %v2346 = vunpack.c.h.b16 %v2185
    %v2347 = vunpack.c.l.b16 %v2186
    %v2348 = vunpack.c.h.b16 %v2186
    %v2349 = vunpack.c.l.b16 %v2187
    %v2350 = vunpack.c.h.b16 %v2187
    %v2351 = vunpack.c.l.b16 %v2188
    %v2352 = vunpack.c.h.b16 %v2188
    %v2353 = vunpack.c.l.b16 %v2189
    %v2354 = vunpack.c.h.b16 %v2189
    %v2355 = vunpack.c.l.b16 %v2190
    %v2356 = vunpack.c.h.b16 %v2190
    %v2357 = vunpack.c.l.b16 %v2191
    %v2358 = vunpack.c.h.b16 %v2191
    %v2359 = vunpack.c.l.b16 %v2192
    %v2360 = vunpack.c.h.b16 %v2192
    %v2361 = vunpack.c.l.b16 %v2193
    %v2362 = vunpack.c.h.b16 %v2193
    %v2363 = vunpack.c.l.b16 %v2194
    %v2364 = vunpack.c.h.b16 %v2194
    %v2365 = vunpack.c.l.b16 %v2195
    %v2366 = vunpack.c.h.b16 %v2195
    %v2367 = vunpack.c.l.b16 %v2196
    %v2368 = vunpack.c.h.b16 %v2196
    %v2369 = vunpack.c.l.b16 %v2197
    %v2370 = vunpack.c.h.b16 %v2197
    %v2371 = vunpack.c.l.b16 %v2198
    %v2372 = vunpack.c.h.b16 %v2198
    %v2373 = vunpack.c.l.b16 %v2199
    %v2374 = vunpack.c.h.b16 %v2199
    %v2375 = vunpack.c.l.b16 %v2200
    %v2376 = vunpack.c.h.b16 %v2200
    %v2377 = vunpack.c.l.b16 %v2201
    %v2378 = vunpack.c.h.b16 %v2201
    %v2379 = vunpack.c.l.b16 %v2202
    %v2380 = vunpack.c.h.b16 %v2202
    %v2381 = vunpack.c.l.b16 %v2203
    %v2382 = vunpack.c.h.b16 %v2203
    %v2383 = vunpack.c.l.b16 %v2204
    %v2384 = vunpack.c.h.b16 %v2204
    %v2385 = vunpack.c.l.b16 %v2205
    %v2386 = vunpack.c.h.b16 %v2205
    %v2387 = vunpack.c.l.b16 %v2206
    %v2388 = vunpack.c.h.b16 %v2206
    %v2389 = vunpack.c.l.b16 %v2207
    %v2390 = vunpack.c.h.b16 %v2207
    %v2391 = vpack.c.b16 %v2301, %v2295
    %v2392 = vpack.c.b16 %v2302, %v2296
    %v2393 = vpack.c.b16 %v2303, %v2297
    %v2394 = vpack.c.b16 %v2304, %v2298
    %v2395 = vpack.c.b16 %v2305, %v2299
    %v2396 = vpack.c.b16 %v2306, %v2300
    %v2397 = vpack.c.b16 %v2313, %v2307
    %v2398 = vpack.c.b16 %v2314, %v2308
    %v2399 = vpack.c.b16 %v2315, %v2309
    %v2400 = vpack.c.b16 %v2316, %v2310
    %v2401 = vpack.c.b16 %v2317, %v2311
    %v2402 = vpack.c.b16 %v2318, %v2312
    %v2403 = vpack.c.b16 %v2325, %v2319
    %v2404 = vpack.c.b16 %v2326, %v2320
    %v2405 = vpack.c.b16 %v2327, %v2321
    %v2406 = vpack.c.b16 %v2328, %v2322
    %v2407 = vpack.c.b16 %v2329, %v2323
    %v2408 = vpack.c.b16 %v2330, %v2324
    %v2409 = vpack.c.b16 %v2337, %v2331
    %v2410 = vpack.c.b16 %v2338, %v2332
    %v2411 = vpack.c.b16 %v2339, %v2333
    %v2412 = vpack.c.b16 %v2340, %v2334
    %v2413 = vpack.c.b16 %v2341, %v2335
    %v2414 = vpack.c.b16 %v2342, %v2336
    %v2415 = vpack.c.b16 %v2349, %v2343
    %v2416 = vpack.c.b16 %v2350, %v2344
    %v2417 = vpack.c.b16 %v2351, %v2345
    %v2418 = vpack.c.b16 %v2352, %v2346
    %v2419 = vpack.c.b16 %v2353, %v2347
    %v2420 = vpack.c.b16 %v2354, %v2348
    %v2421 = vpack.c.b16 %v2361, %v2355
    %v2422 = vpack.c.b16 %v2362, %v2356
    %v2423 = vpack.c.b16 %v2363, %v2357
    %v2424 = vpack.c.b16 %v2364, %v2358
    %v2425 = vpack.c.b16 %v2365, %v2359
    %v2426 = vpack.c.b16 %v2366, %v2360
    %v2427 = vpack.c.b16 %v2373, %v2367
    %v2428 = vpack.c.b16 %v2374, %v2368
    %v2429 = vpack.c.b16 %v2375, %v2369
    %v2430 = vpack.c.b16 %v2376, %v2370
    %v2431 = vpack.c.b16 %v2377, %v2371
    %v2432 = vpack.c.b16 %v2378, %v2372
    %v2433 = vpack.c.b16 %v2385, %v2379
    %v2434 = vpack.c.b16 %v2386, %v2380
    %v2435 = vpack.c.b16 %v2387, %v2381
    %v2436 = vpack.c.b16 %v2388, %v2382
    %v2437 = vpack.c.b16 %v2389, %v2383
    %v2438 = vpack.c.b16 %v2390, %v2384
    %2487 = vmatprep.subr.bf16.mxu0 %v2434
    %2488 = vmatpush1.bf16.msra.mxu0 %v2433
    %2489 = vmatprep.subr.bf16.mxu0 %v2428
    %2490 = vmatpush1.bf16.msra.mxu0 %v2427
    %2491 = vmatprep.subr.bf16.mxu0 %v2422
    %2492 = vmatpush1.bf16.msra.mxu0 %v2421
    %2493 = vmatprep.subr.bf16.mxu0 %v2416
    %2494 = vmatpush1.bf16.msra.mxu0 %v2415
    %2495 = vmatprep.subr.bf16.mxu0 %v2410
    %2496 = vmatpush1.bf16.msra.mxu0 %v2409
    %2497 = vmatprep.subr.bf16.mxu0 %v2404
    %2498 = vmatpush1.bf16.msra.mxu0 %v2403
    %2499 = vmatprep.subr.bf16.mxu0 %v2398
    %2500 = vmatpush1.bf16.msra.mxu0 %v2397
    %2501 = vmatprep.subr.bf16.mxu0 %v2392
    %2502 = vmatpush1.bf16.msra.mxu0 %v2391
    %2503 = vmatprep.subr.bf16.mxu0 0
    %2504 = vmatpush2.bf16.msra.mxu0 0
    %2505 = vmatprep.subr.bf16.mxu0 0
    %2506 = vmatpush2.bf16.msra.mxu0 0
    %2507 = vmatprep.subr.bf16.mxu0 0
    %2508 = vmatpush2.bf16.msra.mxu0 0
    %2509 = vmatprep.subr.bf16.mxu0 0
    %2510 = vmatpush2.bf16.msra.mxu0 0
    %2511 = vmatprep.subr.bf16.mxu0 0
    %2512 = vmatpush2.bf16.msra.mxu0 0
    %2513 = vmatprep.subr.bf16.mxu0 0
    %2514 = vmatpush2.bf16.msra.mxu0 0
    %2515 = vmatprep.subr.bf16.mxu0 0
    %2516 = vmatpush2.bf16.msra.mxu0 0
    %2517 = vmatprep.subr.bf16.mxu0 0
    %2518 = vmatpush2.bf16.msra.mxu0 0
    %2519 = vmatprep.mubr.bf16.mxu0 0
    %2520 = vmatmul.mubr.bf16.gmra.mxu0 %v2208
    %v2521 = vpop.f32.mrf.mxu0
    %v2522 = vadd.f32 %v2220, %v2521
    %v2523 = vpop.f32.mrf.mxu0
    %v2524 = vadd.f32 %v2224, %v2523
    %v2525 = vpop.f32.mrf.mxu0
    %v2526 = vadd.f32 %v2220, %v2525
    %v2527 = vpop.f32.mrf.mxu0
    %v2528 = vadd.f32 %v2224, %v2527
    %2529 = vmatprep.mubr.bf16.mxu0 0
    %2530 = vmatmul.mubr.bf16.gmra.mxu0 %v2209
    %v2531 = vpop.f32.mrf.mxu0
    %v2532 = vadd.f32 %v2220, %v2531
    %v2533 = vpop.f32.mrf.mxu0
    %v2534 = vadd.f32 %v2224, %v2533
    %v2535 = vpop.f32.mrf.mxu0
    %v2536 = vadd.f32 %v2220, %v2535
    %v2537 = vpop.f32.mrf.mxu0
    %v2538 = vadd.f32 %v2224, %v2537
    %2539 = vmatprep.mubr.bf16.mxu0 0
    %2540 = vmatmul.mubr.bf16.gmra.mxu0 %v2210
    %v2541 = vpop.f32.mrf.mxu0
    %v2542 = vadd.f32 %v2220, %v2541
    %v2543 = vpop.f32.mrf.mxu0
    %v2544 = vadd.f32 %v2224, %v2543
    %v2545 = vpop.f32.mrf.mxu0
    %v2546 = vadd.f32 %v2220, %v2545
    %v2547 = vpop.f32.mrf.mxu0
    %v2548 = vadd.f32 %v2224, %v2547
    %2549 = vmatprep.mubr.bf16.mxu0 0
    %2550 = vmatmul.mubr.bf16.gmra.mxu0 %v2211
    %v2551 = vpop.f32.mrf.mxu0
    %v2552 = vadd.f32 %v2220, %v2551
    %v2553 = vpop.f32.mrf.mxu0
    %v2554 = vadd.f32 %v2224, %v2553
    %v2555 = vpop.f32.mrf.mxu0
    %v2556 = vadd.f32 %v2220, %v2555
    %v2557 = vpop.f32.mrf.mxu0
    %v2558 = vadd.f32 %v2224, %v2557
    %2559 = vdwg.mxu0
    %2560 = vmatprep.subr.bf16.mxu0 %v2436
    %2561 = vmatpush1.bf16.msra.mxu0 %v2435
    %2562 = vmatprep.subr.bf16.mxu0 %v2430
    %2563 = vmatpush1.bf16.msra.mxu0 %v2429
    %2564 = vmatprep.subr.bf16.mxu0 %v2424
    %2565 = vmatpush1.bf16.msra.mxu0 %v2423
    %2566 = vmatprep.subr.bf16.mxu0 %v2418
    %2567 = vmatpush1.bf16.msra.mxu0 %v2417
    %2568 = vmatprep.subr.bf16.mxu0 %v2412
    %2569 = vmatpush1.bf16.msra.mxu0 %v2411
    %2570 = vmatprep.subr.bf16.mxu0 %v2406
    %2571 = vmatpush1.bf16.msra.mxu0 %v2405
    %2572 = vmatprep.subr.bf16.mxu0 %v2400
    %2573 = vmatpush1.bf16.msra.mxu0 %v2399
    %2574 = vmatprep.subr.bf16.mxu0 %v2394
    %2575 = vmatpush1.bf16.msra.mxu0 %v2393
    %2576 = vmatprep.subr.bf16.mxu0 0
    %2577 = vmatpush2.bf16.msra.mxu0 0
    %2578 = vmatprep.subr.bf16.mxu0 0
    %2579 = vmatpush2.bf16.msra.mxu0 0
    %2580 = vmatprep.subr.bf16.mxu0 0
    %2581 = vmatpush2.bf16.msra.mxu0 0
    %2582 = vmatprep.subr.bf16.mxu0 0
    %2583 = vmatpush2.bf16.msra.mxu0 0
    %2584 = vmatprep.subr.bf16.mxu0 0
    %2585 = vmatpush2.bf16.msra.mxu0 0
    %2586 = vmatprep.subr.bf16.mxu0 0
    %2587 = vmatpush2.bf16.msra.mxu0 0
    %2588 = vmatprep.subr.bf16.mxu0 0
    %2589 = vmatpush2.bf16.msra.mxu0 0
    %2590 = vmatprep.subr.bf16.mxu0 0
    %2591 = vmatpush2.bf16.msra.mxu0 0
    %2592 = vmatprep.mubr.bf16.mxu0 0
    %2593 = vmatmul.mubr.bf16.gmra.mxu0 %v2208
    %v2594 = vpop.f32.mrf.mxu0
    %v2595 = vadd.f32 %v2228, %v2594
    %v2596 = vpop.f32.mrf.mxu0
    %v2597 = vadd.f32 %v2232, %v2596
    %v2598 = vpop.f32.mrf.mxu0
    %v2599 = vadd.f32 %v2228, %v2598
    %v2600 = vpop.f32.mrf.mxu0
    %v2601 = vadd.f32 %v2232, %v2600
    %2602 = vmatprep.mubr.bf16.mxu0 0
    %2603 = vmatmul.mubr.bf16.gmra.mxu0 %v2209
    %v2604 = vpop.f32.mrf.mxu0
    %v2605 = vadd.f32 %v2228, %v2604
    %v2606 = vpop.f32.mrf.mxu0
    %v2607 = vadd.f32 %v2232, %v2606
    %v2608 = vpop.f32.mrf.mxu0
    %v2609 = vadd.f32 %v2228, %v2608
    %v2610 = vpop.f32.mrf.mxu0
    %v2611 = vadd.f32 %v2232, %v2610
    %2612 = vmatprep.mubr.bf16.mxu0 0
    %2613 = vmatmul.mubr.bf16.gmra.mxu0 %v2210
    %v2614 = vpop.f32.mrf.mxu0
    %v2615 = vadd.f32 %v2228, %v2614
    %v2616 = vpop.f32.mrf.mxu0
    %v2617 = vadd.f32 %v2232, %v2616
    %v2618 = vpop.f32.mrf.mxu0
    %v2619 = vadd.f32 %v2228, %v2618
    %v2620 = vpop.f32.mrf.mxu0
    %v2621 = vadd.f32 %v2232, %v2620
    %2622 = vmatprep.mubr.bf16.mxu0 0
    %2623 = vmatmul.mubr.bf16.gmra.mxu0 %v2211
    %v2624 = vpop.f32.mrf.mxu0
    %v2625 = vadd.f32 %v2228, %v2624
    %v2626 = vpop.f32.mrf.mxu0
    %v2627 = vadd.f32 %v2232, %v2626
    %v2628 = vpop.f32.mrf.mxu0
    %v2629 = vadd.f32 %v2228, %v2628
    %v2630 = vpop.f32.mrf.mxu0
    %v2631 = vadd.f32 %v2232, %v2630
    %2632 = vdwg.mxu0
    %2633 = vmatprep.subr.bf16.mxu0 %v2438
    %2634 = vmatpush1.bf16.msra.mxu0 %v2437
    %2635 = vmatprep.subr.bf16.mxu0 %v2432
    %2636 = vmatpush1.bf16.msra.mxu0 %v2431
    %2637 = vmatprep.subr.bf16.mxu0 %v2426
    %2638 = vmatpush1.bf16.msra.mxu0 %v2425
    %2639 = vmatprep.subr.bf16.mxu0 %v2420
    %2640 = vmatpush1.bf16.msra.mxu0 %v2419
    %2641 = vmatprep.subr.bf16.mxu0 %v2414
    %2642 = vmatpush1.bf16.msra.mxu0 %v2413
    %2643 = vmatprep.subr.bf16.mxu0 %v2408
    %2644 = vmatpush1.bf16.msra.mxu0 %v2407
    %2645 = vmatprep.subr.bf16.mxu0 %v2402
    %2646 = vmatpush1.bf16.msra.mxu0 %v2401
    %2647 = vmatprep.subr.bf16.mxu0 %v2396
    %2648 = vmatpush1.bf16.msra.mxu0 %v2395
    %2649 = vmatprep.subr.bf16.mxu0 0
    %2650 = vmatpush2.bf16.msra.mxu0 0
    %2651 = vmatprep.subr.bf16.mxu0 0
    %2652 = vmatpush2.bf16.msra.mxu0 0
    %2653 = vmatprep.subr.bf16.mxu0 0
    %2654 = vmatpush2.bf16.msra.mxu0 0
    %2655 = vmatprep.subr.bf16.mxu0 0
    %2656 = vmatpush2.bf16.msra.mxu0 0
    %2657 = vmatprep.subr.bf16.mxu0 0
    %2658 = vmatpush2.bf16.msra.mxu0 0
    %2659 = vmatprep.subr.bf16.mxu0 0
    %2660 = vmatpush2.bf16.msra.mxu0 0
    %2661 = vmatprep.subr.bf16.mxu0 0
    %2662 = vmatpush2.bf16.msra.mxu0 0
    %2663 = vmatprep.subr.bf16.mxu0 0
    %2664 = vmatpush2.bf16.msra.mxu0 0
    %2665 = vmatprep.mubr.bf16.mxu0 0
    %2666 = vmatmul.mubr.bf16.gmra.mxu0 %v2208
    %v2667 = vpop.f32.mrf.mxu0
    %v2668 = vadd.f32 %v2236, %v2667
    %v2669 = vpop.f32.mrf.mxu0
    %v2670 = vadd.f32 %v2240, %v2669
    %v2671 = vpop.f32.mrf.mxu0
    %v2672 = vadd.f32 %v2236, %v2671
    %v2673 = vpop.f32.mrf.mxu0
    %v2674 = vadd.f32 %v2240, %v2673
    %2675 = vmatprep.mubr.bf16.mxu0 0
    %2676 = vmatmul.mubr.bf16.gmra.mxu0 %v2209
    %v2677 = vpop.f32.mrf.mxu0
    %v2678 = vadd.f32 %v2236, %v2677
    %v2679 = vpop.f32.mrf.mxu0
    %v2680 = vadd.f32 %v2240, %v2679
    %v2681 = vpop.f32.mrf.mxu0
    %v2682 = vadd.f32 %v2236, %v2681
    %v2683 = vpop.f32.mrf.mxu0
    %v2684 = vadd.f32 %v2240, %v2683
    %2685 = vmatprep.mubr.bf16.mxu0 0
    %2686 = vmatmul.mubr.bf16.gmra.mxu0 %v2210
    %v2687 = vpop.f32.mrf.mxu0
    %v2688 = vadd.f32 %v2236, %v2687
    %v2689 = vpop.f32.mrf.mxu0
    %v2690 = vadd.f32 %v2240, %v2689
    %v2691 = vpop.f32.mrf.mxu0
    %v2692 = vadd.f32 %v2236, %v2691
    %v2693 = vpop.f32.mrf.mxu0
    %v2694 = vadd.f32 %v2240, %v2693
    %2695 = vmatprep.mubr.bf16.mxu0 0
    %2696 = vmatmul.mubr.bf16.gmra.mxu0 %v2211
    %v2697 = vpop.f32.mrf.mxu0
    %v2698 = vadd.f32 %v2236, %v2697
    %v2699 = vpop.f32.mrf.mxu0
    %v2700 = vadd.f32 %v2240, %v2699
    %v2701 = vpop.f32.mrf.mxu0
    %v2702 = vadd.f32 %v2236, %v2701
    %v2703 = vpop.f32.mrf.mxu0
    %v2704 = vadd.f32 %v2240, %v2703
    %2705 = vdwg.mxu0
    %v2706 = vmul.f32 %v2522, 0.5
    %v2707 = vmul.f32 %v2524, 0.5
    %v2708 = vmul.f32 %v2595, 0.5
    %v2709 = vmul.f32 %v2597, 0.5
    %v2710 = vmul.f32 %v2668, 0.5
    %v2711 = vmul.f32 %v2670, 0.5
    %v2712 = vmul.f32 %v2526, 0.5
    %v2713 = vmul.f32 %v2528, 0.5
    %v2714 = vmul.f32 %v2599, 0.5
    %v2715 = vmul.f32 %v2601, 0.5
    %v2716 = vmul.f32 %v2672, 0.5
    %v2717 = vmul.f32 %v2674, 0.5
    %v2718 = vmul.f32 %v2532, 0.5
    %v2719 = vmul.f32 %v2534, 0.5
    %v2720 = vmul.f32 %v2605, 0.5
    %v2721 = vmul.f32 %v2607, 0.5
    %v2722 = vmul.f32 %v2678, 0.5
    %v2723 = vmul.f32 %v2680, 0.5
    %v2724 = vmul.f32 %v2536, 0.5
    %v2725 = vmul.f32 %v2538, 0.5
    %v2726 = vmul.f32 %v2609, 0.5
    %v2727 = vmul.f32 %v2611, 0.5
    %v2728 = vmul.f32 %v2682, 0.5
    %v2729 = vmul.f32 %v2684, 0.5
    %v2730 = vmul.f32 %v2542, 0.5
    %v2731 = vmul.f32 %v2544, 0.5
    %v2732 = vmul.f32 %v2615, 0.5
    %v2733 = vmul.f32 %v2617, 0.5
    %v2734 = vmul.f32 %v2688, 0.5
    %v2735 = vmul.f32 %v2690, 0.5
    %v2736 = vmul.f32 %v2546, 0.5
    %v2737 = vmul.f32 %v2548, 0.5
    %v2738 = vmul.f32 %v2619, 0.5
    %v2739 = vmul.f32 %v2621, 0.5
    %v2740 = vmul.f32 %v2692, 0.5
    %v2741 = vmul.f32 %v2694, 0.5
    %v2742 = vmul.f32 %v2552, 0.5
    %v2743 = vmul.f32 %v2554, 0.5
    %v2744 = vmul.f32 %v2625, 0.5
    %v2745 = vmul.f32 %v2627, 0.5
    %v2746 = vmul.f32 %v2698, 0.5
    %v2747 = vmul.f32 %v2700, 0.5
    %v2748 = vmul.f32 %v2556, 0.5
    %v2749 = vmul.f32 %v2558, 0.5
    %v2750 = vmul.f32 %v2629, 0.5
    %v2751 = vmul.f32 %v2631, 0.5
    %v2752 = vmul.f32 %v2702, 0.5
    %v2753 = vmul.f32 %v2704, 0.5
    %v2754 = vmul.f32 %v2522, 0.044715
    %v2755 = vmul.f32 %v2524, 0.044715
    %v2756 = vmul.f32 %v2595, 0.044715
    %v2757 = vmul.f32 %v2597, 0.044715
    %v2758 = vmul.f32 %v2668, 0.044715
    %v2759 = vmul.f32 %v2670, 0.044715
    %v2760 = vmul.f32 %v2526, 0.044715
    %v2761 = vmul.f32 %v2528, 0.044715
    %v2762 = vmul.f32 %v2599, 0.044715
    %v2763 = vmul.f32 %v2601, 0.044715
    %v2764 = vmul.f32 %v2672, 0.044715
    %v2765 = vmul.f32 %v2674, 0.044715
    %v2766 = vmul.f32 %v2532, 0.044715
    %v2767 = vmul.f32 %v2534, 0.044715
    %v2768 = vmul.f32 %v2605, 0.044715
    %v2769 = vmul.f32 %v2607, 0.044715
    %v2770 = vmul.f32 %v2678, 0.044715
    %v2771 = vmul.f32 %v2680, 0.044715
    %v2772 = vmul.f32 %v2536, 0.044715
    %v2773 = vmul.f32 %v2538, 0.044715
    %v2774 = vmul.f32 %v2609, 0.044715
    %v2775 = vmul.f32 %v2611, 0.044715
    %v2776 = vmul.f32 %v2682, 0.044715
    %v2777 = vmul.f32 %v2684, 0.044715
    %v2778 = vmul.f32 %v2542, 0.044715
    %v2779 = vmul.f32 %v2544, 0.044715
    %v2780 = vmul.f32 %v2615, 0.044715
    %v2781 = vmul.f32 %v2617, 0.044715
    %v2782 = vmul.f32 %v2688, 0.044715
    %v2783 = vmul.f32 %v2690, 0.044715
    %v2784 = vmul.f32 %v2546, 0.044715
    %v2785 = vmul.f32 %v2548, 0.044715
    %v2786 = vmul.f32 %v2619, 0.044715
    %v2787 = vmul.f32 %v2621, 0.044715
    %v2788 = vmul.f32 %v2692, 0.044715
    %v2789 = vmul.f32 %v2694, 0.044715
    %v2790 = vmul.f32 %v2552, 0.044715
    %v2791 = vmul.f32 %v2554, 0.044715
    %v2792 = vmul.f32 %v2625, 0.044715
    %v2793 = vmul.f32 %v2627, 0.044715
    %v2794 = vmul.f32 %v2698, 0.044715
    %v2795 = vmul.f32 %v2700, 0.044715
    %v2796 = vmul.f32 %v2556, 0.044715
    %v2797 = vmul.f32 %v2558, 0.044715
    %v2798 = vmul.f32 %v2629, 0.044715
    %v2799 = vmul.f32 %v2631, 0.044715
    %v2800 = vmul.f32 %v2702, 0.044715
    %v2801 = vmul.f32 %v2704, 0.044715
    %v2802 = vmul.f32 %v2754, %v2522
    %v2803 = vmul.f32 %v2755, %v2524
    %v2804 = vmul.f32 %v2756, %v2595
    %v2805 = vmul.f32 %v2757, %v2597
    %v2806 = vmul.f32 %v2758, %v2668
    %v2807 = vmul.f32 %v2759, %v2670
    %v2808 = vmul.f32 %v2760, %v2526
    %v2809 = vmul.f32 %v2761, %v2528
    %v2810 = vmul.f32 %v2762, %v2599
    %v2811 = vmul.f32 %v2763, %v2601
    %v2812 = vmul.f32 %v2764, %v2672
    %v2813 = vmul.f32 %v2765, %v2674
    %v2814 = vmul.f32 %v2766, %v2532
    %v2815 = vmul.f32 %v2767, %v2534
    %v2816 = vmul.f32 %v2768, %v2605
    %v2817 = vmul.f32 %v2769, %v2607
    %v2818 = vmul.f32 %v2770, %v2678
    %v2819 = vmul.f32 %v2771, %v2680
    %v2820 = vmul.f32 %v2772, %v2536
    %v2821 = vmul.f32 %v2773, %v2538
    %v2822 = vmul.f32 %v2774, %v2609
    %v2823 = vmul.f32 %v2775, %v2611
    %v2824 = vmul.f32 %v2776, %v2682
    %v2825 = vmul.f32 %v2777, %v2684
    %v2826 = vmul.f32 %v2778, %v2542
    %v2827 = vmul.f32 %v2779, %v2544
    %v2828 = vmul.f32 %v2780, %v2615
    %v2829 = vmul.f32 %v2781, %v2617
    %v2830 = vmul.f32 %v2782, %v2688
    %v2831 = vmul.f32 %v2783, %v2690
    %v2832 = vmul.f32 %v2784, %v2546
    %v2833 = vmul.f32 %v2785, %v2548
    %v2834 = vmul.f32 %v2786, %v2619
    %v2835 = vmul.f32 %v2787, %v2621
    %v2836 = vmul.f32 %v2788, %v2692
    %v2837 = vmul.f32 %v2789, %v2694
    %v2838 = vmul.f32 %v2790, %v2552
    %v2839 = vmul.f32 %v2791, %v2554
    %v2840 = vmul.f32 %v2792, %v2625
    %v2841 = vmul.f32 %v2793, %v2627
    %v2842 = vmul.f32 %v2794, %v2698
    %v2843 = vmul.f32 %v2795, %v2700
    %v2844 = vmul.f32 %v2796, %v2556
    %v2845 = vmul.f32 %v2797, %v2558
    %v2846 = vmul.f32 %v2798, %v2629
    %v2847 = vmul.f32 %v2799, %v2631
    %v2848 = vmul.f32 %v2800, %v2702
    %v2849 = vmul.f32 %v2801, %v2704
    %v2850 = vmul.f32 %v2802, %v2522
    %v2851 = vmul.f32 %v2803, %v2524
    %v2852 = vmul.f32 %v2804, %v2595
    %v2853 = vmul.f32 %v2805, %v2597
    %v2854 = vmul.f32 %v2806, %v2668
    %v2855 = vmul.f32 %v2807, %v2670
    %v2856 = vmul.f32 %v2808, %v2526
    %v2857 = vmul.f32 %v2809, %v2528
    %v2858 = vmul.f32 %v2810, %v2599
    %v2859 = vmul.f32 %v2811, %v2601
    %v2860 = vmul.f32 %v2812, %v2672
    %v2861 = vmul.f32 %v2813, %v2674
    %v2862 = vmul.f32 %v2814, %v2532
    %v2863 = vmul.f32 %v2815, %v2534
    %v2864 = vmul.f32 %v2816, %v2605
    %v2865 = vmul.f32 %v2817, %v2607
    %v2866 = vmul.f32 %v2818, %v2678
    %v2867 = vmul.f32 %v2819, %v2680
    %v2868 = vmul.f32 %v2820, %v2536
    %v2869 = vmul.f32 %v2821, %v2538
    %v2870 = vmul.f32 %v2822, %v2609
    %v2871 = vmul.f32 %v2823, %v2611
    %v2872 = vmul.f32 %v2824, %v2682
    %v2873 = vmul.f32 %v2825, %v2684
    %v2874 = vmul.f32 %v2826, %v2542
    %v2875 = vmul.f32 %v2827, %v2544
    %v2876 = vmul.f32 %v2828, %v2615
    %v2877 = vmul.f32 %v2829, %v2617
    %v2878 = vmul.f32 %v2830, %v2688
    %v2879 = vmul.f32 %v2831, %v2690
    %v2880 = vmul.f32 %v2832, %v2546
    %v2881 = vmul.f32 %v2833, %v2548
    %v2882 = vmul.f32 %v2834, %v2619
    %v2883 = vmul.f32 %v2835, %v2621
    %v2884 = vmul.f32 %v2836, %v2692
    %v2885 = vmul.f32 %v2837, %v2694
    %v2886 = vmul.f32 %v2838, %v2552
    %v2887 = vmul.f32 %v2839, %v2554
    %v2888 = vmul.f32 %v2840, %v2625
    %v2889 = vmul.f32 %v2841, %v2627
    %v2890 = vmul.f32 %v2842, %v2698
    %v2891 = vmul.f32 %v2843, %v2700
    %v2892 = vmul.f32 %v2844, %v2556
    %v2893 = vmul.f32 %v2845, %v2558
    %v2894 = vmul.f32 %v2846, %v2629
    %v2895 = vmul.f32 %v2847, %v2631
    %v2896 = vmul.f32 %v2848, %v2702
    %v2897 = vmul.f32 %v2849, %v2704
    %v2898 = vadd.f32 %v2522, %v2850
    %v2899 = vadd.f32 %v2524, %v2851
    %v2900 = vadd.f32 %v2595, %v2852
    %v2901 = vadd.f32 %v2597, %v2853
    %v2902 = vadd.f32 %v2668, %v2854
    %v2903 = vadd.f32 %v2670, %v2855
    %v2904 = vadd.f32 %v2526, %v2856
    %v2905 = vadd.f32 %v2528, %v2857
    %v2906 = vadd.f32 %v2599, %v2858
    %v2907 = vadd.f32 %v2601, %v2859
    %v2908 = vadd.f32 %v2672, %v2860
    %v2909 = vadd.f32 %v2674, %v2861
    %v2910 = vadd.f32 %v2532, %v2862
    %v2911 = vadd.f32 %v2534, %v2863
    %v2912 = vadd.f32 %v2605, %v2864
    %v2913 = vadd.f32 %v2607, %v2865
    %v2914 = vadd.f32 %v2678, %v2866
    %v2915 = vadd.f32 %v2680, %v2867
    %v2916 = vadd.f32 %v2536, %v2868
    %v2917 = vadd.f32 %v2538, %v2869
    %v2918 = vadd.f32 %v2609, %v2870
    %v2919 = vadd.f32 %v2611, %v2871
    %v2920 = vadd.f32 %v2682, %v2872
    %v2921 = vadd.f32 %v2684, %v2873
    %v2922 = vadd.f32 %v2542, %v2874
    %v2923 = vadd.f32 %v2544, %v2875
    %v2924 = vadd.f32 %v2615, %v2876
    %v2925 = vadd.f32 %v2617, %v2877
    %v2926 = vadd.f32 %v2688, %v2878
    %v2927 = vadd.f32 %v2690, %v2879
    %v2928 = vadd.f32 %v2546, %v2880
    %v2929 = vadd.f32 %v2548, %v2881
    %v2930 = vadd.f32 %v2619, %v2882
    %v2931 = vadd.f32 %v2621, %v2883
    %v2932 = vadd.f32 %v2692, %v2884
    %v2933 = vadd.f32 %v2694, %v2885
    %v2934 = vadd.f32 %v2552, %v2886
    %v2935 = vadd.f32 %v2554, %v2887
    %v2936 = vadd.f32 %v2625, %v2888
    %v2937 = vadd.f32 %v2627, %v2889
    %v2938 = vadd.f32 %v2698, %v2890
    %v2939 = vadd.f32 %v2700, %v2891
    %v2940 = vadd.f32 %v2556, %v2892
    %v2941 = vadd.f32 %v2558, %v2893
    %v2942 = vadd.f32 %v2629, %v2894
    %v2943 = vadd.f32 %v2631, %v2895
    %v2944 = vadd.f32 %v2702, %v2896
    %v2945 = vadd.f32 %v2704, %v2897
    %v2946 = vmul.f32 %v2898, 0.7978846
    %v2947 = vmul.f32 %v2899, 0.7978846
    %v2948 = vmul.f32 %v2900, 0.7978846
    %v2949 = vmul.f32 %v2901, 0.7978846
    %v2950 = vmul.f32 %v2902, 0.7978846
    %v2951 = vmul.f32 %v2903, 0.7978846
    %v2952 = vmul.f32 %v2904, 0.7978846
    %v2953 = vmul.f32 %v2905, 0.7978846
    %v2954 = vmul.f32 %v2906, 0.7978846
    %v2955 = vmul.f32 %v2907, 0.7978846
    %v2956 = vmul.f32 %v2908, 0.7978846
    %v2957 = vmul.f32 %v2909, 0.7978846
    %v2958 = vmul.f32 %v2910, 0.7978846
    %v2959 = vmul.f32 %v2911, 0.7978846
    %v2960 = vmul.f32 %v2912, 0.7978846
    %v2961 = vmul.f32 %v2913, 0.7978846
    %v2962 = vmul.f32 %v2914, 0.7978846
    %v2963 = vmul.f32 %v2915, 0.7978846
    %v2964 = vmul.f32 %v2916, 0.7978846
    %v2965 = vmul.f32 %v2917, 0.7978846
    %v2966 = vmul.f32 %v2918, 0.7978846
    %v2967 = vmul.f32 %v2919, 0.7978846
    %v2968 = vmul.f32 %v2920, 0.7978846
    %v2969 = vmul.f32 %v2921, 0.7978846
    %v2970 = vmul.f32 %v2922, 0.7978846
    %v2971 = vmul.f32 %v2923, 0.7978846
    %v2972 = vmul.f32 %v2924, 0.7978846
    %v2973 = vmul.f32 %v2925, 0.7978846
    %v2974 = vmul.f32 %v2926, 0.7978846
    %v2975 = vmul.f32 %v2927, 0.7978846
    %v2976 = vmul.f32 %v2928, 0.7978846
    %v2977 = vmul.f32 %v2929, 0.7978846
    %v2978 = vmul.f32 %v2930, 0.7978846
    %v2979 = vmul.f32 %v2931, 0.7978846
    %v2980 = vmul.f32 %v2932, 0.7978846
    %v2981 = vmul.f32 %v2933, 0.7978846
    %v2982 = vmul.f32 %v2934, 0.7978846
    %v2983 = vmul.f32 %v2935, 0.7978846
    %v2984 = vmul.f32 %v2936, 0.7978846
    %v2985 = vmul.f32 %v2937, 0.7978846
    %v2986 = vmul.f32 %v2938, 0.7978846
    %v2987 = vmul.f32 %v2939, 0.7978846
    %v2988 = vmul.f32 %v2940, 0.7978846
    %v2989 = vmul.f32 %v2941, 0.7978846
    %v2990 = vmul.f32 %v2942, 0.7978846
    %v2991 = vmul.f32 %v2943, 0.7978846
    %v2992 = vmul.f32 %v2944, 0.7978846
    %v2993 = vmul.f32 %v2945, 0.7978846
    %v2994 = vtanh.pop %v2946
    %v2995 = vtanh.pop %v2947
    %v2996 = vtanh.pop %v2948
    %v2997 = vtanh.pop %v2949
    %v2998 = vtanh.pop %v2950
    %v2999 = vtanh.pop %v2951
    %v3000 = vtanh.pop %v2952
    %v3001 = vtanh.pop %v2953
    %v3002 = vtanh.pop %v2954
    %v3003 = vtanh.pop %v2955
    %v3004 = vtanh.pop %v2956
    %v3005 = vtanh.pop %v2957
    %v3006 = vtanh.pop %v2958
    %v3007 = vtanh.pop %v2959
    %v3008 = vtanh.pop %v2960
    %v3009 = vtanh.pop %v2961
    %v3010 = vtanh.pop %v2962
    %v3011 = vtanh.pop %v2963
    %v3012 = vtanh.pop %v2964
    %v3013 = vtanh.pop %v2965
    %v3014 = vtanh.pop %v2966
    %v3015 = vtanh.pop %v2967
    %v3016 = vtanh.pop %v2968
    %v3017 = vtanh.pop %v2969
    %v3018 = vtanh.pop %v2970
    %v3019 = vtanh.pop %v2971
    %v3020 = vtanh.pop %v2972
    %v3021 = vtanh.pop %v2973
    %v3022 = vtanh.pop %v2974
    %v3023 = vtanh.pop %v2975
    %v3024 = vtanh.pop %v2976
    %v3025 = vtanh.pop %v2977
    %v3026 = vtanh.pop %v2978
    %v3027 = vtanh.pop %v2979
    %v3028 = vtanh.pop %v2980
    %v3029 = vtanh.pop %v2981
    %v3030 = vtanh.pop %v2982
    %v3031 = vtanh.pop %v2983
    %v3032 = vtanh.pop %v2984
    %v3033 = vtanh.pop %v2985
    %v3034 = vtanh.pop %v2986
    %v3035 = vtanh.pop %v2987
    %v3036 = vtanh.pop %v2988
    %v3037 = vtanh.pop %v2989
    %v3038 = vtanh.pop %v2990
    %v3039 = vtanh.pop %v2991
    %v3040 = vtanh.pop %v2992
    %v3041 = vtanh.pop %v2993
    %v3042 = vadd.f32 %v2994, 1.0
    %v3043 = vadd.f32 %v2995, 1.0
    %v3044 = vadd.f32 %v2996, 1.0
    %v3045 = vadd.f32 %v2997, 1.0
    %v3046 = vadd.f32 %v2998, 1.0
    %v3047 = vadd.f32 %v2999, 1.0
    %v3048 = vadd.f32 %v3000, 1.0
    %v3049 = vadd.f32 %v3001, 1.0
    %v3050 = vadd.f32 %v3002, 1.0
    %v3051 = vadd.f32 %v3003, 1.0
    %v3052 = vadd.f32 %v3004, 1.0
    %v3053 = vadd.f32 %v3005, 1.0
    %v3054 = vadd.f32 %v3006, 1.0
    %v3055 = vadd.f32 %v3007, 1.0
    %v3056 = vadd.f32 %v3008, 1.0
    %v3057 = vadd.f32 %v3009, 1.0
    %v3058 = vadd.f32 %v3010, 1.0
    %v3059 = vadd.f32 %v3011, 1.0
    %v3060 = vadd.f32 %v3012, 1.0
    %v3061 = vadd.f32 %v3013, 1.0
    %v3062 = vadd.f32 %v3014, 1.0
    %v3063 = vadd.f32 %v3015, 1.0
    %v3064 = vadd.f32 %v3016, 1.0
    %v3065 = vadd.f32 %v3017, 1.0
    %v3066 = vadd.f32 %v3018, 1.0
    %v3067 = vadd.f32 %v3019, 1.0
    %v3068 = vadd.f32 %v3020, 1.0
    %v3069 = vadd.f32 %v3021, 1.0
    %v3070 = vadd.f32 %v3022, 1.0
    %v3071 = vadd.f32 %v3023, 1.0
    %v3072 = vadd.f32 %v3024, 1.0
    %v3073 = vadd.f32 %v3025, 1.0
    %v3074 = vadd.f32 %v3026, 1.0
    %v3075 = vadd.f32 %v3027, 1.0
    %v3076 = vadd.f32 %v3028, 1.0
    %v3077 = vadd.f32 %v3029, 1.0
    %v3078 = vadd.f32 %v3030, 1.0
    %v3079 = vadd.f32 %v3031, 1.0
    %v3080 = vadd.f32 %v3032, 1.0
    %v3081 = vadd.f32 %v3033, 1.0
    %v3082 = vadd.f32 %v3034, 1.0
    %v3083 = vadd.f32 %v3035, 1.0
    %v3084 = vadd.f32 %v3036, 1.0
    %v3085 = vadd.f32 %v3037, 1.0
    %v3086 = vadd.f32 %v3038, 1.0
    %v3087 = vadd.f32 %v3039, 1.0
    %v3088 = vadd.f32 %v3040, 1.0
    %v3089 = vadd.f32 %v3041, 1.0
    %v3090 = vmul.f32 %v2706, %v3042
    %v3091 = vmul.f32 %v2707, %v3043
    %v3092 = vmul.f32 %v2708, %v3044
    %v3093 = vmul.f32 %v2709, %v3045
    %v3094 = vmul.f32 %v2710, %v3046
    %v3095 = vmul.f32 %v2711, %v3047
    %v3096 = vmul.f32 %v2712, %v3048
    %v3097 = vmul.f32 %v2713, %v3049
    %v3098 = vmul.f32 %v2714, %v3050
    %v3099 = vmul.f32 %v2715, %v3051
    %v3100 = vmul.f32 %v2716, %v3052
    %v3101 = vmul.f32 %v2717, %v3053
    %v3102 = vmul.f32 %v2718, %v3054
    %v3103 = vmul.f32 %v2719, %v3055
    %v3104 = vmul.f32 %v2720, %v3056
    %v3105 = vmul.f32 %v2721, %v3057
    %v3106 = vmul.f32 %v2722, %v3058
    %v3107 = vmul.f32 %v2723, %v3059
    %v3108 = vmul.f32 %v2724, %v3060
    %v3109 = vmul.f32 %v2725, %v3061
    %v3110 = vmul.f32 %v2726, %v3062
    %v3111 = vmul.f32 %v2727, %v3063
    %v3112 = vmul.f32 %v2728, %v3064
    %v3113 = vmul.f32 %v2729, %v3065
    %v3114 = vmul.f32 %v2730, %v3066
    %v3115 = vmul.f32 %v2731, %v3067
    %v3116 = vmul.f32 %v2732, %v3068
    %v3117 = vmul.f32 %v2733, %v3069
    %v3118 = vmul.f32 %v2734, %v3070
    %v3119 = vmul.f32 %v2735, %v3071
    %v3120 = vmul.f32 %v2736, %v3072
    %v3121 = vmul.f32 %v2737, %v3073
    %v3122 = vmul.f32 %v2738, %v3074
    %v3123 = vmul.f32 %v2739, %v3075
    %v3124 = vmul.f32 %v2740, %v3076
    %v3125 = vmul.f32 %v2741, %v3077
    %v3126 = vmul.f32 %v2742, %v3078
    %v3127 = vmul.f32 %v2743, %v3079
    %v3128 = vmul.f32 %v2744, %v3080
    %v3129 = vmul.f32 %v2745, %v3081
    %v3130 = vmul.f32 %v2746, %v3082
    %v3131 = vmul.f32 %v2747, %v3083
    %v3132 = vmul.f32 %v2748, %v3084
    %v3133 = vmul.f32 %v2749, %v3085
    %v3134 = vmul.f32 %v2750, %v3086
    %v3135 = vmul.f32 %v2751, %v3087
    %v3136 = vmul.f32 %v2752, %v3088
    %v3137 = vmul.f32 %v2753, %v3089
    %v3138 = vld [vmem:[#allocation9] sm:$0xf]
    %v3139 = vld [vmem:[#allocation9 + $0x4] sm:$0xf]
    %v3140 = vld [vmem:[#allocation9 + $0x8] sm:$0xf]
    %v3141 = vld [vmem:[#allocation9 + $0xc] sm:$0xf]
    %v3142 = vld [vmem:[#allocation9 + $0x10] sm:$0xf]
    %v3143 = vld [vmem:[#allocation9 + $0x14] sm:$0xf]
    %v3144 = vld [vmem:[#allocation9 + $0x18] sm:$0xf]
    %v3145 = vld [vmem:[#allocation9 + $0x1c] sm:$0xf]
    %v3146 = vld [vmem:[#allocation9 + $0x20] sm:$0xf]
    %v3147 = vld [vmem:[#allocation9 + $0x24] sm:$0xf]
    %v3148 = vld [vmem:[#allocation9 + $0x28] sm:$0xf]
    %v3149 = vld [vmem:[#allocation9 + $0x2c] sm:$0xf]
    %v3150 = vld [vmem:[#allocation9 + $0x30] sm:$0xf]
    %v3151 = vld [vmem:[#allocation9 + $0x34] sm:$0xf]
    %v3152 = vld [vmem:[#allocation9 + $0x38] sm:$0xf]
    %v3153 = vld [vmem:[#allocation9 + $0x3c] sm:$0xf]
    %v3154 = vld [vmem:[#allocation9 + $0x40] sm:$0xf]
    %v3155 = vld [vmem:[#allocation9 + $0x44] sm:$0xf]
    %v3156 = vld [vmem:[#allocation9 + $0x48] sm:$0xf]
    %v3157 = vld [vmem:[#allocation9 + $0x4c] sm:$0xf]
    %v3158 = vld [vmem:[#allocation9 + $0x50] sm:$0xf]
    %v3159 = vld [vmem:[#allocation9 + $0x54] sm:$0xf]
    %v3160 = vld [vmem:[#allocation9 + $0x58] sm:$0xf]
    %v3161 = vld [vmem:[#allocation9 + $0x5c] sm:$0xf]
    %v3162 = vld [vmem:[#allocation9 + $0x60] sm:$0xf]
    %v3163 = vld [vmem:[#allocation9 + $0x64] sm:$0xf]
    %v3164 = vld [vmem:[#allocation9 + $0x68] sm:$0xf]
    %v3165 = vld [vmem:[#allocation9 + $0x6c] sm:$0xf]
    %v3166 = vld [vmem:[#allocation9 + $0x70] sm:$0xf]
    %v3167 = vld [vmem:[#allocation9 + $0x74] sm:$0xf]
    %v3168 = vld [vmem:[#allocation9 + $0x78] sm:$0xf]
    %v3169 = vld [vmem:[#allocation9 + $0x7c] sm:$0xf]
    %v3170 = vld [vmem:[#allocation9 + $0x80] sm:$0xf]
    %v3171 = vld [vmem:[#allocation9 + $0x84] sm:$0xf]
    %v3172 = vld [vmem:[#allocation9 + $0x88] sm:$0xf]
    %v3173 = vld [vmem:[#allocation9 + $0x8c] sm:$0xf]
    %v3174 = vld [vmem:[#allocation9 + $0x90] sm:$0xf]
    %v3175 = vld [vmem:[#allocation9 + $0x94] sm:$0xf]
    %v3176 = vld [vmem:[#allocation9 + $0x98] sm:$0xf]
    %v3177 = vld [vmem:[#allocation9 + $0x9c] sm:$0xf]
    %v3178 = vld [vmem:[#allocation9 + $0xa0] sm:$0xf]
    %v3179 = vld [vmem:[#allocation9 + $0xa4] sm:$0xf]
    %v3180 = vld [vmem:[#allocation9 + $0xa8] sm:$0xf]
    %v3181 = vld [vmem:[#allocation9 + $0xac] sm:$0xf]
    %v3182 = vld [vmem:[#allocation9 + $0xb0] sm:$0xf]
    %v3183 = vld [vmem:[#allocation9 + $0xb4] sm:$0xf]
    %v3184 = vld [vmem:[#allocation9 + $0xb8] sm:$0xf]
    %v3185 = vld [vmem:[#allocation9 + $0xbc] sm:$0xf]
    %v3186 = vld [vmem:[#allocation9 + $0xc0] sm:$0xf]
    %v3187 = vld [vmem:[#allocation9 + $0xc4] sm:$0xf]
    %v3188 = vld [vmem:[#allocation9 + $0xc8] sm:$0xf]
    %v3189 = vld [vmem:[#allocation9 + $0xcc] sm:$0xf]
    %v3190 = vld [vmem:[#allocation9 + $0xd0] sm:$0xf]
    %v3191 = vld [vmem:[#allocation9 + $0xd4] sm:$0xf]
    %v3192 = vld [vmem:[#allocation9 + $0xd8] sm:$0xf]
    %v3193 = vld [vmem:[#allocation9 + $0xdc] sm:$0xf]
    %v3194 = vld [vmem:[#allocation9 + $0xe0] sm:$0xf]
    %v3195 = vld [vmem:[#allocation9 + $0xe4] sm:$0xf]
    %v3196 = vld [vmem:[#allocation9 + $0xe8] sm:$0xf]
    %v3197 = vld [vmem:[#allocation9 + $0xec] sm:$0xf]
    %v3198 = vld [vmem:[#allocation9 + $0xf0] sm:$0xf]
    %v3199 = vld [vmem:[#allocation9 + $0xf4] sm:$0xf]
    %v3200 = vld [vmem:[#allocation9 + $0xf8] sm:$0xf]
    %v3201 = vld [vmem:[#allocation9 + $0xfc] sm:$0xf]
    %v3202 = vld [vmem:[#allocation9 + $0x100] sm:$0xf]
    %v3203 = vld [vmem:[#allocation9 + $0x104] sm:$0xf]
    %v3204 = vld [vmem:[#allocation9 + $0x108] sm:$0xf]
    %v3205 = vld [vmem:[#allocation9 + $0x10c] sm:$0xf]
    %v3206 = vld [vmem:[#allocation9 + $0x110] sm:$0xf]
    %v3207 = vld [vmem:[#allocation9 + $0x114] sm:$0xf]
    %v3208 = vld [vmem:[#allocation9 + $0x118] sm:$0xf]
    %v3209 = vld [vmem:[#allocation9 + $0x11c] sm:$0xf]
    %v3210 = vld [vmem:[#allocation9 + $0x120] sm:$0xf]
    %v3211 = vld [vmem:[#allocation9 + $0x124] sm:$0xf]
    %v3212 = vld [vmem:[#allocation9 + $0x128] sm:$0xf]
    %v3213 = vld [vmem:[#allocation9 + $0x12c] sm:$0xf]
    %v3214 = vld [vmem:[#allocation9 + $0x130] sm:$0xf]
    %v3215 = vld [vmem:[#allocation9 + $0x134] sm:$0xf]
    %v3216 = vld [vmem:[#allocation9 + $0x138] sm:$0xf]
    %v3217 = vld [vmem:[#allocation9 + $0x13c] sm:$0xf]
    %v3218 = vld [vmem:[#allocation9 + $0x140] sm:$0xf]
    %v3219 = vld [vmem:[#allocation9 + $0x144] sm:$0xf]
    %v3220 = vld [vmem:[#allocation9 + $0x148] sm:$0xf]
    %v3221 = vld [vmem:[#allocation9 + $0x14c] sm:$0xf]
    %v3222 = vld [vmem:[#allocation9 + $0x150] sm:$0xf]
    %v3223 = vld [vmem:[#allocation9 + $0x154] sm:$0xf]
    %v3224 = vld [vmem:[#allocation9 + $0x158] sm:$0xf]
    %v3225 = vld [vmem:[#allocation9 + $0x15c] sm:$0xf]
    %v3226 = vld [vmem:[#allocation9 + $0x160] sm:$0xf]
    %v3227 = vld [vmem:[#allocation9 + $0x164] sm:$0xf]
    %v3228 = vld [vmem:[#allocation9 + $0x168] sm:$0xf]
    %v3229 = vld [vmem:[#allocation9 + $0x16c] sm:$0xf]
    %v3230 = vld [vmem:[#allocation9 + $0x170] sm:$0xf]
    %v3231 = vld [vmem:[#allocation9 + $0x174] sm:$0xf]
    %v3232 = vld [vmem:[#allocation9 + $0x178] sm:$0xf]
    %v3233 = vld [vmem:[#allocation9 + $0x17c] sm:$0xf]
    %v3234 = vpack.c.bf16 %v3096, %v3090
    %v3235 = vpack.c.bf16 %v3097, %v3091
    %v3236 = vpack.c.bf16 %v3098, %v3092
    %v3237 = vpack.c.bf16 %v3099, %v3093
    %v3238 = vpack.c.bf16 %v3100, %v3094
    %v3239 = vpack.c.bf16 %v3101, %v3095
    %v3240 = vpack.c.bf16 %v3108, %v3102
    %v3241 = vpack.c.bf16 %v3109, %v3103
    %v3242 = vpack.c.bf16 %v3110, %v3104
    %v3243 = vpack.c.bf16 %v3111, %v3105
    %v3244 = vpack.c.bf16 %v3112, %v3106
    %v3245 = vpack.c.bf16 %v3113, %v3107
    %v3246 = vpack.c.bf16 %v3120, %v3114
    %v3247 = vpack.c.bf16 %v3121, %v3115
    %v3248 = vpack.c.bf16 %v3122, %v3116
    %v3249 = vpack.c.bf16 %v3123, %v3117
    %v3250 = vpack.c.bf16 %v3124, %v3118
    %v3251 = vpack.c.bf16 %v3125, %v3119
    %v3252 = vpack.c.bf16 %v3132, %v3126
    %v3253 = vpack.c.bf16 %v3133, %v3127
    %v3254 = vpack.c.bf16 %v3134, %v3128
    %v3255 = vpack.c.bf16 %v3135, %v3129
    %v3256 = vpack.c.bf16 %v3136, %v3130
    %v3257 = vpack.c.bf16 %v3137, %v3131
    %v3258 = vld [vmem:[#allocation2 + $0x64] ss:$0 sm:$0xff]
    %v3355 = vunpack.c.l.b16 %v3138
    %v3356 = vunpack.c.l.b16 %v3139
    %v3357 = vunpack.c.l.b16 %v3140
    %v3358 = vunpack.c.l.b16 %v3141
    %v3359 = vunpack.c.l.b16 %v3142
    %v3360 = vunpack.c.l.b16 %v3143
    %v3361 = vunpack.c.l.b16 %v3144
    %v3362 = vunpack.c.l.b16 %v3145
    %v3363 = vunpack.c.l.b16 %v3146
    %v3364 = vunpack.c.l.b16 %v3147
    %v3365 = vunpack.c.l.b16 %v3148
    %v3366 = vunpack.c.l.b16 %v3149
    %v3367 = vunpack.c.l.b16 %v3150
    %v3368 = vunpack.c.l.b16 %v3151
    %v3369 = vunpack.c.l.b16 %v3152
    %v3370 = vunpack.c.l.b16 %v3153
    %v3371 = vunpack.c.l.b16 %v3154
    %v3372 = vunpack.c.l.b16 %v3155
    %v3373 = vunpack.c.l.b16 %v3156
    %v3374 = vunpack.c.l.b16 %v3157
    %v3375 = vunpack.c.l.b16 %v3158
    %v3376 = vunpack.c.l.b16 %v3159
    %v3377 = vunpack.c.l.b16 %v3160
    %v3378 = vunpack.c.l.b16 %v3161
    %v3379 = vunpack.c.l.b16 %v3162
    %v3380 = vunpack.c.l.b16 %v3163
    %v3381 = vunpack.c.l.b16 %v3164
    %v3382 = vunpack.c.l.b16 %v3165
    %v3383 = vunpack.c.l.b16 %v3166
    %v3384 = vunpack.c.l.b16 %v3167
    %v3385 = vunpack.c.l.b16 %v3168
    %v3386 = vunpack.c.l.b16 %v3169
    %v3387 = vunpack.c.l.b16 %v3170
    %v3388 = vunpack.c.l.b16 %v3171
    %v3389 = vunpack.c.l.b16 %v3172
    %v3390 = vunpack.c.l.b16 %v3173
    %v3391 = vunpack.c.l.b16 %v3174
    %v3392 = vunpack.c.l.b16 %v3175
    %v3393 = vunpack.c.l.b16 %v3176
    %v3394 = vunpack.c.l.b16 %v3177
    %v3395 = vunpack.c.l.b16 %v3178
    %v3396 = vunpack.c.l.b16 %v3179
    %v3397 = vunpack.c.l.b16 %v3180
    %v3398 = vunpack.c.l.b16 %v3181
    %v3399 = vunpack.c.l.b16 %v3182
    %v3400 = vunpack.c.l.b16 %v3183
    %v3401 = vunpack.c.l.b16 %v3184
    %v3402 = vunpack.c.l.b16 %v3185
    %v3403 = vunpack.c.l.b16 %v3186
    %v3404 = vunpack.c.l.b16 %v3187
    %v3405 = vunpack.c.l.b16 %v3188
    %v3406 = vunpack.c.l.b16 %v3189
    %v3407 = vunpack.c.l.b16 %v3190
    %v3408 = vunpack.c.l.b16 %v3191
    %v3409 = vunpack.c.l.b16 %v3192
    %v3410 = vunpack.c.l.b16 %v3193
    %v3411 = vunpack.c.l.b16 %v3194
    %v3412 = vunpack.c.l.b16 %v3195
    %v3413 = vunpack.c.l.b16 %v3196
    %v3414 = vunpack.c.l.b16 %v3197
    %v3415 = vunpack.c.l.b16 %v3198
    %v3416 = vunpack.c.l.b16 %v3199
    %v3417 = vunpack.c.l.b16 %v3200
    %v3418 = vunpack.c.l.b16 %v3201
    %v3419 = vunpack.c.l.b16 %v3202
    %v3420 = vunpack.c.l.b16 %v3203
    %v3421 = vunpack.c.l.b16 %v3204
    %v3422 = vunpack.c.l.b16 %v3205
    %v3423 = vunpack.c.l.b16 %v3206
    %v3424 = vunpack.c.l.b16 %v3207
    %v3425 = vunpack.c.l.b16 %v3208
    %v3426 = vunpack.c.l.b16 %v3209
    %v3427 = vunpack.c.l.b16 %v3210
    %v3428 = vunpack.c.l.b16 %v3211
    %v3429 = vunpack.c.l.b16 %v3212
    %v3430 = vunpack.c.l.b16 %v3213
    %v3431 = vunpack.c.l.b16 %v3214
    %v3432 = vunpack.c.l.b16 %v3215
    %v3433 = vunpack.c.l.b16 %v3216
    %v3434 = vunpack.c.l.b16 %v3217
    %v3435 = vunpack.c.l.b16 %v3218
    %v3436 = vunpack.c.l.b16 %v3219
    %v3437 = vunpack.c.l.b16 %v3220
    %v3438 = vunpack.c.l.b16 %v3221
    %v3439 = vunpack.c.l.b16 %v3222
    %v3440 = vunpack.c.l.b16 %v3223
    %v3441 = vunpack.c.l.b16 %v3224
    %v3442 = vunpack.c.l.b16 %v3225
    %v3443 = vunpack.c.l.b16 %v3226
    %v3444 = vunpack.c.l.b16 %v3227
    %v3445 = vunpack.c.l.b16 %v3228
    %v3446 = vunpack.c.l.b16 %v3229
    %v3447 = vunpack.c.l.b16 %v3230
    %v3448 = vunpack.c.l.b16 %v3231
    %v3449 = vunpack.c.l.b16 %v3232
    %v3450 = vunpack.c.l.b16 %v3233
    %v3451 = vpack.c.b16 %v3356, %v3355
    %v3452 = vpack.c.b16 %v3358, %v3357
    %v3453 = vpack.c.b16 %v3360, %v3359
    %v3454 = vpack.c.b16 %v3362, %v3361
    %v3455 = vpack.c.b16 %v3364, %v3363
    %v3456 = vpack.c.b16 %v3366, %v3365
    %v3457 = vpack.c.b16 %v3368, %v3367
    %v3458 = vpack.c.b16 %v3370, %v3369
    %v3459 = vpack.c.b16 %v3372, %v3371
    %v3460 = vpack.c.b16 %v3374, %v3373
    %v3461 = vpack.c.b16 %v3376, %v3375
    %v3462 = vpack.c.b16 %v3378, %v3377
    %v3463 = vpack.c.b16 %v3380, %v3379
    %v3464 = vpack.c.b16 %v3382, %v3381
    %v3465 = vpack.c.b16 %v3384, %v3383
    %v3466 = vpack.c.b16 %v3386, %v3385
    %v3467 = vpack.c.b16 %v3388, %v3387
    %v3468 = vpack.c.b16 %v3390, %v3389
    %v3469 = vpack.c.b16 %v3392, %v3391
    %v3470 = vpack.c.b16 %v3394, %v3393
    %v3471 = vpack.c.b16 %v3396, %v3395
    %v3472 = vpack.c.b16 %v3398, %v3397
    %v3473 = vpack.c.b16 %v3400, %v3399
    %v3474 = vpack.c.b16 %v3402, %v3401
    %v3475 = vpack.c.b16 %v3404, %v3403
    %v3476 = vpack.c.b16 %v3406, %v3405
    %v3477 = vpack.c.b16 %v3408, %v3407
    %v3478 = vpack.c.b16 %v3410, %v3409
    %v3479 = vpack.c.b16 %v3412, %v3411
    %v3480 = vpack.c.b16 %v3414, %v3413
    %v3481 = vpack.c.b16 %v3416, %v3415
    %v3482 = vpack.c.b16 %v3418, %v3417
    %v3483 = vpack.c.b16 %v3420, %v3419
    %v3484 = vpack.c.b16 %v3422, %v3421
    %v3485 = vpack.c.b16 %v3424, %v3423
    %v3486 = vpack.c.b16 %v3426, %v3425
    %v3487 = vpack.c.b16 %v3428, %v3427
    %v3488 = vpack.c.b16 %v3430, %v3429
    %v3489 = vpack.c.b16 %v3432, %v3431
    %v3490 = vpack.c.b16 %v3434, %v3433
    %v3491 = vpack.c.b16 %v3436, %v3435
    %v3492 = vpack.c.b16 %v3438, %v3437
    %v3493 = vpack.c.b16 %v3440, %v3439
    %v3494 = vpack.c.b16 %v3442, %v3441
    %v3495 = vpack.c.b16 %v3444, %v3443
    %v3496 = vpack.c.b16 %v3446, %v3445
    %v3497 = vpack.c.b16 %v3448, %v3447
    %v3498 = vpack.c.b16 %v3450, %v3449
    %3547 = vmatprep.subr.bf16.mxu0 0
    %3548 = vmatpush1.bf16.msra.mxu0 %v3458
    %3549 = vmatprep.subr.bf16.mxu0 0
    %3550 = vmatpush1.bf16.msra.mxu0 %v3457
    %3551 = vmatprep.subr.bf16.mxu0 0
    %3552 = vmatpush1.bf16.msra.mxu0 %v3456
    %3553 = vmatprep.subr.bf16.mxu0 0
    %3554 = vmatpush1.bf16.msra.mxu0 %v3455
    %3555 = vmatprep.subr.bf16.mxu0 0
    %3556 = vmatpush1.bf16.msra.mxu0 %v3454
    %3557 = vmatprep.subr.bf16.mxu0 0
    %3558 = vmatpush1.bf16.msra.mxu0 %v3453
    %3559 = vmatprep.subr.bf16.mxu0 0
    %3560 = vmatpush1.bf16.msra.mxu0 %v3452
    %3561 = vmatprep.subr.bf16.mxu0 0
    %3562 = vmatpush1.bf16.msra.mxu0 %v3451
    %3563 = vmatprep.subr.bf16.mxu0 0
    %3564 = vmatpush2.bf16.msra.mxu0 %v3466
    %3565 = vmatprep.subr.bf16.mxu0 0
    %3566 = vmatpush2.bf16.msra.mxu0 %v3465
    %3567 = vmatprep.subr.bf16.mxu0 0
    %3568 = vmatpush2.bf16.msra.mxu0 %v3464
    %3569 = vmatprep.subr.bf16.mxu0 0
    %3570 = vmatpush2.bf16.msra.mxu0 %v3463
    %3571 = vmatprep.subr.bf16.mxu0 0
    %3572 = vmatpush2.bf16.msra.mxu0 %v3462
    %3573 = vmatprep.subr.bf16.mxu0 0
    %3574 = vmatpush2.bf16.msra.mxu0 %v3461
    %3575 = vmatprep.subr.bf16.mxu0 0
    %3576 = vmatpush2.bf16.msra.mxu0 %v3460
    %3577 = vmatprep.subr.bf16.mxu0 0
    %3578 = vmatpush2.bf16.msra.mxu0 %v3459
    %3579 = vmatprep.mubr.bf16.mxu0 %v3235
    %3580 = vmatmul.mubr.bf16.gmra.mxu0 %v3234
    %v3581 = vpop.f32.mrf.mxu0
    %v3582 = vadd.f32 %v3258, %v3581
    %v3583 = vpop.f32.mrf.mxu0
    %v3584 = vpop.f32.mrf.mxu0
    %v3585 = vadd.f32 %v3258, %v3584
    %v3586 = vpop.f32.mrf.mxu0
    %3587 = vmatprep.mubr.bf16.mxu0 %v3241
    %3588 = vmatmul.mubr.bf16.gmra.mxu0 %v3240
    %v3589 = vpop.f32.mrf.mxu0
    %v3590 = vadd.f32 %v3258, %v3589
    %v3591 = vpop.f32.mrf.mxu0
    %v3592 = vpop.f32.mrf.mxu0
    %v3593 = vadd.f32 %v3258, %v3592
    %v3594 = vpop.f32.mrf.mxu0
    %3595 = vmatprep.mubr.bf16.mxu0 %v3247
    %3596 = vmatmul.mubr.bf16.gmra.mxu0 %v3246
    %v3597 = vpop.f32.mrf.mxu0
    %v3598 = vadd.f32 %v3258, %v3597
    %v3599 = vpop.f32.mrf.mxu0
    %v3600 = vpop.f32.mrf.mxu0
    %v3601 = vadd.f32 %v3258, %v3600
    %v3602 = vpop.f32.mrf.mxu0
    %3603 = vmatprep.mubr.bf16.mxu0 %v3253
    %3604 = vmatmul.mubr.bf16.gmra.mxu0 %v3252
    %v3605 = vpop.f32.mrf.mxu0
    %v3606 = vadd.f32 %v3258, %v3605
    %v3607 = vpop.f32.mrf.mxu0
    %v3608 = vpop.f32.mrf.mxu0
    %v3609 = vadd.f32 %v3258, %v3608
    %v3610 = vpop.f32.mrf.mxu0
    %3611 = vdwg.mxu0
    %3612 = vmatprep.subr.bf16.mxu0 0
    %3613 = vmatpush1.bf16.msra.mxu0 %v3474
    %3614 = vmatprep.subr.bf16.mxu0 0
    %3615 = vmatpush1.bf16.msra.mxu0 %v3473
    %3616 = vmatprep.subr.bf16.mxu0 0
    %3617 = vmatpush1.bf16.msra.mxu0 %v3472
    %3618 = vmatprep.subr.bf16.mxu0 0
    %3619 = vmatpush1.bf16.msra.mxu0 %v3471
    %3620 = vmatprep.subr.bf16.mxu0 0
    %3621 = vmatpush1.bf16.msra.mxu0 %v3470
    %3622 = vmatprep.subr.bf16.mxu0 0
    %3623 = vmatpush1.bf16.msra.mxu0 %v3469
    %3624 = vmatprep.subr.bf16.mxu0 0
    %3625 = vmatpush1.bf16.msra.mxu0 %v3468
    %3626 = vmatprep.subr.bf16.mxu0 0
    %3627 = vmatpush1.bf16.msra.mxu0 %v3467
    %3628 = vmatprep.subr.bf16.mxu0 0
    %3629 = vmatpush2.bf16.msra.mxu0 %v3482
    %3630 = vmatprep.subr.bf16.mxu0 0
    %3631 = vmatpush2.bf16.msra.mxu0 %v3481
    %3632 = vmatprep.subr.bf16.mxu0 0
    %3633 = vmatpush2.bf16.msra.mxu0 %v3480
    %3634 = vmatprep.subr.bf16.mxu0 0
    %3635 = vmatpush2.bf16.msra.mxu0 %v3479
    %3636 = vmatprep.subr.bf16.mxu0 0
    %3637 = vmatpush2.bf16.msra.mxu0 %v3478
    %3638 = vmatprep.subr.bf16.mxu0 0
    %3639 = vmatpush2.bf16.msra.mxu0 %v3477
    %3640 = vmatprep.subr.bf16.mxu0 0
    %3641 = vmatpush2.bf16.msra.mxu0 %v3476
    %3642 = vmatprep.subr.bf16.mxu0 0
    %3643 = vmatpush2.bf16.msra.mxu0 %v3475
    %3644 = vmatprep.mubr.bf16.mxu0 %v3237
    %3645 = vmatmul.mubr.bf16.gmra.mxu0 %v3236
    %v3646 = vpop.f32.mrf.mxu0
    %v3647 = vadd.f32 %v3582, %v3646
    %v3648 = vpop.f32.mrf.mxu0
    %v3649 = vpop.f32.mrf.mxu0
    %v3650 = vadd.f32 %v3585, %v3649
    %v3651 = vpop.f32.mrf.mxu0
    %3652 = vmatprep.mubr.bf16.mxu0 %v3243
    %3653 = vmatmul.mubr.bf16.gmra.mxu0 %v3242
    %v3654 = vpop.f32.mrf.mxu0
    %v3655 = vadd.f32 %v3590, %v3654
    %v3656 = vpop.f32.mrf.mxu0
    %v3657 = vpop.f32.mrf.mxu0
    %v3658 = vadd.f32 %v3593, %v3657
    %v3659 = vpop.f32.mrf.mxu0
    %3660 = vmatprep.mubr.bf16.mxu0 %v3249
    %3661 = vmatmul.mubr.bf16.gmra.mxu0 %v3248
    %v3662 = vpop.f32.mrf.mxu0
    %v3663 = vadd.f32 %v3598, %v3662
    %v3664 = vpop.f32.mrf.mxu0
    %v3665 = vpop.f32.mrf.mxu0
    %v3666 = vadd.f32 %v3601, %v3665
    %v3667 = vpop.f32.mrf.mxu0
    %3668 = vmatprep.mubr.bf16.mxu0 %v3255
    %3669 = vmatmul.mubr.bf16.gmra.mxu0 %v3254
    %v3670 = vpop.f32.mrf.mxu0
    %v3671 = vadd.f32 %v3606, %v3670
    %v3672 = vpop.f32.mrf.mxu0
    %v3673 = vpop.f32.mrf.mxu0
    %v3674 = vadd.f32 %v3609, %v3673
    %v3675 = vpop.f32.mrf.mxu0
    %3676 = vdwg.mxu0
    %3677 = vmatprep.subr.bf16.mxu0 0
    %3678 = vmatpush1.bf16.msra.mxu0 %v3490
    %3679 = vmatprep.subr.bf16.mxu0 0
    %3680 = vmatpush1.bf16.msra.mxu0 %v3489
    %3681 = vmatprep.subr.bf16.mxu0 0
    %3682 = vmatpush1.bf16.msra.mxu0 %v3488
    %3683 = vmatprep.subr.bf16.mxu0 0
    %3684 = vmatpush1.bf16.msra.mxu0 %v3487
    %3685 = vmatprep.subr.bf16.mxu0 0
    %3686 = vmatpush1.bf16.msra.mxu0 %v3486
    %3687 = vmatprep.subr.bf16.mxu0 0
    %3688 = vmatpush1.bf16.msra.mxu0 %v3485
    %3689 = vmatprep.subr.bf16.mxu0 0
    %3690 = vmatpush1.bf16.msra.mxu0 %v3484
    %3691 = vmatprep.subr.bf16.mxu0 0
    %3692 = vmatpush1.bf16.msra.mxu0 %v3483
    %3693 = vmatprep.subr.bf16.mxu0 0
    %3694 = vmatpush2.bf16.msra.mxu0 %v3498
    %3695 = vmatprep.subr.bf16.mxu0 0
    %3696 = vmatpush2.bf16.msra.mxu0 %v3497
    %3697 = vmatprep.subr.bf16.mxu0 0
    %3698 = vmatpush2.bf16.msra.mxu0 %v3496
    %3699 = vmatprep.subr.bf16.mxu0 0
    %3700 = vmatpush2.bf16.msra.mxu0 %v3495
    %3701 = vmatprep.subr.bf16.mxu0 0
    %3702 = vmatpush2.bf16.msra.mxu0 %v3494
    %3703 = vmatprep.subr.bf16.mxu0 0
    %3704 = vmatpush2.bf16.msra.mxu0 %v3493
    %3705 = vmatprep.subr.bf16.mxu0 0
    %3706 = vmatpush2.bf16.msra.mxu0 %v3492
    %3707 = vmatprep.subr.bf16.mxu0 0
    %3708 = vmatpush2.bf16.msra.mxu0 %v3491
    %3709 = vmatprep.mubr.bf16.mxu0 %v3239
    %3710 = vmatmul.mubr.bf16.gmra.mxu0 %v3238
    %v3711 = vpop.f32.mrf.mxu0
    %v3712 = vadd.f32 %v3647, %v3711
    %v3713 = vpop.f32.mrf.mxu0
    %v3714 = vpop.f32.mrf.mxu0
    %v3715 = vadd.f32 %v3650, %v3714
    %v3716 = vpop.f32.mrf.mxu0
    %3717 = vmatprep.mubr.bf16.mxu0 %v3245
    %3718 = vmatmul.mubr.bf16.gmra.mxu0 %v3244
    %v3719 = vpop.f32.mrf.mxu0
    %v3720 = vadd.f32 %v3655, %v3719
    %v3721 = vpop.f32.mrf.mxu0
    %v3722 = vpop.f32.mrf.mxu0
    %v3723 = vadd.f32 %v3658, %v3722
    %v3724 = vpop.f32.mrf.mxu0
    %3725 = vmatprep.mubr.bf16.mxu0 %v3251
    %3726 = vmatmul.mubr.bf16.gmra.mxu0 %v3250
    %v3727 = vpop.f32.mrf.mxu0
    %v3728 = vadd.f32 %v3663, %v3727
    %v3729 = vpop.f32.mrf.mxu0
    %v3730 = vpop.f32.mrf.mxu0
    %v3731 = vadd.f32 %v3666, %v3730
    %v3732 = vpop.f32.mrf.mxu0
    %3733 = vmatprep.mubr.bf16.mxu0 %v3257
    %3734 = vmatmul.mubr.bf16.gmra.mxu0 %v3256
    %v3735 = vpop.f32.mrf.mxu0
    %v3736 = vadd.f32 %v3671, %v3735
    %v3737 = vpop.f32.mrf.mxu0
    %v3738 = vpop.f32.mrf.mxu0
    %v3739 = vadd.f32 %v3674, %v3738
    %v3740 = vpop.f32.mrf.mxu0
    %3741 = vdwg.mxu0
    %v3742 = vadd.f32 %v2152, %v3712
    %v3743 = vadd.f32 %v2153, %v3715
    %v3744 = vadd.f32 %v2154, %v3720
    %v3745 = vadd.f32 %v2155, %v3723
    %v3746 = vadd.f32 %v2156, %v3728
    %v3747 = vadd.f32 %v2157, %v3731
    %v3748 = vadd.f32 %v2158, %v3736
    %v3749 = vadd.f32 %v2159, %v3739
    %v3750 = vld [vmem:[#allocation2 + $0x65] ss:$0 sm:$0xff]
    %v3751 = vld [vmem:[#allocation2 + $0x66] ss:$0 sm:$0xff]
    %3752 = vadd.xlane.f32.xlu0 %v3742
    %v3753 = vpop.xlane.xlu0 %3752
    %3754 = vadd.xlane.f32.xlu0 %v3743
    %v3755 = vpop.xlane.xlu0 %3754
    %3756 = vadd.xlane.f32.xlu0 %v3744
    %v3757 = vpop.xlane.xlu0 %3756
    %3758 = vadd.xlane.f32.xlu0 %v3745
    %v3759 = vpop.xlane.xlu0 %3758
    %3760 = vadd.xlane.f32.xlu0 %v3746
    %v3761 = vpop.xlane.xlu0 %3760
    %3762 = vadd.xlane.f32.xlu0 %v3747
    %v3763 = vpop.xlane.xlu0 %3762
    %3764 = vadd.xlane.f32.xlu0 %v3748
    %v3765 = vpop.xlane.xlu0 %3764
    %3766 = vadd.xlane.f32.xlu0 %v3749
    %v3767 = vpop.xlane.xlu0 %3766
    %v3768 = vmul.f32 %v3753, %v313
    %v3769 = vmul.f32 %v3755, %v313
    %v3770 = vmul.f32 %v3757, %v313
    %v3771 = vmul.f32 %v3759, %v313
    %v3772 = vmul.f32 %v3761, %v313
    %v3773 = vmul.f32 %v3763, %v313
    %v3774 = vmul.f32 %v3765, %v313
    %v3775 = vmul.f32 %v3767, %v313
    %v3776 = vsub.f32 %v3742, %v3768
    %v3777 = vsub.f32 %v3743, %v3769
    %v3778 = vsub.f32 %v3744, %v3770
    %v3779 = vsub.f32 %v3745, %v3771
    %v3780 = vsub.f32 %v3746, %v3772
    %v3781 = vsub.f32 %v3747, %v3773
    %v3782 = vsub.f32 %v3748, %v3774
    %v3783 = vsub.f32 %v3749, %v3775
    %v3784 = vmul.f32 %v3776, %v3776
    %v3785 = vmul.f32 %v3777, %v3777
    %v3786 = vmul.f32 %v3778, %v3778
    %v3787 = vmul.f32 %v3779, %v3779
    %v3788 = vmul.f32 %v3780, %v3780
    %v3789 = vmul.f32 %v3781, %v3781
    %v3790 = vmul.f32 %v3782, %v3782
    %v3791 = vmul.f32 %v3783, %v3783
    %3792 = vadd.xlane.f32.xlu0 %v3784
    %v3793 = vpop.xlane.xlu0 %3792
    %3794 = vadd.xlane.f32.xlu0 %v3785
    %v3795 = vpop.xlane.xlu0 %3794
    %3796 = vadd.xlane.f32.xlu0 %v3786
    %v3797 = vpop.xlane.xlu0 %3796
    %3798 = vadd.xlane.f32.xlu0 %v3787
    %v3799 = vpop.xlane.xlu0 %3798
    %3800 = vadd.xlane.f32.xlu0 %v3788
    %v3801 = vpop.xlane.xlu0 %3800
    %3802 = vadd.xlane.f32.xlu0 %v3789
    %v3803 = vpop.xlane.xlu0 %3802
    %3804 = vadd.xlane.f32.xlu0 %v3790
    %v3805 = vpop.xlane.xlu0 %3804
    %3806 = vadd.xlane.f32.xlu0 %v3791
    %v3807 = vpop.xlane.xlu0 %3806
    %v3808 = vmul.f32 %v3793, %v313
    %v3809 = vmul.f32 %v3795, %v313
    %v3810 = vmul.f32 %v3797, %v313
    %v3811 = vmul.f32 %v3799, %v313
    %v3812 = vmul.f32 %v3801, %v313
    %v3813 = vmul.f32 %v3803, %v313
    %v3814 = vmul.f32 %v3805, %v313
    %v3815 = vmul.f32 %v3807, %v313
    %v3816 = vadd.f32 %v3808, 1e-05
    %v3817 = vadd.f32 %v3809, 1e-05
    %v3818 = vadd.f32 %v3810, 1e-05
    %v3819 = vadd.f32 %v3811, 1e-05
    %v3820 = vadd.f32 %v3812, 1e-05
    %v3821 = vadd.f32 %v3813, 1e-05
    %v3822 = vadd.f32 %v3814, 1e-05
    %v3823 = vadd.f32 %v3815, 1e-05
    %v3824 = vrsqrt.pop %v3816
    %v3825 = vrsqrt.pop %v3817
    %v3826 = vrsqrt.pop %v3818
    %v3827 = vrsqrt.pop %v3819
    %v3828 = vrsqrt.pop %v3820
    %v3829 = vrsqrt.pop %v3821
    %v3830 = vrsqrt.pop %v3822
    %v3831 = vrsqrt.pop %v3823
    %v3832 = vmul.f32 %v3776, %v3824
    %v3833 = vmul.f32 %v3777, %v3825
    %v3834 = vmul.f32 %v3778, %v3826
    %v3835 = vmul.f32 %v3779, %v3827
    %v3836 = vmul.f32 %v3780, %v3828
    %v3837 = vmul.f32 %v3781, %v3829
    %v3838 = vmul.f32 %v3782, %v3830
    %v3839 = vmul.f32 %v3783, %v3831
    %v3840 = vmul.f32 %v3832, %v3750
    %v3841 = vmul.f32 %v3833, %v3750
    %v3842 = vmul.f32 %v3834, %v3750
    %v3843 = vmul.f32 %v3835, %v3750
    %v3844 = vmul.f32 %v3836, %v3750
    %v3845 = vmul.f32 %v3837, %v3750
    %v3846 = vmul.f32 %v3838, %v3750
    %v3847 = vmul.f32 %v3839, %v3750
    %v3848 = vadd.f32 %v3840, %v3751
    %v3849 = vadd.f32 %v3841, %v3751
    %v3850 = vadd.f32 %v3842, %v3751
    %v3851 = vadd.f32 %v3843, %v3751
    %v3852 = vadd.f32 %v3844, %v3751
    %v3853 = vadd.f32 %v3845, %v3751
    %v3854 = vadd.f32 %v3846, %v3751
    %v3855 = vadd.f32 %v3847, %v3751
    %s3856 = scalar_lea.vmem %s5, 64
    %v3857 = vld [vmem:[%s3856] sm:$0xf]
    %v3858 = vld [vmem:[%s3856 + $0x4] sm:$0xf]
    %v3859 = vld [vmem:[%s3856 + $0x8] sm:$0xf]
    %v3860 = vld [vmem:[%s3856 + $0xc] sm:$0xf]
    %v3861 = vld [vmem:[%s3856 + $0x10] sm:$0xf]
    %v3862 = vld [vmem:[%s3856 + $0x14] sm:$0xf]
    %v3863 = vld [vmem:[%s3856 + $0x18] sm:$0xf]
    %v3864 = vld [vmem:[%s3856 + $0x1c] sm:$0xf]
    %v3865 = vld [vmem:[%s3856 + $0x20] sm:$0xf]
    %v3866 = vld [vmem:[%s3856 + $0x24] sm:$0xf]
    %v3867 = vld [vmem:[%s3856 + $0x28] sm:$0xf]
    %v3868 = vld [vmem:[%s3856 + $0x2c] sm:$0xf]
    %v3869 = vld [vmem:[%s3856 + $0x30] sm:$0xf]
    %v3870 = vld [vmem:[%s3856 + $0x34] sm:$0xf]
    %v3871 = vld [vmem:[%s3856 + $0x38] sm:$0xf]
    %v3872 = vld [vmem:[%s3856 + $0x3c] sm:$0xf]
    %v3873 = vpack.c.bf16 %v3849, %v3848
    %v3874 = vpack.c.bf16 %v3851, %v3850
    %v3875 = vpack.c.bf16 %v3853, %v3852
    %v3876 = vpack.c.bf16 %v3855, %v3854
    %v3877 = vld [vmem:[#allocation2 + $0x67] ss:$0 sm:$0xff]
    %v3894 = vunpack.c.l.b16 %v3857
    %v3895 = vunpack.c.l.b16 %v3858
    %v3896 = vunpack.c.l.b16 %v3859
    %v3897 = vunpack.c.l.b16 %v3860
    %v3898 = vunpack.c.l.b16 %v3861
    %v3899 = vunpack.c.l.b16 %v3862
    %v3900 = vunpack.c.l.b16 %v3863
    %v3901 = vunpack.c.l.b16 %v3864
    %v3902 = vunpack.c.l.b16 %v3865
    %v3903 = vunpack.c.l.b16 %v3866
    %v3904 = vunpack.c.l.b16 %v3867
    %v3905 = vunpack.c.l.b16 %v3868
    %v3906 = vunpack.c.l.b16 %v3869
    %v3907 = vunpack.c.l.b16 %v3870
    %v3908 = vunpack.c.l.b16 %v3871
    %v3909 = vunpack.c.l.b16 %v3872
    %v3910 = vpack.c.b16 %v3895, %v3894
    %v3911 = vpack.c.b16 %v3897, %v3896
    %v3912 = vpack.c.b16 %v3899, %v3898
    %v3913 = vpack.c.b16 %v3901, %v3900
    %v3914 = vpack.c.b16 %v3903, %v3902
    %v3915 = vpack.c.b16 %v3905, %v3904
    %v3916 = vpack.c.b16 %v3907, %v3906
    %v3917 = vpack.c.b16 %v3909, %v3908
    %3926 = vmatprep.subr.bf16.mxu0 0
    %3927 = vmatpush1.bf16.msra.mxu0 %v3917
    %3928 = vmatprep.subr.bf16.mxu0 0
    %3929 = vmatpush1.bf16.msra.mxu0 %v3916
    %3930 = vmatprep.subr.bf16.mxu0 0
    %3931 = vmatpush1.bf16.msra.mxu0 %v3915
    %3932 = vmatprep.subr.bf16.mxu0 0
    %3933 = vmatpush1.bf16.msra.mxu0 %v3914
    %3934 = vmatprep.subr.bf16.mxu0 0
    %3935 = vmatpush1.bf16.msra.mxu0 %v3913
    %3936 = vmatprep.subr.bf16.mxu0 0
    %3937 = vmatpush1.bf16.msra.mxu0 %v3912
    %3938 = vmatprep.subr.bf16.mxu0 0
    %3939 = vmatpush1.bf16.msra.mxu0 %v3911
    %3940 = vmatprep.subr.bf16.mxu0 0
    %3941 = vmatpush1.bf16.msra.mxu0 %v3910
    %3942 = vmatprep.subr.bf16.mxu0 0
    %3943 = vmatpush2.bf16.msra.mxu0 0
    %3944 = vmatprep.subr.bf16.mxu0 0
    %3945 = vmatpush2.bf16.msra.mxu0 0
    %3946 = vmatprep.subr.bf16.mxu0 0
    %3947 = vmatpush2.bf16.msra.mxu0 0
    %3948 = vmatprep.subr.bf16.mxu0 0
    %3949 = vmatpush2.bf16.msra.mxu0 0
    %3950 = vmatprep.subr.bf16.mxu0 0
    %3951 = vmatpush2.bf16.msra.mxu0 0
    %3952 = vmatprep.subr.bf16.mxu0 0
    %3953 = vmatpush2.bf16.msra.mxu0 0
    %3954 = vmatprep.subr.bf16.mxu0 0
    %3955 = vmatpush2.bf16.msra.mxu0 0
    %3956 = vmatprep.subr.bf16.mxu0 0
    %3957 = vmatpush2.bf16.msra.mxu0 0
    %3958 = vmatprep.mubr.bf16.mxu0 0
    %3959 = vmatmul.mubr.bf16.gmra.mxu0 %v3873
    %v3960 = vpop.f32.mrf.mxu0
    %v3961 = vadd.f32 %v3877, %v3960
    %v3962 = vpop.f32.mrf.mxu0
    %v3963 = vpop.f32.mrf.mxu0
    %v3964 = vadd.f32 %v3877, %v3963
    %v3965 = vpop.f32.mrf.mxu0
    %3966 = vmatprep.mubr.bf16.mxu0 0
    %3967 = vmatmul.mubr.bf16.gmra.mxu0 %v3874
    %v3968 = vpop.f32.mrf.mxu0
    %v3969 = vadd.f32 %v3877, %v3968
    %v3970 = vpop.f32.mrf.mxu0
    %v3971 = vpop.f32.mrf.mxu0
    %v3972 = vadd.f32 %v3877, %v3971
    %v3973 = vpop.f32.mrf.mxu0
    %3974 = vmatprep.mubr.bf16.mxu0 0
    %3975 = vmatmul.mubr.bf16.gmra.mxu0 %v3875
    %v3976 = vpop.f32.mrf.mxu0
    %v3977 = vadd.f32 %v3877, %v3976
    %v3978 = vpop.f32.mrf.mxu0
    %v3979 = vpop.f32.mrf.mxu0
    %v3980 = vadd.f32 %v3877, %v3979
    %v3981 = vpop.f32.mrf.mxu0
    %3982 = vmatprep.mubr.bf16.mxu0 0
    %3983 = vmatmul.mubr.bf16.gmra.mxu0 %v3876
    %v3984 = vpop.f32.mrf.mxu0
    %v3985 = vadd.f32 %v3877, %v3984
    %v3986 = vpop.f32.mrf.mxu0
    %v3987 = vpop.f32.mrf.mxu0
    %v3988 = vadd.f32 %v3877, %v3987
    %v3989 = vpop.f32.mrf.mxu0
    %3990 = vdwg.mxu0
    %v3991 = vadd.f32 %v3848, %v3961
    %v3992 = vadd.f32 %v3849, %v3964
    %v3993 = vadd.f32 %v3850, %v3969
    %v3994 = vadd.f32 %v3851, %v3972
    %v3995 = vadd.f32 %v3852, %v3977
    %v3996 = vadd.f32 %v3853, %v3980
    %v3997 = vadd.f32 %v3854, %v3985
    %v3998 = vadd.f32 %v3855, %v3988
    %v3999 = vld [vmem:[#allocation2 + $0x90] ss:$0 sm:$0xff]
    %v4000 = vld [vmem:[#allocation2 + $0x91] ss:$0 sm:$0xff]
    %4001 = vadd.xlane.f32.xlu0 %v3991
    %v4002 = vpop.xlane.xlu0 %4001
    %4003 = vadd.xlane.f32.xlu0 %v3992
    %v4004 = vpop.xlane.xlu0 %4003
    %4005 = vadd.xlane.f32.xlu0 %v3993
    %v4006 = vpop.xlane.xlu0 %4005
    %4007 = vadd.xlane.f32.xlu0 %v3994
    %v4008 = vpop.xlane.xlu0 %4007
    %4009 = vadd.xlane.f32.xlu0 %v3995
    %v4010 = vpop.xlane.xlu0 %4009
    %4011 = vadd.xlane.f32.xlu0 %v3996
    %v4012 = vpop.xlane.xlu0 %4011
    %4013 = vadd.xlane.f32.xlu0 %v3997
    %v4014 = vpop.xlane.xlu0 %4013
    %4015 = vadd.xlane.f32.xlu0 %v3998
    %v4016 = vpop.xlane.xlu0 %4015
    %v4017 = vmul.f32 %v4002, %v313
    %v4018 = vmul.f32 %v4004, %v313
    %v4019 = vmul.f32 %v4006, %v313
    %v4020 = vmul.f32 %v4008, %v313
    %v4021 = vmul.f32 %v4010, %v313
    %v4022 = vmul.f32 %v4012, %v313
    %v4023 = vmul.f32 %v4014, %v313
    %v4024 = vmul.f32 %v4016, %v313
    %v4025 = vsub.f32 %v3991, %v4017
    %v4026 = vsub.f32 %v3992, %v4018
    %v4027 = vsub.f32 %v3993, %v4019
    %v4028 = vsub.f32 %v3994, %v4020
    %v4029 = vsub.f32 %v3995, %v4021
    %v4030 = vsub.f32 %v3996, %v4022
    %v4031 = vsub.f32 %v3997, %v4023
    %v4032 = vsub.f32 %v3998, %v4024
    %v4033 = vmul.f32 %v4025, %v4025
    %v4034 = vmul.f32 %v4026, %v4026
    %v4035 = vmul.f32 %v4027, %v4027
    %v4036 = vmul.f32 %v4028, %v4028
    %v4037 = vmul.f32 %v4029, %v4029
    %v4038 = vmul.f32 %v4030, %v4030
    %v4039 = vmul.f32 %v4031, %v4031
    %v4040 = vmul.f32 %v4032, %v4032
    %4041 = vadd.xlane.f32.xlu0 %v4033
    %v4042 = vpop.xlane.xlu0 %4041
    %4043 = vadd.xlane.f32.xlu0 %v4034
    %v4044 = vpop.xlane.xlu0 %4043
    %4045 = vadd.xlane.f32.xlu0 %v4035
    %v4046 = vpop.xlane.xlu0 %4045
    %4047 = vadd.xlane.f32.xlu0 %v4036
    %v4048 = vpop.xlane.xlu0 %4047
    %4049 = vadd.xlane.f32.xlu0 %v4037
    %v4050 = vpop.xlane.xlu0 %4049
    %4051 = vadd.xlane.f32.xlu0 %v4038
    %v4052 = vpop.xlane.xlu0 %4051
    %4053 = vadd.xlane.f32.xlu0 %v4039
    %v4054 = vpop.xlane.xlu0 %4053
    %4055 = vadd.xlane.f32.xlu0 %v4040
    %v4056 = vpop.xlane.xlu0 %4055
    %v4057 = vmul.f32 %v4042, %v313
    %v4058 = vmul.f32 %v4044, %v313
    %v4059 = vmul.f32 %v4046, %v313
    %v4060 = vmul.f32 %v4048, %v313
    %v4061 = vmul.f32 %v4050, %v313
    %v4062 = vmul.f32 %v4052, %v313
    %v4063 = vmul.f32 %v4054, %v313
    %v4064 = vmul.f32 %v4056, %v313
    %v4065 = vadd.f32 %v4057, 1e-05
    %v4066 = vadd.f32 %v4058, 1e-05
    %v4067 = vadd.f32 %v4059, 1e-05
    %v4068 = vadd.f32 %v4060, 1e-05
    %v4069 = vadd.f32 %v4061, 1e-05
    %v4070 = vadd.f32 %v4062, 1e-05
    %v4071 = vadd.f32 %v4063, 1e-05
    %v4072 = vadd.f32 %v4064, 1e-05
    %v4073 = vrsqrt.pop %v4065
    %v4074 = vrsqrt.pop %v4066
    %v4075 = vrsqrt.pop %v4067
    %v4076 = vrsqrt.pop %v4068
    %v4077 = vrsqrt.pop %v4069
    %v4078 = vrsqrt.pop %v4070
    %v4079 = vrsqrt.pop %v4071
    %v4080 = vrsqrt.pop %v4072
    %v4081 = vmul.f32 %v4025, %v4073
    %v4082 = vmul.f32 %v4026, %v4074
    %v4083 = vmul.f32 %v4027, %v4075
    %v4084 = vmul.f32 %v4028, %v4076
    %v4085 = vmul.f32 %v4029, %v4077
    %v4086 = vmul.f32 %v4030, %v4078
    %v4087 = vmul.f32 %v4031, %v4079
    %v4088 = vmul.f32 %v4032, %v4080
    %v4089 = vmul.f32 %v4081, %v3999
    %v4090 = vmul.f32 %v4082, %v3999
    %v4091 = vmul.f32 %v4083, %v3999
    %v4092 = vmul.f32 %v4084, %v3999
    %v4093 = vmul.f32 %v4085, %v3999
    %v4094 = vmul.f32 %v4086, %v3999
    %v4095 = vmul.f32 %v4087, %v3999
    %v4096 = vmul.f32 %v4088, %v3999
    %v4097 = vadd.f32 %v4089, %v4000
    %v4098 = vadd.f32 %v4090, %v4000
    %v4099 = vadd.f32 %v4091, %v4000
    %v4100 = vadd.f32 %v4092, %v4000
    %v4101 = vadd.f32 %v4093, %v4000
    %v4102 = vadd.f32 %v4094, %v4000
    %v4103 = vadd.f32 %v4095, %v4000
    %v4104 = vadd.f32 %v4096, %v4000
    %s4105 = scalar_lea.vmem [#allocation7], 384
    %v4106 = vld [vmem:[%s4105] sm:$0xff]
    %v4107 = vld [vmem:[%s4105 + $0x8] sm:$0xff]
    %v4108 = vld [vmem:[%s4105 + $0x10] sm:$0xff]
    %v4109 = vld [vmem:[%s4105 + $0x18] sm:$0xff]
    %v4110 = vld [vmem:[%s4105 + $0x20] sm:$0xff]
    %v4111 = vld [vmem:[%s4105 + $0x28] sm:$0xff]
    %v4112 = vld [vmem:[%s4105 + $0x30] sm:$0xff]
    %v4113 = vld [vmem:[%s4105 + $0x38] sm:$0xff]
    %v4114 = vld [vmem:[%s4105 + $0x40] sm:$0xff]
    %v4115 = vld [vmem:[%s4105 + $0x48] sm:$0xff]
    %v4116 = vld [vmem:[%s4105 + $0x50] sm:$0xff]
    %v4117 = vld [vmem:[%s4105 + $0x58] sm:$0xff]
    %v4118 = vld [vmem:[%s4105 + $0x60] sm:$0xff]
    %v4119 = vld [vmem:[%s4105 + $0x68] sm:$0xff]
    %v4120 = vld [vmem:[%s4105 + $0x70] sm:$0xff]
    %v4121 = vld [vmem:[%s4105 + $0x78] sm:$0xff]
    %v4122 = vld [vmem:[%s4105 + $0x80] sm:$0xff]
    %v4123 = vld [vmem:[%s4105 + $0x88] sm:$0xff]
    %v4124 = vld [vmem:[%s4105 + $0x90] sm:$0xff]
    %v4125 = vld [vmem:[%s4105 + $0x98] sm:$0xff]
    %v4126 = vld [vmem:[%s4105 + $0xa0] sm:$0xff]
    %v4127 = vld [vmem:[%s4105 + $0xa8] sm:$0xff]
    %v4128 = vld [vmem:[%s4105 + $0xb0] sm:$0xff]
    %v4129 = vld [vmem:[%s4105 + $0xb8] sm:$0xff]
    %v4130 = vld [vmem:[%s4105 + $0xc0] sm:$0xff]
    %v4131 = vld [vmem:[%s4105 + $0xc8] sm:$0xff]
    %v4132 = vld [vmem:[%s4105 + $0xd0] sm:$0xff]
    %v4133 = vld [vmem:[%s4105 + $0xd8] sm:$0xff]
    %v4134 = vld [vmem:[%s4105 + $0xe0] sm:$0xff]
    %v4135 = vld [vmem:[%s4105 + $0xe8] sm:$0xff]
    %v4136 = vld [vmem:[%s4105 + $0xf0] sm:$0xff]
    %v4137 = vld [vmem:[%s4105 + $0xf8] sm:$0xff]
    %v4138 = vld [vmem:[%s4105 + $0x100] sm:$0xff]
    %v4139 = vld [vmem:[%s4105 + $0x108] sm:$0xff]
    %v4140 = vld [vmem:[%s4105 + $0x110] sm:$0xff]
    %v4141 = vld [vmem:[%s4105 + $0x118] sm:$0xff]
    %v4142 = vld [vmem:[%s4105 + $0x120] sm:$0xff]
    %v4143 = vld [vmem:[%s4105 + $0x128] sm:$0xff]
    %v4144 = vld [vmem:[%s4105 + $0x130] sm:$0xff]
    %v4145 = vld [vmem:[%s4105 + $0x138] sm:$0xff]
    %v4146 = vld [vmem:[%s4105 + $0x140] sm:$0xff]
    %v4147 = vld [vmem:[%s4105 + $0x148] sm:$0xff]
    %v4148 = vld [vmem:[%s4105 + $0x150] sm:$0xff]
    %v4149 = vld [vmem:[%s4105 + $0x158] sm:$0xff]
    %v4150 = vld [vmem:[%s4105 + $0x160] sm:$0xff]
    %v4151 = vld [vmem:[%s4105 + $0x168] sm:$0xff]
    %v4152 = vld [vmem:[%s4105 + $0x170] sm:$0xff]
    %v4153 = vld [vmem:[%s4105 + $0x178] sm:$0xff]
    %v4154 = vpack.c.bf16 %v4098, %v4097
    %v4155 = vpack.c.bf16 %v4100, %v4099
    %v4156 = vpack.c.bf16 %v4102, %v4101
    %v4157 = vpack.c.bf16 %v4104, %v4103
    %s4158 = scalar_lea.vmem [#allocation2], 146
    %v4159 = vld [vmem:[%s4158] ss:$8 sm:$0xf]
    %v4160 = vld [vmem:[%s4158] ss:$8 sm:$0x30]
    %v4161 = vor.u32 %v4159, %v4160
    %v4163 = vlaneseq
    %v4164 = vshrl.u32 %v4163, 7
    %v4165 = vsub.s32 0, %v4164
    %v4166 = vrot.slane %v4161, %v4165
    %v4167 = vlaneseq
    %v4168 = vshrl.u32 %v4167, 7
    %v4169 = vsub.s32 1, %v4168
    %v4170 = vrot.slane %v4161, %v4169
    %v4171 = vlaneseq
    %v4172 = vshrl.u32 %v4171, 7
    %v4173 = vsub.s32 2, %v4172
    %v4174 = vrot.slane %v4161, %v4173
    %v4175 = vlaneseq
    %v4176 = vshrl.u32 %v4175, 7
    %v4177 = vsub.s32 3, %v4176
    %v4178 = vrot.slane %v4161, %v4177
    %v4179 = vlaneseq
    %v4180 = vshrl.u32 %v4179, 7
    %v4181 = vsub.s32 4, %v4180
    %v4182 = vrot.slane %v4161, %v4181
    %v4183 = vlaneseq
    %v4184 = vshrl.u32 %v4183, 7
    %v4185 = vsub.s32 5, %v4184
    %v4186 = vrot.slane %v4161, %v4185
    %v4241 = vunpack.c.l.b16 %v4106
    %v4242 = vunpack.c.h.b16 %v4106
    %v4243 = vunpack.c.l.b16 %v4107
    %v4244 = vunpack.c.h.b16 %v4107
    %v4245 = vunpack.c.l.b16 %v4108
    %v4246 = vunpack.c.h.b16 %v4108
    %v4247 = vunpack.c.l.b16 %v4109
    %v4248 = vunpack.c.h.b16 %v4109
    %v4249 = vunpack.c.l.b16 %v4110
    %v4250 = vunpack.c.h.b16 %v4110
    %v4251 = vunpack.c.l.b16 %v4111
    %v4252 = vunpack.c.h.b16 %v4111
    %v4253 = vunpack.c.l.b16 %v4112
    %v4254 = vunpack.c.h.b16 %v4112
    %v4255 = vunpack.c.l.b16 %v4113
    %v4256 = vunpack.c.h.b16 %v4113
    %v4257 = vunpack.c.l.b16 %v4114
    %v4258 = vunpack.c.h.b16 %v4114
    %v4259 = vunpack.c.l.b16 %v4115
    %v4260 = vunpack.c.h.b16 %v4115
    %v4261 = vunpack.c.l.b16 %v4116
    %v4262 = vunpack.c.h.b16 %v4116
    %v4263 = vunpack.c.l.b16 %v4117
    %v4264 = vunpack.c.h.b16 %v4117
    %v4265 = vunpack.c.l.b16 %v4118
    %v4266 = vunpack.c.h.b16 %v4118
    %v4267 = vunpack.c.l.b16 %v4119
    %v4268 = vunpack.c.h.b16 %v4119
    %v4269 = vunpack.c.l.b16 %v4120
    %v4270 = vunpack.c.h.b16 %v4120
    %v4271 = vunpack.c.l.b16 %v4121
    %v4272 = vunpack.c.h.b16 %v4121
    %v4273 = vunpack.c.l.b16 %v4122
    %v4274 = vunpack.c.h.b16 %v4122
    %v4275 = vunpack.c.l.b16 %v4123
    %v4276 = vunpack.c.h.b16 %v4123
    %v4277 = vunpack.c.l.b16 %v4124
    %v4278 = vunpack.c.h.b16 %v4124
    %v4279 = vunpack.c.l.b16 %v4125
    %v4280 = vunpack.c.h.b16 %v4125
    %v4281 = vunpack.c.l.b16 %v4126
    %v4282 = vunpack.c.h.b16 %v4126
    %v4283 = vunpack.c.l.b16 %v4127
    %v4284 = vunpack.c.h.b16 %v4127
    %v4285 = vunpack.c.l.b16 %v4128
    %v4286 = vunpack.c.h.b16 %v4128
    %v4287 = vunpack.c.l.b16 %v4129
    %v4288 = vunpack.c.h.b16 %v4129
    %v4289 = vunpack.c.l.b16 %v4130
    %v4290 = vunpack.c.h.b16 %v4130
    %v4291 = vunpack.c.l.b16 %v4131
    %v4292 = vunpack.c.h.b16 %v4131
    %v4293 = vunpack.c.l.b16 %v4132
    %v4294 = vunpack.c.h.b16 %v4132
    %v4295 = vunpack.c.l.b16 %v4133
    %v4296 = vunpack.c.h.b16 %v4133
    %v4297 = vunpack.c.l.b16 %v4134
    %v4298 = vunpack.c.h.b16 %v4134
    %v4299 = vunpack.c.l.b16 %v4135
    %v4300 = vunpack.c.h.b16 %v4135
    %v4301 = vunpack.c.l.b16 %v4136
    %v4302 = vunpack.c.h.b16 %v4136
    %v4303 = vunpack.c.l.b16 %v4137
    %v4304 = vunpack.c.h.b16 %v4137
    %v4305 = vunpack.c.l.b16 %v4138
    %v4306 = vunpack.c.h.b16 %v4138
    %v4307 = vunpack.c.l.b16 %v4139
    %v4308 = vunpack.c.h.b16 %v4139
    %v4309 = vunpack.c.l.b16 %v4140
    %v4310 = vunpack.c.h.b16 %v4140
    %v4311 = vunpack.c.l.b16 %v4141
    %v4312 = vunpack.c.h.b16 %v4141
    %v4313 = vunpack.c.l.b16 %v4142
    %v4314 = vunpack.c.h.b16 %v4142
    %v4315 = vunpack.c.l.b16 %v4143
    %v4316 = vunpack.c.h.b16 %v4143
    %v4317 = vunpack.c.l.b16 %v4144
    %v4318 = vunpack.c.h.b16 %v4144
    %v4319 = vunpack.c.l.b16 %v4145
    %v4320 = vunpack.c.h.b16 %v4145
    %v4321 = vunpack.c.l.b16 %v4146
    %v4322 = vunpack.c.h.b16 %v4146
    %v4323 = vunpack.c.l.b16 %v4147
    %v4324 = vunpack.c.h.b16 %v4147
    %v4325 = vunpack.c.l.b16 %v4148
    %v4326 = vunpack.c.h.b16 %v4148
    %v4327 = vunpack.c.l.b16 %v4149
    %v4328 = vunpack.c.h.b16 %v4149
    %v4329 = vunpack.c.l.b16 %v4150
    %v4330 = vunpack.c.h.b16 %v4150
    %v4331 = vunpack.c.l.b16 %v4151
    %v4332 = vunpack.c.h.b16 %v4151
    %v4333 = vunpack.c.l.b16 %v4152
    %v4334 = vunpack.c.h.b16 %v4152
    %v4335 = vunpack.c.l.b16 %v4153
    %v4336 = vunpack.c.h.b16 %v4153
    %v4337 = vpack.c.b16 %v4247, %v4241
    %v4338 = vpack.c.b16 %v4248, %v4242
    %v4339 = vpack.c.b16 %v4249, %v4243
    %v4340 = vpack.c.b16 %v4250, %v4244
    %v4341 = vpack.c.b16 %v4251, %v4245
    %v4342 = vpack.c.b16 %v4252, %v4246
    %v4343 = vpack.c.b16 %v4259, %v4253
    %v4344 = vpack.c.b16 %v4260, %v4254
    %v4345 = vpack.c.b16 %v4261, %v4255
    %v4346 = vpack.c.b16 %v4262, %v4256
    %v4347 = vpack.c.b16 %v4263, %v4257
    %v4348 = vpack.c.b16 %v4264, %v4258
    %v4349 = vpack.c.b16 %v4271, %v4265
    %v4350 = vpack.c.b16 %v4272, %v4266
    %v4351 = vpack.c.b16 %v4273, %v4267
    %v4352 = vpack.c.b16 %v4274, %v4268
    %v4353 = vpack.c.b16 %v4275, %v4269
    %v4354 = vpack.c.b16 %v4276, %v4270
    %v4355 = vpack.c.b16 %v4283, %v4277
    %v4356 = vpack.c.b16 %v4284, %v4278
    %v4357 = vpack.c.b16 %v4285, %v4279
    %v4358 = vpack.c.b16 %v4286, %v4280
    %v4359 = vpack.c.b16 %v4287, %v4281
    %v4360 = vpack.c.b16 %v4288, %v4282
    %v4361 = vpack.c.b16 %v4295, %v4289
    %v4362 = vpack.c.b16 %v4296, %v4290
    %v4363 = vpack.c.b16 %v4297, %v4291
    %v4364 = vpack.c.b16 %v4298, %v4292
    %v4365 = vpack.c.b16 %v4299, %v4293
    %v4366 = vpack.c.b16 %v4300, %v4294
    %v4367 = vpack.c.b16 %v4307, %v4301
    %v4368 = vpack.c.b16 %v4308, %v4302
    %v4369 = vpack.c.b16 %v4309, %v4303
    %v4370 = vpack.c.b16 %v4310, %v4304
    %v4371 = vpack.c.b16 %v4311, %v4305
    %v4372 = vpack.c.b16 %v4312, %v4306
    %v4373 = vpack.c.b16 %v4319, %v4313
    %v4374 = vpack.c.b16 %v4320, %v4314
    %v4375 = vpack.c.b16 %v4321, %v4315
    %v4376 = vpack.c.b16 %v4322, %v4316
    %v4377 = vpack.c.b16 %v4323, %v4317
    %v4378 = vpack.c.b16 %v4324, %v4318
    %v4379 = vpack.c.b16 %v4331, %v4325
    %v4380 = vpack.c.b16 %v4332, %v4326
    %v4381 = vpack.c.b16 %v4333, %v4327
    %v4382 = vpack.c.b16 %v4334, %v4328
    %v4383 = vpack.c.b16 %v4335, %v4329
    %v4384 = vpack.c.b16 %v4336, %v4330
    %4433 = vmatprep.subr.bf16.mxu0 %v4380
    %4434 = vmatpush1.bf16.msra.mxu0 %v4379
    %4435 = vmatprep.subr.bf16.mxu0 %v4374
    %4436 = vmatpush1.bf16.msra.mxu0 %v4373
    %4437 = vmatprep.subr.bf16.mxu0 %v4368
    %4438 = vmatpush1.bf16.msra.mxu0 %v4367
    %4439 = vmatprep.subr.bf16.mxu0 %v4362
    %4440 = vmatpush1.bf16.msra.mxu0 %v4361
    %4441 = vmatprep.subr.bf16.mxu0 %v4356
    %4442 = vmatpush1.bf16.msra.mxu0 %v4355
    %4443 = vmatprep.subr.bf16.mxu0 %v4350
    %4444 = vmatpush1.bf16.msra.mxu0 %v4349
    %4445 = vmatprep.subr.bf16.mxu0 %v4344
    %4446 = vmatpush1.bf16.msra.mxu0 %v4343
    %4447 = vmatprep.subr.bf16.mxu0 %v4338
    %4448 = vmatpush1.bf16.msra.mxu0 %v4337
    %4449 = vmatprep.subr.bf16.mxu0 0
    %4450 = vmatpush2.bf16.msra.mxu0 0
    %4451 = vmatprep.subr.bf16.mxu0 0
    %4452 = vmatpush2.bf16.msra.mxu0 0
    %4453 = vmatprep.subr.bf16.mxu0 0
    %4454 = vmatpush2.bf16.msra.mxu0 0
    %4455 = vmatprep.subr.bf16.mxu0 0
    %4456 = vmatpush2.bf16.msra.mxu0 0
    %4457 = vmatprep.subr.bf16.mxu0 0
    %4458 = vmatpush2.bf16.msra.mxu0 0
    %4459 = vmatprep.subr.bf16.mxu0 0
    %4460 = vmatpush2.bf16.msra.mxu0 0
    %4461 = vmatprep.subr.bf16.mxu0 0
    %4462 = vmatpush2.bf16.msra.mxu0 0
    %4463 = vmatprep.subr.bf16.mxu0 0
    %4464 = vmatpush2.bf16.msra.mxu0 0
    %4465 = vmatprep.mubr.bf16.mxu0 0
    %4466 = vmatmul.mubr.bf16.gmra.mxu0 %v4154
    %v4467 = vpop.f32.mrf.mxu0
    %v4468 = vadd.f32 %v4166, %v4467
    %v4469 = vpop.f32.mrf.mxu0
    %v4470 = vadd.f32 %v4170, %v4469
    %v4471 = vpop.f32.mrf.mxu0
    %v4472 = vadd.f32 %v4166, %v4471
    %v4473 = vpop.f32.mrf.mxu0
    %v4474 = vadd.f32 %v4170, %v4473
    %4475 = vmatprep.mubr.bf16.mxu0 0
    %4476 = vmatmul.mubr.bf16.gmra.mxu0 %v4155
    %v4477 = vpop.f32.mrf.mxu0
    %v4478 = vadd.f32 %v4166, %v4477
    %v4479 = vpop.f32.mrf.mxu0
    %v4480 = vadd.f32 %v4170, %v4479
    %v4481 = vpop.f32.mrf.mxu0
    %v4482 = vadd.f32 %v4166, %v4481
    %v4483 = vpop.f32.mrf.mxu0
    %v4484 = vadd.f32 %v4170, %v4483
    %4485 = vmatprep.mubr.bf16.mxu0 0
    %4486 = vmatmul.mubr.bf16.gmra.mxu0 %v4156
    %v4487 = vpop.f32.mrf.mxu0
    %v4488 = vadd.f32 %v4166, %v4487
    %v4489 = vpop.f32.mrf.mxu0
    %v4490 = vadd.f32 %v4170, %v4489
    %v4491 = vpop.f32.mrf.mxu0
    %v4492 = vadd.f32 %v4166, %v4491
    %v4493 = vpop.f32.mrf.mxu0
    %v4494 = vadd.f32 %v4170, %v4493
    %4495 = vmatprep.mubr.bf16.mxu0 0
    %4496 = vmatmul.mubr.bf16.gmra.mxu0 %v4157
    %v4497 = vpop.f32.mrf.mxu0
    %v4498 = vadd.f32 %v4166, %v4497
    %v4499 = vpop.f32.mrf.mxu0
    %v4500 = vadd.f32 %v4170, %v4499
    %v4501 = vpop.f32.mrf.mxu0
    %v4502 = vadd.f32 %v4166, %v4501
    %v4503 = vpop.f32.mrf.mxu0
    %v4504 = vadd.f32 %v4170, %v4503
    %4505 = vdwg.mxu0
    %4506 = vmatprep.subr.bf16.mxu0 %v4382
    %4507 = vmatpush1.bf16.msra.mxu0 %v4381
    %4508 = vmatprep.subr.bf16.mxu0 %v4376
    %4509 = vmatpush1.bf16.msra.mxu0 %v4375
    %4510 = vmatprep.subr.bf16.mxu0 %v4370
    %4511 = vmatpush1.bf16.msra.mxu0 %v4369
    %4512 = vmatprep.subr.bf16.mxu0 %v4364
    %4513 = vmatpush1.bf16.msra.mxu0 %v4363
    %4514 = vmatprep.subr.bf16.mxu0 %v4358
    %4515 = vmatpush1.bf16.msra.mxu0 %v4357
    %4516 = vmatprep.subr.bf16.mxu0 %v4352
    %4517 = vmatpush1.bf16.msra.mxu0 %v4351
    %4518 = vmatprep.subr.bf16.mxu0 %v4346
    %4519 = vmatpush1.bf16.msra.mxu0 %v4345
    %4520 = vmatprep.subr.bf16.mxu0 %v4340
    %4521 = vmatpush1.bf16.msra.mxu0 %v4339
    %4522 = vmatprep.subr.bf16.mxu0 0
    %4523 = vmatpush2.bf16.msra.mxu0 0
    %4524 = vmatprep.subr.bf16.mxu0 0
    %4525 = vmatpush2.bf16.msra.mxu0 0
    %4526 = vmatprep.subr.bf16.mxu0 0
    %4527 = vmatpush2.bf16.msra.mxu0 0
    %4528 = vmatprep.subr.bf16.mxu0 0
    %4529 = vmatpush2.bf16.msra.mxu0 0
    %4530 = vmatprep.subr.bf16.mxu0 0
    %4531 = vmatpush2.bf16.msra.mxu0 0
    %4532 = vmatprep.subr.bf16.mxu0 0
    %4533 = vmatpush2.bf16.msra.mxu0 0
    %4534 = vmatprep.subr.bf16.mxu0 0
    %4535 = vmatpush2.bf16.msra.mxu0 0
    %4536 = vmatprep.subr.bf16.mxu0 0
    %4537 = vmatpush2.bf16.msra.mxu0 0
    %4538 = vmatprep.mubr.bf16.mxu0 0
    %4539 = vmatmul.mubr.bf16.gmra.mxu0 %v4154
    %v4540 = vpop.f32.mrf.mxu0
    %v4541 = vadd.f32 %v4174, %v4540
    %v4542 = vpop.f32.mrf.mxu0
    %v4543 = vadd.f32 %v4178, %v4542
    %v4544 = vpop.f32.mrf.mxu0
    %v4545 = vadd.f32 %v4174, %v4544
    %v4546 = vpop.f32.mrf.mxu0
    %v4547 = vadd.f32 %v4178, %v4546
    %4548 = vmatprep.mubr.bf16.mxu0 0
    %4549 = vmatmul.mubr.bf16.gmra.mxu0 %v4155
    %v4550 = vpop.f32.mrf.mxu0
    %v4551 = vadd.f32 %v4174, %v4550
    %v4552 = vpop.f32.mrf.mxu0
    %v4553 = vadd.f32 %v4178, %v4552
    %v4554 = vpop.f32.mrf.mxu0
    %v4555 = vadd.f32 %v4174, %v4554
    %v4556 = vpop.f32.mrf.mxu0
    %v4557 = vadd.f32 %v4178, %v4556
    %4558 = vmatprep.mubr.bf16.mxu0 0
    %4559 = vmatmul.mubr.bf16.gmra.mxu0 %v4156
    %v4560 = vpop.f32.mrf.mxu0
    %v4561 = vadd.f32 %v4174, %v4560
    %v4562 = vpop.f32.mrf.mxu0
    %v4563 = vadd.f32 %v4178, %v4562
    %v4564 = vpop.f32.mrf.mxu0
    %v4565 = vadd.f32 %v4174, %v4564
    %v4566 = vpop.f32.mrf.mxu0
    %v4567 = vadd.f32 %v4178, %v4566
    %4568 = vmatprep.mubr.bf16.mxu0 0
    %4569 = vmatmul.mubr.bf16.gmra.mxu0 %v4157
    %v4570 = vpop.f32.mrf.mxu0
    %v4571 = vadd.f32 %v4174, %v4570
    %v4572 = vpop.f32.mrf.mxu0
    %v4573 = vadd.f32 %v4178, %v4572
    %v4574 = vpop.f32.mrf.mxu0
    %v4575 = vadd.f32 %v4174, %v4574
    %v4576 = vpop.f32.mrf.mxu0
    %v4577 = vadd.f32 %v4178, %v4576
    %4578 = vdwg.mxu0
    %4579 = vmatprep.subr.bf16.mxu0 %v4384
    %4580 = vmatpush1.bf16.msra.mxu0 %v4383
    %4581 = vmatprep.subr.bf16.mxu0 %v4378
    %4582 = vmatpush1.bf16.msra.mxu0 %v4377
    %4583 = vmatprep.subr.bf16.mxu0 %v4372
    %4584 = vmatpush1.bf16.msra.mxu0 %v4371
    %4585 = vmatprep.subr.bf16.mxu0 %v4366
    %4586 = vmatpush1.bf16.msra.mxu0 %v4365
    %4587 = vmatprep.subr.bf16.mxu0 %v4360
    %4588 = vmatpush1.bf16.msra.mxu0 %v4359
    %4589 = vmatprep.subr.bf16.mxu0 %v4354
    %4590 = vmatpush1.bf16.msra.mxu0 %v4353
    %4591 = vmatprep.subr.bf16.mxu0 %v4348
    %4592 = vmatpush1.bf16.msra.mxu0 %v4347
    %4593 = vmatprep.subr.bf16.mxu0 %v4342
    %4594 = vmatpush1.bf16.msra.mxu0 %v4341
    %4595 = vmatprep.subr.bf16.mxu0 0
    %4596 = vmatpush2.bf16.msra.mxu0 0
    %4597 = vmatprep.subr.bf16.mxu0 0
    %4598 = vmatpush2.bf16.msra.mxu0 0
    %4599 = vmatprep.subr.bf16.mxu0 0
    %4600 = vmatpush2.bf16.msra.mxu0 0
    %4601 = vmatprep.subr.bf16.mxu0 0
    %4602 = vmatpush2.bf16.msra.mxu0 0
    %4603 = vmatprep.subr.bf16.mxu0 0
    %4604 = vmatpush2.bf16.msra.mxu0 0
    %4605 = vmatprep.subr.bf16.mxu0 0
    %4606 = vmatpush2.bf16.msra.mxu0 0
    %4607 = vmatprep.subr.bf16.mxu0 0
    %4608 = vmatpush2.bf16.msra.mxu0 0
    %4609 = vmatprep.subr.bf16.mxu0 0
    %4610 = vmatpush2.bf16.msra.mxu0 0
    %4611 = vmatprep.mubr.bf16.mxu0 0
    %4612 = vmatmul.mubr.bf16.gmra.mxu0 %v4154
    %v4613 = vpop.f32.mrf.mxu0
    %v4614 = vadd.f32 %v4182, %v4613
    %v4615 = vpop.f32.mrf.mxu0
    %v4616 = vadd.f32 %v4186, %v4615
    %v4617 = vpop.f32.mrf.mxu0
    %v4618 = vadd.f32 %v4182, %v4617
    %v4619 = vpop.f32.mrf.mxu0
    %v4620 = vadd.f32 %v4186, %v4619
    %4621 = vmatprep.mubr.bf16.mxu0 0
    %4622 = vmatmul.mubr.bf16.gmra.mxu0 %v4155
    %v4623 = vpop.f32.mrf.mxu0
    %v4624 = vadd.f32 %v4182, %v4623
    %v4625 = vpop.f32.mrf.mxu0
    %v4626 = vadd.f32 %v4186, %v4625
    %v4627 = vpop.f32.mrf.mxu0
    %v4628 = vadd.f32 %v4182, %v4627
    %v4629 = vpop.f32.mrf.mxu0
    %v4630 = vadd.f32 %v4186, %v4629
    %4631 = vmatprep.mubr.bf16.mxu0 0
    %4632 = vmatmul.mubr.bf16.gmra.mxu0 %v4156
    %v4633 = vpop.f32.mrf.mxu0
    %v4634 = vadd.f32 %v4182, %v4633
    %v4635 = vpop.f32.mrf.mxu0
    %v4636 = vadd.f32 %v4186, %v4635
    %v4637 = vpop.f32.mrf.mxu0
    %v4638 = vadd.f32 %v4182, %v4637
    %v4639 = vpop.f32.mrf.mxu0
    %v4640 = vadd.f32 %v4186, %v4639
    %4641 = vmatprep.mubr.bf16.mxu0 0
    %4642 = vmatmul.mubr.bf16.gmra.mxu0 %v4157
    %v4643 = vpop.f32.mrf.mxu0
    %v4644 = vadd.f32 %v4182, %v4643
    %v4645 = vpop.f32.mrf.mxu0
    %v4646 = vadd.f32 %v4186, %v4645
    %v4647 = vpop.f32.mrf.mxu0
    %v4648 = vadd.f32 %v4182, %v4647
    %v4649 = vpop.f32.mrf.mxu0
    %v4650 = vadd.f32 %v4186, %v4649
    %4651 = vdwg.mxu0
    %v4652 = vmul.f32 %v4468, 0.5
    %v4653 = vmul.f32 %v4470, 0.5
    %v4654 = vmul.f32 %v4541, 0.5
    %v4655 = vmul.f32 %v4543, 0.5
    %v4656 = vmul.f32 %v4614, 0.5
    %v4657 = vmul.f32 %v4616, 0.5
    %v4658 = vmul.f32 %v4472, 0.5
    %v4659 = vmul.f32 %v4474, 0.5
    %v4660 = vmul.f32 %v4545, 0.5
    %v4661 = vmul.f32 %v4547, 0.5
    %v4662 = vmul.f32 %v4618, 0.5
    %v4663 = vmul.f32 %v4620, 0.5
    %v4664 = vmul.f32 %v4478, 0.5
    %v4665 = vmul.f32 %v4480, 0.5
    %v4666 = vmul.f32 %v4551, 0.5
    %v4667 = vmul.f32 %v4553, 0.5
    %v4668 = vmul.f32 %v4624, 0.5
    %v4669 = vmul.f32 %v4626, 0.5
    %v4670 = vmul.f32 %v4482, 0.5
    %v4671 = vmul.f32 %v4484, 0.5
    %v4672 = vmul.f32 %v4555, 0.5
    %v4673 = vmul.f32 %v4557, 0.5
    %v4674 = vmul.f32 %v4628, 0.5
    %v4675 = vmul.f32 %v4630, 0.5
    %v4676 = vmul.f32 %v4488, 0.5
    %v4677 = vmul.f32 %v4490, 0.5
    %v4678 = vmul.f32 %v4561, 0.5
    %v4679 = vmul.f32 %v4563, 0.5
    %v4680 = vmul.f32 %v4634, 0.5
    %v4681 = vmul.f32 %v4636, 0.5
    %v4682 = vmul.f32 %v4492, 0.5
    %v4683 = vmul.f32 %v4494, 0.5
    %v4684 = vmul.f32 %v4565, 0.5
    %v4685 = vmul.f32 %v4567, 0.5
    %v4686 = vmul.f32 %v4638, 0.5
    %v4687 = vmul.f32 %v4640, 0.5
    %v4688 = vmul.f32 %v4498, 0.5
    %v4689 = vmul.f32 %v4500, 0.5
    %v4690 = vmul.f32 %v4571, 0.5
    %v4691 = vmul.f32 %v4573, 0.5
    %v4692 = vmul.f32 %v4644, 0.5
    %v4693 = vmul.f32 %v4646, 0.5
    %v4694 = vmul.f32 %v4502, 0.5
    %v4695 = vmul.f32 %v4504, 0.5
    %v4696 = vmul.f32 %v4575, 0.5
    %v4697 = vmul.f32 %v4577, 0.5
    %v4698 = vmul.f32 %v4648, 0.5
    %v4699 = vmul.f32 %v4650, 0.5
    %v4700 = vmul.f32 %v4468, 0.044715
    %v4701 = vmul.f32 %v4470, 0.044715
    %v4702 = vmul.f32 %v4541, 0.044715
    %v4703 = vmul.f32 %v4543, 0.044715
    %v4704 = vmul.f32 %v4614, 0.044715
    %v4705 = vmul.f32 %v4616, 0.044715
    %v4706 = vmul.f32 %v4472, 0.044715
    %v4707 = vmul.f32 %v4474, 0.044715
    %v4708 = vmul.f32 %v4545, 0.044715
    %v4709 = vmul.f32 %v4547, 0.044715
    %v4710 = vmul.f32 %v4618, 0.044715
    %v4711 = vmul.f32 %v4620, 0.044715
    %v4712 = vmul.f32 %v4478, 0.044715
    %v4713 = vmul.f32 %v4480, 0.044715
    %v4714 = vmul.f32 %v4551, 0.044715
    %v4715 = vmul.f32 %v4553, 0.044715
    %v4716 = vmul.f32 %v4624, 0.044715
    %v4717 = vmul.f32 %v4626, 0.044715
    %v4718 = vmul.f32 %v4482, 0.044715
    %v4719 = vmul.f32 %v4484, 0.044715
    %v4720 = vmul.f32 %v4555, 0.044715
    %v4721 = vmul.f32 %v4557, 0.044715
    %v4722 = vmul.f32 %v4628, 0.044715
    %v4723 = vmul.f32 %v4630, 0.044715
    %v4724 = vmul.f32 %v4488, 0.044715
    %v4725 = vmul.f32 %v4490, 0.044715
    %v4726 = vmul.f32 %v4561, 0.044715
    %v4727 = vmul.f32 %v4563, 0.044715
    %v4728 = vmul.f32 %v4634, 0.044715
    %v4729 = vmul.f32 %v4636, 0.044715
    %v4730 = vmul.f32 %v4492, 0.044715
    %v4731 = vmul.f32 %v4494, 0.044715
    %v4732 = vmul.f32 %v4565, 0.044715
    %v4733 = vmul.f32 %v4567, 0.044715
    %v4734 = vmul.f32 %v4638, 0.044715
    %v4735 = vmul.f32 %v4640, 0.044715
    %v4736 = vmul.f32 %v4498, 0.044715
    %v4737 = vmul.f32 %v4500, 0.044715
    %v4738 = vmul.f32 %v4571, 0.044715
    %v4739 = vmul.f32 %v4573, 0.044715
    %v4740 = vmul.f32 %v4644, 0.044715
    %v4741 = vmul.f32 %v4646, 0.044715
    %v4742 = vmul.f32 %v4502, 0.044715
    %v4743 = vmul.f32 %v4504, 0.044715
    %v4744 = vmul.f32 %v4575, 0.044715
    %v4745 = vmul.f32 %v4577, 0.044715
    %v4746 = vmul.f32 %v4648, 0.044715
    %v4747 = vmul.f32 %v4650, 0.044715
    %v4748 = vmul.f32 %v4700, %v4468
    %v4749 = vmul.f32 %v4701, %v4470
    %v4750 = vmul.f32 %v4702, %v4541
    %v4751 = vmul.f32 %v4703, %v4543
    %v4752 = vmul.f32 %v4704, %v4614
    %v4753 = vmul.f32 %v4705, %v4616
    %v4754 = vmul.f32 %v4706, %v4472
    %v4755 = vmul.f32 %v4707, %v4474
    %v4756 = vmul.f32 %v4708, %v4545
    %v4757 = vmul.f32 %v4709, %v4547
    %v4758 = vmul.f32 %v4710, %v4618
    %v4759 = vmul.f32 %v4711, %v4620
    %v4760 = vmul.f32 %v4712, %v4478
    %v4761 = vmul.f32 %v4713, %v4480
    %v4762 = vmul.f32 %v4714, %v4551
    %v4763 = vmul.f32 %v4715, %v4553
    %v4764 = vmul.f32 %v4716, %v4624
    %v4765 = vmul.f32 %v4717, %v4626
    %v4766 = vmul.f32 %v4718, %v4482
    %v4767 = vmul.f32 %v4719, %v4484
    %v4768 = vmul.f32 %v4720, %v4555
    %v4769 = vmul.f32 %v4721, %v4557
    %v4770 = vmul.f32 %v4722, %v4628
    %v4771 = vmul.f32 %v4723, %v4630
    %v4772 = vmul.f32 %v4724, %v4488
    %v4773 = vmul.f32 %v4725, %v4490
    %v4774 = vmul.f32 %v4726, %v4561
    %v4775 = vmul.f32 %v4727, %v4563
    %v4776 = vmul.f32 %v4728, %v4634
    %v4777 = vmul.f32 %v4729, %v4636
    %v4778 = vmul.f32 %v4730, %v4492
    %v4779 = vmul.f32 %v4731, %v4494
    %v4780 = vmul.f32 %v4732, %v4565
    %v4781 = vmul.f32 %v4733, %v4567
    %v4782 = vmul.f32 %v4734, %v4638
    %v4783 = vmul.f32 %v4735, %v4640
    %v4784 = vmul.f32 %v4736, %v4498
    %v4785 = vmul.f32 %v4737, %v4500
    %v4786 = vmul.f32 %v4738, %v4571
    %v4787 = vmul.f32 %v4739, %v4573
    %v4788 = vmul.f32 %v4740, %v4644
    %v4789 = vmul.f32 %v4741, %v4646
    %v4790 = vmul.f32 %v4742, %v4502
    %v4791 = vmul.f32 %v4743, %v4504
    %v4792 = vmul.f32 %v4744, %v4575
    %v4793 = vmul.f32 %v4745, %v4577
    %v4794 = vmul.f32 %v4746, %v4648
    %v4795 = vmul.f32 %v4747, %v4650
    %v4796 = vmul.f32 %v4748, %v4468
    %v4797 = vmul.f32 %v4749, %v4470
    %v4798 = vmul.f32 %v4750, %v4541
    %v4799 = vmul.f32 %v4751, %v4543
    %v4800 = vmul.f32 %v4752, %v4614
    %v4801 = vmul.f32 %v4753, %v4616
    %v4802 = vmul.f32 %v4754, %v4472
    %v4803 = vmul.f32 %v4755, %v4474
    %v4804 = vmul.f32 %v4756, %v4545
    %v4805 = vmul.f32 %v4757, %v4547
    %v4806 = vmul.f32 %v4758, %v4618
    %v4807 = vmul.f32 %v4759, %v4620
    %v4808 = vmul.f32 %v4760, %v4478
    %v4809 = vmul.f32 %v4761, %v4480
    %v4810 = vmul.f32 %v4762, %v4551
    %v4811 = vmul.f32 %v4763, %v4553
    %v4812 = vmul.f32 %v4764, %v4624
    %v4813 = vmul.f32 %v4765, %v4626
    %v4814 = vmul.f32 %v4766, %v4482
    %v4815 = vmul.f32 %v4767, %v4484
    %v4816 = vmul.f32 %v4768, %v4555
    %v4817 = vmul.f32 %v4769, %v4557
    %v4818 = vmul.f32 %v4770, %v4628
    %v4819 = vmul.f32 %v4771, %v4630
    %v4820 = vmul.f32 %v4772, %v4488
    %v4821 = vmul.f32 %v4773, %v4490
    %v4822 = vmul.f32 %v4774, %v4561
    %v4823 = vmul.f32 %v4775, %v4563
    %v4824 = vmul.f32 %v4776, %v4634
    %v4825 = vmul.f32 %v4777, %v4636
    %v4826 = vmul.f32 %v4778, %v4492
    %v4827 = vmul.f32 %v4779, %v4494
    %v4828 = vmul.f32 %v4780, %v4565
    %v4829 = vmul.f32 %v4781, %v4567
    %v4830 = vmul.f32 %v4782, %v4638
    %v4831 = vmul.f32 %v4783, %v4640
    %v4832 = vmul.f32 %v4784, %v4498
    %v4833 = vmul.f32 %v4785, %v4500
    %v4834 = vmul.f32 %v4786, %v4571
    %v4835 = vmul.f32 %v4787, %v4573
    %v4836 = vmul.f32 %v4788, %v4644
    %v4837 = vmul.f32 %v4789, %v4646
    %v4838 = vmul.f32 %v4790, %v4502
    %v4839 = vmul.f32 %v4791, %v4504
    %v4840 = vmul.f32 %v4792, %v4575
    %v4841 = vmul.f32 %v4793, %v4577
    %v4842 = vmul.f32 %v4794, %v4648
    %v4843 = vmul.f32 %v4795, %v4650
    %v4844 = vadd.f32 %v4468, %v4796
    %v4845 = vadd.f32 %v4470, %v4797
    %v4846 = vadd.f32 %v4541, %v4798
    %v4847 = vadd.f32 %v4543, %v4799
    %v4848 = vadd.f32 %v4614, %v4800
    %v4849 = vadd.f32 %v4616, %v4801
    %v4850 = vadd.f32 %v4472, %v4802
    %v4851 = vadd.f32 %v4474, %v4803
    %v4852 = vadd.f32 %v4545, %v4804
    %v4853 = vadd.f32 %v4547, %v4805
    %v4854 = vadd.f32 %v4618, %v4806
    %v4855 = vadd.f32 %v4620, %v4807
    %v4856 = vadd.f32 %v4478, %v4808
    %v4857 = vadd.f32 %v4480, %v4809
    %v4858 = vadd.f32 %v4551, %v4810
    %v4859 = vadd.f32 %v4553, %v4811
    %v4860 = vadd.f32 %v4624, %v4812
    %v4861 = vadd.f32 %v4626, %v4813
    %v4862 = vadd.f32 %v4482, %v4814
    %v4863 = vadd.f32 %v4484, %v4815
    %v4864 = vadd.f32 %v4555, %v4816
    %v4865 = vadd.f32 %v4557, %v4817
    %v4866 = vadd.f32 %v4628, %v4818
    %v4867 = vadd.f32 %v4630, %v4819
    %v4868 = vadd.f32 %v4488, %v4820
    %v4869 = vadd.f32 %v4490, %v4821
    %v4870 = vadd.f32 %v4561, %v4822
    %v4871 = vadd.f32 %v4563, %v4823
    %v4872 = vadd.f32 %v4634, %v4824
    %v4873 = vadd.f32 %v4636, %v4825
    %v4874 = vadd.f32 %v4492, %v4826
    %v4875 = vadd.f32 %v4494, %v4827
    %v4876 = vadd.f32 %v4565, %v4828
    %v4877 = vadd.f32 %v4567, %v4829
    %v4878 = vadd.f32 %v4638, %v4830
    %v4879 = vadd.f32 %v4640, %v4831
    %v4880 = vadd.f32 %v4498, %v4832
    %v4881 = vadd.f32 %v4500, %v4833
    %v4882 = vadd.f32 %v4571, %v4834
    %v4883 = vadd.f32 %v4573, %v4835
    %v4884 = vadd.f32 %v4644, %v4836
    %v4885 = vadd.f32 %v4646, %v4837
    %v4886 = vadd.f32 %v4502, %v4838
    %v4887 = vadd.f32 %v4504, %v4839
    %v4888 = vadd.f32 %v4575, %v4840
    %v4889 = vadd.f32 %v4577, %v4841
    %v4890 = vadd.f32 %v4648, %v4842
    %v4891 = vadd.f32 %v4650, %v4843
    %v4892 = vmul.f32 %v4844, 0.7978846
    %v4893 = vmul.f32 %v4845, 0.7978846
    %v4894 = vmul.f32 %v4846, 0.7978846
    %v4895 = vmul.f32 %v4847, 0.7978846
    %v4896 = vmul.f32 %v4848, 0.7978846
    %v4897 = vmul.f32 %v4849, 0.7978846
    %v4898 = vmul.f32 %v4850, 0.7978846
    %v4899 = vmul.f32 %v4851, 0.7978846
    %v4900 = vmul.f32 %v4852, 0.7978846
    %v4901 = vmul.f32 %v4853, 0.7978846
    %v4902 = vmul.f32 %v4854, 0.7978846
    %v4903 = vmul.f32 %v4855, 0.7978846
    %v4904 = vmul.f32 %v4856, 0.7978846
    %v4905 = vmul.f32 %v4857, 0.7978846
    %v4906 = vmul.f32 %v4858, 0.7978846
    %v4907 = vmul.f32 %v4859, 0.7978846
    %v4908 = vmul.f32 %v4860, 0.7978846
    %v4909 = vmul.f32 %v4861, 0.7978846
    %v4910 = vmul.f32 %v4862, 0.7978846
    %v4911 = vmul.f32 %v4863, 0.7978846
    %v4912 = vmul.f32 %v4864, 0.7978846
    %v4913 = vmul.f32 %v4865, 0.7978846
    %v4914 = vmul.f32 %v4866, 0.7978846
    %v4915 = vmul.f32 %v4867, 0.7978846
    %v4916 = vmul.f32 %v4868, 0.7978846
    %v4917 = vmul.f32 %v4869, 0.7978846
    %v4918 = vmul.f32 %v4870, 0.7978846
    %v4919 = vmul.f32 %v4871, 0.7978846
    %v4920 = vmul.f32 %v4872, 0.7978846
    %v4921 = vmul.f32 %v4873, 0.7978846
    %v4922 = vmul.f32 %v4874, 0.7978846
    %v4923 = vmul.f32 %v4875, 0.7978846
    %v4924 = vmul.f32 %v4876, 0.7978846
    %v4925 = vmul.f32 %v4877, 0.7978846
    %v4926 = vmul.f32 %v4878, 0.7978846
    %v4927 = vmul.f32 %v4879, 0.7978846
    %v4928 = vmul.f32 %v4880, 0.7978846
    %v4929 = vmul.f32 %v4881, 0.7978846
    %v4930 = vmul.f32 %v4882, 0.7978846
    %v4931 = vmul.f32 %v4883, 0.7978846
    %v4932 = vmul.f32 %v4884, 0.7978846
    %v4933 = vmul.f32 %v4885, 0.7978846
    %v4934 = vmul.f32 %v4886, 0.7978846
    %v4935 = vmul.f32 %v4887, 0.7978846
    %v4936 = vmul.f32 %v4888, 0.7978846
    %v4937 = vmul.f32 %v4889, 0.7978846
    %v4938 = vmul.f32 %v4890, 0.7978846
    %v4939 = vmul.f32 %v4891, 0.7978846
    %v4940 = vtanh.pop %v4892
    %v4941 = vtanh.pop %v4893
    %v4942 = vtanh.pop %v4894
    %v4943 = vtanh.pop %v4895
    %v4944 = vtanh.pop %v4896
    %v4945 = vtanh.pop %v4897
    %v4946 = vtanh.pop %v4898
    %v4947 = vtanh.pop %v4899
    %v4948 = vtanh.pop %v4900
    %v4949 = vtanh.pop %v4901
    %v4950 = vtanh.pop %v4902
    %v4951 = vtanh.pop %v4903
    %v4952 = vtanh.pop %v4904
    %v4953 = vtanh.pop %v4905
    %v4954 = vtanh.pop %v4906
    %v4955 = vtanh.pop %v4907
    %v4956 = vtanh.pop %v4908
    %v4957 = vtanh.pop %v4909
    %v4958 = vtanh.pop %v4910
    %v4959 = vtanh.pop %v4911
    %v4960 = vtanh.pop %v4912
    %v4961 = vtanh.pop %v4913
    %v4962 = vtanh.pop %v4914
    %v4963 = vtanh.pop %v4915
    %v4964 = vtanh.pop %v4916
    %v4965 = vtanh.pop %v4917
    %v4966 = vtanh.pop %v4918
    %v4967 = vtanh.pop %v4919
    %v4968 = vtanh.pop %v4920
    %v4969 = vtanh.pop %v4921
    %v4970 = vtanh.pop %v4922
    %v4971 = vtanh.pop %v4923
    %v4972 = vtanh.pop %v4924
    %v4973 = vtanh.pop %v4925
    %v4974 = vtanh.pop %v4926
    %v4975 = vtanh.pop %v4927
    %v4976 = vtanh.pop %v4928
    %v4977 = vtanh.pop %v4929
    %v4978 = vtanh.pop %v4930
    %v4979 = vtanh.pop %v4931
    %v4980 = vtanh.pop %v4932
    %v4981 = vtanh.pop %v4933
    %v4982 = vtanh.pop %v4934
    %v4983 = vtanh.pop %v4935
    %v4984 = vtanh.pop %v4936
    %v4985 = vtanh.pop %v4937
    %v4986 = vtanh.pop %v4938
    %v4987 = vtanh.pop %v4939
    %v4988 = vadd.f32 %v4940, 1.0
    %v4989 = vadd.f32 %v4941, 1.0
    %v4990 = vadd.f32 %v4942, 1.0
    %v4991 = vadd.f32 %v4943, 1.0
    %v4992 = vadd.f32 %v4944, 1.0
    %v4993 = vadd.f32 %v4945, 1.0
    %v4994 = vadd.f32 %v4946, 1.0
    %v4995 = vadd.f32 %v4947, 1.0
    %v4996 = vadd.f32 %v4948, 1.0
    %v4997 = vadd.f32 %v4949, 1.0
    %v4998 = vadd.f32 %v4950, 1.0
    %v4999 = vadd.f32 %v4951, 1.0
    %v5000 = vadd.f32 %v4952, 1.0
    %v5001 = vadd.f32 %v4953, 1.0
    %v5002 = vadd.f32 %v4954, 1.0
    %v5003 = vadd.f32 %v4955, 1.0
    %v5004 = vadd.f32 %v4956, 1.0
    %v5005 = vadd.f32 %v4957, 1.0
    %v5006 = vadd.f32 %v4958, 1.0
    %v5007 = vadd.f32 %v4959, 1.0
    %v5008 = vadd.f32 %v4960, 1.0
    %v5009 = vadd.f32 %v4961, 1.0
    %v5010 = vadd.f32 %v4962, 1.0
    %v5011 = vadd.f32 %v4963, 1.0
    %v5012 = vadd.f32 %v4964, 1.0
    %v5013 = vadd.f32 %v4965, 1.0
    %v5014 = vadd.f32 %v4966, 1.0
    %v5015 = vadd.f32 %v4967, 1.0
    %v5016 = vadd.f32 %v4968, 1.0
    %v5017 = vadd.f32 %v4969, 1.0
    %v5018 = vadd.f32 %v4970, 1.0
    %v5019 = vadd.f32 %v4971, 1.0
    %v5020 = vadd.f32 %v4972, 1.0
    %v5021 = vadd.f32 %v4973, 1.0
    %v5022 = vadd.f32 %v4974, 1.0
    %v5023 = vadd.f32 %v4975, 1.0
    %v5024 = vadd.f32 %v4976, 1.0
    %v5025 = vadd.f32 %v4977, 1.0
    %v5026 = vadd.f32 %v4978, 1.0
    %v5027 = vadd.f32 %v4979, 1.0
    %v5028 = vadd.f32 %v4980, 1.0
    %v5029 = vadd.f32 %v4981, 1.0
    %v5030 = vadd.f32 %v4982, 1.0
    %v5031 = vadd.f32 %v4983, 1.0
    %v5032 = vadd.f32 %v4984, 1.0
    %v5033 = vadd.f32 %v4985, 1.0
    %v5034 = vadd.f32 %v4986, 1.0
    %v5035 = vadd.f32 %v4987, 1.0
    %v5036 = vmul.f32 %v4652, %v4988
    %v5037 = vmul.f32 %v4653, %v4989
    %v5038 = vmul.f32 %v4654, %v4990
    %v5039 = vmul.f32 %v4655, %v4991
    %v5040 = vmul.f32 %v4656, %v4992
    %v5041 = vmul.f32 %v4657, %v4993
    %v5042 = vmul.f32 %v4658, %v4994
    %v5043 = vmul.f32 %v4659, %v4995
    %v5044 = vmul.f32 %v4660, %v4996
    %v5045 = vmul.f32 %v4661, %v4997
    %v5046 = vmul.f32 %v4662, %v4998
    %v5047 = vmul.f32 %v4663, %v4999
    %v5048 = vmul.f32 %v4664, %v5000
    %v5049 = vmul.f32 %v4665, %v5001
    %v5050 = vmul.f32 %v4666, %v5002
    %v5051 = vmul.f32 %v4667, %v5003
    %v5052 = vmul.f32 %v4668, %v5004
    %v5053 = vmul.f32 %v4669, %v5005
    %v5054 = vmul.f32 %v4670, %v5006
    %v5055 = vmul.f32 %v4671, %v5007
    %v5056 = vmul.f32 %v4672, %v5008
    %v5057 = vmul.f32 %v4673, %v5009
    %v5058 = vmul.f32 %v4674, %v5010
    %v5059 = vmul.f32 %v4675, %v5011
    %v5060 = vmul.f32 %v4676, %v5012
    %v5061 = vmul.f32 %v4677, %v5013
    %v5062 = vmul.f32 %v4678, %v5014
    %v5063 = vmul.f32 %v4679, %v5015
    %v5064 = vmul.f32 %v4680, %v5016
    %v5065 = vmul.f32 %v4681, %v5017
    %v5066 = vmul.f32 %v4682, %v5018
    %v5067 = vmul.f32 %v4683, %v5019
    %v5068 = vmul.f32 %v4684, %v5020
    %v5069 = vmul.f32 %v4685, %v5021
    %v5070 = vmul.f32 %v4686, %v5022
    %v5071 = vmul.f32 %v4687, %v5023
    %v5072 = vmul.f32 %v4688, %v5024
    %v5073 = vmul.f32 %v4689, %v5025
    %v5074 = vmul.f32 %v4690, %v5026
    %v5075 = vmul.f32 %v4691, %v5027
    %v5076 = vmul.f32 %v4692, %v5028
    %v5077 = vmul.f32 %v4693, %v5029
    %v5078 = vmul.f32 %v4694, %v5030
    %v5079 = vmul.f32 %v4695, %v5031
    %v5080 = vmul.f32 %v4696, %v5032
    %v5081 = vmul.f32 %v4697, %v5033
    %v5082 = vmul.f32 %v4698, %v5034
    %v5083 = vmul.f32 %v4699, %v5035
    %s5084 = scalar_lea.vmem [#allocation9], 384
    %v5085 = vld [vmem:[%s5084] sm:$0xf]
    %v5086 = vld [vmem:[%s5084 + $0x4] sm:$0xf]
    %v5087 = vld [vmem:[%s5084 + $0x8] sm:$0xf]
    %v5088 = vld [vmem:[%s5084 + $0xc] sm:$0xf]
    %v5089 = vld [vmem:[%s5084 + $0x10] sm:$0xf]
    %v5090 = vld [vmem:[%s5084 + $0x14] sm:$0xf]
    %v5091 = vld [vmem:[%s5084 + $0x18] sm:$0xf]
    %v5092 = vld [vmem:[%s5084 + $0x1c] sm:$0xf]
    %v5093 = vld [vmem:[%s5084 + $0x20] sm:$0xf]
    %v5094 = vld [vmem:[%s5084 + $0x24] sm:$0xf]
    %v5095 = vld [vmem:[%s5084 + $0x28] sm:$0xf]
    %v5096 = vld [vmem:[%s5084 + $0x2c] sm:$0xf]
    %v5097 = vld [vmem:[%s5084 + $0x30] sm:$0xf]
    %v5098 = vld [vmem:[%s5084 + $0x34] sm:$0xf]
    %v5099 = vld [vmem:[%s5084 + $0x38] sm:$0xf]
    %v5100 = vld [vmem:[%s5084 + $0x3c] sm:$0xf]
    %v5101 = vld [vmem:[%s5084 + $0x40] sm:$0xf]
    %v5102 = vld [vmem:[%s5084 + $0x44] sm:$0xf]
    %v5103 = vld [vmem:[%s5084 + $0x48] sm:$0xf]
    %v5104 = vld [vmem:[%s5084 + $0x4c] sm:$0xf]
    %v5105 = vld [vmem:[%s5084 + $0x50] sm:$0xf]
    %v5106 = vld [vmem:[%s5084 + $0x54] sm:$0xf]
    %v5107 = vld [vmem:[%s5084 + $0x58] sm:$0xf]
    %v5108 = vld [vmem:[%s5084 + $0x5c] sm:$0xf]
    %v5109 = vld [vmem:[%s5084 + $0x60] sm:$0xf]
    %v5110 = vld [vmem:[%s5084 + $0x64] sm:$0xf]
    %v5111 = vld [vmem:[%s5084 + $0x68] sm:$0xf]
    %v5112 = vld [vmem:[%s5084 + $0x6c] sm:$0xf]
    %v5113 = vld [vmem:[%s5084 + $0x70] sm:$0xf]
    %v5114 = vld [vmem:[%s5084 + $0x74] sm:$0xf]
    %v5115 = vld [vmem:[%s5084 + $0x78] sm:$0xf]
    %v5116 = vld [vmem:[%s5084 + $0x7c] sm:$0xf]
    %v5117 = vld [vmem:[%s5084 + $0x80] sm:$0xf]
    %v5118 = vld [vmem:[%s5084 + $0x84] sm:$0xf]
    %v5119 = vld [vmem:[%s5084 + $0x88] sm:$0xf]
    %v5120 = vld [vmem:[%s5084 + $0x8c] sm:$0xf]
    %v5121 = vld [vmem:[%s5084 + $0x90] sm:$0xf]
    %v5122 = vld [vmem:[%s5084 + $0x94] sm:$0xf]
    %v5123 = vld [vmem:[%s5084 + $0x98] sm:$0xf]
    %v5124 = vld [vmem:[%s5084 + $0x9c] sm:$0xf]
    %v5125 = vld [vmem:[%s5084 + $0xa0] sm:$0xf]
    %v5126 = vld [vmem:[%s5084 + $0xa4] sm:$0xf]
    %v5127 = vld [vmem:[%s5084 + $0xa8] sm:$0xf]
    %v5128 = vld [vmem:[%s5084 + $0xac] sm:$0xf]
    %v5129 = vld [vmem:[%s5084 + $0xb0] sm:$0xf]
    %v5130 = vld [vmem:[%s5084 + $0xb4] sm:$0xf]
    %v5131 = vld [vmem:[%s5084 + $0xb8] sm:$0xf]
    %v5132 = vld [vmem:[%s5084 + $0xbc] sm:$0xf]
    %v5133 = vld [vmem:[%s5084 + $0xc0] sm:$0xf]
    %v5134 = vld [vmem:[%s5084 + $0xc4] sm:$0xf]
    %v5135 = vld [vmem:[%s5084 + $0xc8] sm:$0xf]
    %v5136 = vld [vmem:[%s5084 + $0xcc] sm:$0xf]
    %v5137 = vld [vmem:[%s5084 + $0xd0] sm:$0xf]
    %v5138 = vld [vmem:[%s5084 + $0xd4] sm:$0xf]
    %v5139 = vld [vmem:[%s5084 + $0xd8] sm:$0xf]
    %v5140 = vld [vmem:[%s5084 + $0xdc] sm:$0xf]
    %v5141 = vld [vmem:[%s5084 + $0xe0] sm:$0xf]
    %v5142 = vld [vmem:[%s5084 + $0xe4] sm:$0xf]
    %v5143 = vld [vmem:[%s5084 + $0xe8] sm:$0xf]
    %v5144 = vld [vmem:[%s5084 + $0xec] sm:$0xf]
    %v5145 = vld [vmem:[%s5084 + $0xf0] sm:$0xf]
    %v5146 = vld [vmem:[%s5084 + $0xf4] sm:$0xf]
    %v5147 = vld [vmem:[%s5084 + $0xf8] sm:$0xf]
    %v5148 = vld [vmem:[%s5084 + $0xfc] sm:$0xf]
    %v5149 = vld [vmem:[%s5084 + $0x100] sm:$0xf]
    %v5150 = vld [vmem:[%s5084 + $0x104] sm:$0xf]
    %v5151 = vld [vmem:[%s5084 + $0x108] sm:$0xf]
    %v5152 = vld [vmem:[%s5084 + $0x10c] sm:$0xf]
    %v5153 = vld [vmem:[%s5084 + $0x110] sm:$0xf]
    %v5154 = vld [vmem:[%s5084 + $0x114] sm:$0xf]
    %v5155 = vld [vmem:[%s5084 + $0x118] sm:$0xf]
    %v5156 = vld [vmem:[%s5084 + $0x11c] sm:$0xf]
    %v5157 = vld [vmem:[%s5084 + $0x120] sm:$0xf]
    %v5158 = vld [vmem:[%s5084 + $0x124] sm:$0xf]
    %v5159 = vld [vmem:[%s5084 + $0x128] sm:$0xf]
    %v5160 = vld [vmem:[%s5084 + $0x12c] sm:$0xf]
    %v5161 = vld [vmem:[%s5084 + $0x130] sm:$0xf]
    %v5162 = vld [vmem:[%s5084 + $0x134] sm:$0xf]
    %v5163 = vld [vmem:[%s5084 + $0x138] sm:$0xf]
    %v5164 = vld [vmem:[%s5084 + $0x13c] sm:$0xf]
    %v5165 = vld [vmem:[%s5084 + $0x140] sm:$0xf]
    %v5166 = vld [vmem:[%s5084 + $0x144] sm:$0xf]
    %v5167 = vld [vmem:[%s5084 + $0x148] sm:$0xf]
    %v5168 = vld [vmem:[%s5084 + $0x14c] sm:$0xf]
    %v5169 = vld [vmem:[%s5084 + $0x150] sm:$0xf]
    %v5170 = vld [vmem:[%s5084 + $0x154] sm:$0xf]
    %v5171 = vld [vmem:[%s5084 + $0x158] sm:$0xf]
    %v5172 = vld [vmem:[%s5084 + $0x15c] sm:$0xf]
    %v5173 = vld [vmem:[%s5084 + $0x160] sm:$0xf]
    %v5174 = vld [vmem:[%s5084 + $0x164] sm:$0xf]
    %v5175 = vld [vmem:[%s5084 + $0x168] sm:$0xf]
    %v5176 = vld [vmem:[%s5084 + $0x16c] sm:$0xf]
    %v5177 = vld [vmem:[%s5084 + $0x170] sm:$0xf]
    %v5178 = vld [vmem:[%s5084 + $0x174] sm:$0xf]
    %v5179 = vld [vmem:[%s5084 + $0x178] sm:$0xf]
    %v5180 = vld [vmem:[%s5084 + $0x17c] sm:$0xf]
    %v5181 = vpack.c.bf16 %v5042, %v5036
    %v5182 = vpack.c.bf16 %v5043, %v5037
    %v5183 = vpack.c.bf16 %v5044, %v5038
    %v5184 = vpack.c.bf16 %v5045, %v5039
    %v5185 = vpack.c.bf16 %v5046, %v5040
    %v5186 = vpack.c.bf16 %v5047, %v5041
    %v5187 = vpack.c.bf16 %v5054, %v5048
    %v5188 = vpack.c.bf16 %v5055, %v5049
    %v5189 = vpack.c.bf16 %v5056, %v5050
    %v5190 = vpack.c.bf16 %v5057, %v5051
    %v5191 = vpack.c.bf16 %v5058, %v5052
    %v5192 = vpack.c.bf16 %v5059, %v5053
    %v5193 = vpack.c.bf16 %v5066, %v5060
    %v5194 = vpack.c.bf16 %v5067, %v5061
    %v5195 = vpack.c.bf16 %v5068, %v5062
    %v5196 = vpack.c.bf16 %v5069, %v5063
    %v5197 = vpack.c.bf16 %v5070, %v5064
    %v5198 = vpack.c.bf16 %v5071, %v5065
    %v5199 = vpack.c.bf16 %v5078, %v5072
    %v5200 = vpack.c.bf16 %v5079, %v5073
    %v5201 = vpack.c.bf16 %v5080, %v5074
    %v5202 = vpack.c.bf16 %v5081, %v5075
    %v5203 = vpack.c.bf16 %v5082, %v5076
    %v5204 = vpack.c.bf16 %v5083, %v5077
    %v5205 = vld [vmem:[#allocation2 + $0x93] ss:$0 sm:$0xff]
    %v5302 = vunpack.c.l.b16 %v5085
    %v5303 = vunpack.c.l.b16 %v5086
    %v5304 = vunpack.c.l.b16 %v5087
    %v5305 = vunpack.c.l.b16 %v5088
    %v5306 = vunpack.c.l.b16 %v5089
    %v5307 = vunpack.c.l.b16 %v5090
    %v5308 = vunpack.c.l.b16 %v5091
    %v5309 = vunpack.c.l.b16 %v5092
    %v5310 = vunpack.c.l.b16 %v5093
    %v5311 = vunpack.c.l.b16 %v5094
    %v5312 = vunpack.c.l.b16 %v5095
    %v5313 = vunpack.c.l.b16 %v5096
    %v5314 = vunpack.c.l.b16 %v5097
    %v5315 = vunpack.c.l.b16 %v5098
    %v5316 = vunpack.c.l.b16 %v5099
    %v5317 = vunpack.c.l.b16 %v5100
    %v5318 = vunpack.c.l.b16 %v5101
    %v5319 = vunpack.c.l.b16 %v5102
    %v5320 = vunpack.c.l.b16 %v5103
    %v5321 = vunpack.c.l.b16 %v5104
    %v5322 = vunpack.c.l.b16 %v5105
    %v5323 = vunpack.c.l.b16 %v5106
    %v5324 = vunpack.c.l.b16 %v5107
    %v5325 = vunpack.c.l.b16 %v5108
    %v5326 = vunpack.c.l.b16 %v5109
    %v5327 = vunpack.c.l.b16 %v5110
    %v5328 = vunpack.c.l.b16 %v5111
    %v5329 = vunpack.c.l.b16 %v5112
    %v5330 = vunpack.c.l.b16 %v5113
    %v5331 = vunpack.c.l.b16 %v5114
    %v5332 = vunpack.c.l.b16 %v5115
    %v5333 = vunpack.c.l.b16 %v5116
    %v5334 = vunpack.c.l.b16 %v5117
    %v5335 = vunpack.c.l.b16 %v5118
    %v5336 = vunpack.c.l.b16 %v5119
    %v5337 = vunpack.c.l.b16 %v5120
    %v5338 = vunpack.c.l.b16 %v5121
    %v5339 = vunpack.c.l.b16 %v5122
    %v5340 = vunpack.c.l.b16 %v5123
    %v5341 = vunpack.c.l.b16 %v5124
    %v5342 = vunpack.c.l.b16 %v5125
    %v5343 = vunpack.c.l.b16 %v5126
    %v5344 = vunpack.c.l.b16 %v5127
    %v5345 = vunpack.c.l.b16 %v5128
    %v5346 = vunpack.c.l.b16 %v5129
    %v5347 = vunpack.c.l.b16 %v5130
    %v5348 = vunpack.c.l.b16 %v5131
    %v5349 = vunpack.c.l.b16 %v5132
    %v5350 = vunpack.c.l.b16 %v5133
    %v5351 = vunpack.c.l.b16 %v5134
    %v5352 = vunpack.c.l.b16 %v5135
    %v5353 = vunpack.c.l.b16 %v5136
    %v5354 = vunpack.c.l.b16 %v5137
    %v5355 = vunpack.c.l.b16 %v5138
    %v5356 = vunpack.c.l.b16 %v5139
    %v5357 = vunpack.c.l.b16 %v5140
    %v5358 = vunpack.c.l.b16 %v5141
    %v5359 = vunpack.c.l.b16 %v5142
    %v5360 = vunpack.c.l.b16 %v5143
    %v5361 = vunpack.c.l.b16 %v5144
    %v5362 = vunpack.c.l.b16 %v5145
    %v5363 = vunpack.c.l.b16 %v5146
    %v5364 = vunpack.c.l.b16 %v5147
    %v5365 = vunpack.c.l.b16 %v5148
    %v5366 = vunpack.c.l.b16 %v5149
    %v5367 = vunpack.c.l.b16 %v5150
    %v5368 = vunpack.c.l.b16 %v5151
    %v5369 = vunpack.c.l.b16 %v5152
    %v5370 = vunpack.c.l.b16 %v5153
    %v5371 = vunpack.c.l.b16 %v5154
    %v5372 = vunpack.c.l.b16 %v5155
    %v5373 = vunpack.c.l.b16 %v5156
    %v5374 = vunpack.c.l.b16 %v5157
    %v5375 = vunpack.c.l.b16 %v5158
    %v5376 = vunpack.c.l.b16 %v5159
    %v5377 = vunpack.c.l.b16 %v5160
    %v5378 = vunpack.c.l.b16 %v5161
    %v5379 = vunpack.c.l.b16 %v5162
    %v5380 = vunpack.c.l.b16 %v5163
    %v5381 = vunpack.c.l.b16 %v5164
    %v5382 = vunpack.c.l.b16 %v5165
    %v5383 = vunpack.c.l.b16 %v5166
    %v5384 = vunpack.c.l.b16 %v5167
    %v5385 = vunpack.c.l.b16 %v5168
    %v5386 = vunpack.c.l.b16 %v5169
    %v5387 = vunpack.c.l.b16 %v5170
    %v5388 = vunpack.c.l.b16 %v5171
    %v5389 = vunpack.c.l.b16 %v5172
    %v5390 = vunpack.c.l.b16 %v5173
    %v5391 = vunpack.c.l.b16 %v5174
    %v5392 = vunpack.c.l.b16 %v5175
    %v5393 = vunpack.c.l.b16 %v5176
    %v5394 = vunpack.c.l.b16 %v5177
    %v5395 = vunpack.c.l.b16 %v5178
    %v5396 = vunpack.c.l.b16 %v5179
    %v5397 = vunpack.c.l.b16 %v5180
    %v5398 = vpack.c.b16 %v5303, %v5302
    %v5399 = vpack.c.b16 %v5305, %v5304
    %v5400 = vpack.c.b16 %v5307, %v5306
    %v5401 = vpack.c.b16 %v5309, %v5308
    %v5402 = vpack.c.b16 %v5311, %v5310
    %v5403 = vpack.c.b16 %v5313, %v5312
    %v5404 = vpack.c.b16 %v5315, %v5314
    %v5405 = vpack.c.b16 %v5317, %v5316
    %v5406 = vpack.c.b16 %v5319, %v5318
    %v5407 = vpack.c.b16 %v5321, %v5320
    %v5408 = vpack.c.b16 %v5323, %v5322
    %v5409 = vpack.c.b16 %v5325, %v5324
    %v5410 = vpack.c.b16 %v5327, %v5326
    %v5411 = vpack.c.b16 %v5329, %v5328
    %v5412 = vpack.c.b16 %v5331, %v5330
    %v5413 = vpack.c.b16 %v5333, %v5332
    %v5414 = vpack.c.b16 %v5335, %v5334
    %v5415 = vpack.c.b16 %v5337, %v5336
    %v5416 = vpack.c.b16 %v5339, %v5338
    %v5417 = vpack.c.b16 %v5341, %v5340
    %v5418 = vpack.c.b16 %v5343, %v5342
    %v5419 = vpack.c.b16 %v5345, %v5344
    %v5420 = vpack.c.b16 %v5347, %v5346
    %v5421 = vpack.c.b16 %v5349, %v5348
    %v5422 = vpack.c.b16 %v5351, %v5350
    %v5423 = vpack.c.b16 %v5353, %v5352
    %v5424 = vpack.c.b16 %v5355, %v5354
    %v5425 = vpack.c.b16 %v5357, %v5356
    %v5426 = vpack.c.b16 %v5359, %v5358
    %v5427 = vpack.c.b16 %v5361, %v5360
    %v5428 = vpack.c.b16 %v5363, %v5362
    %v5429 = vpack.c.b16 %v5365, %v5364
    %v5430 = vpack.c.b16 %v5367, %v5366
    %v5431 = vpack.c.b16 %v5369, %v5368
    %v5432 = vpack.c.b16 %v5371, %v5370
    %v5433 = vpack.c.b16 %v5373, %v5372
    %v5434 = vpack.c.b16 %v5375, %v5374
    %v5435 = vpack.c.b16 %v5377, %v5376
    %v5436 = vpack.c.b16 %v5379, %v5378
    %v5437 = vpack.c.b16 %v5381, %v5380
    %v5438 = vpack.c.b16 %v5383, %v5382
    %v5439 = vpack.c.b16 %v5385, %v5384
    %v5440 = vpack.c.b16 %v5387, %v5386
    %v5441 = vpack.c.b16 %v5389, %v5388
    %v5442 = vpack.c.b16 %v5391, %v5390
    %v5443 = vpack.c.b16 %v5393, %v5392
    %v5444 = vpack.c.b16 %v5395, %v5394
    %v5445 = vpack.c.b16 %v5397, %v5396
    %5494 = vmatprep.subr.bf16.mxu0 0
    %5495 = vmatpush1.bf16.msra.mxu0 %v5405
    %5496 = vmatprep.subr.bf16.mxu0 0
    %5497 = vmatpush1.bf16.msra.mxu0 %v5404
    %5498 = vmatprep.subr.bf16.mxu0 0
    %5499 = vmatpush1.bf16.msra.mxu0 %v5403
    %5500 = vmatprep.subr.bf16.mxu0 0
    %5501 = vmatpush1.bf16.msra.mxu0 %v5402
    %5502 = vmatprep.subr.bf16.mxu0 0
    %5503 = vmatpush1.bf16.msra.mxu0 %v5401
    %5504 = vmatprep.subr.bf16.mxu0 0
    %5505 = vmatpush1.bf16.msra.mxu0 %v5400
    %5506 = vmatprep.subr.bf16.mxu0 0
    %5507 = vmatpush1.bf16.msra.mxu0 %v5399
    %5508 = vmatprep.subr.bf16.mxu0 0
    %5509 = vmatpush1.bf16.msra.mxu0 %v5398
    %5510 = vmatprep.subr.bf16.mxu0 0
    %5511 = vmatpush2.bf16.msra.mxu0 %v5413
    %5512 = vmatprep.subr.bf16.mxu0 0
    %5513 = vmatpush2.bf16.msra.mxu0 %v5412
    %5514 = vmatprep.subr.bf16.mxu0 0
    %5515 = vmatpush2.bf16.msra.mxu0 %v5411
    %5516 = vmatprep.subr.bf16.mxu0 0
    %5517 = vmatpush2.bf16.msra.mxu0 %v5410
    %5518 = vmatprep.subr.bf16.mxu0 0
    %5519 = vmatpush2.bf16.msra.mxu0 %v5409
    %5520 = vmatprep.subr.bf16.mxu0 0
    %5521 = vmatpush2.bf16.msra.mxu0 %v5408
    %5522 = vmatprep.subr.bf16.mxu0 0
    %5523 = vmatpush2.bf16.msra.mxu0 %v5407
    %5524 = vmatprep.subr.bf16.mxu0 0
    %5525 = vmatpush2.bf16.msra.mxu0 %v5406
    %5526 = vmatprep.mubr.bf16.mxu0 %v5182
    %5527 = vmatmul.mubr.bf16.gmra.mxu0 %v5181
    %v5528 = vpop.f32.mrf.mxu0
    %v5529 = vadd.f32 %v5205, %v5528
    %v5530 = vpop.f32.mrf.mxu0
    %v5531 = vpop.f32.mrf.mxu0
    %v5532 = vadd.f32 %v5205, %v5531
    %v5533 = vpop.f32.mrf.mxu0
    %5534 = vmatprep.mubr.bf16.mxu0 %v5188
    %5535 = vmatmul.mubr.bf16.gmra.mxu0 %v5187
    %v5536 = vpop.f32.mrf.mxu0
    %v5537 = vadd.f32 %v5205, %v5536
    %v5538 = vpop.f32.mrf.mxu0
    %v5539 = vpop.f32.mrf.mxu0
    %v5540 = vadd.f32 %v5205, %v5539
    %v5541 = vpop.f32.mrf.mxu0
    %5542 = vmatprep.mubr.bf16.mxu0 %v5194
    %5543 = vmatmul.mubr.bf16.gmra.mxu0 %v5193
    %v5544 = vpop.f32.mrf.mxu0
    %v5545 = vadd.f32 %v5205, %v5544
    %v5546 = vpop.f32.mrf.mxu0
    %v5547 = vpop.f32.mrf.mxu0
    %v5548 = vadd.f32 %v5205, %v5547
    %v5549 = vpop.f32.mrf.mxu0
    %5550 = vmatprep.mubr.bf16.mxu0 %v5200
    %5551 = vmatmul.mubr.bf16.gmra.mxu0 %v5199
    %v5552 = vpop.f32.mrf.mxu0
    %v5553 = vadd.f32 %v5205, %v5552
    %v5554 = vpop.f32.mrf.mxu0
    %v5555 = vpop.f32.mrf.mxu0
    %v5556 = vadd.f32 %v5205, %v5555
    %v5557 = vpop.f32.mrf.mxu0
    %5558 = vdwg.mxu0
    %5559 = vmatprep.subr.bf16.mxu0 0
    %5560 = vmatpush1.bf16.msra.mxu0 %v5421
    %5561 = vmatprep.subr.bf16.mxu0 0
    %5562 = vmatpush1.bf16.msra.mxu0 %v5420
    %5563 = vmatprep.subr.bf16.mxu0 0
    %5564 = vmatpush1.bf16.msra.mxu0 %v5419
    %5565 = vmatprep.subr.bf16.mxu0 0
    %5566 = vmatpush1.bf16.msra.mxu0 %v5418
    %5567 = vmatprep.subr.bf16.mxu0 0
    %5568 = vmatpush1.bf16.msra.mxu0 %v5417
    %5569 = vmatprep.subr.bf16.mxu0 0
    %5570 = vmatpush1.bf16.msra.mxu0 %v5416
    %5571 = vmatprep.subr.bf16.mxu0 0
    %5572 = vmatpush1.bf16.msra.mxu0 %v5415
    %5573 = vmatprep.subr.bf16.mxu0 0
    %5574 = vmatpush1.bf16.msra.mxu0 %v5414
    %5575 = vmatprep.subr.bf16.mxu0 0
    %5576 = vmatpush2.bf16.msra.mxu0 %v5429
    %5577 = vmatprep.subr.bf16.mxu0 0
    %5578 = vmatpush2.bf16.msra.mxu0 %v5428
    %5579 = vmatprep.subr.bf16.mxu0 0
    %5580 = vmatpush2.bf16.msra.mxu0 %v5427
    %5581 = vmatprep.subr.bf16.mxu0 0
    %5582 = vmatpush2.bf16.msra.mxu0 %v5426
    %5583 = vmatprep.subr.bf16.mxu0 0
    %5584 = vmatpush2.bf16.msra.mxu0 %v5425
    %5585 = vmatprep.subr.bf16.mxu0 0
    %5586 = vmatpush2.bf16.msra.mxu0 %v5424
    %5587 = vmatprep.subr.bf16.mxu0 0
    %5588 = vmatpush2.bf16.msra.mxu0 %v5423
    %5589 = vmatprep.subr.bf16.mxu0 0
    %5590 = vmatpush2.bf16.msra.mxu0 %v5422
    %5591 = vmatprep.mubr.bf16.mxu0 %v5184
    %5592 = vmatmul.mubr.bf16.gmra.mxu0 %v5183
    %v5593 = vpop.f32.mrf.mxu0
    %v5594 = vadd.f32 %v5529, %v5593
    %v5595 = vpop.f32.mrf.mxu0
    %v5596 = vpop.f32.mrf.mxu0
    %v5597 = vadd.f32 %v5532, %v5596
    %v5598 = vpop.f32.mrf.mxu0
    %5599 = vmatprep.mubr.bf16.mxu0 %v5190
    %5600 = vmatmul.mubr.bf16.gmra.mxu0 %v5189
    %v5601 = vpop.f32.mrf.mxu0
    %v5602 = vadd.f32 %v5537, %v5601
    %v5603 = vpop.f32.mrf.mxu0
    %v5604 = vpop.f32.mrf.mxu0
    %v5605 = vadd.f32 %v5540, %v5604
    %v5606 = vpop.f32.mrf.mxu0
    %5607 = vmatprep.mubr.bf16.mxu0 %v5196
    %5608 = vmatmul.mubr.bf16.gmra.mxu0 %v5195
    %v5609 = vpop.f32.mrf.mxu0
    %v5610 = vadd.f32 %v5545, %v5609
    %v5611 = vpop.f32.mrf.mxu0
    %v5612 = vpop.f32.mrf.mxu0
    %v5613 = vadd.f32 %v5548, %v5612
    %v5614 = vpop.f32.mrf.mxu0
    %5615 = vmatprep.mubr.bf16.mxu0 %v5202
    %5616 = vmatmul.mubr.bf16.gmra.mxu0 %v5201
    %v5617 = vpop.f32.mrf.mxu0
    %v5618 = vadd.f32 %v5553, %v5617
    %v5619 = vpop.f32.mrf.mxu0
    %v5620 = vpop.f32.mrf.mxu0
    %v5621 = vadd.f32 %v5556, %v5620
    %v5622 = vpop.f32.mrf.mxu0
    %5623 = vdwg.mxu0
    %5624 = vmatprep.subr.bf16.mxu0 0
    %5625 = vmatpush1.bf16.msra.mxu0 %v5437
    %5626 = vmatprep.subr.bf16.mxu0 0
    %5627 = vmatpush1.bf16.msra.mxu0 %v5436
    %5628 = vmatprep.subr.bf16.mxu0 0
    %5629 = vmatpush1.bf16.msra.mxu0 %v5435
    %5630 = vmatprep.subr.bf16.mxu0 0
    %5631 = vmatpush1.bf16.msra.mxu0 %v5434
    %5632 = vmatprep.subr.bf16.mxu0 0
    %5633 = vmatpush1.bf16.msra.mxu0 %v5433
    %5634 = vmatprep.subr.bf16.mxu0 0
    %5635 = vmatpush1.bf16.msra.mxu0 %v5432
    %5636 = vmatprep.subr.bf16.mxu0 0
    %5637 = vmatpush1.bf16.msra.mxu0 %v5431
    %5638 = vmatprep.subr.bf16.mxu0 0
    %5639 = vmatpush1.bf16.msra.mxu0 %v5430
    %5640 = vmatprep.subr.bf16.mxu0 0
    %5641 = vmatpush2.bf16.msra.mxu0 %v5445
    %5642 = vmatprep.subr.bf16.mxu0 0
    %5643 = vmatpush2.bf16.msra.mxu0 %v5444
    %5644 = vmatprep.subr.bf16.mxu0 0
    %5645 = vmatpush2.bf16.msra.mxu0 %v5443
    %5646 = vmatprep.subr.bf16.mxu0 0
    %5647 = vmatpush2.bf16.msra.mxu0 %v5442
    %5648 = vmatprep.subr.bf16.mxu0 0
    %5649 = vmatpush2.bf16.msra.mxu0 %v5441
    %5650 = vmatprep.subr.bf16.mxu0 0
    %5651 = vmatpush2.bf16.msra.mxu0 %v5440
    %5652 = vmatprep.subr.bf16.mxu0 0
    %5653 = vmatpush2.bf16.msra.mxu0 %v5439
    %5654 = vmatprep.subr.bf16.mxu0 0
    %5655 = vmatpush2.bf16.msra.mxu0 %v5438
    %5656 = vmatprep.mubr.bf16.mxu0 %v5186
    %5657 = vmatmul.mubr.bf16.gmra.mxu0 %v5185
    %v5658 = vpop.f32.mrf.mxu0
    %v5659 = vadd.f32 %v5594, %v5658
    %v5660 = vpop.f32.mrf.mxu0
    %v5661 = vpop.f32.mrf.mxu0
    %v5662 = vadd.f32 %v5597, %v5661
    %v5663 = vpop.f32.mrf.mxu0
    %5664 = vmatprep.mubr.bf16.mxu0 %v5192
    %5665 = vmatmul.mubr.bf16.gmra.mxu0 %v5191
    %v5666 = vpop.f32.mrf.mxu0
    %v5667 = vadd.f32 %v5602, %v5666
    %v5668 = vpop.f32.mrf.mxu0
    %v5669 = vpop.f32.mrf.mxu0
    %v5670 = vadd.f32 %v5605, %v5669
    %v5671 = vpop.f32.mrf.mxu0
    %5672 = vmatprep.mubr.bf16.mxu0 %v5198
    %5673 = vmatmul.mubr.bf16.gmra.mxu0 %v5197
    %v5674 = vpop.f32.mrf.mxu0
    %v5675 = vadd.f32 %v5610, %v5674
    %v5676 = vpop.f32.mrf.mxu0
    %v5677 = vpop.f32.mrf.mxu0
    %v5678 = vadd.f32 %v5613, %v5677
    %v5679 = vpop.f32.mrf.mxu0
    %5680 = vmatprep.mubr.bf16.mxu0 %v5204
    %5681 = vmatmul.mubr.bf16.gmra.mxu0 %v5203
    %v5682 = vpop.f32.mrf.mxu0
    %v5683 = vadd.f32 %v5618, %v5682
    %v5684 = vpop.f32.mrf.mxu0
    %v5685 = vpop.f32.mrf.mxu0
    %v5686 = vadd.f32 %v5621, %v5685
    %v5687 = vpop.f32.mrf.mxu0
    %5688 = vdwg.mxu0
    %v5689 = vadd.f32 %v4097, %v5659
    %v5690 = vadd.f32 %v4098, %v5662
    %v5691 = vadd.f32 %v4099, %v5667
    %v5692 = vadd.f32 %v4100, %v5670
    %v5693 = vadd.f32 %v4101, %v5675
    %v5694 = vadd.f32 %v4102, %v5678
    %v5695 = vadd.f32 %v4103, %v5683
    %v5696 = vadd.f32 %v4104, %v5686
    %v5697 = vld [vmem:[#allocation2 + $0x94] ss:$0 sm:$0xff]
    %v5698 = vld [vmem:[#allocation2 + $0x95] ss:$0 sm:$0xff]
    %5699 = vadd.xlane.f32.xlu0 %v5689
    %v5700 = vpop.xlane.xlu0 %5699
    %5701 = vadd.xlane.f32.xlu0 %v5690
    %v5702 = vpop.xlane.xlu0 %5701
    %5703 = vadd.xlane.f32.xlu0 %v5691
    %v5704 = vpop.xlane.xlu0 %5703
    %5705 = vadd.xlane.f32.xlu0 %v5692
    %v5706 = vpop.xlane.xlu0 %5705
    %5707 = vadd.xlane.f32.xlu0 %v5693
    %v5708 = vpop.xlane.xlu0 %5707
    %5709 = vadd.xlane.f32.xlu0 %v5694
    %v5710 = vpop.xlane.xlu0 %5709
    %5711 = vadd.xlane.f32.xlu0 %v5695
    %v5712 = vpop.xlane.xlu0 %5711
    %5713 = vadd.xlane.f32.xlu0 %v5696
    %v5714 = vpop.xlane.xlu0 %5713
    %v5715 = vmul.f32 %v5700, %v313
    %v5716 = vmul.f32 %v5702, %v313
    %v5717 = vmul.f32 %v5704, %v313
    %v5718 = vmul.f32 %v5706, %v313
    %v5719 = vmul.f32 %v5708, %v313
    %v5720 = vmul.f32 %v5710, %v313
    %v5721 = vmul.f32 %v5712, %v313
    %v5722 = vmul.f32 %v5714, %v313
    %v5723 = vsub.f32 %v5689, %v5715
    %v5724 = vsub.f32 %v5690, %v5716
    %v5725 = vsub.f32 %v5691, %v5717
    %v5726 = vsub.f32 %v5692, %v5718
    %v5727 = vsub.f32 %v5693, %v5719
    %v5728 = vsub.f32 %v5694, %v5720
    %v5729 = vsub.f32 %v5695, %v5721
    %v5730 = vsub.f32 %v5696, %v5722
    %v5731 = vmul.f32 %v5723, %v5723
    %v5732 = vmul.f32 %v5724, %v5724
    %v5733 = vmul.f32 %v5725, %v5725
    %v5734 = vmul.f32 %v5726, %v5726
    %v5735 = vmul.f32 %v5727, %v5727
    %v5736 = vmul.f32 %v5728, %v5728
    %v5737 = vmul.f32 %v5729, %v5729
    %v5738 = vmul.f32 %v5730, %v5730
    %5739 = vadd.xlane.f32.xlu0 %v5731
    %v5740 = vpop.xlane.xlu0 %5739
    %5741 = vadd.xlane.f32.xlu0 %v5732
    %v5742 = vpop.xlane.xlu0 %5741
    %5743 = vadd.xlane.f32.xlu0 %v5733
    %v5744 = vpop.xlane.xlu0 %5743
    %5745 = vadd.xlane.f32.xlu0 %v5734
    %v5746 = vpop.xlane.xlu0 %5745
    %5747 = vadd.xlane.f32.xlu0 %v5735
    %v5748 = vpop.xlane.xlu0 %5747
    %5749 = vadd.xlane.f32.xlu0 %v5736
    %v5750 = vpop.xlane.xlu0 %5749
    %5751 = vadd.xlane.f32.xlu0 %v5737
    %v5752 = vpop.xlane.xlu0 %5751
    %5753 = vadd.xlane.f32.xlu0 %v5738
    %v5754 = vpop.xlane.xlu0 %5753
    %v5755 = vmul.f32 %v5740, %v313
    %v5756 = vmul.f32 %v5742, %v313
    %v5757 = vmul.f32 %v5744, %v313
    %v5758 = vmul.f32 %v5746, %v313
    %v5759 = vmul.f32 %v5748, %v313
    %v5760 = vmul.f32 %v5750, %v313
    %v5761 = vmul.f32 %v5752, %v313
    %v5762 = vmul.f32 %v5754, %v313
    %v5763 = vadd.f32 %v5755, 1e-05
    %v5764 = vadd.f32 %v5756, 1e-05
    %v5765 = vadd.f32 %v5757, 1e-05
    %v5766 = vadd.f32 %v5758, 1e-05
    %v5767 = vadd.f32 %v5759, 1e-05
    %v5768 = vadd.f32 %v5760, 1e-05
    %v5769 = vadd.f32 %v5761, 1e-05
    %v5770 = vadd.f32 %v5762, 1e-05
    %v5771 = vrsqrt.pop %v5763
    %v5772 = vrsqrt.pop %v5764
    %v5773 = vrsqrt.pop %v5765
    %v5774 = vrsqrt.pop %v5766
    %v5775 = vrsqrt.pop %v5767
    %v5776 = vrsqrt.pop %v5768
    %v5777 = vrsqrt.pop %v5769
    %v5778 = vrsqrt.pop %v5770
    %v5779 = vmul.f32 %v5723, %v5771
    %v5780 = vmul.f32 %v5724, %v5772
    %v5781 = vmul.f32 %v5725, %v5773
    %v5782 = vmul.f32 %v5726, %v5774
    %v5783 = vmul.f32 %v5727, %v5775
    %v5784 = vmul.f32 %v5728, %v5776
    %v5785 = vmul.f32 %v5729, %v5777
    %v5786 = vmul.f32 %v5730, %v5778
    %v5787 = vmul.f32 %v5779, %v5697
    %v5788 = vmul.f32 %v5780, %v5697
    %v5789 = vmul.f32 %v5781, %v5697
    %v5790 = vmul.f32 %v5782, %v5697
    %v5791 = vmul.f32 %v5783, %v5697
    %v5792 = vmul.f32 %v5784, %v5697
    %v5793 = vmul.f32 %v5785, %v5697
    %v5794 = vmul.f32 %v5786, %v5697
    %v5795 = vadd.f32 %v5787, %v5698
    %v5796 = vadd.f32 %v5788, %v5698
    %v5797 = vadd.f32 %v5789, %v5698
    %v5798 = vadd.f32 %v5790, %v5698
    %v5799 = vadd.f32 %v5791, %v5698
    %v5800 = vadd.f32 %v5792, %v5698
    %v5801 = vadd.f32 %v5793, %v5698
    %v5802 = vadd.f32 %v5794, %v5698
    %v5803 = vld [vmem:[#allocation2 + $0x96] ss:$0 sm:$0xff]
    %v5804 = vld [vmem:[#allocation2 + $0x97] ss:$0 sm:$0xff]
    %5805 = vadd.xlane.f32.xlu0 %v5795
    %v5806 = vpop.xlane.xlu0 %5805
    %5807 = vadd.xlane.f32.xlu0 %v5796
    %v5808 = vpop.xlane.xlu0 %5807
    %5809 = vadd.xlane.f32.xlu0 %v5797
    %v5810 = vpop.xlane.xlu0 %5809
    %5811 = vadd.xlane.f32.xlu0 %v5798
    %v5812 = vpop.xlane.xlu0 %5811
    %5813 = vadd.xlane.f32.xlu0 %v5799
    %v5814 = vpop.xlane.xlu0 %5813
    %5815 = vadd.xlane.f32.xlu0 %v5800
    %v5816 = vpop.xlane.xlu0 %5815
    %5817 = vadd.xlane.f32.xlu0 %v5801
    %v5818 = vpop.xlane.xlu0 %5817
    %5819 = vadd.xlane.f32.xlu0 %v5802
    %v5820 = vpop.xlane.xlu0 %5819
    %v5821 = vmul.f32 %v5806, %v313
    %v5822 = vmul.f32 %v5808, %v313
    %v5823 = vmul.f32 %v5810, %v313
    %v5824 = vmul.f32 %v5812, %v313
    %v5825 = vmul.f32 %v5814, %v313
    %v5826 = vmul.f32 %v5816, %v313
    %v5827 = vmul.f32 %v5818, %v313
    %v5828 = vmul.f32 %v5820, %v313
    %v5829 = vsub.f32 %v5795, %v5821
    %v5830 = vsub.f32 %v5796, %v5822
    %v5831 = vsub.f32 %v5797, %v5823
    %v5832 = vsub.f32 %v5798, %v5824
    %v5833 = vsub.f32 %v5799, %v5825
    %v5834 = vsub.f32 %v5800, %v5826
    %v5835 = vsub.f32 %v5801, %v5827
    %v5836 = vsub.f32 %v5802, %v5828
    %v5837 = vmul.f32 %v5829, %v5829
    %v5838 = vmul.f32 %v5830, %v5830
    %v5839 = vmul.f32 %v5831, %v5831
    %v5840 = vmul.f32 %v5832, %v5832
    %v5841 = vmul.f32 %v5833, %v5833
    %v5842 = vmul.f32 %v5834, %v5834
    %v5843 = vmul.f32 %v5835, %v5835
    %v5844 = vmul.f32 %v5836, %v5836
    %5845 = vadd.xlane.f32.xlu0 %v5837
    %v5846 = vpop.xlane.xlu0 %5845
    %5847 = vadd.xlane.f32.xlu0 %v5838
    %v5848 = vpop.xlane.xlu0 %5847
    %5849 = vadd.xlane.f32.xlu0 %v5839
    %v5850 = vpop.xlane.xlu0 %5849
    %5851 = vadd.xlane.f32.xlu0 %v5840
    %v5852 = vpop.xlane.xlu0 %5851
    %5853 = vadd.xlane.f32.xlu0 %v5841
    %v5854 = vpop.xlane.xlu0 %5853
    %5855 = vadd.xlane.f32.xlu0 %v5842
    %v5856 = vpop.xlane.xlu0 %5855
    %5857 = vadd.xlane.f32.xlu0 %v5843
    %v5858 = vpop.xlane.xlu0 %5857
    %5859 = vadd.xlane.f32.xlu0 %v5844
    %v5860 = vpop.xlane.xlu0 %5859
    %v5861 = vmul.f32 %v5846, %v313
    %v5862 = vmul.f32 %v5848, %v313
    %v5863 = vmul.f32 %v5850, %v313
    %v5864 = vmul.f32 %v5852, %v313
    %v5865 = vmul.f32 %v5854, %v313
    %v5866 = vmul.f32 %v5856, %v313
    %v5867 = vmul.f32 %v5858, %v313
    %v5868 = vmul.f32 %v5860, %v313
    %v5869 = vadd.f32 %v5861, 1e-05
    %v5870 = vadd.f32 %v5862, 1e-05
    %v5871 = vadd.f32 %v5863, 1e-05
    %v5872 = vadd.f32 %v5864, 1e-05
    %v5873 = vadd.f32 %v5865, 1e-05
    %v5874 = vadd.f32 %v5866, 1e-05
    %v5875 = vadd.f32 %v5867, 1e-05
    %v5876 = vadd.f32 %v5868, 1e-05
    %v5877 = vrsqrt.pop %v5869
    %v5878 = vrsqrt.pop %v5870
    %v5879 = vrsqrt.pop %v5871
    %v5880 = vrsqrt.pop %v5872
    %v5881 = vrsqrt.pop %v5873
    %v5882 = vrsqrt.pop %v5874
    %v5883 = vrsqrt.pop %v5875
    %v5884 = vrsqrt.pop %v5876
    %v5885 = vmul.f32 %v5829, %v5877
    %v5886 = vmul.f32 %v5830, %v5878
    %v5887 = vmul.f32 %v5831, %v5879
    %v5888 = vmul.f32 %v5832, %v5880
    %v5889 = vmul.f32 %v5833, %v5881
    %v5890 = vmul.f32 %v5834, %v5882
    %v5891 = vmul.f32 %v5835, %v5883
    %v5892 = vmul.f32 %v5836, %v5884
    %v5893 = vmul.f32 %v5885, %v5803
    %v5894 = vmul.f32 %v5886, %v5803
    %v5895 = vmul.f32 %v5887, %v5803
    %v5896 = vmul.f32 %v5888, %v5803
    %v5897 = vmul.f32 %v5889, %v5803
    %v5898 = vmul.f32 %v5890, %v5803
    %v5899 = vmul.f32 %v5891, %v5803
    %v5900 = vmul.f32 %v5892, %v5803
    %v5901 = vadd.f32 %v5893, %v5804
    %v5902 = vadd.f32 %v5894, %v5804
    %v5903 = vadd.f32 %v5895, %v5804
    %v5904 = vadd.f32 %v5896, %v5804
    %v5905 = vadd.f32 %v5897, %v5804
    %v5906 = vadd.f32 %v5898, %v5804
    %v5907 = vadd.f32 %v5899, %v5804
    %v5908 = vadd.f32 %v5900, %v5804
    %v5909 = vld [vmem:[#allocation10] sm:$0xff]
    %v5910 = vld [vmem:[#allocation10 + $0x8] sm:$0xff]
    %v5911 = vld [vmem:[#allocation10 + $0x10] sm:$0xff]
    %v5912 = vld [vmem:[#allocation10 + $0x18] sm:$0xff]
    %v5913 = vld [vmem:[#allocation10 + $0x20] sm:$0xff]
    %v5914 = vld [vmem:[#allocation10 + $0x28] sm:$0xff]
    %v5915 = vld [vmem:[#allocation10 + $0x30] sm:$0xff]
    %v5916 = vld [vmem:[#allocation10 + $0x38] sm:$0xff]
    %v5917 = vld [vmem:[#allocation10 + $0x40] sm:$0xff]
    %v5918 = vld [vmem:[#allocation10 + $0x48] sm:$0xff]
    %v5919 = vld [vmem:[#allocation10 + $0x50] sm:$0xff]
    %v5920 = vld [vmem:[#allocation10 + $0x58] sm:$0xff]
    %v5921 = vld [vmem:[#allocation10 + $0x60] sm:$0xff]
    %v5922 = vld [vmem:[#allocation10 + $0x68] sm:$0xff]
    %v5923 = vld [vmem:[#allocation10 + $0x70] sm:$0xff]
    %v5924 = vld [vmem:[#allocation10 + $0x78] sm:$0xff]
    %v5925 = vpack.c.bf16 %v5902, %v5901
    %v5926 = vpack.c.bf16 %v5904, %v5903
    %v5927 = vpack.c.bf16 %v5906, %v5905
    %v5928 = vpack.c.bf16 %v5908, %v5907
    %s5929 = scalar_lea.vmem [#allocation2], 192
    %v5930 = vld [vmem:[%s5929] ss:$8 sm:$0x3]
    %v5932 = vlaneseq
    %v5933 = vshrl.u32 %v5932, 7
    %v5934 = vsub.s32 0, %v5933
    %v5935 = vrot.slane %v5930, %v5934
    %v5936 = vlaneseq
    %v5937 = vshrl.u32 %v5936, 7
    %v5938 = vsub.s32 1, %v5937
    %v5939 = vrot.slane %v5930, %v5938
    %v5958 = vunpack.c.l.b16 %v5909
    %v5959 = vunpack.c.h.b16 %v5909
    %v5960 = vunpack.c.l.b16 %v5910
    %v5961 = vunpack.c.h.b16 %v5910
    %v5962 = vunpack.c.l.b16 %v5911
    %v5963 = vunpack.c.h.b16 %v5911
    %v5964 = vunpack.c.l.b16 %v5912
    %v5965 = vunpack.c.h.b16 %v5912
    %v5966 = vunpack.c.l.b16 %v5913
    %v5967 = vunpack.c.h.b16 %v5913
    %v5968 = vunpack.c.l.b16 %v5914
    %v5969 = vunpack.c.h.b16 %v5914
    %v5970 = vunpack.c.l.b16 %v5915
    %v5971 = vunpack.c.h.b16 %v5915
    %v5972 = vunpack.c.l.b16 %v5916
    %v5973 = vunpack.c.h.b16 %v5916
    %v5974 = vunpack.c.l.b16 %v5917
    %v5975 = vunpack.c.h.b16 %v5917
    %v5976 = vunpack.c.l.b16 %v5918
    %v5977 = vunpack.c.h.b16 %v5918
    %v5978 = vunpack.c.l.b16 %v5919
    %v5979 = vunpack.c.h.b16 %v5919
    %v5980 = vunpack.c.l.b16 %v5920
    %v5981 = vunpack.c.h.b16 %v5920
    %v5982 = vunpack.c.l.b16 %v5921
    %v5983 = vunpack.c.h.b16 %v5921
    %v5984 = vunpack.c.l.b16 %v5922
    %v5985 = vunpack.c.h.b16 %v5922
    %v5986 = vunpack.c.l.b16 %v5923
    %v5987 = vunpack.c.h.b16 %v5923
    %v5988 = vunpack.c.l.b16 %v5924
    %v5989 = vunpack.c.h.b16 %v5924
    %v5990 = vpack.c.b16 %v5960, %v5958
    %v5991 = vpack.c.b16 %v5961, %v5959
    %v5992 = vpack.c.b16 %v5964, %v5962
    %v5993 = vpack.c.b16 %v5965, %v5963
    %v5994 = vpack.c.b16 %v5968, %v5966
    %v5995 = vpack.c.b16 %v5969, %v5967
    %v5996 = vpack.c.b16 %v5972, %v5970
    %v5997 = vpack.c.b16 %v5973, %v5971
    %v5998 = vpack.c.b16 %v5976, %v5974
    %v5999 = vpack.c.b16 %v5977, %v5975
    %v6000 = vpack.c.b16 %v5980, %v5978
    %v6001 = vpack.c.b16 %v5981, %v5979
    %v6002 = vpack.c.b16 %v5984, %v5982
    %v6003 = vpack.c.b16 %v5985, %v5983
    %v6004 = vpack.c.b16 %v5988, %v5986
    %v6005 = vpack.c.b16 %v5989, %v5987
    %6022 = vmatprep.subr.bf16.mxu0 %v6005
    %6023 = vmatpush1.bf16.msra.mxu0 %v6004
    %6024 = vmatprep.subr.bf16.mxu0 %v6003
    %6025 = vmatpush1.bf16.msra.mxu0 %v6002
    %6026 = vmatprep.subr.bf16.mxu0 %v6001
    %6027 = vmatpush1.bf16.msra.mxu0 %v6000
    %6028 = vmatprep.subr.bf16.mxu0 %v5999
    %6029 = vmatpush1.bf16.msra.mxu0 %v5998
    %6030 = vmatprep.subr.bf16.mxu0 %v5997
    %6031 = vmatpush1.bf16.msra.mxu0 %v5996
    %6032 = vmatprep.subr.bf16.mxu0 %v5995
    %6033 = vmatpush1.bf16.msra.mxu0 %v5994
    %6034 = vmatprep.subr.bf16.mxu0 %v5993
    %6035 = vmatpush1.bf16.msra.mxu0 %v5992
    %6036 = vmatprep.subr.bf16.mxu0 %v5991
    %6037 = vmatpush1.bf16.msra.mxu0 %v5990
    %6038 = vmatprep.subr.bf16.mxu0 0
    %6039 = vmatpush2.bf16.msra.mxu0 0
    %6040 = vmatprep.subr.bf16.mxu0 0
    %6041 = vmatpush2.bf16.msra.mxu0 0
    %6042 = vmatprep.subr.bf16.mxu0 0
    %6043 = vmatpush2.bf16.msra.mxu0 0
    %6044 = vmatprep.subr.bf16.mxu0 0
    %6045 = vmatpush2.bf16.msra.mxu0 0
    %6046 = vmatprep.subr.bf16.mxu0 0
    %6047 = vmatpush2.bf16.msra.mxu0 0
    %6048 = vmatprep.subr.bf16.mxu0 0
    %6049 = vmatpush2.bf16.msra.mxu0 0
    %6050 = vmatprep.subr.bf16.mxu0 0
    %6051 = vmatpush2.bf16.msra.mxu0 0
    %6052 = vmatprep.subr.bf16.mxu0 0
    %6053 = vmatpush2.bf16.msra.mxu0 0
    %6054 = vmatprep.mubr.bf16.mxu0 0
    %6055 = vmatmul.mubr.bf16.gmra.mxu0 %v5925
    %v6056 = vpop.f32.mrf.mxu0
    %v6057 = vadd.f32 %v5935, %v6056
    %v6058 = vpop.f32.mrf.mxu0
    %v6059 = vadd.f32 %v5939, %v6058
    %v6060 = vpop.f32.mrf.mxu0
    %v6061 = vadd.f32 %v5935, %v6060
    %v6062 = vpop.f32.mrf.mxu0
    %v6063 = vadd.f32 %v5939, %v6062
    %6064 = vmatprep.mubr.bf16.mxu0 0
    %6065 = vmatmul.mubr.bf16.gmra.mxu0 %v5926
    %v6066 = vpop.f32.mrf.mxu0
    %v6067 = vadd.f32 %v5935, %v6066
    %v6068 = vpop.f32.mrf.mxu0
    %v6069 = vadd.f32 %v5939, %v6068
    %v6070 = vpop.f32.mrf.mxu0
    %v6071 = vadd.f32 %v5935, %v6070
    %v6072 = vpop.f32.mrf.mxu0
    %v6073 = vadd.f32 %v5939, %v6072
    %6074 = vmatprep.mubr.bf16.mxu0 0
    %6075 = vmatmul.mubr.bf16.gmra.mxu0 %v5927
    %v6076 = vpop.f32.mrf.mxu0
    %v6077 = vadd.f32 %v5935, %v6076
    %v6078 = vpop.f32.mrf.mxu0
    %v6079 = vadd.f32 %v5939, %v6078
    %v6080 = vpop.f32.mrf.mxu0
    %v6081 = vadd.f32 %v5935, %v6080
    %v6082 = vpop.f32.mrf.mxu0
    %v6083 = vadd.f32 %v5939, %v6082
    %6084 = vmatprep.mubr.bf16.mxu0 0
    %6085 = vmatmul.mubr.bf16.gmra.mxu0 %v5928
    %v6086 = vpop.f32.mrf.mxu0
    %v6087 = vadd.f32 %v5935, %v6086
    %v6088 = vpop.f32.mrf.mxu0
    %v6089 = vadd.f32 %v5939, %v6088
    %v6090 = vpop.f32.mrf.mxu0
    %v6091 = vadd.f32 %v5935, %v6090
    %v6092 = vpop.f32.mrf.mxu0
    %v6093 = vadd.f32 %v5939, %v6092
    %6094 = vdwg.mxu0
    %s6095 = scalar_lea.vmem [#allocation2], 193
    %v6096 = vld [vmem:[%s6095] ss:$8 sm:$0x3]
    %s6097 = scalar_lea.vmem [#allocation2], 194
    %v6098 = vld [vmem:[%s6097] ss:$8 sm:$0x3]
    %v6099 = vadd.f32 %v6057, %v6059
    %6100 = vadd.xlane.f32.xlu0 %v6099
    %v6101 = vpop.xlane.xlu0 %6100
    %v6102 = vadd.f32 %v6061, %v6063
    %6103 = vadd.xlane.f32.xlu0 %v6102
    %v6104 = vpop.xlane.xlu0 %6103
    %v6105 = vadd.f32 %v6067, %v6069
    %6106 = vadd.xlane.f32.xlu0 %v6105
    %v6107 = vpop.xlane.xlu0 %6106
    %v6108 = vadd.f32 %v6071, %v6073
    %6109 = vadd.xlane.f32.xlu0 %v6108
    %v6110 = vpop.xlane.xlu0 %6109
    %v6111 = vadd.f32 %v6077, %v6079
    %6112 = vadd.xlane.f32.xlu0 %v6111
    %v6113 = vpop.xlane.xlu0 %6112
    %v6114 = vadd.f32 %v6081, %v6083
    %6115 = vadd.xlane.f32.xlu0 %v6114
    %v6116 = vpop.xlane.xlu0 %6115
    %v6117 = vadd.f32 %v6087, %v6089
    %6118 = vadd.xlane.f32.xlu0 %v6117
    %v6119 = vpop.xlane.xlu0 %6118
    %v6120 = vadd.f32 %v6091, %v6093
    %6121 = vadd.xlane.f32.xlu0 %v6120
    %v6122 = vpop.xlane.xlu0 %6121
    %v6123 = vrcp.pop 256.0
    %v6124 = vmul.f32 %v6101, %v6123
    %v6125 = vmul.f32 %v6104, %v6123
    %v6126 = vmul.f32 %v6107, %v6123
    %v6127 = vmul.f32 %v6110, %v6123
    %v6128 = vmul.f32 %v6113, %v6123
    %v6129 = vmul.f32 %v6116, %v6123
    %v6130 = vmul.f32 %v6119, %v6123
    %v6131 = vmul.f32 %v6122, %v6123
    %v6132 = vsub.f32 %v6057, %v6124
    %v6133 = vsub.f32 %v6059, %v6124
    %v6134 = vsub.f32 %v6061, %v6125
    %v6135 = vsub.f32 %v6063, %v6125
    %v6136 = vsub.f32 %v6067, %v6126
    %v6137 = vsub.f32 %v6069, %v6126
    %v6138 = vsub.f32 %v6071, %v6127
    %v6139 = vsub.f32 %v6073, %v6127
    %v6140 = vsub.f32 %v6077, %v6128
    %v6141 = vsub.f32 %v6079, %v6128
    %v6142 = vsub.f32 %v6081, %v6129
    %v6143 = vsub.f32 %v6083, %v6129
    %v6144 = vsub.f32 %v6087, %v6130
    %v6145 = vsub.f32 %v6089, %v6130
    %v6146 = vsub.f32 %v6091, %v6131
    %v6147 = vsub.f32 %v6093, %v6131
    %v6148 = vmul.f32 %v6132, %v6132
    %v6149 = vmul.f32 %v6133, %v6133
    %v6150 = vmul.f32 %v6134, %v6134
    %v6151 = vmul.f32 %v6135, %v6135
    %v6152 = vmul.f32 %v6136, %v6136
    %v6153 = vmul.f32 %v6137, %v6137
    %v6154 = vmul.f32 %v6138, %v6138
    %v6155 = vmul.f32 %v6139, %v6139
    %v6156 = vmul.f32 %v6140, %v6140
    %v6157 = vmul.f32 %v6141, %v6141
    %v6158 = vmul.f32 %v6142, %v6142
    %v6159 = vmul.f32 %v6143, %v6143
    %v6160 = vmul.f32 %v6144, %v6144
    %v6161 = vmul.f32 %v6145, %v6145
    %v6162 = vmul.f32 %v6146, %v6146
    %v6163 = vmul.f32 %v6147, %v6147
    %v6164 = vadd.f32 %v6148, %v6149
    %6165 = vadd.xlane.f32.xlu0 %v6164
    %v6166 = vpop.xlane.xlu0 %6165
    %v6167 = vadd.f32 %v6150, %v6151
    %6168 = vadd.xlane.f32.xlu0 %v6167
    %v6169 = vpop.xlane.xlu0 %6168
    %v6170 = vadd.f32 %v6152, %v6153
    %6171 = vadd.xlane.f32.xlu0 %v6170
    %v6172 = vpop.xlane.xlu0 %6171
    %v6173 = vadd.f32 %v6154, %v6155
    %6174 = vadd.xlane.f32.xlu0 %v6173
    %v6175 = vpop.xlane.xlu0 %6174
    %v6176 = vadd.f32 %v6156, %v6157
    %6177 = vadd.xlane.f32.xlu0 %v6176
    %v6178 = vpop.xlane.xlu0 %6177
    %v6179 = vadd.f32 %v6158, %v6159
    %6180 = vadd.xlane.f32.xlu0 %v6179
    %v6181 = vpop.xlane.xlu0 %6180
    %v6182 = vadd.f32 %v6160, %v6161
    %6183 = vadd.xlane.f32.xlu0 %v6182
    %v6184 = vpop.xlane.xlu0 %6183
    %v6185 = vadd.f32 %v6162, %v6163
    %6186 = vadd.xlane.f32.xlu0 %v6185
    %v6187 = vpop.xlane.xlu0 %6186
    %v6188 = vmul.f32 %v6166, %v6123
    %v6189 = vmul.f32 %v6169, %v6123
    %v6190 = vmul.f32 %v6172, %v6123
    %v6191 = vmul.f32 %v6175, %v6123
    %v6192 = vmul.f32 %v6178, %v6123
    %v6193 = vmul.f32 %v6181, %v6123
    %v6194 = vmul.f32 %v6184, %v6123
    %v6195 = vmul.f32 %v6187, %v6123
    %v6196 = vadd.f32 %v6188, 1e-05
    %v6197 = vadd.f32 %v6189, 1e-05
    %v6198 = vadd.f32 %v6190, 1e-05
    %v6199 = vadd.f32 %v6191, 1e-05
    %v6200 = vadd.f32 %v6192, 1e-05
    %v6201 = vadd.f32 %v6193, 1e-05
    %v6202 = vadd.f32 %v6194, 1e-05
    %v6203 = vadd.f32 %v6195, 1e-05
    %v6204 = vrsqrt.pop %v6196
    %v6205 = vrsqrt.pop %v6197
    %v6206 = vrsqrt.pop %v6198
    %v6207 = vrsqrt.pop %v6199
    %v6208 = vrsqrt.pop %v6200
    %v6209 = vrsqrt.pop %v6201
    %v6210 = vrsqrt.pop %v6202
    %v6211 = vrsqrt.pop %v6203
    %v6212 = vmul.f32 %v6132, %v6204
    %v6213 = vmul.f32 %v6133, %v6204
    %v6214 = vmul.f32 %v6134, %v6205
    %v6215 = vmul.f32 %v6135, %v6205
    %v6216 = vmul.f32 %v6136, %v6206
    %v6217 = vmul.f32 %v6137, %v6206
    %v6218 = vmul.f32 %v6138, %v6207
    %v6219 = vmul.f32 %v6139, %v6207
    %v6220 = vmul.f32 %v6140, %v6208
    %v6221 = vmul.f32 %v6141, %v6208
    %v6222 = vmul.f32 %v6142, %v6209
    %v6223 = vmul.f32 %v6143, %v6209
    %v6224 = vmul.f32 %v6144, %v6210
    %v6225 = vmul.f32 %v6145, %v6210
    %v6226 = vmul.f32 %v6146, %v6211
    %v6227 = vmul.f32 %v6147, %v6211
    %v6229 = vlaneseq
    %v6230 = vshrl.u32 %v6229, 7
    %v6231 = vsub.s32 0, %v6230
    %v6232 = vrot.slane %v6096, %v6231
    %v6233 = vlaneseq
    %v6234 = vshrl.u32 %v6233, 7
    %v6235 = vsub.s32 1, %v6234
    %v6236 = vrot.slane %v6096, %v6235
    %v6239 = vmul.f32 %v6212, %v6232
    %v6240 = vmul.f32 %v6213, %v6236
    %v6241 = vmul.f32 %v6214, %v6232
    %v6242 = vmul.f32 %v6215, %v6236
    %v6243 = vmul.f32 %v6216, %v6232
    %v6244 = vmul.f32 %v6217, %v6236
    %v6245 = vmul.f32 %v6218, %v6232
    %v6246 = vmul.f32 %v6219, %v6236
    %v6247 = vmul.f32 %v6220, %v6232
    %v6248 = vmul.f32 %v6221, %v6236
    %v6249 = vmul.f32 %v6222, %v6232
    %v6250 = vmul.f32 %v6223, %v6236
    %v6251 = vmul.f32 %v6224, %v6232
    %v6252 = vmul.f32 %v6225, %v6236
    %v6253 = vmul.f32 %v6226, %v6232
    %v6254 = vmul.f32 %v6227, %v6236
    %v6256 = vlaneseq
    %v6257 = vshrl.u32 %v6256, 7
    %v6258 = vsub.s32 0, %v6257
    %v6259 = vrot.slane %v6098, %v6258
    %v6260 = vlaneseq
    %v6261 = vshrl.u32 %v6260, 7
    %v6262 = vsub.s32 1, %v6261
    %v6263 = vrot.slane %v6098, %v6262
    %v6266 = vadd.f32 %v6239, %v6259
    %v6267 = vadd.f32 %v6240, %v6263
    %v6268 = vadd.f32 %v6241, %v6259
    %v6269 = vadd.f32 %v6242, %v6263
    %v6270 = vadd.f32 %v6243, %v6259
    %v6271 = vadd.f32 %v6244, %v6263
    %v6272 = vadd.f32 %v6245, %v6259
    %v6273 = vadd.f32 %v6246, %v6263
    %v6274 = vadd.f32 %v6247, %v6259
    %v6275 = vadd.f32 %v6248, %v6263
    %v6276 = vadd.f32 %v6249, %v6259
    %v6277 = vadd.f32 %v6250, %v6263
    %v6278 = vadd.f32 %v6251, %v6259
    %v6279 = vadd.f32 %v6252, %v6263
    %v6280 = vadd.f32 %v6253, %v6259
    %v6281 = vadd.f32 %v6254, %v6263
    %v6282 = vmul.f32 %v6266, 0.5
    %v6283 = vmul.f32 %v6267, 0.5
    %v6284 = vmul.f32 %v6268, 0.5
    %v6285 = vmul.f32 %v6269, 0.5
    %v6286 = vmul.f32 %v6270, 0.5
    %v6287 = vmul.f32 %v6271, 0.5
    %v6288 = vmul.f32 %v6272, 0.5
    %v6289 = vmul.f32 %v6273, 0.5
    %v6290 = vmul.f32 %v6274, 0.5
    %v6291 = vmul.f32 %v6275, 0.5
    %v6292 = vmul.f32 %v6276, 0.5
    %v6293 = vmul.f32 %v6277, 0.5
    %v6294 = vmul.f32 %v6278, 0.5
    %v6295 = vmul.f32 %v6279, 0.5
    %v6296 = vmul.f32 %v6280, 0.5
    %v6297 = vmul.f32 %v6281, 0.5
    %v6298 = vmul.f32 %v6266, 0.044715
    %v6299 = vmul.f32 %v6267, 0.044715
    %v6300 = vmul.f32 %v6268, 0.044715
    %v6301 = vmul.f32 %v6269, 0.044715
    %v6302 = vmul.f32 %v6270, 0.044715
    %v6303 = vmul.f32 %v6271, 0.044715
    %v6304 = vmul.f32 %v6272, 0.044715
    %v6305 = vmul.f32 %v6273, 0.044715
    %v6306 = vmul.f32 %v6274, 0.044715
    %v6307 = vmul.f32 %v6275, 0.044715
    %v6308 = vmul.f32 %v6276, 0.044715
    %v6309 = vmul.f32 %v6277, 0.044715
    %v6310 = vmul.f32 %v6278, 0.044715
    %v6311 = vmul.f32 %v6279, 0.044715
    %v6312 = vmul.f32 %v6280, 0.044715
    %v6313 = vmul.f32 %v6281, 0.044715
    %v6314 = vmul.f32 %v6298, %v6266
    %v6315 = vmul.f32 %v6299, %v6267
    %v6316 = vmul.f32 %v6300, %v6268
    %v6317 = vmul.f32 %v6301, %v6269
    %v6318 = vmul.f32 %v6302, %v6270
    %v6319 = vmul.f32 %v6303, %v6271
    %v6320 = vmul.f32 %v6304, %v6272
    %v6321 = vmul.f32 %v6305, %v6273
    %v6322 = vmul.f32 %v6306, %v6274
    %v6323 = vmul.f32 %v6307, %v6275
    %v6324 = vmul.f32 %v6308, %v6276
    %v6325 = vmul.f32 %v6309, %v6277
    %v6326 = vmul.f32 %v6310, %v6278
    %v6327 = vmul.f32 %v6311, %v6279
    %v6328 = vmul.f32 %v6312, %v6280
    %v6329 = vmul.f32 %v6313, %v6281
    %v6330 = vmul.f32 %v6314, %v6266
    %v6331 = vmul.f32 %v6315, %v6267
    %v6332 = vmul.f32 %v6316, %v6268
    %v6333 = vmul.f32 %v6317, %v6269
    %v6334 = vmul.f32 %v6318, %v6270
    %v6335 = vmul.f32 %v6319, %v6271
    %v6336 = vmul.f32 %v6320, %v6272
    %v6337 = vmul.f32 %v6321, %v6273
    %v6338 = vmul.f32 %v6322, %v6274
    %v6339 = vmul.f32 %v6323, %v6275
    %v6340 = vmul.f32 %v6324, %v6276
    %v6341 = vmul.f32 %v6325, %v6277
    %v6342 = vmul.f32 %v6326, %v6278
    %v6343 = vmul.f32 %v6327, %v6279
    %v6344 = vmul.f32 %v6328, %v6280
    %v6345 = vmul.f32 %v6329, %v6281
    %v6346 = vadd.f32 %v6266, %v6330
    %v6347 = vadd.f32 %v6267, %v6331
    %v6348 = vadd.f32 %v6268, %v6332
    %v6349 = vadd.f32 %v6269, %v6333
    %v6350 = vadd.f32 %v6270, %v6334
    %v6351 = vadd.f32 %v6271, %v6335
    %v6352 = vadd.f32 %v6272, %v6336
    %v6353 = vadd.f32 %v6273, %v6337
    %v6354 = vadd.f32 %v6274, %v6338
    %v6355 = vadd.f32 %v6275, %v6339
    %v6356 = vadd.f32 %v6276, %v6340
    %v6357 = vadd.f32 %v6277, %v6341
    %v6358 = vadd.f32 %v6278, %v6342
    %v6359 = vadd.f32 %v6279, %v6343
    %v6360 = vadd.f32 %v6280, %v6344
    %v6361 = vadd.f32 %v6281, %v6345
    %v6362 = vmul.f32 %v6346, 0.7978846
    %v6363 = vmul.f32 %v6347, 0.7978846
    %v6364 = vmul.f32 %v6348, 0.7978846
    %v6365 = vmul.f32 %v6349, 0.7978846
    %v6366 = vmul.f32 %v6350, 0.7978846
    %v6367 = vmul.f32 %v6351, 0.7978846
    %v6368 = vmul.f32 %v6352, 0.7978846
    %v6369 = vmul.f32 %v6353, 0.7978846
    %v6370 = vmul.f32 %v6354, 0.7978846
    %v6371 = vmul.f32 %v6355, 0.7978846
    %v6372 = vmul.f32 %v6356, 0.7978846
    %v6373 = vmul.f32 %v6357, 0.7978846
    %v6374 = vmul.f32 %v6358, 0.7978846
    %v6375 = vmul.f32 %v6359, 0.7978846
    %v6376 = vmul.f32 %v6360, 0.7978846
    %v6377 = vmul.f32 %v6361, 0.7978846
    %v6378 = vtanh.pop %v6362
    %v6379 = vtanh.pop %v6363
    %v6380 = vtanh.pop %v6364
    %v6381 = vtanh.pop %v6365
    %v6382 = vtanh.pop %v6366
    %v6383 = vtanh.pop %v6367
    %v6384 = vtanh.pop %v6368
    %v6385 = vtanh.pop %v6369
    %v6386 = vtanh.pop %v6370
    %v6387 = vtanh.pop %v6371
    %v6388 = vtanh.pop %v6372
    %v6389 = vtanh.pop %v6373
    %v6390 = vtanh.pop %v6374
    %v6391 = vtanh.pop %v6375
    %v6392 = vtanh.pop %v6376
    %v6393 = vtanh.pop %v6377
    %v6394 = vadd.f32 %v6378, 1.0
    %v6395 = vadd.f32 %v6379, 1.0
    %v6396 = vadd.f32 %v6380, 1.0
    %v6397 = vadd.f32 %v6381, 1.0
    %v6398 = vadd.f32 %v6382, 1.0
    %v6399 = vadd.f32 %v6383, 1.0
    %v6400 = vadd.f32 %v6384, 1.0
    %v6401 = vadd.f32 %v6385, 1.0
    %v6402 = vadd.f32 %v6386, 1.0
    %v6403 = vadd.f32 %v6387, 1.0
    %v6404 = vadd.f32 %v6388, 1.0
    %v6405 = vadd.f32 %v6389, 1.0
    %v6406 = vadd.f32 %v6390, 1.0
    %v6407 = vadd.f32 %v6391, 1.0
    %v6408 = vadd.f32 %v6392, 1.0
    %v6409 = vadd.f32 %v6393, 1.0
    %v6410 = vmul.f32 %v6282, %v6394
    %v6411 = vmul.f32 %v6283, %v6395
    %v6412 = vmul.f32 %v6284, %v6396
    %v6413 = vmul.f32 %v6285, %v6397
    %v6414 = vmul.f32 %v6286, %v6398
    %v6415 = vmul.f32 %v6287, %v6399
    %v6416 = vmul.f32 %v6288, %v6400
    %v6417 = vmul.f32 %v6289, %v6401
    %v6418 = vmul.f32 %v6290, %v6402
    %v6419 = vmul.f32 %v6291, %v6403
    %v6420 = vmul.f32 %v6292, %v6404
    %v6421 = vmul.f32 %v6293, %v6405
    %v6422 = vmul.f32 %v6294, %v6406
    %v6423 = vmul.f32 %v6295, %v6407
    %v6424 = vmul.f32 %v6296, %v6408
    %v6425 = vmul.f32 %v6297, %v6409
    %v6426 = vld [vmem:[#allocation12] sm:$0xf]
    %v6427 = vld [vmem:[#allocation12 + $0x4] sm:$0xf]
    %v6428 = vld [vmem:[#allocation12 + $0x8] sm:$0xf]
    %v6429 = vld [vmem:[#allocation12 + $0xc] sm:$0xf]
    %v6430 = vld [vmem:[#allocation12 + $0x10] sm:$0xf]
    %v6431 = vld [vmem:[#allocation12 + $0x14] sm:$0xf]
    %v6432 = vld [vmem:[#allocation12 + $0x18] sm:$0xf]
    %v6433 = vld [vmem:[#allocation12 + $0x1c] sm:$0xf]
    %v6434 = vld [vmem:[#allocation12 + $0x20] sm:$0xf]
    %v6435 = vld [vmem:[#allocation12 + $0x24] sm:$0xf]
    %v6436 = vld [vmem:[#allocation12 + $0x28] sm:$0xf]
    %v6437 = vld [vmem:[#allocation12 + $0x2c] sm:$0xf]
    %v6438 = vld [vmem:[#allocation12 + $0x30] sm:$0xf]
    %v6439 = vld [vmem:[#allocation12 + $0x34] sm:$0xf]
    %v6440 = vld [vmem:[#allocation12 + $0x38] sm:$0xf]
    %v6441 = vld [vmem:[#allocation12 + $0x3c] sm:$0xf]
    %v6442 = vld [vmem:[#allocation12 + $0x40] sm:$0xf]
    %v6443 = vld [vmem:[#allocation12 + $0x44] sm:$0xf]
    %v6444 = vld [vmem:[#allocation12 + $0x48] sm:$0xf]
    %v6445 = vld [vmem:[#allocation12 + $0x4c] sm:$0xf]
    %v6446 = vld [vmem:[#allocation12 + $0x50] sm:$0xf]
    %v6447 = vld [vmem:[#allocation12 + $0x54] sm:$0xf]
    %v6448 = vld [vmem:[#allocation12 + $0x58] sm:$0xf]
    %v6449 = vld [vmem:[#allocation12 + $0x5c] sm:$0xf]
    %v6450 = vld [vmem:[#allocation12 + $0x60] sm:$0xf]
    %v6451 = vld [vmem:[#allocation12 + $0x64] sm:$0xf]
    %v6452 = vld [vmem:[#allocation12 + $0x68] sm:$0xf]
    %v6453 = vld [vmem:[#allocation12 + $0x6c] sm:$0xf]
    %v6454 = vld [vmem:[#allocation12 + $0x70] sm:$0xf]
    %v6455 = vld [vmem:[#allocation12 + $0x74] sm:$0xf]
    %v6456 = vld [vmem:[#allocation12 + $0x78] sm:$0xf]
    %v6457 = vld [vmem:[#allocation12 + $0x7c] sm:$0xf]
    %v6458 = vpack.c.bf16 %v6412, %v6410
    %v6459 = vpack.c.bf16 %v6413, %v6411
    %v6460 = vpack.c.bf16 %v6416, %v6414
    %v6461 = vpack.c.bf16 %v6417, %v6415
    %v6462 = vpack.c.bf16 %v6420, %v6418
    %v6463 = vpack.c.bf16 %v6421, %v6419
    %v6464 = vpack.c.bf16 %v6424, %v6422
    %v6465 = vpack.c.bf16 %v6425, %v6423
    %v6466 = vld [vmem:[#allocation2 + $0xc3] ss:$0 sm:$0xff]
    %v6499 = vunpack.c.l.b16 %v6426
    %v6500 = vunpack.c.l.b16 %v6427
    %v6501 = vunpack.c.l.b16 %v6428
    %v6502 = vunpack.c.l.b16 %v6429
    %v6503 = vunpack.c.l.b16 %v6430
    %v6504 = vunpack.c.l.b16 %v6431
    %v6505 = vunpack.c.l.b16 %v6432
    %v6506 = vunpack.c.l.b16 %v6433
    %v6507 = vunpack.c.l.b16 %v6434
    %v6508 = vunpack.c.l.b16 %v6435
    %v6509 = vunpack.c.l.b16 %v6436
    %v6510 = vunpack.c.l.b16 %v6437
    %v6511 = vunpack.c.l.b16 %v6438
    %v6512 = vunpack.c.l.b16 %v6439
    %v6513 = vunpack.c.l.b16 %v6440
    %v6514 = vunpack.c.l.b16 %v6441
    %v6515 = vunpack.c.l.b16 %v6442
    %v6516 = vunpack.c.l.b16 %v6443
    %v6517 = vunpack.c.l.b16 %v6444
    %v6518 = vunpack.c.l.b16 %v6445
    %v6519 = vunpack.c.l.b16 %v6446
    %v6520 = vunpack.c.l.b16 %v6447
    %v6521 = vunpack.c.l.b16 %v6448
    %v6522 = vunpack.c.l.b16 %v6449
    %v6523 = vunpack.c.l.b16 %v6450
    %v6524 = vunpack.c.l.b16 %v6451
    %v6525 = vunpack.c.l.b16 %v6452
    %v6526 = vunpack.c.l.b16 %v6453
    %v6527 = vunpack.c.l.b16 %v6454
    %v6528 = vunpack.c.l.b16 %v6455
    %v6529 = vunpack.c.l.b16 %v6456
    %v6530 = vunpack.c.l.b16 %v6457
    %v6531 = vpack.c.b16 %v6500, %v6499
    %v6532 = vpack.c.b16 %v6502, %v6501
    %v6533 = vpack.c.b16 %v6504, %v6503
    %v6534 = vpack.c.b16 %v6506, %v6505
    %v6535 = vpack.c.b16 %v6508, %v6507
    %v6536 = vpack.c.b16 %v6510, %v6509
    %v6537 = vpack.c.b16 %v6512, %v6511
    %v6538 = vpack.c.b16 %v6514, %v6513
    %v6539 = vpack.c.b16 %v6516, %v6515
    %v6540 = vpack.c.b16 %v6518, %v6517
    %v6541 = vpack.c.b16 %v6520, %v6519
    %v6542 = vpack.c.b16 %v6522, %v6521
    %v6543 = vpack.c.b16 %v6524, %v6523
    %v6544 = vpack.c.b16 %v6526, %v6525
    %v6545 = vpack.c.b16 %v6528, %v6527
    %v6546 = vpack.c.b16 %v6530, %v6529
    %6563 = vmatprep.subr.bf16.mxu0 0
    %6564 = vmatpush1.bf16.msra.mxu0 %v6538
    %6565 = vmatprep.subr.bf16.mxu0 0
    %6566 = vmatpush1.bf16.msra.mxu0 %v6537
    %6567 = vmatprep.subr.bf16.mxu0 0
    %6568 = vmatpush1.bf16.msra.mxu0 %v6536
    %6569 = vmatprep.subr.bf16.mxu0 0
    %6570 = vmatpush1.bf16.msra.mxu0 %v6535
    %6571 = vmatprep.subr.bf16.mxu0 0
    %6572 = vmatpush1.bf16.msra.mxu0 %v6534
    %6573 = vmatprep.subr.bf16.mxu0 0
    %6574 = vmatpush1.bf16.msra.mxu0 %v6533
    %6575 = vmatprep.subr.bf16.mxu0 0
    %6576 = vmatpush1.bf16.msra.mxu0 %v6532
    %6577 = vmatprep.subr.bf16.mxu0 0
    %6578 = vmatpush1.bf16.msra.mxu0 %v6531
    %6579 = vmatprep.subr.bf16.mxu0 0
    %6580 = vmatpush2.bf16.msra.mxu0 %v6546
    %6581 = vmatprep.subr.bf16.mxu0 0
    %6582 = vmatpush2.bf16.msra.mxu0 %v6545
    %6583 = vmatprep.subr.bf16.mxu0 0
    %6584 = vmatpush2.bf16.msra.mxu0 %v6544
    %6585 = vmatprep.subr.bf16.mxu0 0
    %6586 = vmatpush2.bf16.msra.mxu0 %v6543
    %6587 = vmatprep.subr.bf16.mxu0 0
    %6588 = vmatpush2.bf16.msra.mxu0 %v6542
    %6589 = vmatprep.subr.bf16.mxu0 0
    %6590 = vmatpush2.bf16.msra.mxu0 %v6541
    %6591 = vmatprep.subr.bf16.mxu0 0
    %6592 = vmatpush2.bf16.msra.mxu0 %v6540
    %6593 = vmatprep.subr.bf16.mxu0 0
    %6594 = vmatpush2.bf16.msra.mxu0 %v6539
    %6595 = vmatprep.mubr.bf16.mxu0 %v6459
    %6596 = vmatmul.mubr.bf16.gmra.mxu0 %v6458
    %v6597 = vpop.f32.mrf.mxu0
    %v6598 = vadd.f32 %v6466, %v6597
    %v6599 = vpop.f32.mrf.mxu0
    %v6600 = vpop.f32.mrf.mxu0
    %v6601 = vadd.f32 %v6466, %v6600
    %v6602 = vpop.f32.mrf.mxu0
    %6603 = vmatprep.mubr.bf16.mxu0 %v6461
    %6604 = vmatmul.mubr.bf16.gmra.mxu0 %v6460
    %v6605 = vpop.f32.mrf.mxu0
    %v6606 = vadd.f32 %v6466, %v6605
    %v6607 = vpop.f32.mrf.mxu0
    %v6608 = vpop.f32.mrf.mxu0
    %v6609 = vadd.f32 %v6466, %v6608
    %v6610 = vpop.f32.mrf.mxu0
    %6611 = vmatprep.mubr.bf16.mxu0 %v6463
    %6612 = vmatmul.mubr.bf16.gmra.mxu0 %v6462
    %v6613 = vpop.f32.mrf.mxu0
    %v6614 = vadd.f32 %v6466, %v6613
    %v6615 = vpop.f32.mrf.mxu0
    %v6616 = vpop.f32.mrf.mxu0
    %v6617 = vadd.f32 %v6466, %v6616
    %v6618 = vpop.f32.mrf.mxu0
    %6619 = vmatprep.mubr.bf16.mxu0 %v6465
    %6620 = vmatmul.mubr.bf16.gmra.mxu0 %v6464
    %v6621 = vpop.f32.mrf.mxu0
    %v6622 = vadd.f32 %v6466, %v6621
    %v6623 = vpop.f32.mrf.mxu0
    %v6624 = vpop.f32.mrf.mxu0
    %v6625 = vadd.f32 %v6466, %v6624
    %v6626 = vpop.f32.mrf.mxu0
    %6627 = vdwg.mxu0
    %v6628 = vld [vmem:[#allocation2 + $0xc4] ss:$0 sm:$0xff]
    %v6629 = vld [vmem:[#allocation2 + $0xc5] ss:$0 sm:$0xff]
    %6630 = vadd.xlane.f32.xlu0 %v6598
    %v6631 = vpop.xlane.xlu0 %6630
    %6632 = vadd.xlane.f32.xlu0 %v6601
    %v6633 = vpop.xlane.xlu0 %6632
    %6634 = vadd.xlane.f32.xlu0 %v6606
    %v6635 = vpop.xlane.xlu0 %6634
    %6636 = vadd.xlane.f32.xlu0 %v6609
    %v6637 = vpop.xlane.xlu0 %6636
    %6638 = vadd.xlane.f32.xlu0 %v6614
    %v6639 = vpop.xlane.xlu0 %6638
    %6640 = vadd.xlane.f32.xlu0 %v6617
    %v6641 = vpop.xlane.xlu0 %6640
    %6642 = vadd.xlane.f32.xlu0 %v6622
    %v6643 = vpop.xlane.xlu0 %6642
    %6644 = vadd.xlane.f32.xlu0 %v6625
    %v6645 = vpop.xlane.xlu0 %6644
    %v6646 = vmul.f32 %v6631, %v313
    %v6647 = vmul.f32 %v6633, %v313
    %v6648 = vmul.f32 %v6635, %v313
    %v6649 = vmul.f32 %v6637, %v313
    %v6650 = vmul.f32 %v6639, %v313
    %v6651 = vmul.f32 %v6641, %v313
    %v6652 = vmul.f32 %v6643, %v313
    %v6653 = vmul.f32 %v6645, %v313
    %v6654 = vsub.f32 %v6598, %v6646
    %v6655 = vsub.f32 %v6601, %v6647
    %v6656 = vsub.f32 %v6606, %v6648
    %v6657 = vsub.f32 %v6609, %v6649
    %v6658 = vsub.f32 %v6614, %v6650
    %v6659 = vsub.f32 %v6617, %v6651
    %v6660 = vsub.f32 %v6622, %v6652
    %v6661 = vsub.f32 %v6625, %v6653
    %v6662 = vmul.f32 %v6654, %v6654
    %v6663 = vmul.f32 %v6655, %v6655
    %v6664 = vmul.f32 %v6656, %v6656
    %v6665 = vmul.f32 %v6657, %v6657
    %v6666 = vmul.f32 %v6658, %v6658
    %v6667 = vmul.f32 %v6659, %v6659
    %v6668 = vmul.f32 %v6660, %v6660
    %v6669 = vmul.f32 %v6661, %v6661
    %6670 = vadd.xlane.f32.xlu0 %v6662
    %v6671 = vpop.xlane.xlu0 %6670
    %6672 = vadd.xlane.f32.xlu0 %v6663
    %v6673 = vpop.xlane.xlu0 %6672
    %6674 = vadd.xlane.f32.xlu0 %v6664
    %v6675 = vpop.xlane.xlu0 %6674
    %6676 = vadd.xlane.f32.xlu0 %v6665
    %v6677 = vpop.xlane.xlu0 %6676
    %6678 = vadd.xlane.f32.xlu0 %v6666
    %v6679 = vpop.xlane.xlu0 %6678
    %6680 = vadd.xlane.f32.xlu0 %v6667
    %v6681 = vpop.xlane.xlu0 %6680
    %6682 = vadd.xlane.f32.xlu0 %v6668
    %v6683 = vpop.xlane.xlu0 %6682
    %6684 = vadd.xlane.f32.xlu0 %v6669
    %v6685 = vpop.xlane.xlu0 %6684
    %v6686 = vmul.f32 %v6671, %v313
    %v6687 = vmul.f32 %v6673, %v313
    %v6688 = vmul.f32 %v6675, %v313
    %v6689 = vmul.f32 %v6677, %v313
    %v6690 = vmul.f32 %v6679, %v313
    %v6691 = vmul.f32 %v6681, %v313
    %v6692 = vmul.f32 %v6683, %v313
    %v6693 = vmul.f32 %v6685, %v313
    %v6694 = vadd.f32 %v6686, 1e-05
    %v6695 = vadd.f32 %v6687, 1e-05
    %v6696 = vadd.f32 %v6688, 1e-05
    %v6697 = vadd.f32 %v6689, 1e-05
    %v6698 = vadd.f32 %v6690, 1e-05
    %v6699 = vadd.f32 %v6691, 1e-05
    %v6700 = vadd.f32 %v6692, 1e-05
    %v6701 = vadd.f32 %v6693, 1e-05
    %v6702 = vrsqrt.pop %v6694
    %v6703 = vrsqrt.pop %v6695
    %v6704 = vrsqrt.pop %v6696
    %v6705 = vrsqrt.pop %v6697
    %v6706 = vrsqrt.pop %v6698
    %v6707 = vrsqrt.pop %v6699
    %v6708 = vrsqrt.pop %v6700
    %v6709 = vrsqrt.pop %v6701
    %v6710 = vmul.f32 %v6654, %v6702
    %v6711 = vmul.f32 %v6655, %v6703
    %v6712 = vmul.f32 %v6656, %v6704
    %v6713 = vmul.f32 %v6657, %v6705
    %v6714 = vmul.f32 %v6658, %v6706
    %v6715 = vmul.f32 %v6659, %v6707
    %v6716 = vmul.f32 %v6660, %v6708
    %v6717 = vmul.f32 %v6661, %v6709
    %v6718 = vmul.f32 %v6710, %v6628
    %v6719 = vmul.f32 %v6711, %v6628
    %v6720 = vmul.f32 %v6712, %v6628
    %v6721 = vmul.f32 %v6713, %v6628
    %v6722 = vmul.f32 %v6714, %v6628
    %v6723 = vmul.f32 %v6715, %v6628
    %v6724 = vmul.f32 %v6716, %v6628
    %v6725 = vmul.f32 %v6717, %v6628
    %v6726 = vadd.f32 %v6718, %v6629
    %v6727 = vadd.f32 %v6719, %v6629
    %v6728 = vadd.f32 %v6720, %v6629
    %v6729 = vadd.f32 %v6721, %v6629
    %v6730 = vadd.f32 %v6722, %v6629
    %v6731 = vadd.f32 %v6723, %v6629
    %v6732 = vadd.f32 %v6724, %v6629
    %v6733 = vadd.f32 %v6725, %v6629
    %v6734 = vmul.f32 %v6726, 0.5
    %v6735 = vmul.f32 %v6727, 0.5
    %v6736 = vmul.f32 %v6728, 0.5
    %v6737 = vmul.f32 %v6729, 0.5
    %v6738 = vmul.f32 %v6730, 0.5
    %v6739 = vmul.f32 %v6731, 0.5
    %v6740 = vmul.f32 %v6732, 0.5
    %v6741 = vmul.f32 %v6733, 0.5
    %v6742 = vmul.f32 %v6726, 0.044715
    %v6743 = vmul.f32 %v6727, 0.044715
    %v6744 = vmul.f32 %v6728, 0.044715
    %v6745 = vmul.f32 %v6729, 0.044715
    %v6746 = vmul.f32 %v6730, 0.044715
    %v6747 = vmul.f32 %v6731, 0.044715
    %v6748 = vmul.f32 %v6732, 0.044715
    %v6749 = vmul.f32 %v6733, 0.044715
    %v6750 = vmul.f32 %v6742, %v6726
    %v6751 = vmul.f32 %v6743, %v6727
    %v6752 = vmul.f32 %v6744, %v6728
    %v6753 = vmul.f32 %v6745, %v6729
    %v6754 = vmul.f32 %v6746, %v6730
    %v6755 = vmul.f32 %v6747, %v6731
    %v6756 = vmul.f32 %v6748, %v6732
    %v6757 = vmul.f32 %v6749, %v6733
    %v6758 = vmul.f32 %v6750, %v6726
    %v6759 = vmul.f32 %v6751, %v6727
    %v6760 = vmul.f32 %v6752, %v6728
    %v6761 = vmul.f32 %v6753, %v6729
    %v6762 = vmul.f32 %v6754, %v6730
    %v6763 = vmul.f32 %v6755, %v6731
    %v6764 = vmul.f32 %v6756, %v6732
    %v6765 = vmul.f32 %v6757, %v6733
    %v6766 = vadd.f32 %v6726, %v6758
    %v6767 = vadd.f32 %v6727, %v6759
    %v6768 = vadd.f32 %v6728, %v6760
    %v6769 = vadd.f32 %v6729, %v6761
    %v6770 = vadd.f32 %v6730, %v6762
    %v6771 = vadd.f32 %v6731, %v6763
    %v6772 = vadd.f32 %v6732, %v6764
    %v6773 = vadd.f32 %v6733, %v6765
    %v6774 = vmul.f32 %v6766, 0.7978846
    %v6775 = vmul.f32 %v6767, 0.7978846
    %v6776 = vmul.f32 %v6768, 0.7978846
    %v6777 = vmul.f32 %v6769, 0.7978846
    %v6778 = vmul.f32 %v6770, 0.7978846
    %v6779 = vmul.f32 %v6771, 0.7978846
    %v6780 = vmul.f32 %v6772, 0.7978846
    %v6781 = vmul.f32 %v6773, 0.7978846
    %v6782 = vtanh.pop %v6774
    %v6783 = vtanh.pop %v6775
    %v6784 = vtanh.pop %v6776
    %v6785 = vtanh.pop %v6777
    %v6786 = vtanh.pop %v6778
    %v6787 = vtanh.pop %v6779
    %v6788 = vtanh.pop %v6780
    %v6789 = vtanh.pop %v6781
    %v6790 = vadd.f32 %v6782, 1.0
    %v6791 = vadd.f32 %v6783, 1.0
    %v6792 = vadd.f32 %v6784, 1.0
    %v6793 = vadd.f32 %v6785, 1.0
    %v6794 = vadd.f32 %v6786, 1.0
    %v6795 = vadd.f32 %v6787, 1.0
    %v6796 = vadd.f32 %v6788, 1.0
    %v6797 = vadd.f32 %v6789, 1.0
    %v6798 = vmul.f32 %v6734, %v6790
    %v6799 = vmul.f32 %v6735, %v6791
    %v6800 = vmul.f32 %v6736, %v6792
    %v6801 = vmul.f32 %v6737, %v6793
    %v6802 = vmul.f32 %v6738, %v6794
    %v6803 = vmul.f32 %v6739, %v6795
    %v6804 = vmul.f32 %v6740, %v6796
    %v6805 = vmul.f32 %v6741, %v6797
    %v6806 = vld [vmem:[#allocation13] sm:$0xf]
    %v6807 = vld [vmem:[#allocation13 + $0x4] sm:$0xf]
    %v6808 = vld [vmem:[#allocation13 + $0x8] sm:$0xf]
    %v6809 = vld [vmem:[#allocation13 + $0xc] sm:$0xf]
    %v6810 = vld [vmem:[#allocation13 + $0x10] sm:$0xf]
    %v6811 = vld [vmem:[#allocation13 + $0x14] sm:$0xf]
    %v6812 = vld [vmem:[#allocation13 + $0x18] sm:$0xf]
    %v6813 = vld [vmem:[#allocation13 + $0x1c] sm:$0xf]
    %v6814 = vld [vmem:[#allocation13 + $0x20] sm:$0xf]
    %v6815 = vld [vmem:[#allocation13 + $0x24] sm:$0xf]
    %v6816 = vld [vmem:[#allocation13 + $0x28] sm:$0xf]
    %v6817 = vld [vmem:[#allocation13 + $0x2c] sm:$0xf]
    %v6818 = vld [vmem:[#allocation13 + $0x30] sm:$0xf]
    %v6819 = vld [vmem:[#allocation13 + $0x34] sm:$0xf]
    %v6820 = vld [vmem:[#allocation13 + $0x38] sm:$0xf]
    %v6821 = vld [vmem:[#allocation13 + $0x3c] sm:$0xf]
    %v6822 = vpack.c.bf16 %v6799, %v6798
    %v6823 = vpack.c.bf16 %v6801, %v6800
    %v6824 = vpack.c.bf16 %v6803, %v6802
    %v6825 = vpack.c.bf16 %v6805, %v6804
    %v6826 = vld [vmem:[#allocation2 + $0xc6] ss:$0 sm:$0xff]
    %v6843 = vunpack.c.l.b16 %v6806
    %v6844 = vunpack.c.l.b16 %v6807
    %v6845 = vunpack.c.l.b16 %v6808
    %v6846 = vunpack.c.l.b16 %v6809
    %v6847 = vunpack.c.l.b16 %v6810
    %v6848 = vunpack.c.l.b16 %v6811
    %v6849 = vunpack.c.l.b16 %v6812
    %v6850 = vunpack.c.l.b16 %v6813
    %v6851 = vunpack.c.l.b16 %v6814
    %v6852 = vunpack.c.l.b16 %v6815
    %v6853 = vunpack.c.l.b16 %v6816
    %v6854 = vunpack.c.l.b16 %v6817
    %v6855 = vunpack.c.l.b16 %v6818
    %v6856 = vunpack.c.l.b16 %v6819
    %v6857 = vunpack.c.l.b16 %v6820
    %v6858 = vunpack.c.l.b16 %v6821
    %v6859 = vpack.c.b16 %v6844, %v6843
    %v6860 = vpack.c.b16 %v6846, %v6845
    %v6861 = vpack.c.b16 %v6848, %v6847
    %v6862 = vpack.c.b16 %v6850, %v6849
    %v6863 = vpack.c.b16 %v6852, %v6851
    %v6864 = vpack.c.b16 %v6854, %v6853
    %v6865 = vpack.c.b16 %v6856, %v6855
    %v6866 = vpack.c.b16 %v6858, %v6857
    %6875 = vmatprep.subr.bf16.mxu0 0
    %6876 = vmatpush1.bf16.msra.mxu0 %v6866
    %6877 = vmatprep.subr.bf16.mxu0 0
    %6878 = vmatpush1.bf16.msra.mxu0 %v6865
    %6879 = vmatprep.subr.bf16.mxu0 0
    %6880 = vmatpush1.bf16.msra.mxu0 %v6864
    %6881 = vmatprep.subr.bf16.mxu0 0
    %6882 = vmatpush1.bf16.msra.mxu0 %v6863
    %6883 = vmatprep.subr.bf16.mxu0 0
    %6884 = vmatpush1.bf16.msra.mxu0 %v6862
    %6885 = vmatprep.subr.bf16.mxu0 0
    %6886 = vmatpush1.bf16.msra.mxu0 %v6861
    %6887 = vmatprep.subr.bf16.mxu0 0
    %6888 = vmatpush1.bf16.msra.mxu0 %v6860
    %6889 = vmatprep.subr.bf16.mxu0 0
    %6890 = vmatpush1.bf16.msra.mxu0 %v6859
    %6891 = vmatprep.subr.bf16.mxu0 0
    %6892 = vmatpush2.bf16.msra.mxu0 0
    %6893 = vmatprep.subr.bf16.mxu0 0
    %6894 = vmatpush2.bf16.msra.mxu0 0
    %6895 = vmatprep.subr.bf16.mxu0 0
    %6896 = vmatpush2.bf16.msra.mxu0 0
    %6897 = vmatprep.subr.bf16.mxu0 0
    %6898 = vmatpush2.bf16.msra.mxu0 0
    %6899 = vmatprep.subr.bf16.mxu0 0
    %6900 = vmatpush2.bf16.msra.mxu0 0
    %6901 = vmatprep.subr.bf16.mxu0 0
    %6902 = vmatpush2.bf16.msra.mxu0 0
    %6903 = vmatprep.subr.bf16.mxu0 0
    %6904 = vmatpush2.bf16.msra.mxu0 0
    %6905 = vmatprep.subr.bf16.mxu0 0
    %6906 = vmatpush2.bf16.msra.mxu0 0
    %6907 = vmatprep.mubr.bf16.mxu0 0
    %6908 = vmatmul.mubr.bf16.gmra.mxu0 %v6822
    %v6909 = vpop.f32.mrf.mxu0
    %v6910 = vadd.f32 %v6826, %v6909
    %v6911 = vpop.f32.mrf.mxu0
    %v6912 = vpop.f32.mrf.mxu0
    %v6913 = vadd.f32 %v6826, %v6912
    %v6914 = vpop.f32.mrf.mxu0
    %6915 = vmatprep.mubr.bf16.mxu0 0
    %6916 = vmatmul.mubr.bf16.gmra.mxu0 %v6823
    %v6917 = vpop.f32.mrf.mxu0
    %v6918 = vadd.f32 %v6826, %v6917
    %v6919 = vpop.f32.mrf.mxu0
    %v6920 = vpop.f32.mrf.mxu0
    %v6921 = vadd.f32 %v6826, %v6920
    %v6922 = vpop.f32.mrf.mxu0
    %6923 = vmatprep.mubr.bf16.mxu0 0
    %6924 = vmatmul.mubr.bf16.gmra.mxu0 %v6824
    %v6925 = vpop.f32.mrf.mxu0
    %v6926 = vadd.f32 %v6826, %v6925
    %v6927 = vpop.f32.mrf.mxu0
    %v6928 = vpop.f32.mrf.mxu0
    %v6929 = vadd.f32 %v6826, %v6928
    %v6930 = vpop.f32.mrf.mxu0
    %6931 = vmatprep.mubr.bf16.mxu0 0
    %6932 = vmatmul.mubr.bf16.gmra.mxu0 %v6825
    %v6933 = vpop.f32.mrf.mxu0
    %v6934 = vadd.f32 %v6826, %v6933
    %v6935 = vpop.f32.mrf.mxu0
    %v6936 = vpop.f32.mrf.mxu0
    %v6937 = vadd.f32 %v6826, %v6936
    %v6938 = vpop.f32.mrf.mxu0
    %6939 = vdwg.mxu0
    %v6940 = vld [vmem:[#allocation2 + $0xc7] ss:$0 sm:$0xff]
    %v6941 = vld [vmem:[#allocation2 + $0xf0] ss:$0 sm:$0xff]
    %6942 = vadd.xlane.f32.xlu0 %v6910
    %v6943 = vpop.xlane.xlu0 %6942
    %6944 = vadd.xlane.f32.xlu0 %v6913
    %v6945 = vpop.xlane.xlu0 %6944
    %6946 = vadd.xlane.f32.xlu0 %v6918
    %v6947 = vpop.xlane.xlu0 %6946
    %6948 = vadd.xlane.f32.xlu0 %v6921
    %v6949 = vpop.xlane.xlu0 %6948
    %6950 = vadd.xlane.f32.xlu0 %v6926
    %v6951 = vpop.xlane.xlu0 %6950
    %6952 = vadd.xlane.f32.xlu0 %v6929
    %v6953 = vpop.xlane.xlu0 %6952
    %6954 = vadd.xlane.f32.xlu0 %v6934
    %v6955 = vpop.xlane.xlu0 %6954
    %6956 = vadd.xlane.f32.xlu0 %v6937
    %v6957 = vpop.xlane.xlu0 %6956
    %v6958 = vmul.f32 %v6943, %v313
    %v6959 = vmul.f32 %v6945, %v313
    %v6960 = vmul.f32 %v6947, %v313
    %v6961 = vmul.f32 %v6949, %v313
    %v6962 = vmul.f32 %v6951, %v313
    %v6963 = vmul.f32 %v6953, %v313
    %v6964 = vmul.f32 %v6955, %v313
    %v6965 = vmul.f32 %v6957, %v313
    %v6966 = vsub.f32 %v6910, %v6958
    %v6967 = vsub.f32 %v6913, %v6959
    %v6968 = vsub.f32 %v6918, %v6960
    %v6969 = vsub.f32 %v6921, %v6961
    %v6970 = vsub.f32 %v6926, %v6962
    %v6971 = vsub.f32 %v6929, %v6963
    %v6972 = vsub.f32 %v6934, %v6964
    %v6973 = vsub.f32 %v6937, %v6965
    %v6974 = vmul.f32 %v6966, %v6966
    %v6975 = vmul.f32 %v6967, %v6967
    %v6976 = vmul.f32 %v6968, %v6968
    %v6977 = vmul.f32 %v6969, %v6969
    %v6978 = vmul.f32 %v6970, %v6970
    %v6979 = vmul.f32 %v6971, %v6971
    %v6980 = vmul.f32 %v6972, %v6972
    %v6981 = vmul.f32 %v6973, %v6973
    %6982 = vadd.xlane.f32.xlu0 %v6974
    %v6983 = vpop.xlane.xlu0 %6982
    %6984 = vadd.xlane.f32.xlu0 %v6975
    %v6985 = vpop.xlane.xlu0 %6984
    %6986 = vadd.xlane.f32.xlu0 %v6976
    %v6987 = vpop.xlane.xlu0 %6986
    %6988 = vadd.xlane.f32.xlu0 %v6977
    %v6989 = vpop.xlane.xlu0 %6988
    %6990 = vadd.xlane.f32.xlu0 %v6978
    %v6991 = vpop.xlane.xlu0 %6990
    %6992 = vadd.xlane.f32.xlu0 %v6979
    %v6993 = vpop.xlane.xlu0 %6992
    %6994 = vadd.xlane.f32.xlu0 %v6980
    %v6995 = vpop.xlane.xlu0 %6994
    %6996 = vadd.xlane.f32.xlu0 %v6981
    %v6997 = vpop.xlane.xlu0 %6996
    %v6998 = vmul.f32 %v6983, %v313
    %v6999 = vmul.f32 %v6985, %v313
    %v7000 = vmul.f32 %v6987, %v313
    %v7001 = vmul.f32 %v6989, %v313
    %v7002 = vmul.f32 %v6991, %v313
    %v7003 = vmul.f32 %v6993, %v313
    %v7004 = vmul.f32 %v6995, %v313
    %v7005 = vmul.f32 %v6997, %v313
    %v7006 = vadd.f32 %v6998, 1e-05
    %v7007 = vadd.f32 %v6999, 1e-05
    %v7008 = vadd.f32 %v7000, 1e-05
    %v7009 = vadd.f32 %v7001, 1e-05
    %v7010 = vadd.f32 %v7002, 1e-05
    %v7011 = vadd.f32 %v7003, 1e-05
    %v7012 = vadd.f32 %v7004, 1e-05
    %v7013 = vadd.f32 %v7005, 1e-05
    %v7014 = vrsqrt.pop %v7006
    %v7015 = vrsqrt.pop %v7007
    %v7016 = vrsqrt.pop %v7008
    %v7017 = vrsqrt.pop %v7009
    %v7018 = vrsqrt.pop %v7010
    %v7019 = vrsqrt.pop %v7011
    %v7020 = vrsqrt.pop %v7012
    %v7021 = vrsqrt.pop %v7013
    %v7022 = vmul.f32 %v6966, %v7014
    %v7023 = vmul.f32 %v6967, %v7015
    %v7024 = vmul.f32 %v6968, %v7016
    %v7025 = vmul.f32 %v6969, %v7017
    %v7026 = vmul.f32 %v6970, %v7018
    %v7027 = vmul.f32 %v6971, %v7019
    %v7028 = vmul.f32 %v6972, %v7020
    %v7029 = vmul.f32 %v6973, %v7021
    %v7030 = vmul.f32 %v7022, %v6940
    %v7031 = vmul.f32 %v7023, %v6940
    %v7032 = vmul.f32 %v7024, %v6940
    %v7033 = vmul.f32 %v7025, %v6940
    %v7034 = vmul.f32 %v7026, %v6940
    %v7035 = vmul.f32 %v7027, %v6940
    %v7036 = vmul.f32 %v7028, %v6940
    %v7037 = vmul.f32 %v7029, %v6940
    %v7038 = vadd.f32 %v7030, %v6941
    %v7039 = vadd.f32 %v7031, %v6941
    %v7040 = vadd.f32 %v7032, %v6941
    %v7041 = vadd.f32 %v7033, %v6941
    %v7042 = vadd.f32 %v7034, %v6941
    %v7043 = vadd.f32 %v7035, %v6941
    %v7044 = vadd.f32 %v7036, %v6941
    %v7045 = vadd.f32 %v7037, %v6941
    %v7046 = vmul.f32 %v7038, 0.5
    %v7047 = vmul.f32 %v7039, 0.5
    %v7048 = vmul.f32 %v7040, 0.5
    %v7049 = vmul.f32 %v7041, 0.5
    %v7050 = vmul.f32 %v7042, 0.5
    %v7051 = vmul.f32 %v7043, 0.5
    %v7052 = vmul.f32 %v7044, 0.5
    %v7053 = vmul.f32 %v7045, 0.5
    %v7054 = vmul.f32 %v7038, 0.044715
    %v7055 = vmul.f32 %v7039, 0.044715
    %v7056 = vmul.f32 %v7040, 0.044715
    %v7057 = vmul.f32 %v7041, 0.044715
    %v7058 = vmul.f32 %v7042, 0.044715
    %v7059 = vmul.f32 %v7043, 0.044715
    %v7060 = vmul.f32 %v7044, 0.044715
    %v7061 = vmul.f32 %v7045, 0.044715
    %v7062 = vmul.f32 %v7054, %v7038
    %v7063 = vmul.f32 %v7055, %v7039
    %v7064 = vmul.f32 %v7056, %v7040
    %v7065 = vmul.f32 %v7057, %v7041
    %v7066 = vmul.f32 %v7058, %v7042
    %v7067 = vmul.f32 %v7059, %v7043
    %v7068 = vmul.f32 %v7060, %v7044
    %v7069 = vmul.f32 %v7061, %v7045
    %v7070 = vmul.f32 %v7062, %v7038
    %v7071 = vmul.f32 %v7063, %v7039
    %v7072 = vmul.f32 %v7064, %v7040
    %v7073 = vmul.f32 %v7065, %v7041
    %v7074 = vmul.f32 %v7066, %v7042
    %v7075 = vmul.f32 %v7067, %v7043
    %v7076 = vmul.f32 %v7068, %v7044
    %v7077 = vmul.f32 %v7069, %v7045
    %v7078 = vadd.f32 %v7038, %v7070
    %v7079 = vadd.f32 %v7039, %v7071
    %v7080 = vadd.f32 %v7040, %v7072
    %v7081 = vadd.f32 %v7041, %v7073
    %v7082 = vadd.f32 %v7042, %v7074
    %v7083 = vadd.f32 %v7043, %v7075
    %v7084 = vadd.f32 %v7044, %v7076
    %v7085 = vadd.f32 %v7045, %v7077
    %v7086 = vmul.f32 %v7078, 0.7978846
    %v7087 = vmul.f32 %v7079, 0.7978846
    %v7088 = vmul.f32 %v7080, 0.7978846
    %v7089 = vmul.f32 %v7081, 0.7978846
    %v7090 = vmul.f32 %v7082, 0.7978846
    %v7091 = vmul.f32 %v7083, 0.7978846
    %v7092 = vmul.f32 %v7084, 0.7978846
    %v7093 = vmul.f32 %v7085, 0.7978846
    %v7094 = vtanh.pop %v7086
    %v7095 = vtanh.pop %v7087
    %v7096 = vtanh.pop %v7088
    %v7097 = vtanh.pop %v7089
    %v7098 = vtanh.pop %v7090
    %v7099 = vtanh.pop %v7091
    %v7100 = vtanh.pop %v7092
    %v7101 = vtanh.pop %v7093
    %v7102 = vadd.f32 %v7094, 1.0
    %v7103 = vadd.f32 %v7095, 1.0
    %v7104 = vadd.f32 %v7096, 1.0
    %v7105 = vadd.f32 %v7097, 1.0
    %v7106 = vadd.f32 %v7098, 1.0
    %v7107 = vadd.f32 %v7099, 1.0
    %v7108 = vadd.f32 %v7100, 1.0
    %v7109 = vadd.f32 %v7101, 1.0
    %v7110 = vmul.f32 %v7046, %v7102
    %v7111 = vmul.f32 %v7047, %v7103
    %v7112 = vmul.f32 %v7048, %v7104
    %v7113 = vmul.f32 %v7049, %v7105
    %v7114 = vmul.f32 %v7050, %v7106
    %v7115 = vmul.f32 %v7051, %v7107
    %v7116 = vmul.f32 %v7052, %v7108
    %v7117 = vmul.f32 %v7053, %v7109
    %v7118 = vld [vmem:[%s11] sm:$0xf]
    %v7119 = vld [vmem:[%s11 + $0x4] sm:$0xf]
    %v7120 = vld [vmem:[%s11 + $0x8] sm:$0xf]
    %v7121 = vld [vmem:[%s11 + $0xc] sm:$0xf]
    %v7122 = vld [vmem:[%s11 + $0x10] sm:$0xf]
    %v7123 = vld [vmem:[%s11 + $0x14] sm:$0xf]
    %v7124 = vld [vmem:[%s11 + $0x18] sm:$0xf]
    %v7125 = vld [vmem:[%s11 + $0x1c] sm:$0xf]
    %v7126 = vld [vmem:[%s11 + $0x20] sm:$0xf]
    %v7127 = vld [vmem:[%s11 + $0x24] sm:$0xf]
    %v7128 = vld [vmem:[%s11 + $0x28] sm:$0xf]
    %v7129 = vld [vmem:[%s11 + $0x2c] sm:$0xf]
    %v7130 = vld [vmem:[%s11 + $0x30] sm:$0xf]
    %v7131 = vld [vmem:[%s11 + $0x34] sm:$0xf]
    %v7132 = vld [vmem:[%s11 + $0x38] sm:$0xf]
    %v7133 = vld [vmem:[%s11 + $0x3c] sm:$0xf]
    %v7134 = vpack.c.bf16 %v7111, %v7110
    %v7135 = vpack.c.bf16 %v7113, %v7112
    %v7136 = vpack.c.bf16 %v7115, %v7114
    %v7137 = vpack.c.bf16 %v7117, %v7116
    %v7138 = vld [vmem:[#allocation2 + $0xf1] ss:$0 sm:$0xff]
    %v7155 = vunpack.c.l.b16 %v7118
    %v7156 = vunpack.c.l.b16 %v7119
    %v7157 = vunpack.c.l.b16 %v7120
    %v7158 = vunpack.c.l.b16 %v7121
    %v7159 = vunpack.c.l.b16 %v7122
    %v7160 = vunpack.c.l.b16 %v7123
    %v7161 = vunpack.c.l.b16 %v7124
    %v7162 = vunpack.c.l.b16 %v7125
    %v7163 = vunpack.c.l.b16 %v7126
    %v7164 = vunpack.c.l.b16 %v7127
    %v7165 = vunpack.c.l.b16 %v7128
    %v7166 = vunpack.c.l.b16 %v7129
    %v7167 = vunpack.c.l.b16 %v7130
    %v7168 = vunpack.c.l.b16 %v7131
    %v7169 = vunpack.c.l.b16 %v7132
    %v7170 = vunpack.c.l.b16 %v7133
    %v7171 = vpack.c.b16 %v7156, %v7155
    %v7172 = vpack.c.b16 %v7158, %v7157
    %v7173 = vpack.c.b16 %v7160, %v7159
    %v7174 = vpack.c.b16 %v7162, %v7161
    %v7175 = vpack.c.b16 %v7164, %v7163
    %v7176 = vpack.c.b16 %v7166, %v7165
    %v7177 = vpack.c.b16 %v7168, %v7167
    %v7178 = vpack.c.b16 %v7170, %v7169
    %7187 = vmatprep.subr.bf16.mxu0 0
    %7188 = vmatpush1.bf16.msra.mxu0 %v7178
    %7189 = vmatprep.subr.bf16.mxu0 0
    %7190 = vmatpush1.bf16.msra.mxu0 %v7177
    %7191 = vmatprep.subr.bf16.mxu0 0
    %7192 = vmatpush1.bf16.msra.mxu0 %v7176
    %7193 = vmatprep.subr.bf16.mxu0 0
    %7194 = vmatpush1.bf16.msra.mxu0 %v7175
    %7195 = vmatprep.subr.bf16.mxu0 0
    %7196 = vmatpush1.bf16.msra.mxu0 %v7174
    %7197 = vmatprep.subr.bf16.mxu0 0
    %7198 = vmatpush1.bf16.msra.mxu0 %v7173
    %7199 = vmatprep.subr.bf16.mxu0 0
    %7200 = vmatpush1.bf16.msra.mxu0 %v7172
    %7201 = vmatprep.subr.bf16.mxu0 0
    %7202 = vmatpush1.bf16.msra.mxu0 %v7171
    %7203 = vmatprep.subr.bf16.mxu0 0
    %7204 = vmatpush2.bf16.msra.mxu0 0
    %7205 = vmatprep.subr.bf16.mxu0 0
    %7206 = vmatpush2.bf16.msra.mxu0 0
    %7207 = vmatprep.subr.bf16.mxu0 0
    %7208 = vmatpush2.bf16.msra.mxu0 0
    %7209 = vmatprep.subr.bf16.mxu0 0
    %7210 = vmatpush2.bf16.msra.mxu0 0
    %7211 = vmatprep.subr.bf16.mxu0 0
    %7212 = vmatpush2.bf16.msra.mxu0 0
    %7213 = vmatprep.subr.bf16.mxu0 0
    %7214 = vmatpush2.bf16.msra.mxu0 0
    %7215 = vmatprep.subr.bf16.mxu0 0
    %7216 = vmatpush2.bf16.msra.mxu0 0
    %7217 = vmatprep.subr.bf16.mxu0 0
    %7218 = vmatpush2.bf16.msra.mxu0 0
    %7219 = vmatprep.mubr.bf16.mxu0 0
    %7220 = vmatmul.mubr.bf16.gmra.mxu0 %v7134
    %v7221 = vpop.f32.mrf.mxu0
    %v7222 = vadd.f32 %v7138, %v7221
    %v7223 = vpop.f32.mrf.mxu0
    %v7224 = vpop.f32.mrf.mxu0
    %v7225 = vadd.f32 %v7138, %v7224
    %v7226 = vpop.f32.mrf.mxu0
    %7227 = vmatprep.mubr.bf16.mxu0 0
    %7228 = vmatmul.mubr.bf16.gmra.mxu0 %v7135
    %v7229 = vpop.f32.mrf.mxu0
    %v7230 = vadd.f32 %v7138, %v7229
    %v7231 = vpop.f32.mrf.mxu0
    %v7232 = vpop.f32.mrf.mxu0
    %v7233 = vadd.f32 %v7138, %v7232
    %v7234 = vpop.f32.mrf.mxu0
    %7235 = vmatprep.mubr.bf16.mxu0 0
    %7236 = vmatmul.mubr.bf16.gmra.mxu0 %v7136
    %v7237 = vpop.f32.mrf.mxu0
    %v7238 = vadd.f32 %v7138, %v7237
    %v7239 = vpop.f32.mrf.mxu0
    %v7240 = vpop.f32.mrf.mxu0
    %v7241 = vadd.f32 %v7138, %v7240
    %v7242 = vpop.f32.mrf.mxu0
    %7243 = vmatprep.mubr.bf16.mxu0 0
    %7244 = vmatmul.mubr.bf16.gmra.mxu0 %v7137
    %v7245 = vpop.f32.mrf.mxu0
    %v7246 = vadd.f32 %v7138, %v7245
    %v7247 = vpop.f32.mrf.mxu0
    %v7248 = vpop.f32.mrf.mxu0
    %v7249 = vadd.f32 %v7138, %v7248
    %v7250 = vpop.f32.mrf.mxu0
    %7251 = vdwg.mxu0
    %v7252 = vld [vmem:[#allocation2 + $0xf2] ss:$0 sm:$0xff]
    %v7253 = vld [vmem:[#allocation2 + $0xf3] ss:$0 sm:$0xff]
    %vm7254 = vcmask 523264
    %v7255 = vsel %vm7254, %v7222, 0.0
    %7256 = vadd.xlane.f32.xlu0 %v7255
    %v7257 = vpop.xlane.xlu0 %7256
    %v7258 = vsel %vm7254, %v7225, 0.0
    %7259 = vadd.xlane.f32.xlu0 %v7258
    %v7260 = vpop.xlane.xlu0 %7259
    %v7261 = vsel %vm7254, %v7230, 0.0
    %7262 = vadd.xlane.f32.xlu0 %v7261
    %v7263 = vpop.xlane.xlu0 %7262
    %v7264 = vsel %vm7254, %v7233, 0.0
    %7265 = vadd.xlane.f32.xlu0 %v7264
    %v7266 = vpop.xlane.xlu0 %7265
    %v7267 = vsel %vm7254, %v7238, 0.0
    %7268 = vadd.xlane.f32.xlu0 %v7267
    %v7269 = vpop.xlane.xlu0 %7268
    %v7270 = vsel %vm7254, %v7241, 0.0
    %7271 = vadd.xlane.f32.xlu0 %v7270
    %v7272 = vpop.xlane.xlu0 %7271
    %v7273 = vsel %vm7254, %v7246, 0.0
    %7274 = vadd.xlane.f32.xlu0 %v7273
    %v7275 = vpop.xlane.xlu0 %7274
    %v7276 = vsel %vm7254, %v7249, 0.0
    %7277 = vadd.xlane.f32.xlu0 %v7276
    %v7278 = vpop.xlane.xlu0 %7277
    %v7279 = vrcp.pop 64.0
    %v7280 = vmul.f32 %v7257, %v7279
    %v7281 = vmul.f32 %v7260, %v7279
    %v7282 = vmul.f32 %v7263, %v7279
    %v7283 = vmul.f32 %v7266, %v7279
    %v7284 = vmul.f32 %v7269, %v7279
    %v7285 = vmul.f32 %v7272, %v7279
    %v7286 = vmul.f32 %v7275, %v7279
    %v7287 = vmul.f32 %v7278, %v7279
    %v7288 = vsub.f32 %v7222, %v7280
    %v7289 = vsub.f32 %v7225, %v7281
    %v7290 = vsub.f32 %v7230, %v7282
    %v7291 = vsub.f32 %v7233, %v7283
    %v7292 = vsub.f32 %v7238, %v7284
    %v7293 = vsub.f32 %v7241, %v7285
    %v7294 = vsub.f32 %v7246, %v7286
    %v7295 = vsub.f32 %v7249, %v7287
    %v7296 = vmul.f32 %v7288, %v7288
    %v7297 = vmul.f32 %v7289, %v7289
    %v7298 = vmul.f32 %v7290, %v7290
    %v7299 = vmul.f32 %v7291, %v7291
    %v7300 = vmul.f32 %v7292, %v7292
    %v7301 = vmul.f32 %v7293, %v7293
    %v7302 = vmul.f32 %v7294, %v7294
    %v7303 = vmul.f32 %v7295, %v7295
    %v7304 = vsel %vm7254, %v7296, 0.0
    %7305 = vadd.xlane.f32.xlu0 %v7304
    %v7306 = vpop.xlane.xlu0 %7305
    %v7307 = vsel %vm7254, %v7297, 0.0
    %7308 = vadd.xlane.f32.xlu0 %v7307
    %v7309 = vpop.xlane.xlu0 %7308
    %v7310 = vsel %vm7254, %v7298, 0.0
    %7311 = vadd.xlane.f32.xlu0 %v7310
    %v7312 = vpop.xlane.xlu0 %7311
    %v7313 = vsel %vm7254, %v7299, 0.0
    %7314 = vadd.xlane.f32.xlu0 %v7313
    %v7315 = vpop.xlane.xlu0 %7314
    %v7316 = vsel %vm7254, %v7300, 0.0
    %7317 = vadd.xlane.f32.xlu0 %v7316
    %v7318 = vpop.xlane.xlu0 %7317
    %v7319 = vsel %vm7254, %v7301, 0.0
    %7320 = vadd.xlane.f32.xlu0 %v7319
    %v7321 = vpop.xlane.xlu0 %7320
    %v7322 = vsel %vm7254, %v7302, 0.0
    %7323 = vadd.xlane.f32.xlu0 %v7322
    %v7324 = vpop.xlane.xlu0 %7323
    %v7325 = vsel %vm7254, %v7303, 0.0
    %7326 = vadd.xlane.f32.xlu0 %v7325
    %v7327 = vpop.xlane.xlu0 %7326
    %v7328 = vmul.f32 %v7306, %v7279
    %v7329 = vmul.f32 %v7309, %v7279
    %v7330 = vmul.f32 %v7312, %v7279
    %v7331 = vmul.f32 %v7315, %v7279
    %v7332 = vmul.f32 %v7318, %v7279
    %v7333 = vmul.f32 %v7321, %v7279
    %v7334 = vmul.f32 %v7324, %v7279
    %v7335 = vmul.f32 %v7327, %v7279
    %v7336 = vadd.f32 %v7328, 1e-05
    %v7337 = vadd.f32 %v7329, 1e-05
    %v7338 = vadd.f32 %v7330, 1e-05
    %v7339 = vadd.f32 %v7331, 1e-05
    %v7340 = vadd.f32 %v7332, 1e-05
    %v7341 = vadd.f32 %v7333, 1e-05
    %v7342 = vadd.f32 %v7334, 1e-05
    %v7343 = vadd.f32 %v7335, 1e-05
    %v7344 = vrsqrt.pop %v7336
    %v7345 = vrsqrt.pop %v7337
    %v7346 = vrsqrt.pop %v7338
    %v7347 = vrsqrt.pop %v7339
    %v7348 = vrsqrt.pop %v7340
    %v7349 = vrsqrt.pop %v7341
    %v7350 = vrsqrt.pop %v7342
    %v7351 = vrsqrt.pop %v7343
    %v7352 = vmul.f32 %v7288, %v7344
    %v7353 = vmul.f32 %v7289, %v7345
    %v7354 = vmul.f32 %v7290, %v7346
    %v7355 = vmul.f32 %v7291, %v7347
    %v7356 = vmul.f32 %v7292, %v7348
    %v7357 = vmul.f32 %v7293, %v7349
    %v7358 = vmul.f32 %v7294, %v7350
    %v7359 = vmul.f32 %v7295, %v7351
    %v7360 = vmul.f32 %v7352, %v7252
    %v7361 = vmul.f32 %v7353, %v7252
    %v7362 = vmul.f32 %v7354, %v7252
    %v7363 = vmul.f32 %v7355, %v7252
    %v7364 = vmul.f32 %v7356, %v7252
    %v7365 = vmul.f32 %v7357, %v7252
    %v7366 = vmul.f32 %v7358, %v7252
    %v7367 = vmul.f32 %v7359, %v7252
    %v7368 = vadd.f32 %v7360, %v7253
    %v7369 = vadd.f32 %v7361, %v7253
    %v7370 = vadd.f32 %v7362, %v7253
    %v7371 = vadd.f32 %v7363, %v7253
    %v7372 = vadd.f32 %v7364, %v7253
    %v7373 = vadd.f32 %v7365, %v7253
    %v7374 = vadd.f32 %v7366, %v7253
    %v7375 = vadd.f32 %v7367, %v7253
    %v7376 = vmul.f32 %v7368, 0.5
    %v7377 = vmul.f32 %v7369, 0.5
    %v7378 = vmul.f32 %v7370, 0.5
    %v7379 = vmul.f32 %v7371, 0.5
    %v7380 = vmul.f32 %v7372, 0.5
    %v7381 = vmul.f32 %v7373, 0.5
    %v7382 = vmul.f32 %v7374, 0.5
    %v7383 = vmul.f32 %v7375, 0.5
    %v7384 = vmul.f32 %v7368, 0.044715
    %v7385 = vmul.f32 %v7369, 0.044715
    %v7386 = vmul.f32 %v7370, 0.044715
    %v7387 = vmul.f32 %v7371, 0.044715
    %v7388 = vmul.f32 %v7372, 0.044715
    %v7389 = vmul.f32 %v7373, 0.044715
    %v7390 = vmul.f32 %v7374, 0.044715
    %v7391 = vmul.f32 %v7375, 0.044715
    %v7392 = vmul.f32 %v7384, %v7368
    %v7393 = vmul.f32 %v7385, %v7369
    %v7394 = vmul.f32 %v7386, %v7370
    %v7395 = vmul.f32 %v7387, %v7371
    %v7396 = vmul.f32 %v7388, %v7372
    %v7397 = vmul.f32 %v7389, %v7373
    %v7398 = vmul.f32 %v7390, %v7374
    %v7399 = vmul.f32 %v7391, %v7375
    %v7400 = vmul.f32 %v7392, %v7368
    %v7401 = vmul.f32 %v7393, %v7369
    %v7402 = vmul.f32 %v7394, %v7370
    %v7403 = vmul.f32 %v7395, %v7371
    %v7404 = vmul.f32 %v7396, %v7372
    %v7405 = vmul.f32 %v7397, %v7373
    %v7406 = vmul.f32 %v7398, %v7374
    %v7407 = vmul.f32 %v7399, %v7375
    %v7408 = vadd.f32 %v7368, %v7400
    %v7409 = vadd.f32 %v7369, %v7401
    %v7410 = vadd.f32 %v7370, %v7402
    %v7411 = vadd.f32 %v7371, %v7403
    %v7412 = vadd.f32 %v7372, %v7404
    %v7413 = vadd.f32 %v7373, %v7405
    %v7414 = vadd.f32 %v7374, %v7406
    %v7415 = vadd.f32 %v7375, %v7407
    %v7416 = vmul.f32 %v7408, 0.7978846
    %v7417 = vmul.f32 %v7409, 0.7978846
    %v7418 = vmul.f32 %v7410, 0.7978846
    %v7419 = vmul.f32 %v7411, 0.7978846
    %v7420 = vmul.f32 %v7412, 0.7978846
    %v7421 = vmul.f32 %v7413, 0.7978846
    %v7422 = vmul.f32 %v7414, 0.7978846
    %v7423 = vmul.f32 %v7415, 0.7978846
    %v7424 = vtanh.pop %v7416
    %v7425 = vtanh.pop %v7417
    %v7426 = vtanh.pop %v7418
    %v7427 = vtanh.pop %v7419
    %v7428 = vtanh.pop %v7420
    %v7429 = vtanh.pop %v7421
    %v7430 = vtanh.pop %v7422
    %v7431 = vtanh.pop %v7423
    %v7432 = vadd.f32 %v7424, 1.0
    %v7433 = vadd.f32 %v7425, 1.0
    %v7434 = vadd.f32 %v7426, 1.0
    %v7435 = vadd.f32 %v7427, 1.0
    %v7436 = vadd.f32 %v7428, 1.0
    %v7437 = vadd.f32 %v7429, 1.0
    %v7438 = vadd.f32 %v7430, 1.0
    %v7439 = vadd.f32 %v7431, 1.0
    %v7440 = vmul.f32 %v7376, %v7432
    %v7441 = vmul.f32 %v7377, %v7433
    %v7442 = vmul.f32 %v7378, %v7434
    %v7443 = vmul.f32 %v7379, %v7435
    %v7444 = vmul.f32 %v7380, %v7436
    %v7445 = vmul.f32 %v7381, %v7437
    %v7446 = vmul.f32 %v7382, %v7438
    %v7447 = vmul.f32 %v7383, %v7439
    %v7448 = vld [vmem:[%s12] sm:$0xf]
    %v7449 = vld [vmem:[%s12 + $0x4] sm:$0xf]
    %v7450 = vld [vmem:[%s12 + $0x8] sm:$0xf]
    %v7451 = vld [vmem:[%s12 + $0xc] sm:$0xf]
    %v7452 = vld [vmem:[%s12 + $0x10] sm:$0xf]
    %v7453 = vld [vmem:[%s12 + $0x14] sm:$0xf]
    %v7454 = vld [vmem:[%s12 + $0x18] sm:$0xf]
    %v7455 = vld [vmem:[%s12 + $0x1c] sm:$0xf]
    %v7456 = vpack.c.bf16 %v7441, %v7440
    %v7457 = vpack.c.bf16 %v7443, %v7442
    %v7458 = vpack.c.bf16 %v7445, %v7444
    %v7459 = vpack.c.bf16 %v7447, %v7446
    %v7460 = vld [vmem:[#allocation2 + $0xf4] ss:$0 sm:$0xff]
    %v7469 = vunpack.c.l.b16 %v7448
    %v7470 = vunpack.c.l.b16 %v7449
    %v7471 = vunpack.c.l.b16 %v7450
    %v7472 = vunpack.c.l.b16 %v7451
    %v7473 = vunpack.c.l.b16 %v7452
    %v7474 = vunpack.c.l.b16 %v7453
    %v7475 = vunpack.c.l.b16 %v7454
    %v7476 = vunpack.c.l.b16 %v7455
    %v7477 = vpack.c.b16 %v7470, %v7469
    %v7478 = vpack.c.b16 %v7472, %v7471
    %v7479 = vpack.c.b16 %v7474, %v7473
    %v7480 = vpack.c.b16 %v7476, %v7475
    %v7486 = vsel %vm7254, %v7456, 0
    %v7489 = vsel %vm7254, %v7457, 0
    %v7492 = vsel %vm7254, %v7458, 0
    %v7495 = vsel %vm7254, %v7459, 0
    %7497 = vmatprep.subr.bf16.mxu0 0
    %7498 = vmatpush1.bf16.msra.mxu0 0
    %7499 = vmatprep.subr.bf16.mxu0 0
    %7500 = vmatpush1.bf16.msra.mxu0 0
    %7501 = vmatprep.subr.bf16.mxu0 0
    %7502 = vmatpush1.bf16.msra.mxu0 0
    %7503 = vmatprep.subr.bf16.mxu0 0
    %7504 = vmatpush1.bf16.msra.mxu0 0
    %7505 = vmatprep.subr.bf16.mxu0 0
    %7506 = vmatpush1.bf16.msra.mxu0 %v7480
    %7507 = vmatprep.subr.bf16.mxu0 0
    %7508 = vmatpush1.bf16.msra.mxu0 %v7479
    %7509 = vmatprep.subr.bf16.mxu0 0
    %7510 = vmatpush1.bf16.msra.mxu0 %v7478
    %7511 = vmatprep.subr.bf16.mxu0 0
    %7512 = vmatpush1.bf16.msra.mxu0 %v7477
    %7513 = vmatprep.subr.bf16.mxu0 0
    %7514 = vmatpush2.bf16.msra.mxu0 0
    %7515 = vmatprep.subr.bf16.mxu0 0
    %7516 = vmatpush2.bf16.msra.mxu0 0
    %7517 = vmatprep.subr.bf16.mxu0 0
    %7518 = vmatpush2.bf16.msra.mxu0 0
    %7519 = vmatprep.subr.bf16.mxu0 0
    %7520 = vmatpush2.bf16.msra.mxu0 0
    %7521 = vmatprep.subr.bf16.mxu0 0
    %7522 = vmatpush2.bf16.msra.mxu0 0
    %7523 = vmatprep.subr.bf16.mxu0 0
    %7524 = vmatpush2.bf16.msra.mxu0 0
    %7525 = vmatprep.subr.bf16.mxu0 0
    %7526 = vmatpush2.bf16.msra.mxu0 0
    %7527 = vmatprep.subr.bf16.mxu0 0
    %7528 = vmatpush2.bf16.msra.mxu0 0
    %7529 = vmatprep.mubr.bf16.mxu0 0
    %7530 = vmatmul.mubr.bf16.gmra.mxu0 %v7486
    %v7531 = vpop.f32.mrf.mxu0
    %v7532 = vadd.f32 %v7460, %v7531
    %v7533 = vpop.f32.mrf.mxu0
    %v7534 = vpop.f32.mrf.mxu0
    %v7535 = vadd.f32 %v7460, %v7534
    %v7536 = vpop.f32.mrf.mxu0
    %7537 = vmatprep.mubr.bf16.mxu0 0
    %7538 = vmatmul.mubr.bf16.gmra.mxu0 %v7489
    %v7539 = vpop.f32.mrf.mxu0
    %v7540 = vadd.f32 %v7460, %v7539
    %v7541 = vpop.f32.mrf.mxu0
    %v7542 = vpop.f32.mrf.mxu0
    %v7543 = vadd.f32 %v7460, %v7542
    %v7544 = vpop.f32.mrf.mxu0
    %7545 = vmatprep.mubr.bf16.mxu0 0
    %7546 = vmatmul.mubr.bf16.gmra.mxu0 %v7492
    %v7547 = vpop.f32.mrf.mxu0
    %v7548 = vadd.f32 %v7460, %v7547
    %v7549 = vpop.f32.mrf.mxu0
    %v7550 = vpop.f32.mrf.mxu0
    %v7551 = vadd.f32 %v7460, %v7550
    %v7552 = vpop.f32.mrf.mxu0
    %7553 = vmatprep.mubr.bf16.mxu0 0
    %7554 = vmatmul.mubr.bf16.gmra.mxu0 %v7495
    %v7555 = vpop.f32.mrf.mxu0
    %v7556 = vadd.f32 %v7460, %v7555
    %v7557 = vpop.f32.mrf.mxu0
    %v7558 = vpop.f32.mrf.mxu0
    %v7559 = vadd.f32 %v7460, %v7558
    %v7560 = vpop.f32.mrf.mxu0
    %7561 = vdwg.mxu0
    %v7562 = vsub.f32 0.0, %v7532
    %v7563 = vsub.f32 0.0, %v7535
    %v7564 = vsub.f32 0.0, %v7540
    %v7565 = vsub.f32 0.0, %v7543
    %v7566 = vsub.f32 0.0, %v7548
    %v7567 = vsub.f32 0.0, %v7551
    %v7568 = vsub.f32 0.0, %v7556
    %v7569 = vsub.f32 0.0, %v7559
    %v7570 = vmul.f32 %v7562, 1.442695
    %v7571 = vpow.pop %v7570
    %v7572 = vmul.f32 %v7563, 1.442695
    %v7573 = vpow.pop %v7572
    %v7574 = vmul.f32 %v7564, 1.442695
    %v7575 = vpow.pop %v7574
    %v7576 = vmul.f32 %v7565, 1.442695
    %v7577 = vpow.pop %v7576
    %v7578 = vmul.f32 %v7566, 1.442695
    %v7579 = vpow.pop %v7578
    %v7580 = vmul.f32 %v7567, 1.442695
    %v7581 = vpow.pop %v7580
    %v7582 = vmul.f32 %v7568, 1.442695
    %v7583 = vpow.pop %v7582
    %v7584 = vmul.f32 %v7569, 1.442695
    %v7585 = vpow.pop %v7584
    %v7586 = vadd.f32 %v7571, 1.0
    %v7587 = vadd.f32 %v7573, 1.0
    %v7588 = vadd.f32 %v7575, 1.0
    %v7589 = vadd.f32 %v7577, 1.0
    %v7590 = vadd.f32 %v7579, 1.0
    %v7591 = vadd.f32 %v7581, 1.0
    %v7592 = vadd.f32 %v7583, 1.0
    %v7593 = vadd.f32 %v7585, 1.0
    %v7594 = vrcp.pop %v7586
    %v7595 = vmul.f32 1.0, %v7594
    %v7596 = vrcp.pop %v7587
    %v7597 = vmul.f32 1.0, %v7596
    %v7598 = vrcp.pop %v7588
    %v7599 = vmul.f32 1.0, %v7598
    %v7600 = vrcp.pop %v7589
    %v7601 = vmul.f32 1.0, %v7600
    %v7602 = vrcp.pop %v7590
    %v7603 = vmul.f32 1.0, %v7602
    %v7604 = vrcp.pop %v7591
    %v7605 = vmul.f32 1.0, %v7604
    %v7606 = vrcp.pop %v7592
    %v7607 = vmul.f32 1.0, %v7606
    %v7608 = vrcp.pop %v7593
    %v7609 = vmul.f32 1.0, %v7608
    %vm7610 = vcmask 7168
    %7611 = vst.msk [vmem:[%s13] sm:$0xff] %vm7610, %v7595
    %7612 = vst.msk [vmem:[%s13 + $0x8] sm:$0xff] %vm7610, %v7597
    %7613 = vst.msk [vmem:[%s13 + $0x10] sm:$0xff] %vm7610, %v7599
    %7614 = vst.msk [vmem:[%s13 + $0x18] sm:$0xff] %vm7610, %v7601
    %7615 = vst.msk [vmem:[%s13 + $0x20] sm:$0xff] %vm7610, %v7603
    %7616 = vst.msk [vmem:[%s13 + $0x28] sm:$0xff] %vm7610, %v7605
    %7617 = vst.msk [vmem:[%s13 + $0x30] sm:$0xff] %vm7610, %v7607
    %7618 = vst.msk [vmem:[%s13 + $0x38] sm:$0xff] %vm7610, %v7609
    // Predicated region
    $region86: #{tpu_custom_call.1} parent=1 // pred_check
      _
    $region87: #{tpu_custom_call.1} parent=1 // pred_check_branch
      %7620 = sbr.rel (0) target = $region89
    $region88: #{tpu_custom_call.1} parent=1 // pred_region
      _
    $region89: #{tpu_custom_call.1} parent=1 // pred_fallthru
      _
    // Predicated region
    $region90: #{tpu_custom_call.1} parent=1 // pred_check
      _
    $region91: #{tpu_custom_call.1} parent=1 // pred_check_branch
      %7622 = sbr.rel (0) target = $region93
    $region92: #{tpu_custom_call.1} parent=1 // pred_region
      _
    $region93: #{tpu_custom_call.1} parent=1 // pred_fallthru
      _
    %7623 = vsyncpa [#allocation3], 1
    %7624 = vsyncpa [#allocation5], 1
    %7625 = vsyncpa [#allocation8], 1
    %7626 = vsyncpa [#allocation11], 1
    %7627 = vsyncpa [#allocation14], 1

</llo_original>
